<compile_context>
chip_gen: v7x
topology: tpu7x:2x2x1
jax: 0.10.0
libtpu: 0.0.40
codegen_flags: <defaults>
</compile_context>

<pallas_src>
import functools
import math

import jax
import jax.numpy as jnp
from jax import lax
from jax.experimental import pallas as pl
from jax.experimental.pallas import tpu as pltpu

BN_EPS = 1e-5
N_CHANNEL = 32   # args.nChannel
N_CONV = 3       # args.nConv -> (N_CONV - 1) middle 3x3 conv/bn blocks
KSIZE = 3
N_TAPS = KSIZE * KSIZE


# ----------------------------------------------------------------------------
# Fused Pallas kernel: whole conv/ReLU/BN stack in one call.
# ----------------------------------------------------------------------------
def _mynet_fused_kernel(x1_ref, code_ref, w1_ref, w2_ref, w3_ref,
                        b_ref, gamma_ref, beta_ref, out_ref,
                        act_ref, slab_ref, *,
                        n_mid, m_rows, n_ch, img_w, pad0):
    # x1_ref    : (M, 9*Cin)       bf16  im2col of the zero-padded input (layer 1)
    # code_ref  : (M, C)           i32   bit t set iff tap t reads inside the image
    # w1_ref    : (9*Cin, C)       bf16
    # w2_ref    : (n_mid, 9*C, C)  bf16  per-layer K-concat weights (middle layers)
    # w3_ref    : (C, C)           bf16  final 1x1 conv
    # b/gamma/beta_ref : (L, 1, C) f32   per-layer conv bias / BN gamma / BN beta
    # out_ref   : (M, C)           f32
    # act_ref   : (M + 2*pad0, C)  f32   VMEM scratch: zero halo + activations
    # slab_ref  : (M, 9*C)         bf16  VMEM scratch: K-concat tap slab

    inv_m = 1.0 / m_rows

    def bias_relu_bn(acc, layer, relu):
        y = acc + b_ref[layer]                                  # (M,C) + (1,C)
        if relu:
            y = jnp.maximum(y, 0.0)
        # BatchNorm2d, training-mode batch stats (biased variance) over all
        # N*H*W rows -- exact, since the whole M lives in this single block.
        # One-pass: sum & sum-of-squares, var = E[y^2] - mean^2 (clamped >= 0).
        s1 = jnp.sum(y, axis=0, keepdims=True)
        s2 = jnp.sum(y * y, axis=0, keepdims=True)
        mean = s1 * inv_m
        var = jnp.maximum(s2 * inv_m - mean * mean, 0.0)
        scale = gamma_ref[layer] * lax.rsqrt(var + BN_EPS)      # rsqrt -> EUP
        shift = beta_ref[layer] - mean * scale
        return y * scale + shift                                # one FMA / elem

    # Zero ONLY the halo rows; the interior is fully overwritten by layer 1.
    act_ref[0:pad0, :] = jnp.zeros((pad0, n_ch), act_ref.dtype)
    act_ref[pad0 + m_rows:, :] = jnp.zeros((pad0, n_ch), act_ref.dtype)

    # ---- layer 1: 3x3 conv as ONE (M, 9*Cin) x (9*Cin, C) bf16 matmul ------
    acc = jnp.dot(x1_ref[...], w1_ref[...], preferred_element_type=jnp.float32)
    act_ref[pl.ds(pad0, m_rows), :] = bias_relu_bn(acc, 0, relu=True)

    # ---- middle layers: one (M, 9*C) x (9*C, C) matmul per layer -----------
    # Tap (dy,dx) of output row r = (n,h,w) lives at padded row
    # pad0 + r + (dy-1)*W + (dx-1); border-code bit t zeroes out-of-image taps.
    code = code_ref[...]                                        # (M, C) i32
    for layer in range(n_mid):
        for t in range(N_TAPS):
            dy, dx = t // KSIZE - 1, t % KSIZE - 1
            off = dy * img_w + dx
            a = act_ref[pl.ds(pad0 + off, m_rows), :]           # f32 (M, C)
            if not (dy == 0 and dx == 0):                       # center tap: no mask
                a = jnp.where((code & (1 << t)) != 0, a, 0.0)
            slab_ref[:, t * n_ch:(t + 1) * n_ch] = a.astype(jnp.bfloat16)
        acc = jnp.dot(slab_ref[...], w2_ref[layer],
                      preferred_element_type=jnp.float32)
        act_ref[pl.ds(pad0, m_rows), :] = bias_relu_bn(acc, 1 + layer, relu=True)

    # ---- final layer: 1x1 conv + BN (no ReLU) ------------------------------
    a = act_ref[pl.ds(pad0, m_rows), :].astype(jnp.bfloat16)
    acc = jnp.dot(a, w3_ref[...], preferred_element_type=jnp.float32)
    out_ref[...] = bias_relu_bn(acc, 1 + n_mid, relu=False)


# ----------------------------------------------------------------------------
# Wrapper glue (plain JAX): first-layer im2col, border code, packing, pallas_call
# ----------------------------------------------------------------------------
def _im2col_first_layer(x, ksize):
    """(N,H,W,Cin) -> (N*H*W, k*k*Cin) with SAME zero padding."""
    n, h, w, c = x.shape
    pad = ksize // 2
    xpad = jnp.pad(x, ((0, 0), (pad, pad), (pad, pad), (0, 0)))
    cols = []
    for dy in range(ksize):
        for dx in range(ksize):
            cols.append(xpad[:, dy:dy + h, dx:dx + w, :].reshape(n * h * w, c))
    return jnp.concatenate(cols, axis=1)


def _border_code(n, h, w, c):
    """(N*H*W, C) int32: bit t set iff tap t=(dy*3+dx) reads inside the image."""
    hh = jnp.arange(h).reshape(1, h, 1)
    ww = jnp.arange(w).reshape(1, 1, w)
    code = jnp.zeros((1, h, w), jnp.int32)
    for t in range(N_TAPS):
        dy, dx = t // KSIZE - 1, t % KSIZE - 1
        valid = ((hh + dy >= 0) & (hh + dy < h) &
                 (ww + dx >= 0) & (ww + dx < w))
        code = code | (valid.astype(jnp.int32) << t)
    code = jnp.broadcast_to(code.reshape(1, h, w, 1), (n, h, w, c))
    return code.reshape(n * h * w, c)


def mynet_forward(params, x):
    """x: (N, H, W, Cin) NHWC -> (N, H, W, nChannel); one fused pallas_call."""
    n, h, w, cin = x.shape
    c = N_CHANNEL
    m = n * h * w
    n_mid = N_CONV - 1
    pad0 = ((w + 1 + 7) // 8) * 8          # halo rows, sublane(8)-aligned interior
    pad_rows = m + 2 * pad0

    x1 = _im2col_first_layer(x, KSIZE).astype(jnp.bfloat16)        # (M, 9*Cin)
    code = _border_code(n, h, w, c)                                 # (M, C) i32

    w1, b1, g1, be1 = params["conv1"]
    w3, b3, g3, be3 = params["conv3"]
    w1f = w1.reshape(KSIZE * KSIZE * cin, c).astype(jnp.bfloat16)   # (9*Cin, C)
    w2f = jnp.stack([p[0].reshape(N_TAPS * c, c) for p in params["conv2"]],
                    axis=0).astype(jnp.bfloat16)                    # (n_mid, 9C, C)
    w3f = w3.reshape(c, c).astype(jnp.bfloat16)                     # (C, C)

    b_all = jnp.stack([b1] + [p[1] for p in params["conv2"]] + [b3], axis=0)
    g_all = jnp.stack([g1] + [p[2] for p in params["conv2"]] + [g3], axis=0)
    be_all = jnp.stack([be1] + [p[3] for p in params["conv2"]] + [be3], axis=0)

    kernel = functools.partial(_mynet_fused_kernel, n_mid=n_mid, m_rows=m,
                               n_ch=c, img_w=w, pad0=pad0)
    out2d = pl.pallas_call(
        kernel,
        out_shape=jax.ShapeDtypeStruct((m, c), jnp.float32),
        in_specs=[
            pl.BlockSpec(x1.shape, lambda: (0, 0)),
            pl.BlockSpec(code.shape, lambda: (0, 0)),
            pl.BlockSpec(w1f.shape, lambda: (0, 0)),
            pl.BlockSpec(w2f.shape, lambda: (0, 0, 0)),
            pl.BlockSpec(w3f.shape, lambda: (0, 0)),
            pl.BlockSpec(b_all.shape, lambda: (0, 0, 0)),
            pl.BlockSpec(g_all.shape, lambda: (0, 0, 0)),
            pl.BlockSpec(be_all.shape, lambda: (0, 0, 0)),
        ],
        out_specs=pl.BlockSpec((m, c), lambda: (0, 0)),
        scratch_shapes=[pltpu.VMEM((pad_rows, c), jnp.float32),      # padded activations
                        pltpu.VMEM((m, N_TAPS * c), jnp.bfloat16)],  # K-concat tap slab
    )(x1, code, w1f, w2f, w3f, b_all, g_all, be_all)
    return out2d.reshape(n, h, w, c)


# ----------------------------------------------------------------------------
# Parameter init (deterministic, PyTorch-default-like fan_in uniform for conv,
# gamma=1 / beta=0 for BatchNorm)
# ----------------------------------------------------------------------------
def init_params(key, input_dim, n_channel, n_conv):
    def conv_init(k, ksize, cin, cout):
        fan_in = ksize * ksize * cin
        bound = 1.0 / math.sqrt(fan_in)
        kw, kb = jax.random.split(k)
        w = jax.random.uniform(kw, (ksize * ksize, cin, cout), jnp.float32,
                               -bound, bound)
        b = jax.random.uniform(kb, (1, cout), jnp.float32, -bound, bound)
        gamma = jnp.ones((1, cout), jnp.float32)
        beta = jnp.zeros((1, cout), jnp.float32)
        return (w, b, gamma, beta)

    keys = jax.random.split(key, n_conv + 1)
    return {
        "conv1": conv_init(keys[0], 3, input_dim, n_channel),
        "conv2": [conv_init(keys[i + 1], 3, n_channel, n_channel)
                  for i in range(n_conv - 1)],
        "conv3": conv_init(keys[n_conv], 1, n_channel, n_channel),
    }


# ----------------------------------------------------------------------------
# Pure-JAX reference with the SAME numerics (bf16 conv operands, f32 accum/BN)
# ----------------------------------------------------------------------------
def mynet_reference(params, x):
    def layer(x, p, ksize, relu):
        w, b, gamma, beta = p
        cin, cout = w.shape[1], w.shape[2]
        wk = w.reshape(ksize, ksize, cin, cout).astype(jnp.bfloat16)
        y = lax.conv_general_dilated(
            x.astype(jnp.bfloat16), wk, window_strides=(1, 1), padding="SAME",
            dimension_numbers=("NHWC", "HWIO", "NHWC"),
            preferred_element_type=jnp.float32)
        y = y + b.reshape(1, 1, 1, -1)
        if relu:
            y = jnp.maximum(y, 0.0)
        mean = jnp.mean(y, axis=(0, 1, 2), keepdims=True)
        var = jnp.mean(jnp.square(y - mean), axis=(0, 1, 2), keepdims=True)
        return ((y - mean) * lax.rsqrt(var + BN_EPS)
                * gamma.reshape(1, 1, 1, -1) + beta.reshape(1, 1, 1, -1))

    x = layer(x, params["conv1"], 3, True)
    for p in params["conv2"]:
        x = layer(x, p, 3, True)
    x = layer(x, params["conv3"], 1, False)
    return x


if __name__ == "__main__":
    key = jax.random.PRNGKey(0)
    kx, kp = jax.random.split(key)

    # PyTorch-convention input (NCHW), small shapes.
    N, CIN, H, W = 2, 4, 16, 16
    x_nchw = jax.random.normal(kx, (N, CIN, H, W), jnp.float32)
    x_nhwc = jnp.transpose(x_nchw, (0, 2, 3, 1))   # NCHW -> NHWC for the kernel

    params = init_params(kp, CIN, N_CHANNEL, N_CONV)

    out = mynet_forward(params, x_nhwc)
    out = jax.block_until_ready(out)

    ref = mynet_reference(params, x_nhwc)
    assert out.shape == (N, H, W, N_CHANNEL)
    # Tolerance accounts for order-sensitive bf16 rounding of layer-boundary
    # activations and the one-pass BN variance (kernel) vs two-pass (reference);
    # real bugs show up as O(0.1..1) errors after BN.
    err = jnp.max(jnp.abs(out - ref))
    assert jnp.allclose(out, ref, atol=2e-2, rtol=2e-2), \
        f"Pallas kernel mismatch, max abs err={err}"

    print("KERNEL_OK")
</pallas_src>

<mosaic_0001>
module attributes {stable_mosaic.version = 11 : i64} {
  func.func @_mynet_fused_kernel(%arg0: memref<512x36xbf16, #tpu.memory_space<vmem>>, %arg1: memref<512x32xi32, #tpu.memory_space<vmem>>, %arg2: memref<36x32xbf16, #tpu.memory_space<vmem>>, %arg3: memref<2x288x32xbf16, #tpu.memory_space<vmem>>, %arg4: memref<32x32xbf16, #tpu.memory_space<vmem>>, %arg5: memref<4x1x32xf32, #tpu.memory_space<vmem>>, %arg6: memref<4x1x32xf32, #tpu.memory_space<vmem>>, %arg7: memref<4x1x32xf32, #tpu.memory_space<vmem>>, %arg8: memref<512x32xf32, #tpu.memory_space<vmem>>, %arg9: memref<560x32xf32, #tpu.memory_space<vmem>>, %arg10: memref<512x288xbf16, #tpu.memory_space<vmem>>) attributes {dimension_semantics = [], scalar_prefetch = 0 : i64, scratch_operands = 2 : i64, tpu.core_type = #tpu.core_type<tc>} {
    %cst = arith.constant 0.000000e+00 : f32
    %0 = vector.broadcast %cst : f32 to vector<24x32xf32>
    %c0 = arith.constant 0 : index
    %c0_0 = arith.constant 0 : index
    %1 = vector.load %arg9[%c0, %c0_0] : memref<560x32xf32, #tpu.memory_space<vmem>>, vector<24x32xf32>
    tpu.vector_store %arg9[%c0, %c0_0], %0 {strides = array<i32>} : memref<560x32xf32, #tpu.memory_space<vmem>>, vector<24x32xf32>,
    %cst_1 = arith.constant 0.000000e+00 : f32
    %2 = vector.broadcast %cst_1 : f32 to vector<24x32xf32>
    %c536 = arith.constant 536 : index
    %c0_2 = arith.constant 0 : index
    %3 = vector.load %arg9[%c536, %c0_2] : memref<560x32xf32, #tpu.memory_space<vmem>>, vector<24x32xf32>
    tpu.vector_store %arg9[%c536, %c0_2], %2 {strides = array<i32>} : memref<560x32xf32, #tpu.memory_space<vmem>>, vector<24x32xf32>,
    %c0_3 = arith.constant 0 : index
    %c0_4 = arith.constant 0 : index
    %4 = vector.load %arg0[%c0_3, %c0_4] : memref<512x36xbf16, #tpu.memory_space<vmem>>, vector<512x36xbf16>
    %c0_5 = arith.constant 0 : index
    %c0_6 = arith.constant 0 : index
    %5 = vector.load %arg2[%c0_5, %c0_6] : memref<36x32xbf16, #tpu.memory_space<vmem>>, vector<36x32xbf16>
    %cst_7 = arith.constant dense<0.000000e+00> : vector<512x32xf32>
    %6 = tpu.matmul %4, %5, %cst_7 {dimension_numbers = #tpu.dot_dimension_numbers<[1], [0], [0], [1], [0, 0, 1, 1], [], []>} : vector<512x36xbf16>, vector<36x32xbf16>, vector<512x32xf32> -> vector<512x32xf32>
    %c0_8 = arith.constant 0 : index
    %c0_9 = arith.constant 0 : index
    %c0_10 = arith.constant 0 : index
    %7 = vector.load %arg5[%c0_8, %c0_9, %c0_10] : memref<4x1x32xf32, #tpu.memory_space<vmem>>, vector<1x1x32xf32>
    %8 = vector.shape_cast %7 : vector<1x1x32xf32> to vector<1x32xf32>
    %9 = vector.broadcast %8 : vector<1x32xf32> to vector<512x32xf32>
    %10 = arith.addf %6, %9 : vector<512x32xf32>
    %cst_11 = arith.constant 0.000000e+00 : f32
    %11 = vector.broadcast %cst_11 : f32 to vector<512x32xf32>
    %12 = arith.maximumf %10, %11 : vector<512x32xf32>
    %cst_12 = arith.constant dense<0.000000e+00> : vector<32xf32>
    %13 = vector.multi_reduction <add>, %12, %cst_12 [0] : vector<512x32xf32> to vector<32xf32>
    %14 = vector.shape_cast %13 : vector<32xf32> to vector<1x32xf32>
    %15 = arith.mulf %12, %12 : vector<512x32xf32>
    %cst_13 = arith.constant dense<0.000000e+00> : vector<32xf32>
    %16 = vector.multi_reduction <add>, %15, %cst_13 [0] : vector<512x32xf32> to vector<32xf32>
    %17 = vector.shape_cast %16 : vector<32xf32> to vector<1x32xf32>
    %cst_14 = arith.constant 0.001953125 : f32
    %18 = vector.broadcast %cst_14 : f32 to vector<1x32xf32>
    %19 = arith.mulf %14, %18 : vector<1x32xf32>
    %cst_15 = arith.constant 0.001953125 : f32
    %20 = vector.broadcast %cst_15 : f32 to vector<1x32xf32>
    %21 = arith.mulf %17, %20 : vector<1x32xf32>
    %22 = arith.mulf %19, %19 : vector<1x32xf32>
    %23 = arith.subf %21, %22 : vector<1x32xf32>
    %cst_16 = arith.constant 0.000000e+00 : f32
    %24 = vector.broadcast %cst_16 : f32 to vector<1x32xf32>
    %25 = arith.maximumf %23, %24 : vector<1x32xf32>
    %c0_17 = arith.constant 0 : index
    %c0_18 = arith.constant 0 : index
    %c0_19 = arith.constant 0 : index
    %26 = vector.load %arg6[%c0_17, %c0_18, %c0_19] : memref<4x1x32xf32, #tpu.memory_space<vmem>>, vector<1x1x32xf32>
    %27 = vector.shape_cast %26 : vector<1x1x32xf32> to vector<1x32xf32>
    %cst_20 = arith.constant 9.99999974E-6 : f32
    %28 = vector.broadcast %cst_20 : f32 to vector<1x32xf32>
    %29 = arith.addf %25, %28 : vector<1x32xf32>
    %30 = math.rsqrt %29 : vector<1x32xf32>
    %31 = arith.mulf %27, %30 : vector<1x32xf32>
    %c0_21 = arith.constant 0 : index
    %c0_22 = arith.constant 0 : index
    %c0_23 = arith.constant 0 : index
    %32 = vector.load %arg7[%c0_21, %c0_22, %c0_23] : memref<4x1x32xf32, #tpu.memory_space<vmem>>, vector<1x1x32xf32>
    %33 = vector.shape_cast %32 : vector<1x1x32xf32> to vector<1x32xf32>
    %34 = arith.mulf %19, %31 : vector<1x32xf32>
    %35 = arith.subf %33, %34 : vector<1x32xf32>
    %36 = vector.broadcast %31 : vector<1x32xf32> to vector<512x32xf32>
    %37 = arith.mulf %12, %36 : vector<512x32xf32>
    %38 = vector.broadcast %35 : vector<1x32xf32> to vector<512x32xf32>
    %39 = arith.addf %37, %38 : vector<512x32xf32>
    %c24 = arith.constant 24 : index
    %c0_24 = arith.constant 0 : index
    %40 = vector.load %arg9[%c24, %c0_24] : memref<560x32xf32, #tpu.memory_space<vmem>>, vector<512x32xf32>
    tpu.vector_store %arg9[%c24, %c0_24], %39 {strides = array<i32>} : memref<560x32xf32, #tpu.memory_space<vmem>>, vector<512x32xf32>,
    %c0_25 = arith.constant 0 : index
    %c0_26 = arith.constant 0 : index
    %41 = vector.load %arg1[%c0_25, %c0_26] : memref<512x32xi32, #tpu.memory_space<vmem>>, vector<512x32xi32>
    %c7 = arith.constant 7 : index
    %c0_27 = arith.constant 0 : index
    %42 = vector.load %arg9[%c7, %c0_27] : memref<560x32xf32, #tpu.memory_space<vmem>>, vector<512x32xf32>
    %c1_i32 = arith.constant 1 : i32
    %43 = vector.broadcast %c1_i32 : i32 to vector<512x32xi32>
    %44 = arith.andi %41, %43 : vector<512x32xi32>
    %c0_i32 = arith.constant 0 : i32
    %45 = vector.broadcast %c0_i32 : i32 to vector<512x32xi32>
    %46 = arith.cmpi ne, %44, %45 : vector<512x32xi32>
    %cst_28 = arith.constant 0.000000e+00 : f32
    %47 = vector.broadcast %cst_28 : f32 to vector<512x32xf32>
    %48 = arith.select %46, %42, %47 : vector<512x32xi1>, vector<512x32xf32>
    %49 = arith.truncf %48 : vector<512x32xf32> to vector<512x32xbf16>
    %c0_29 = arith.constant 0 : index
    %c0_30 = arith.constant 0 : index
    %50 = vector.load %arg10[%c0_29, %c0_30] : memref<512x288xbf16, #tpu.memory_space<vmem>>, vector<512x32xbf16>
    tpu.vector_store %arg10[%c0_29, %c0_30], %49 {strides = array<i32>} : memref<512x288xbf16, #tpu.memory_space<vmem>>, vector<512x32xbf16>,
    %c8 = arith.constant 8 : index
    %c0_31 = arith.constant 0 : index
    %51 = vector.load %arg9[%c8, %c0_31] : memref<560x32xf32, #tpu.memory_space<vmem>>, vector<512x32xf32>
    %c2_i32 = arith.constant 2 : i32
    %52 = vector.broadcast %c2_i32 : i32 to vector<512x32xi32>
    %53 = arith.andi %41, %52 : vector<512x32xi32>
    %c0_i32_32 = arith.constant 0 : i32
    %54 = vector.broadcast %c0_i32_32 : i32 to vector<512x32xi32>
    %55 = arith.cmpi ne, %53, %54 : vector<512x32xi32>
    %cst_33 = arith.constant 0.000000e+00 : f32
    %56 = vector.broadcast %cst_33 : f32 to vector<512x32xf32>
    %57 = arith.select %55, %51, %56 : vector<512x32xi1>, vector<512x32xf32>
    %58 = arith.truncf %57 : vector<512x32xf32> to vector<512x32xbf16>
    %c0_34 = arith.constant 0 : index
    %c32 = arith.constant 32 : index
    %59 = vector.load %arg10[%c0_34, %c32] : memref<512x288xbf16, #tpu.memory_space<vmem>>, vector<512x32xbf16>
    tpu.vector_store %arg10[%c0_34, %c32], %58 {strides = array<i32>} : memref<512x288xbf16, #tpu.memory_space<vmem>>, vector<512x32xbf16>,
    %c9 = arith.constant 9 : index
    %c0_35 = arith.constant 0 : index
    %60 = vector.load %arg9[%c9, %c0_35] : memref<560x32xf32, #tpu.memory_space<vmem>>, vector<512x32xf32>
    %c4_i32 = arith.constant 4 : i32
    %61 = vector.broadcast %c4_i32 : i32 to vector<512x32xi32>
    %62 = arith.andi %41, %61 : vector<512x32xi32>
    %c0_i32_36 = arith.constant 0 : i32
    %63 = vector.broadcast %c0_i32_36 : i32 to vector<512x32xi32>
    %64 = arith.cmpi ne, %62, %63 : vector<512x32xi32>
    %cst_37 = arith.constant 0.000000e+00 : f32
    %65 = vector.broadcast %cst_37 : f32 to vector<512x32xf32>
    %66 = arith.select %64, %60, %65 : vector<512x32xi1>, vector<512x32xf32>
    %67 = arith.truncf %66 : vector<512x32xf32> to vector<512x32xbf16>
    %c0_38 = arith.constant 0 : index
    %c64 = arith.constant 64 : index
    %68 = vector.load %arg10[%c0_38, %c64] : memref<512x288xbf16, #tpu.memory_space<vmem>>, vector<512x32xbf16>
    tpu.vector_store %arg10[%c0_38, %c64], %67 {strides = array<i32>} : memref<512x288xbf16, #tpu.memory_space<vmem>>, vector<512x32xbf16>,
    %c23 = arith.constant 23 : index
    %c0_39 = arith.constant 0 : index
    %69 = vector.load %arg9[%c23, %c0_39] : memref<560x32xf32, #tpu.memory_space<vmem>>, vector<512x32xf32>
    %c8_i32 = arith.constant 8 : i32
    %70 = vector.broadcast %c8_i32 : i32 to vector<512x32xi32>
    %71 = arith.andi %41, %70 : vector<512x32xi32>
    %c0_i32_40 = arith.constant 0 : i32
    %72 = vector.broadcast %c0_i32_40 : i32 to vector<512x32xi32>
    %73 = arith.cmpi ne, %71, %72 : vector<512x32xi32>
    %cst_41 = arith.constant 0.000000e+00 : f32
    %74 = vector.broadcast %cst_41 : f32 to vector<512x32xf32>
    %75 = arith.select %73, %69, %74 : vector<512x32xi1>, vector<512x32xf32>
    %76 = arith.truncf %75 : vector<512x32xf32> to vector<512x32xbf16>
    %c0_42 = arith.constant 0 : index
    %c96 = arith.constant 96 : index
    %77 = vector.load %arg10[%c0_42, %c96] : memref<512x288xbf16, #tpu.memory_space<vmem>>, vector<512x32xbf16>
    tpu.vector_store %arg10[%c0_42, %c96], %76 {strides = array<i32>} : memref<512x288xbf16, #tpu.memory_space<vmem>>, vector<512x32xbf16>,
    %c24_43 = arith.constant 24 : index
    %c0_44 = arith.constant 0 : index
    %78 = vector.load %arg9[%c24_43, %c0_44] : memref<560x32xf32, #tpu.memory_space<vmem>>, vector<512x32xf32>
    %79 = arith.truncf %78 : vector<512x32xf32> to vector<512x32xbf16>
    %c0_45 = arith.constant 0 : index
    %c128 = arith.constant 128 : index
    %80 = vector.load %arg10[%c0_45, %c128] : memref<512x288xbf16, #tpu.memory_space<vmem>>, vector<512x32xbf16>
    tpu.vector_store %arg10[%c0_45, %c128], %79 {strides = array<i32>} : memref<512x288xbf16, #tpu.memory_space<vmem>>, vector<512x32xbf16>,
    %c25 = arith.constant 25 : index
    %c0_46 = arith.constant 0 : index
    %81 = vector.load %arg9[%c25, %c0_46] : memref<560x32xf32, #tpu.memory_space<vmem>>, vector<512x32xf32>
    %c32_i32 = arith.constant 32 : i32
    %82 = vector.broadcast %c32_i32 : i32 to vector<512x32xi32>
    %83 = arith.andi %41, %82 : vector<512x32xi32>
    %c0_i32_47 = arith.constant 0 : i32
    %84 = vector.broadcast %c0_i32_47 : i32 to vector<512x32xi32>
    %85 = arith.cmpi ne, %83, %84 : vector<512x32xi32>
    %cst_48 = arith.constant 0.000000e+00 : f32
    %86 = vector.broadcast %cst_48 : f32 to vector<512x32xf32>
    %87 = arith.select %85, %81, %86 : vector<512x32xi1>, vector<512x32xf32>
    %88 = arith.truncf %87 : vector<512x32xf32> to vector<512x32xbf16>
    %c0_49 = arith.constant 0 : index
    %c160 = arith.constant 160 : index
    %89 = vector.load %arg10[%c0_49, %c160] : memref<512x288xbf16, #tpu.memory_space<vmem>>, vector<512x32xbf16>
    tpu.vector_store %arg10[%c0_49, %c160], %88 {strides = array<i32>} : memref<512x288xbf16, #tpu.memory_space<vmem>>, vector<512x32xbf16>,
    %c39 = arith.constant 39 : index
    %c0_50 = arith.constant 0 : index
    %90 = vector.load %arg9[%c39, %c0_50] : memref<560x32xf32, #tpu.memory_space<vmem>>, vector<512x32xf32>
    %c64_i32 = arith.constant 64 : i32
    %91 = vector.broadcast %c64_i32 : i32 to vector<512x32xi32>
    %92 = arith.andi %41, %91 : vector<512x32xi32>
    %c0_i32_51 = arith.constant 0 : i32
    %93 = vector.broadcast %c0_i32_51 : i32 to vector<512x32xi32>
    %94 = arith.cmpi ne, %92, %93 : vector<512x32xi32>
    %cst_52 = arith.constant 0.000000e+00 : f32
    %95 = vector.broadcast %cst_52 : f32 to vector<512x32xf32>
    %96 = arith.select %94, %90, %95 : vector<512x32xi1>, vector<512x32xf32>
    %97 = arith.truncf %96 : vector<512x32xf32> to vector<512x32xbf16>
    %c0_53 = arith.constant 0 : index
    %c192 = arith.constant 192 : index
    %98 = vector.load %arg10[%c0_53, %c192] : memref<512x288xbf16, #tpu.memory_space<vmem>>, vector<512x32xbf16>
    tpu.vector_store %arg10[%c0_53, %c192], %97 {strides = array<i32>} : memref<512x288xbf16, #tpu.memory_space<vmem>>, vector<512x32xbf16>,
    %c40 = arith.constant 40 : index
    %c0_54 = arith.constant 0 : index
    %99 = vector.load %arg9[%c40, %c0_54] : memref<560x32xf32, #tpu.memory_space<vmem>>, vector<512x32xf32>
    %c128_i32 = arith.constant 128 : i32
    %100 = vector.broadcast %c128_i32 : i32 to vector<512x32xi32>
    %101 = arith.andi %41, %100 : vector<512x32xi32>
    %c0_i32_55 = arith.constant 0 : i32
    %102 = vector.broadcast %c0_i32_55 : i32 to vector<512x32xi32>
    %103 = arith.cmpi ne, %101, %102 : vector<512x32xi32>
    %cst_56 = arith.constant 0.000000e+00 : f32
    %104 = vector.broadcast %cst_56 : f32 to vector<512x32xf32>
    %105 = arith.select %103, %99, %104 : vector<512x32xi1>, vector<512x32xf32>
    %106 = arith.truncf %105 : vector<512x32xf32> to vector<512x32xbf16>
    %c0_57 = arith.constant 0 : index
    %c224 = arith.constant 224 : index
    %107 = vector.load %arg10[%c0_57, %c224] : memref<512x288xbf16, #tpu.memory_space<vmem>>, vector<512x32xbf16>
    tpu.vector_store %arg10[%c0_57, %c224], %106 {strides = array<i32>} : memref<512x288xbf16, #tpu.memory_space<vmem>>, vector<512x32xbf16>,
    %c41 = arith.constant 41 : index
    %c0_58 = arith.constant 0 : index
    %108 = vector.load %arg9[%c41, %c0_58] : memref<560x32xf32, #tpu.memory_space<vmem>>, vector<512x32xf32>
    %c256_i32 = arith.constant 256 : i32
    %109 = vector.broadcast %c256_i32 : i32 to vector<512x32xi32>
    %110 = arith.andi %41, %109 : vector<512x32xi32>
    %c0_i32_59 = arith.constant 0 : i32
    %111 = vector.broadcast %c0_i32_59 : i32 to vector<512x32xi32>
    %112 = arith.cmpi ne, %110, %111 : vector<512x32xi32>
    %cst_60 = arith.constant 0.000000e+00 : f32
    %113 = vector.broadcast %cst_60 : f32 to vector<512x32xf32>
    %114 = arith.select %112, %108, %113 : vector<512x32xi1>, vector<512x32xf32>
    %115 = arith.truncf %114 : vector<512x32xf32> to vector<512x32xbf16>
    %c0_61 = arith.constant 0 : index
    %c256 = arith.constant 256 : index
    %116 = vector.load %arg10[%c0_61, %c256] : memref<512x288xbf16, #tpu.memory_space<vmem>>, vector<512x32xbf16>
    tpu.vector_store %arg10[%c0_61, %c256], %115 {strides = array<i32>} : memref<512x288xbf16, #tpu.memory_space<vmem>>, vector<512x32xbf16>,
    %c0_62 = arith.constant 0 : index
    %c0_63 = arith.constant 0 : index
    %117 = vector.load %arg10[%c0_62, %c0_63] : memref<512x288xbf16, #tpu.memory_space<vmem>>, vector<512x288xbf16>
    %c0_64 = arith.constant 0 : index
    %c0_65 = arith.constant 0 : index
    %c0_66 = arith.constant 0 : index
    %118 = vector.load %arg3[%c0_64, %c0_65, %c0_66] : memref<2x288x32xbf16, #tpu.memory_space<vmem>>, vector<1x288x32xbf16>
    %119 = vector.shape_cast %118 : vector<1x288x32xbf16> to vector<288x32xbf16>
    %cst_67 = arith.constant dense<0.000000e+00> : vector<512x32xf32>
    %120 = tpu.matmul %117, %119, %cst_67 {dimension_numbers = #tpu.dot_dimension_numbers<[1], [0], [0], [1], [0, 0, 1, 1], [], []>} : vector<512x288xbf16>, vector<288x32xbf16>, vector<512x32xf32> -> vector<512x32xf32>
    %c1 = arith.constant 1 : index
    %c0_68 = arith.constant 0 : index
    %c0_69 = arith.constant 0 : index
    %121 = vector.load %arg5[%c1, %c0_68, %c0_69] : memref<4x1x32xf32, #tpu.memory_space<vmem>>, vector<1x1x32xf32>
    %122 = vector.shape_cast %121 : vector<1x1x32xf32> to vector<1x32xf32>
    %123 = vector.broadcast %122 : vector<1x32xf32> to vector<512x32xf32>
    %124 = arith.addf %120, %123 : vector<512x32xf32>
    %cst_70 = arith.constant 0.000000e+00 : f32
    %125 = vector.broadcast %cst_70 : f32 to vector<512x32xf32>
    %126 = arith.maximumf %124, %125 : vector<512x32xf32>
    %cst_71 = arith.constant dense<0.000000e+00> : vector<32xf32>
    %127 = vector.multi_reduction <add>, %126, %cst_71 [0] : vector<512x32xf32> to vector<32xf32>
    %128 = vector.shape_cast %127 : vector<32xf32> to vector<1x32xf32>
    %129 = arith.mulf %126, %126 : vector<512x32xf32>
    %cst_72 = arith.constant dense<0.000000e+00> : vector<32xf32>
    %130 = vector.multi_reduction <add>, %129, %cst_72 [0] : vector<512x32xf32> to vector<32xf32>
    %131 = vector.shape_cast %130 : vector<32xf32> to vector<1x32xf32>
    %cst_73 = arith.constant 0.001953125 : f32
    %132 = vector.broadcast %cst_73 : f32 to vector<1x32xf32>
    %133 = arith.mulf %128, %132 : vector<1x32xf32>
    %cst_74 = arith.constant 0.001953125 : f32
    %134 = vector.broadcast %cst_74 : f32 to vector<1x32xf32>
    %135 = arith.mulf %131, %134 : vector<1x32xf32>
    %136 = arith.mulf %133, %133 : vector<1x32xf32>
    %137 = arith.subf %135, %136 : vector<1x32xf32>
    %cst_75 = arith.constant 0.000000e+00 : f32
    %138 = vector.broadcast %cst_75 : f32 to vector<1x32xf32>
    %139 = arith.maximumf %137, %138 : vector<1x32xf32>
    %c1_76 = arith.constant 1 : index
    %c0_77 = arith.constant 0 : index
    %c0_78 = arith.constant 0 : index
    %140 = vector.load %arg6[%c1_76, %c0_77, %c0_78] : memref<4x1x32xf32, #tpu.memory_space<vmem>>, vector<1x1x32xf32>
    %141 = vector.shape_cast %140 : vector<1x1x32xf32> to vector<1x32xf32>
    %cst_79 = arith.constant 9.99999974E-6 : f32
    %142 = vector.broadcast %cst_79 : f32 to vector<1x32xf32>
    %143 = arith.addf %139, %142 : vector<1x32xf32>
    %144 = math.rsqrt %143 : vector<1x32xf32>
    %145 = arith.mulf %141, %144 : vector<1x32xf32>
    %c1_80 = arith.constant 1 : index
    %c0_81 = arith.constant 0 : index
    %c0_82 = arith.constant 0 : index
    %146 = vector.load %arg7[%c1_80, %c0_81, %c0_82] : memref<4x1x32xf32, #tpu.memory_space<vmem>>, vector<1x1x32xf32>
    %147 = vector.shape_cast %146 : vector<1x1x32xf32> to vector<1x32xf32>
    %148 = arith.mulf %133, %145 : vector<1x32xf32>
    %149 = arith.subf %147, %148 : vector<1x32xf32>
    %150 = vector.broadcast %145 : vector<1x32xf32> to vector<512x32xf32>
    %151 = arith.mulf %126, %150 : vector<512x32xf32>
    %152 = vector.broadcast %149 : vector<1x32xf32> to vector<512x32xf32>
    %153 = arith.addf %151, %152 : vector<512x32xf32>
    %c24_83 = arith.constant 24 : index
    %c0_84 = arith.constant 0 : index
    %154 = vector.load %arg9[%c24_83, %c0_84] : memref<560x32xf32, #tpu.memory_space<vmem>>, vector<512x32xf32>
    tpu.vector_store %arg9[%c24_83, %c0_84], %153 {strides = array<i32>} : memref<560x32xf32, #tpu.memory_space<vmem>>, vector<512x32xf32>,
    %c7_85 = arith.constant 7 : index
    %c0_86 = arith.constant 0 : index
    %155 = vector.load %arg9[%c7_85, %c0_86] : memref<560x32xf32, #tpu.memory_space<vmem>>, vector<512x32xf32>
    %c1_i32_87 = arith.constant 1 : i32
    %156 = vector.broadcast %c1_i32_87 : i32 to vector<512x32xi32>
    %157 = arith.andi %41, %156 : vector<512x32xi32>
    %c0_i32_88 = arith.constant 0 : i32
    %158 = vector.broadcast %c0_i32_88 : i32 to vector<512x32xi32>
    %159 = arith.cmpi ne, %157, %158 : vector<512x32xi32>
    %cst_89 = arith.constant 0.000000e+00 : f32
    %160 = vector.broadcast %cst_89 : f32 to vector<512x32xf32>
    %161 = arith.select %159, %155, %160 : vector<512x32xi1>, vector<512x32xf32>
    %162 = arith.truncf %161 : vector<512x32xf32> to vector<512x32xbf16>
    %c0_90 = arith.constant 0 : index
    %c0_91 = arith.constant 0 : index
    %163 = vector.load %arg10[%c0_90, %c0_91] : memref<512x288xbf16, #tpu.memory_space<vmem>>, vector<512x32xbf16>
    tpu.vector_store %arg10[%c0_90, %c0_91], %162 {strides = array<i32>} : memref<512x288xbf16, #tpu.memory_space<vmem>>, vector<512x32xbf16>,
    %c8_92 = arith.constant 8 : index
    %c0_93 = arith.constant 0 : index
    %164 = vector.load %arg9[%c8_92, %c0_93] : memref<560x32xf32, #tpu.memory_space<vmem>>, vector<512x32xf32>
    %c2_i32_94 = arith.constant 2 : i32
    %165 = vector.broadcast %c2_i32_94 : i32 to vector<512x32xi32>
    %166 = arith.andi %41, %165 : vector<512x32xi32>
    %c0_i32_95 = arith.constant 0 : i32
    %167 = vector.broadcast %c0_i32_95 : i32 to vector<512x32xi32>
    %168 = arith.cmpi ne, %166, %167 : vector<512x32xi32>
    %cst_96 = arith.constant 0.000000e+00 : f32
    %169 = vector.broadcast %cst_96 : f32 to vector<512x32xf32>
    %170 = arith.select %168, %164, %169 : vector<512x32xi1>, vector<512x32xf32>
    %171 = arith.truncf %170 : vector<512x32xf32> to vector<512x32xbf16>
    %c0_97 = arith.constant 0 : index
    %c32_98 = arith.constant 32 : index
    %172 = vector.load %arg10[%c0_97, %c32_98] : memref<512x288xbf16, #tpu.memory_space<vmem>>, vector<512x32xbf16>
    tpu.vector_store %arg10[%c0_97, %c32_98], %171 {strides = array<i32>} : memref<512x288xbf16, #tpu.memory_space<vmem>>, vector<512x32xbf16>,
    %c9_99 = arith.constant 9 : index
    %c0_100 = arith.constant 0 : index
    %173 = vector.load %arg9[%c9_99, %c0_100] : memref<560x32xf32, #tpu.memory_space<vmem>>, vector<512x32xf32>
    %c4_i32_101 = arith.constant 4 : i32
    %174 = vector.broadcast %c4_i32_101 : i32 to vector<512x32xi32>
    %175 = arith.andi %41, %174 : vector<512x32xi32>
    %c0_i32_102 = arith.constant 0 : i32
    %176 = vector.broadcast %c0_i32_102 : i32 to vector<512x32xi32>
    %177 = arith.cmpi ne, %175, %176 : vector<512x32xi32>
    %cst_103 = arith.constant 0.000000e+00 : f32
    %178 = vector.broadcast %cst_103 : f32 to vector<512x32xf32>
    %179 = arith.select %177, %173, %178 : vector<512x32xi1>, vector<512x32xf32>
    %180 = arith.truncf %179 : vector<512x32xf32> to vector<512x32xbf16>
    %c0_104 = arith.constant 0 : index
    %c64_105 = arith.constant 64 : index
    %181 = vector.load %arg10[%c0_104, %c64_105] : memref<512x288xbf16, #tpu.memory_space<vmem>>, vector<512x32xbf16>
    tpu.vector_store %arg10[%c0_104, %c64_105], %180 {strides = array<i32>} : memref<512x288xbf16, #tpu.memory_space<vmem>>, vector<512x32xbf16>,
    %c23_106 = arith.constant 23 : index
    %c0_107 = arith.constant 0 : index
    %182 = vector.load %arg9[%c23_106, %c0_107] : memref<560x32xf32, #tpu.memory_space<vmem>>, vector<512x32xf32>
    %c8_i32_108 = arith.constant 8 : i32
    %183 = vector.broadcast %c8_i32_108 : i32 to vector<512x32xi32>
    %184 = arith.andi %41, %183 : vector<512x32xi32>
    %c0_i32_109 = arith.constant 0 : i32
    %185 = vector.broadcast %c0_i32_109 : i32 to vector<512x32xi32>
    %186 = arith.cmpi ne, %184, %185 : vector<512x32xi32>
    %cst_110 = arith.constant 0.000000e+00 : f32
    %187 = vector.broadcast %cst_110 : f32 to vector<512x32xf32>
    %188 = arith.select %186, %182, %187 : vector<512x32xi1>, vector<512x32xf32>
    %189 = arith.truncf %188 : vector<512x32xf32> to vector<512x32xbf16>
    %c0_111 = arith.constant 0 : index
    %c96_112 = arith.constant 96 : index
    %190 = vector.load %arg10[%c0_111, %c96_112] : memref<512x288xbf16, #tpu.memory_space<vmem>>, vector<512x32xbf16>
    tpu.vector_store %arg10[%c0_111, %c96_112], %189 {strides = array<i32>} : memref<512x288xbf16, #tpu.memory_space<vmem>>, vector<512x32xbf16>,
    %c24_113 = arith.constant 24 : index
    %c0_114 = arith.constant 0 : index
    %191 = vector.load %arg9[%c24_113, %c0_114] : memref<560x32xf32, #tpu.memory_space<vmem>>, vector<512x32xf32>
    %192 = arith.truncf %191 : vector<512x32xf32> to vector<512x32xbf16>
    %c0_115 = arith.constant 0 : index
    %c128_116 = arith.constant 128 : index
    %193 = vector.load %arg10[%c0_115, %c128_116] : memref<512x288xbf16, #tpu.memory_space<vmem>>, vector<512x32xbf16>
    tpu.vector_store %arg10[%c0_115, %c128_116], %192 {strides = array<i32>} : memref<512x288xbf16, #tpu.memory_space<vmem>>, vector<512x32xbf16>,
    %c25_117 = arith.constant 25 : index
    %c0_118 = arith.constant 0 : index
    %194 = vector.load %arg9[%c25_117, %c0_118] : memref<560x32xf32, #tpu.memory_space<vmem>>, vector<512x32xf32>
    %c32_i32_119 = arith.constant 32 : i32
    %195 = vector.broadcast %c32_i32_119 : i32 to vector<512x32xi32>
    %196 = arith.andi %41, %195 : vector<512x32xi32>
    %c0_i32_120 = arith.constant 0 : i32
    %197 = vector.broadcast %c0_i32_120 : i32 to vector<512x32xi32>
    %198 = arith.cmpi ne, %196, %197 : vector<512x32xi32>
    %cst_121 = arith.constant 0.000000e+00 : f32
    %199 = vector.broadcast %cst_121 : f32 to vector<512x32xf32>
    %200 = arith.select %198, %194, %199 : vector<512x32xi1>, vector<512x32xf32>
    %201 = arith.truncf %200 : vector<512x32xf32> to vector<512x32xbf16>
    %c0_122 = arith.constant 0 : index
    %c160_123 = arith.constant 160 : index
    %202 = vector.load %arg10[%c0_122, %c160_123] : memref<512x288xbf16, #tpu.memory_space<vmem>>, vector<512x32xbf16>
    tpu.vector_store %arg10[%c0_122, %c160_123], %201 {strides = array<i32>} : memref<512x288xbf16, #tpu.memory_space<vmem>>, vector<512x32xbf16>,
    %c39_124 = arith.constant 39 : index
    %c0_125 = arith.constant 0 : index
    %203 = vector.load %arg9[%c39_124, %c0_125] : memref<560x32xf32, #tpu.memory_space<vmem>>, vector<512x32xf32>
    %c64_i32_126 = arith.constant 64 : i32
    %204 = vector.broadcast %c64_i32_126 : i32 to vector<512x32xi32>
    %205 = arith.andi %41, %204 : vector<512x32xi32>
    %c0_i32_127 = arith.constant 0 : i32
    %206 = vector.broadcast %c0_i32_127 : i32 to vector<512x32xi32>
    %207 = arith.cmpi ne, %205, %206 : vector<512x32xi32>
    %cst_128 = arith.constant 0.000000e+00 : f32
    %208 = vector.broadcast %cst_128 : f32 to vector<512x32xf32>
    %209 = arith.select %207, %203, %208 : vector<512x32xi1>, vector<512x32xf32>
    %210 = arith.truncf %209 : vector<512x32xf32> to vector<512x32xbf16>
    %c0_129 = arith.constant 0 : index
    %c192_130 = arith.constant 192 : index
    %211 = vector.load %arg10[%c0_129, %c192_130] : memref<512x288xbf16, #tpu.memory_space<vmem>>, vector<512x32xbf16>
    tpu.vector_store %arg10[%c0_129, %c192_130], %210 {strides = array<i32>} : memref<512x288xbf16, #tpu.memory_space<vmem>>, vector<512x32xbf16>,
    %c40_131 = arith.constant 40 : index
    %c0_132 = arith.constant 0 : index
    %212 = vector.load %arg9[%c40_131, %c0_132] : memref<560x32xf32, #tpu.memory_space<vmem>>, vector<512x32xf32>
    %c128_i32_133 = arith.constant 128 : i32
    %213 = vector.broadcast %c128_i32_133 : i32 to vector<512x32xi32>
    %214 = arith.andi %41, %213 : vector<512x32xi32>
    %c0_i32_134 = arith.constant 0 : i32
    %215 = vector.broadcast %c0_i32_134 : i32 to vector<512x32xi32>
    %216 = arith.cmpi ne, %214, %215 : vector<512x32xi32>
    %cst_135 = arith.constant 0.000000e+00 : f32
    %217 = vector.broadcast %cst_135 : f32 to vector<512x32xf32>
    %218 = arith.select %216, %212, %217 : vector<512x32xi1>, vector<512x32xf32>
    %219 = arith.truncf %218 : vector<512x32xf32> to vector<512x32xbf16>
    %c0_136 = arith.constant 0 : index
    %c224_137 = arith.constant 224 : index
    %220 = vector.load %arg10[%c0_136, %c224_137] : memref<512x288xbf16, #tpu.memory_space<vmem>>, vector<512x32xbf16>
    tpu.vector_store %arg10[%c0_136, %c224_137], %219 {strides = array<i32>} : memref<512x288xbf16, #tpu.memory_space<vmem>>, vector<512x32xbf16>,
    %c41_138 = arith.constant 41 : index
    %c0_139 = arith.constant 0 : index
    %221 = vector.load %arg9[%c41_138, %c0_139] : memref<560x32xf32, #tpu.memory_space<vmem>>, vector<512x32xf32>
    %c256_i32_140 = arith.constant 256 : i32
    %222 = vector.broadcast %c256_i32_140 : i32 to vector<512x32xi32>
    %223 = arith.andi %41, %222 : vector<512x32xi32>
    %c0_i32_141 = arith.constant 0 : i32
    %224 = vector.broadcast %c0_i32_141 : i32 to vector<512x32xi32>
    %225 = arith.cmpi ne, %223, %224 : vector<512x32xi32>
    %cst_142 = arith.constant 0.000000e+00 : f32
    %226 = vector.broadcast %cst_142 : f32 to vector<512x32xf32>
    %227 = arith.select %225, %221, %226 : vector<512x32xi1>, vector<512x32xf32>
    %228 = arith.truncf %227 : vector<512x32xf32> to vector<512x32xbf16>
    %c0_143 = arith.constant 0 : index
    %c256_144 = arith.constant 256 : index
    %229 = vector.load %arg10[%c0_143, %c256_144] : memref<512x288xbf16, #tpu.memory_space<vmem>>, vector<512x32xbf16>
    tpu.vector_store %arg10[%c0_143, %c256_144], %228 {strides = array<i32>} : memref<512x288xbf16, #tpu.memory_space<vmem>>, vector<512x32xbf16>,
    %c0_145 = arith.constant 0 : index
    %c0_146 = arith.constant 0 : index
    %230 = vector.load %arg10[%c0_145, %c0_146] : memref<512x288xbf16, #tpu.memory_space<vmem>>, vector<512x288xbf16>
    %c1_147 = arith.constant 1 : index
    %c0_148 = arith.constant 0 : index
    %c0_149 = arith.constant 0 : index
    %231 = vector.load %arg3[%c1_147, %c0_148, %c0_149] : memref<2x288x32xbf16, #tpu.memory_space<vmem>>, vector<1x288x32xbf16>
    %232 = vector.shape_cast %231 : vector<1x288x32xbf16> to vector<288x32xbf16>
    %cst_150 = arith.constant dense<0.000000e+00> : vector<512x32xf32>
    %233 = tpu.matmul %230, %232, %cst_150 {dimension_numbers = #tpu.dot_dimension_numbers<[1], [0], [0], [1], [0, 0, 1, 1], [], []>} : vector<512x288xbf16>, vector<288x32xbf16>, vector<512x32xf32> -> vector<512x32xf32>
    %c2 = arith.constant 2 : index
    %c0_151 = arith.constant 0 : index
    %c0_152 = arith.constant 0 : index
    %234 = vector.load %arg5[%c2, %c0_151, %c0_152] : memref<4x1x32xf32, #tpu.memory_space<vmem>>, vector<1x1x32xf32>
    %235 = vector.shape_cast %234 : vector<1x1x32xf32> to vector<1x32xf32>
    %236 = vector.broadcast %235 : vector<1x32xf32> to vector<512x32xf32>
    %237 = arith.addf %233, %236 : vector<512x32xf32>
    %cst_153 = arith.constant 0.000000e+00 : f32
    %238 = vector.broadcast %cst_153 : f32 to vector<512x32xf32>
    %239 = arith.maximumf %237, %238 : vector<512x32xf32>
    %cst_154 = arith.constant dense<0.000000e+00> : vector<32xf32>
    %240 = vector.multi_reduction <add>, %239, %cst_154 [0] : vector<512x32xf32> to vector<32xf32>
    %241 = vector.shape_cast %240 : vector<32xf32> to vector<1x32xf32>
    %242 = arith.mulf %239, %239 : vector<512x32xf32>
    %cst_155 = arith.constant dense<0.000000e+00> : vector<32xf32>
    %243 = vector.multi_reduction <add>, %242, %cst_155 [0] : vector<512x32xf32> to vector<32xf32>
    %244 = vector.shape_cast %243 : vector<32xf32> to vector<1x32xf32>
    %cst_156 = arith.constant 0.001953125 : f32
    %245 = vector.broadcast %cst_156 : f32 to vector<1x32xf32>
    %246 = arith.mulf %241, %245 : vector<1x32xf32>
    %cst_157 = arith.constant 0.001953125 : f32
    %247 = vector.broadcast %cst_157 : f32 to vector<1x32xf32>
    %248 = arith.mulf %244, %247 : vector<1x32xf32>
    %249 = arith.mulf %246, %246 : vector<1x32xf32>
    %250 = arith.subf %248, %249 : vector<1x32xf32>
    %cst_158 = arith.constant 0.000000e+00 : f32
    %251 = vector.broadcast %cst_158 : f32 to vector<1x32xf32>
    %252 = arith.maximumf %250, %251 : vector<1x32xf32>
    %c2_159 = arith.constant 2 : index
    %c0_160 = arith.constant 0 : index
    %c0_161 = arith.constant 0 : index
    %253 = vector.load %arg6[%c2_159, %c0_160, %c0_161] : memref<4x1x32xf32, #tpu.memory_space<vmem>>, vector<1x1x32xf32>
    %254 = vector.shape_cast %253 : vector<1x1x32xf32> to vector<1x32xf32>
    %cst_162 = arith.constant 9.99999974E-6 : f32
    %255 = vector.broadcast %cst_162 : f32 to vector<1x32xf32>
    %256 = arith.addf %252, %255 : vector<1x32xf32>
    %257 = math.rsqrt %256 : vector<1x32xf32>
    %258 = arith.mulf %254, %257 : vector<1x32xf32>
    %c2_163 = arith.constant 2 : index
    %c0_164 = arith.constant 0 : index
    %c0_165 = arith.constant 0 : index
    %259 = vector.load %arg7[%c2_163, %c0_164, %c0_165] : memref<4x1x32xf32, #tpu.memory_space<vmem>>, vector<1x1x32xf32>
    %260 = vector.shape_cast %259 : vector<1x1x32xf32> to vector<1x32xf32>
    %261 = arith.mulf %246, %258 : vector<1x32xf32>
    %262 = arith.subf %260, %261 : vector<1x32xf32>
    %263 = vector.broadcast %258 : vector<1x32xf32> to vector<512x32xf32>
    %264 = arith.mulf %239, %263 : vector<512x32xf32>
    %265 = vector.broadcast %262 : vector<1x32xf32> to vector<512x32xf32>
    %266 = arith.addf %264, %265 : vector<512x32xf32>
    %c24_166 = arith.constant 24 : index
    %c0_167 = arith.constant 0 : index
    %267 = vector.load %arg9[%c24_166, %c0_167] : memref<560x32xf32, #tpu.memory_space<vmem>>, vector<512x32xf32>
    tpu.vector_store %arg9[%c24_166, %c0_167], %266 {strides = array<i32>} : memref<560x32xf32, #tpu.memory_space<vmem>>, vector<512x32xf32>,
    %c24_168 = arith.constant 24 : index
    %c0_169 = arith.constant 0 : index
    %268 = vector.load %arg9[%c24_168, %c0_169] : memref<560x32xf32, #tpu.memory_space<vmem>>, vector<512x32xf32>
    %269 = arith.truncf %268 : vector<512x32xf32> to vector<512x32xbf16>
    %c0_170 = arith.constant 0 : index
    %c0_171 = arith.constant 0 : index
    %270 = vector.load %arg4[%c0_170, %c0_171] : memref<32x32xbf16, #tpu.memory_space<vmem>>, vector<32x32xbf16>
    %cst_172 = arith.constant dense<0.000000e+00> : vector<512x32xf32>
    %271 = tpu.matmul %269, %270, %cst_172 {dimension_numbers = #tpu.dot_dimension_numbers<[1], [0], [0], [1], [0, 0, 1, 1], [], []>} : vector<512x32xbf16>, vector<32x32xbf16>, vector<512x32xf32> -> vector<512x32xf32>
    %c3 = arith.constant 3 : index
    %c0_173 = arith.constant 0 : index
    %c0_174 = arith.constant 0 : index
    %272 = vector.load %arg5[%c3, %c0_173, %c0_174] : memref<4x1x32xf32, #tpu.memory_space<vmem>>, vector<1x1x32xf32>
    %273 = vector.shape_cast %272 : vector<1x1x32xf32> to vector<1x32xf32>
    %274 = vector.broadcast %273 : vector<1x32xf32> to vector<512x32xf32>
    %275 = arith.addf %271, %274 : vector<512x32xf32>
    %cst_175 = arith.constant dense<0.000000e+00> : vector<32xf32>
    %276 = vector.multi_reduction <add>, %275, %cst_175 [0] : vector<512x32xf32> to vector<32xf32>
    %277 = vector.shape_cast %276 : vector<32xf32> to vector<1x32xf32>
    %278 = arith.mulf %275, %275 : vector<512x32xf32>
    %cst_176 = arith.constant dense<0.000000e+00> : vector<32xf32>
    %279 = vector.multi_reduction <add>, %278, %cst_176 [0] : vector<512x32xf32> to vector<32xf32>
    %280 = vector.shape_cast %279 : vector<32xf32> to vector<1x32xf32>
    %cst_177 = arith.constant 0.001953125 : f32
    %281 = vector.broadcast %cst_177 : f32 to vector<1x32xf32>
    %282 = arith.mulf %277, %281 : vector<1x32xf32>
    %cst_178 = arith.constant 0.001953125 : f32
    %283 = vector.broadcast %cst_178 : f32 to vector<1x32xf32>
    %284 = arith.mulf %280, %283 : vector<1x32xf32>
    %285 = arith.mulf %282, %282 : vector<1x32xf32>
    %286 = arith.subf %284, %285 : vector<1x32xf32>
    %cst_179 = arith.constant 0.000000e+00 : f32
    %287 = vector.broadcast %cst_179 : f32 to vector<1x32xf32>
    %288 = arith.maximumf %286, %287 : vector<1x32xf32>
    %c3_180 = arith.constant 3 : index
    %c0_181 = arith.constant 0 : index
    %c0_182 = arith.constant 0 : index
    %289 = vector.load %arg6[%c3_180, %c0_181, %c0_182] : memref<4x1x32xf32, #tpu.memory_space<vmem>>, vector<1x1x32xf32>
    %290 = vector.shape_cast %289 : vector<1x1x32xf32> to vector<1x32xf32>
    %cst_183 = arith.constant 9.99999974E-6 : f32
    %291 = vector.broadcast %cst_183 : f32 to vector<1x32xf32>
    %292 = arith.addf %288, %291 : vector<1x32xf32>
    %293 = math.rsqrt %292 : vector<1x32xf32>
    %294 = arith.mulf %290, %293 : vector<1x32xf32>
    %c3_184 = arith.constant 3 : index
    %c0_185 = arith.constant 0 : index
    %c0_186 = arith.constant 0 : index
    %295 = vector.load %arg7[%c3_184, %c0_185, %c0_186] : memref<4x1x32xf32, #tpu.memory_space<vmem>>, vector<1x1x32xf32>
    %296 = vector.shape_cast %295 : vector<1x1x32xf32> to vector<1x32xf32>
    %297 = arith.mulf %282, %294 : vector<1x32xf32>
    %298 = arith.subf %296, %297 : vector<1x32xf32>
    %299 = vector.broadcast %294 : vector<1x32xf32> to vector<512x32xf32>
    %300 = arith.mulf %275, %299 : vector<512x32xf32>
    %301 = vector.broadcast %298 : vector<1x32xf32> to vector<512x32xf32>
    %302 = arith.addf %300, %301 : vector<512x32xf32>
    %c0_187 = arith.constant 0 : index
    %c0_188 = arith.constant 0 : index
    %303 = vector.load %arg8[%c0_187, %c0_188] : memref<512x32xf32, #tpu.memory_space<vmem>>, vector<512x32xf32>
    tpu.vector_store %arg8[%c0_187, %c0_188], %302 {strides = array<i32>} : memref<512x32xf32, #tpu.memory_space<vmem>>, vector<512x32xf32>,
    return
  }
}

</mosaic_0001>

<llo_original>
// kernel: tpu_custom_call.1
$region0: #{tpu_custom_call.1}
  #allocation0 [shape = 'u32[]', space=smem, size = 0x4, offset = 0x4, fixed_abs, tag = 'smem constant byte address 0x4 - core index']
  #allocation1 [shape = 'u32[144,128]{1,0:T(1,128)}', space=vmem, size = 0x12000, scoped, tag = 'internal scratch']
  #allocation2 [shape = 'f32[560,32]{1,0:T(8,128)}', space=vmem, size = 0x46000, scoped, tag = 'scratch operand']
  #allocation3 [shape = 'bf16[512,288]{1,0:T(16,128)(2,1)}', space=vmem, size = 0x60000, scoped, tag = 'scratch operand']
  %s0 = inlined_call_operand.vmem [shape: bf16[512,36], index: 0, kind: input, shape index: {}]
  %s1 = inlined_call_operand.vmem [shape: s32[512,32], index: 1, kind: input, shape index: {}]
  %s2 = inlined_call_operand.vmem [shape: bf16[36,32], index: 2, kind: input, shape index: {}]
  %s3 = inlined_call_operand.vmem [shape: bf16[2,288,32], index: 3, kind: input, shape index: {}]
  %s4 = inlined_call_operand.vmem [shape: bf16[32,32], index: 4, kind: input, shape index: {}]
  %s5 = inlined_call_operand.vmem [shape: f32[4,1,32], index: 5, kind: input, shape index: {}]
  %s6 = inlined_call_operand.vmem [shape: f32[4,1,32], index: 6, kind: input, shape index: {}]
  %s7 = inlined_call_operand.vmem [shape: f32[4,1,32], index: 7, kind: input, shape index: {}]
  %s8 = inlined_call_operand.vmem [shape: f32[512,32], index: 8, kind: output, shape index: {}]
  %s9 = sld [smem:[#allocation0]]
  $region42: #{tpu_custom_call.1} parent=0
    _
  %s11 = ssub.s32 1, %s9
  %s12 = scalar_select 0, %s11, %s9
  // Predicated region
  $region2: #{tpu_custom_call.1} parent=0 // pred_check
    _
  $region3: #{tpu_custom_call.1} parent=0 // pred_check_branch
    %14 = sbr.rel (0) target = $region5
  $region4: #{tpu_custom_call.1} parent=0 // pred_region
    _
  $region5: #{tpu_custom_call.1} parent=0 // pred_fallthru
    _
  // Predicated region
  $region6: #{tpu_custom_call.1} parent=0 // pred_check
    _
  $region7: #{tpu_custom_call.1} parent=0 // pred_check_branch
    %16 = sbr.rel (0) target = $region9
  $region8: #{tpu_custom_call.1} parent=0 // pred_region
    _
  $region9: #{tpu_custom_call.1} parent=0 // pred_fallthru
    _
  // Predicated region
  $region10: #{tpu_custom_call.1} parent=0 // pred_check
    _
  $region11: #{tpu_custom_call.1} parent=0 // pred_check_branch
    %18 = sbr.rel (0) target = $region13
  $region12: #{tpu_custom_call.1} parent=0 // pred_region
    _
  $region13: #{tpu_custom_call.1} parent=0 // pred_fallthru
    _
  // Predicated region
  $region14: #{tpu_custom_call.1} parent=0 // pred_check
    _
  $region15: #{tpu_custom_call.1} parent=0 // pred_check_branch
    %20 = sbr.rel (0) target = $region17
  $region16: #{tpu_custom_call.1} parent=0 // pred_region
    _
  $region17: #{tpu_custom_call.1} parent=0 // pred_fallthru
    _
  // Predicated region
  $region18: #{tpu_custom_call.1} parent=0 // pred_check
    _
  $region19: #{tpu_custom_call.1} parent=0 // pred_check_branch
    %22 = sbr.rel (0) target = $region21
  $region20: #{tpu_custom_call.1} parent=0 // pred_region
    _
  $region21: #{tpu_custom_call.1} parent=0 // pred_fallthru
    _
  // Predicated region
  $region22: #{tpu_custom_call.1} parent=0 // pred_check
    _
  $region23: #{tpu_custom_call.1} parent=0 // pred_check_branch
    %24 = sbr.rel (0) target = $region25
  $region24: #{tpu_custom_call.1} parent=0 // pred_region
    _
  $region25: #{tpu_custom_call.1} parent=0 // pred_fallthru
    _
  // Predicated region
  $region26: #{tpu_custom_call.1} parent=0 // pred_check
    _
  $region27: #{tpu_custom_call.1} parent=0 // pred_check_branch
    %26 = sbr.rel (0) target = $region29
  $region28: #{tpu_custom_call.1} parent=0 // pred_region
    _
  $region29: #{tpu_custom_call.1} parent=0 // pred_fallthru
    _
  // Predicated region
  $region30: #{tpu_custom_call.1} parent=0 // pred_check
    _
  $region31: #{tpu_custom_call.1} parent=0 // pred_check_branch
    %28 = sbr.rel (0) target = $region33
  $region32: #{tpu_custom_call.1} parent=0 // pred_region
    _
  $region33: #{tpu_custom_call.1} parent=0 // pred_fallthru
    _
  %vm30 = vcmask 261120
  %31 = vst.msk [vmem:[#allocation2] sm:$0xff] %vm30, 0.0
  %32 = vst.msk [vmem:[#allocation2 + $0x8] sm:$0xff] %vm30, 0.0
  %33 = vst.msk [vmem:[#allocation2 + $0x10] sm:$0xff] %vm30, 0.0
  %34 = vst.msk [vmem:[#allocation2 + $0x218] sm:$0xff] %vm30, 0.0
  %35 = vst.msk [vmem:[#allocation2 + $0x220] sm:$0xff] %vm30, 0.0
  %36 = vst.msk [vmem:[#allocation2 + $0x228] sm:$0xff] %vm30, 0.0
  %v37 = vld [vmem:[%s0] sm:$0xf]
  %v38 = vld [vmem:[%s0 + $0x4] sm:$0xf]
  %v39 = vld [vmem:[%s0 + $0x8] sm:$0xf]
  %v40 = vld [vmem:[%s0 + $0xc] sm:$0xf]
  %v41 = vld [vmem:[%s0 + $0x10] sm:$0xf]
  %v42 = vld [vmem:[%s0 + $0x14] sm:$0xf]
  %v43 = vld [vmem:[%s0 + $0x18] sm:$0xf]
  %v44 = vld [vmem:[%s0 + $0x1c] sm:$0xf]
  %v45 = vld [vmem:[%s0 + $0x20] sm:$0xf]
  %v46 = vld [vmem:[%s0 + $0x24] sm:$0xf]
  %v47 = vld [vmem:[%s0 + $0x28] sm:$0xf]
  %v48 = vld [vmem:[%s0 + $0x2c] sm:$0xf]
  %v49 = vld [vmem:[%s0 + $0x30] sm:$0xf]
  %v50 = vld [vmem:[%s0 + $0x34] sm:$0xf]
  %v51 = vld [vmem:[%s0 + $0x38] sm:$0xf]
  %v52 = vld [vmem:[%s0 + $0x3c] sm:$0xf]
  %v53 = vld [vmem:[%s0 + $0x40] sm:$0xf]
  %v54 = vld [vmem:[%s0 + $0x44] sm:$0xf]
  %v55 = vld [vmem:[%s0 + $0x48] sm:$0xf]
  %v56 = vld [vmem:[%s0 + $0x4c] sm:$0xf]
  %v57 = vld [vmem:[%s0 + $0x50] sm:$0xf]
  %v58 = vld [vmem:[%s0 + $0x54] sm:$0xf]
  %v59 = vld [vmem:[%s0 + $0x58] sm:$0xf]
  %v60 = vld [vmem:[%s0 + $0x5c] sm:$0xf]
  %v61 = vld [vmem:[%s0 + $0x60] sm:$0xf]
  %v62 = vld [vmem:[%s0 + $0x64] sm:$0xf]
  %v63 = vld [vmem:[%s0 + $0x68] sm:$0xf]
  %v64 = vld [vmem:[%s0 + $0x6c] sm:$0xf]
  %v65 = vld [vmem:[%s0 + $0x70] sm:$0xf]
  %v66 = vld [vmem:[%s0 + $0x74] sm:$0xf]
  %v67 = vld [vmem:[%s0 + $0x78] sm:$0xf]
  %v68 = vld [vmem:[%s0 + $0x7c] sm:$0xf]
  %v69 = vld [vmem:[%s0 + $0x80] sm:$0xf]
  %v70 = vld [vmem:[%s0 + $0x84] sm:$0xf]
  %v71 = vld [vmem:[%s0 + $0x88] sm:$0xf]
  %v72 = vld [vmem:[%s0 + $0x8c] sm:$0xf]
  %v73 = vld [vmem:[%s0 + $0x90] sm:$0xf]
  %v74 = vld [vmem:[%s0 + $0x94] sm:$0xf]
  %v75 = vld [vmem:[%s0 + $0x98] sm:$0xf]
  %v76 = vld [vmem:[%s0 + $0x9c] sm:$0xf]
  %v77 = vld [vmem:[%s0 + $0xa0] sm:$0xf]
  %v78 = vld [vmem:[%s0 + $0xa4] sm:$0xf]
  %v79 = vld [vmem:[%s0 + $0xa8] sm:$0xf]
  %v80 = vld [vmem:[%s0 + $0xac] sm:$0xf]
  %v81 = vld [vmem:[%s0 + $0xb0] sm:$0xf]
  %v82 = vld [vmem:[%s0 + $0xb4] sm:$0xf]
  %v83 = vld [vmem:[%s0 + $0xb8] sm:$0xf]
  %v84 = vld [vmem:[%s0 + $0xbc] sm:$0xf]
  %v85 = vld [vmem:[%s0 + $0xc0] sm:$0xf]
  %v86 = vld [vmem:[%s0 + $0xc4] sm:$0xf]
  %v87 = vld [vmem:[%s0 + $0xc8] sm:$0xf]
  %v88 = vld [vmem:[%s0 + $0xcc] sm:$0xf]
  %v89 = vld [vmem:[%s0 + $0xd0] sm:$0xf]
  %v90 = vld [vmem:[%s0 + $0xd4] sm:$0xf]
  %v91 = vld [vmem:[%s0 + $0xd8] sm:$0xf]
  %v92 = vld [vmem:[%s0 + $0xdc] sm:$0xf]
  %v93 = vld [vmem:[%s0 + $0xe0] sm:$0xf]
  %v94 = vld [vmem:[%s0 + $0xe4] sm:$0xf]
  %v95 = vld [vmem:[%s0 + $0xe8] sm:$0xf]
  %v96 = vld [vmem:[%s0 + $0xec] sm:$0xf]
  %v97 = vld [vmem:[%s0 + $0xf0] sm:$0xf]
  %v98 = vld [vmem:[%s0 + $0xf4] sm:$0xf]
  %v99 = vld [vmem:[%s0 + $0xf8] sm:$0xf]
  %v100 = vld [vmem:[%s0 + $0xfc] sm:$0xf]
  %v101 = vld [vmem:[%s2] sm:$0xf]
  %v102 = vld [vmem:[%s2 + $0x4] sm:$0xf]
  %v103 = vld [vmem:[%s2 + $0x8] sm:$0xf]
  %v104 = vld [vmem:[%s2 + $0xc] sm:$0xf]
  %v105 = vld [vmem:[%s2 + $0x10] sm:$0x3]
  %v106 = vld [vmem:[%s5] sm:$0x1]
  %v108 = vlaneseq
  %v109 = vshrl.u32 %v108, 7
  %v110 = vsub.s32 0, %v109
  %v111 = vrot.slane %v106, %v110
  %v177 = vunpack.c.l.b16 %v37
  %v178 = vunpack.c.l.b16 %v38
  %v179 = vunpack.c.l.b16 %v39
  %v180 = vunpack.c.l.b16 %v40
  %v181 = vunpack.c.l.b16 %v41
  %v182 = vunpack.c.l.b16 %v42
  %v183 = vunpack.c.l.b16 %v43
  %v184 = vunpack.c.l.b16 %v44
  %v185 = vunpack.c.l.b16 %v45
  %v186 = vunpack.c.l.b16 %v46
  %v187 = vunpack.c.l.b16 %v47
  %v188 = vunpack.c.l.b16 %v48
  %v189 = vunpack.c.l.b16 %v49
  %v190 = vunpack.c.l.b16 %v50
  %v191 = vunpack.c.l.b16 %v51
  %v192 = vunpack.c.l.b16 %v52
  %v193 = vunpack.c.l.b16 %v53
  %v194 = vunpack.c.l.b16 %v54
  %v195 = vunpack.c.l.b16 %v55
  %v196 = vunpack.c.l.b16 %v56
  %v197 = vunpack.c.l.b16 %v57
  %v198 = vunpack.c.l.b16 %v58
  %v199 = vunpack.c.l.b16 %v59
  %v200 = vunpack.c.l.b16 %v60
  %v201 = vunpack.c.l.b16 %v61
  %v202 = vunpack.c.l.b16 %v62
  %v203 = vunpack.c.l.b16 %v63
  %v204 = vunpack.c.l.b16 %v64
  %v205 = vunpack.c.l.b16 %v65
  %v206 = vunpack.c.l.b16 %v66
  %v207 = vunpack.c.l.b16 %v67
  %v208 = vunpack.c.l.b16 %v68
  %v209 = vunpack.c.l.b16 %v69
  %v210 = vunpack.c.l.b16 %v70
  %v211 = vunpack.c.l.b16 %v71
  %v212 = vunpack.c.l.b16 %v72
  %v213 = vunpack.c.l.b16 %v73
  %v214 = vunpack.c.l.b16 %v74
  %v215 = vunpack.c.l.b16 %v75
  %v216 = vunpack.c.l.b16 %v76
  %v217 = vunpack.c.l.b16 %v77
  %v218 = vunpack.c.l.b16 %v78
  %v219 = vunpack.c.l.b16 %v79
  %v220 = vunpack.c.l.b16 %v80
  %v221 = vunpack.c.l.b16 %v81
  %v222 = vunpack.c.l.b16 %v82
  %v223 = vunpack.c.l.b16 %v83
  %v224 = vunpack.c.l.b16 %v84
  %v225 = vunpack.c.l.b16 %v85
  %v226 = vunpack.c.l.b16 %v86
  %v227 = vunpack.c.l.b16 %v87
  %v228 = vunpack.c.l.b16 %v88
  %v229 = vunpack.c.l.b16 %v89
  %v230 = vunpack.c.l.b16 %v90
  %v231 = vunpack.c.l.b16 %v91
  %v232 = vunpack.c.l.b16 %v92
  %v233 = vunpack.c.l.b16 %v93
  %v234 = vunpack.c.l.b16 %v94
  %v235 = vunpack.c.l.b16 %v95
  %v236 = vunpack.c.l.b16 %v96
  %v237 = vunpack.c.l.b16 %v97
  %v238 = vunpack.c.l.b16 %v98
  %v239 = vunpack.c.l.b16 %v99
  %v240 = vunpack.c.l.b16 %v100
  %v241 = vpack.c.b16 %v178, %v177
  %v242 = vpack.c.b16 %v180, %v179
  %v243 = vpack.c.b16 %v182, %v181
  %v244 = vpack.c.b16 %v184, %v183
  %v245 = vpack.c.b16 %v186, %v185
  %v246 = vpack.c.b16 %v188, %v187
  %v247 = vpack.c.b16 %v190, %v189
  %v248 = vpack.c.b16 %v192, %v191
  %v249 = vpack.c.b16 %v194, %v193
  %v250 = vpack.c.b16 %v196, %v195
  %v251 = vpack.c.b16 %v198, %v197
  %v252 = vpack.c.b16 %v200, %v199
  %v253 = vpack.c.b16 %v202, %v201
  %v254 = vpack.c.b16 %v204, %v203
  %v255 = vpack.c.b16 %v206, %v205
  %v256 = vpack.c.b16 %v208, %v207
  %v257 = vpack.c.b16 %v210, %v209
  %v258 = vpack.c.b16 %v212, %v211
  %v259 = vpack.c.b16 %v214, %v213
  %v260 = vpack.c.b16 %v216, %v215
  %v261 = vpack.c.b16 %v218, %v217
  %v262 = vpack.c.b16 %v220, %v219
  %v263 = vpack.c.b16 %v222, %v221
  %v264 = vpack.c.b16 %v224, %v223
  %v265 = vpack.c.b16 %v226, %v225
  %v266 = vpack.c.b16 %v228, %v227
  %v267 = vpack.c.b16 %v230, %v229
  %v268 = vpack.c.b16 %v232, %v231
  %v269 = vpack.c.b16 %v234, %v233
  %v270 = vpack.c.b16 %v236, %v235
  %v271 = vpack.c.b16 %v238, %v237
  %v272 = vpack.c.b16 %v240, %v239
  %v278 = vunpack.c.l.b16 %v101
  %v279 = vunpack.c.l.b16 %v102
  %v280 = vunpack.c.l.b16 %v103
  %v281 = vunpack.c.l.b16 %v104
  %v282 = vunpack.c.l.b16 %v105
  %v283 = vpack.c.b16 %v279, %v278
  %v284 = vpack.c.b16 %v281, %v280
  %v285 = vpack.c.b16 %v282, %v282
  %vm288 = vcmask 293888
  %v290 = vsel %vm288, %v241, 0
  %v293 = vsel %vm288, %v242, 0
  %v296 = vsel %vm288, %v243, 0
  %v299 = vsel %vm288, %v244, 0
  %v302 = vsel %vm288, %v245, 0
  %v305 = vsel %vm288, %v246, 0
  %v308 = vsel %vm288, %v247, 0
  %v311 = vsel %vm288, %v248, 0
  %v314 = vsel %vm288, %v249, 0
  %v317 = vsel %vm288, %v250, 0
  %v320 = vsel %vm288, %v251, 0
  %v323 = vsel %vm288, %v252, 0
  %v326 = vsel %vm288, %v253, 0
  %v329 = vsel %vm288, %v254, 0
  %v332 = vsel %vm288, %v255, 0
  %v335 = vsel %vm288, %v256, 0
  %v338 = vsel %vm288, %v257, 0
  %v341 = vsel %vm288, %v258, 0
  %v344 = vsel %vm288, %v259, 0
  %v347 = vsel %vm288, %v260, 0
  %v350 = vsel %vm288, %v261, 0
  %v353 = vsel %vm288, %v262, 0
  %v356 = vsel %vm288, %v263, 0
  %v359 = vsel %vm288, %v264, 0
  %v362 = vsel %vm288, %v265, 0
  %v365 = vsel %vm288, %v266, 0
  %v368 = vsel %vm288, %v267, 0
  %v371 = vsel %vm288, %v268, 0
  %v374 = vsel %vm288, %v269, 0
  %v377 = vsel %vm288, %v270, 0
  %v380 = vsel %vm288, %v271, 0
  %v383 = vsel %vm288, %v272, 0
  %vm385 = vcmask 1041408
  %v387 = vsel %vm385, %v285, 0
  %389 = vmatprep.subr.bf16.mxu0 0
  %390 = vmatpush1.bf16.msra.mxu0 %v283
  %391 = vmatprep.subr.bf16.mxu0 0
  %392 = vmatpush1.bf16.msra.mxu0 %v284
  %393 = vmatprep.subr.bf16.mxu0 0
  %394 = vmatpush1.bf16.msra.mxu0 %v387
  %395 = vmatprep.subr.bf16.mxu0 0
  %396 = vmatpush1.bf16.msra.mxu0 0
  %397 = vmatprep.subr.bf16.mxu0 0
  %398 = vmatpush1.bf16.msra.mxu0 0
  %399 = vmatprep.subr.bf16.mxu0 0
  %400 = vmatpush1.bf16.msra.mxu0 0
  %401 = vmatprep.subr.bf16.mxu0 0
  %402 = vmatpush1.bf16.msra.mxu0 0
  %403 = vmatprep.subr.bf16.mxu0 0
  %404 = vmatpush1.bf16.msra.mxu0 0
  %405 = vmatprep.subr.bf16.mxu0 0
  %406 = vmatpush1.bf16.msra.mxu0 0
  %407 = vmatprep.subr.bf16.mxu0 0
  %408 = vmatpush1.bf16.msra.mxu0 0
  %409 = vmatprep.subr.bf16.mxu0 0
  %410 = vmatpush1.bf16.msra.mxu0 0
  %411 = vmatprep.subr.bf16.mxu0 0
  %412 = vmatpush1.bf16.msra.mxu0 0
  %413 = vmatprep.subr.bf16.mxu0 0
  %414 = vmatpush1.bf16.msra.mxu0 0
  %415 = vmatprep.subr.bf16.mxu0 0
  %416 = vmatpush1.bf16.msra.mxu0 0
  %417 = vmatprep.subr.bf16.mxu0 0
  %418 = vmatpush1.bf16.msra.mxu0 0
  %419 = vmatprep.subr.bf16.mxu0 0
  %420 = vmatpush1.bf16.msra.mxu0 0
  %421 = vmatprep.mubr.bf16.mxu0 0
  %422 = vmatmul.mubr.bf16.gmra.mrb[0].mxu0 %v290
  %v423 = vpop.f32.mrb[0].mxu0
  %v424 = vadd.f32 %v111, %v423
  %v425 = vpop.f32.mrb[0].mxu0
  %v426 = vpop.f32.mrb[0].mxu0
  %v427 = vadd.f32 %v111, %v426
  %v428 = vpop.f32.mrb[0].mxu0
  %429 = vmatprep.mubr.bf16.mxu0 0
  %430 = vmatmul.mubr.bf16.gmra.mrb[0].mxu0 %v293
  %v431 = vpop.f32.mrb[0].mxu0
  %v432 = vadd.f32 %v111, %v431
  %v433 = vpop.f32.mrb[0].mxu0
  %v434 = vpop.f32.mrb[0].mxu0
  %v435 = vadd.f32 %v111, %v434
  %v436 = vpop.f32.mrb[0].mxu0
  %437 = vmatprep.mubr.bf16.mxu0 0
  %438 = vmatmul.mubr.bf16.gmra.mrb[0].mxu0 %v296
  %v439 = vpop.f32.mrb[0].mxu0
  %v440 = vadd.f32 %v111, %v439
  %v441 = vpop.f32.mrb[0].mxu0
  %v442 = vpop.f32.mrb[0].mxu0
  %v443 = vadd.f32 %v111, %v442
  %v444 = vpop.f32.mrb[0].mxu0
  %445 = vmatprep.mubr.bf16.mxu0 0
  %446 = vmatmul.mubr.bf16.gmra.mrb[0].mxu0 %v299
  %v447 = vpop.f32.mrb[0].mxu0
  %v448 = vadd.f32 %v111, %v447
  %v449 = vpop.f32.mrb[0].mxu0
  %v450 = vpop.f32.mrb[0].mxu0
  %v451 = vadd.f32 %v111, %v450
  %v452 = vpop.f32.mrb[0].mxu0
  %453 = vmatprep.mubr.bf16.mxu0 0
  %454 = vmatmul.mubr.bf16.gmra.mrb[0].mxu0 %v302
  %v455 = vpop.f32.mrb[0].mxu0
  %v456 = vadd.f32 %v111, %v455
  %v457 = vpop.f32.mrb[0].mxu0
  %v458 = vpop.f32.mrb[0].mxu0
  %v459 = vadd.f32 %v111, %v458
  %v460 = vpop.f32.mrb[0].mxu0
  %461 = vmatprep.mubr.bf16.mxu0 0
  %462 = vmatmul.mubr.bf16.gmra.mrb[0].mxu0 %v305
  %v463 = vpop.f32.mrb[0].mxu0
  %v464 = vadd.f32 %v111, %v463
  %v465 = vpop.f32.mrb[0].mxu0
  %v466 = vpop.f32.mrb[0].mxu0
  %v467 = vadd.f32 %v111, %v466
  %v468 = vpop.f32.mrb[0].mxu0
  %469 = vmatprep.mubr.bf16.mxu0 0
  %470 = vmatmul.mubr.bf16.gmra.mrb[0].mxu0 %v308
  %v471 = vpop.f32.mrb[0].mxu0
  %v472 = vadd.f32 %v111, %v471
  %v473 = vpop.f32.mrb[0].mxu0
  %v474 = vpop.f32.mrb[0].mxu0
  %v475 = vadd.f32 %v111, %v474
  %v476 = vpop.f32.mrb[0].mxu0
  %477 = vmatprep.mubr.bf16.mxu0 0
  %478 = vmatmul.mubr.bf16.gmra.mrb[0].mxu0 %v311
  %v479 = vpop.f32.mrb[0].mxu0
  %v480 = vadd.f32 %v111, %v479
  %v481 = vpop.f32.mrb[0].mxu0
  %v482 = vpop.f32.mrb[0].mxu0
  %v483 = vadd.f32 %v111, %v482
  %v484 = vpop.f32.mrb[0].mxu0
  %485 = vmatprep.mubr.bf16.mxu0 0
  %486 = vmatmul.mubr.bf16.gmra.mrb[0].mxu0 %v314
  %v487 = vpop.f32.mrb[0].mxu0
  %v488 = vadd.f32 %v111, %v487
  %v489 = vpop.f32.mrb[0].mxu0
  %v490 = vpop.f32.mrb[0].mxu0
  %v491 = vadd.f32 %v111, %v490
  %v492 = vpop.f32.mrb[0].mxu0
  %493 = vmatprep.mubr.bf16.mxu0 0
  %494 = vmatmul.mubr.bf16.gmra.mrb[0].mxu0 %v317
  %v495 = vpop.f32.mrb[0].mxu0
  %v496 = vadd.f32 %v111, %v495
  %v497 = vpop.f32.mrb[0].mxu0
  %v498 = vpop.f32.mrb[0].mxu0
  %v499 = vadd.f32 %v111, %v498
  %v500 = vpop.f32.mrb[0].mxu0
  %501 = vmatprep.mubr.bf16.mxu0 0
  %502 = vmatmul.mubr.bf16.gmra.mrb[0].mxu0 %v320
  %v503 = vpop.f32.mrb[0].mxu0
  %v504 = vadd.f32 %v111, %v503
  %v505 = vpop.f32.mrb[0].mxu0
  %v506 = vpop.f32.mrb[0].mxu0
  %v507 = vadd.f32 %v111, %v506
  %v508 = vpop.f32.mrb[0].mxu0
  %509 = vmatprep.mubr.bf16.mxu0 0
  %510 = vmatmul.mubr.bf16.gmra.mrb[0].mxu0 %v323
  %v511 = vpop.f32.mrb[0].mxu0
  %v512 = vadd.f32 %v111, %v511
  %v513 = vpop.f32.mrb[0].mxu0
  %v514 = vpop.f32.mrb[0].mxu0
  %v515 = vadd.f32 %v111, %v514
  %v516 = vpop.f32.mrb[0].mxu0
  %517 = vmatprep.mubr.bf16.mxu0 0
  %518 = vmatmul.mubr.bf16.gmra.mrb[0].mxu0 %v326
  %v519 = vpop.f32.mrb[0].mxu0
  %v520 = vadd.f32 %v111, %v519
  %v521 = vpop.f32.mrb[0].mxu0
  %v522 = vpop.f32.mrb[0].mxu0
  %v523 = vadd.f32 %v111, %v522
  %v524 = vpop.f32.mrb[0].mxu0
  %525 = vmatprep.mubr.bf16.mxu0 0
  %526 = vmatmul.mubr.bf16.gmra.mrb[0].mxu0 %v329
  %v527 = vpop.f32.mrb[0].mxu0
  %v528 = vadd.f32 %v111, %v527
  %v529 = vpop.f32.mrb[0].mxu0
  %v530 = vpop.f32.mrb[0].mxu0
  %v531 = vadd.f32 %v111, %v530
  %v532 = vpop.f32.mrb[0].mxu0
  %533 = vmatprep.mubr.bf16.mxu0 0
  %534 = vmatmul.mubr.bf16.gmra.mrb[0].mxu0 %v332
  %v535 = vpop.f32.mrb[0].mxu0
  %v536 = vadd.f32 %v111, %v535
  %v537 = vpop.f32.mrb[0].mxu0
  %v538 = vpop.f32.mrb[0].mxu0
  %v539 = vadd.f32 %v111, %v538
  %v540 = vpop.f32.mrb[0].mxu0
  %541 = vmatprep.mubr.bf16.mxu0 0
  %542 = vmatmul.mubr.bf16.gmra.mrb[0].mxu0 %v335
  %v543 = vpop.f32.mrb[0].mxu0
  %v544 = vadd.f32 %v111, %v543
  %v545 = vpop.f32.mrb[0].mxu0
  %v546 = vpop.f32.mrb[0].mxu0
  %v547 = vadd.f32 %v111, %v546
  %v548 = vpop.f32.mrb[0].mxu0
  %549 = vmatprep.mubr.bf16.mxu0 0
  %550 = vmatmul.mubr.bf16.gmra.mrb[0].mxu0 %v338
  %v551 = vpop.f32.mrb[0].mxu0
  %v552 = vadd.f32 %v111, %v551
  %v553 = vpop.f32.mrb[0].mxu0
  %v554 = vpop.f32.mrb[0].mxu0
  %v555 = vadd.f32 %v111, %v554
  %v556 = vpop.f32.mrb[0].mxu0
  %557 = vmatprep.mubr.bf16.mxu0 0
  %558 = vmatmul.mubr.bf16.gmra.mrb[0].mxu0 %v341
  %v559 = vpop.f32.mrb[0].mxu0
  %v560 = vadd.f32 %v111, %v559
  %v561 = vpop.f32.mrb[0].mxu0
  %v562 = vpop.f32.mrb[0].mxu0
  %v563 = vadd.f32 %v111, %v562
  %v564 = vpop.f32.mrb[0].mxu0
  %565 = vmatprep.mubr.bf16.mxu0 0
  %566 = vmatmul.mubr.bf16.gmra.mrb[0].mxu0 %v344
  %v567 = vpop.f32.mrb[0].mxu0
  %v568 = vadd.f32 %v111, %v567
  %v569 = vpop.f32.mrb[0].mxu0
  %v570 = vpop.f32.mrb[0].mxu0
  %v571 = vadd.f32 %v111, %v570
  %v572 = vpop.f32.mrb[0].mxu0
  %573 = vmatprep.mubr.bf16.mxu0 0
  %574 = vmatmul.mubr.bf16.gmra.mrb[0].mxu0 %v347
  %v575 = vpop.f32.mrb[0].mxu0
  %v576 = vadd.f32 %v111, %v575
  %v577 = vpop.f32.mrb[0].mxu0
  %v578 = vpop.f32.mrb[0].mxu0
  %v579 = vadd.f32 %v111, %v578
  %v580 = vpop.f32.mrb[0].mxu0
  %581 = vmatprep.mubr.bf16.mxu0 0
  %582 = vmatmul.mubr.bf16.gmra.mrb[0].mxu0 %v350
  %v583 = vpop.f32.mrb[0].mxu0
  %v584 = vadd.f32 %v111, %v583
  %v585 = vpop.f32.mrb[0].mxu0
  %v586 = vpop.f32.mrb[0].mxu0
  %v587 = vadd.f32 %v111, %v586
  %v588 = vpop.f32.mrb[0].mxu0
  %589 = vmatprep.mubr.bf16.mxu0 0
  %590 = vmatmul.mubr.bf16.gmra.mrb[0].mxu0 %v353
  %v591 = vpop.f32.mrb[0].mxu0
  %v592 = vadd.f32 %v111, %v591
  %v593 = vpop.f32.mrb[0].mxu0
  %v594 = vpop.f32.mrb[0].mxu0
  %v595 = vadd.f32 %v111, %v594
  %v596 = vpop.f32.mrb[0].mxu0
  %597 = vmatprep.mubr.bf16.mxu0 0
  %598 = vmatmul.mubr.bf16.gmra.mrb[0].mxu0 %v356
  %v599 = vpop.f32.mrb[0].mxu0
  %v600 = vadd.f32 %v111, %v599
  %v601 = vpop.f32.mrb[0].mxu0
  %v602 = vpop.f32.mrb[0].mxu0
  %v603 = vadd.f32 %v111, %v602
  %v604 = vpop.f32.mrb[0].mxu0
  %605 = vmatprep.mubr.bf16.mxu0 0
  %606 = vmatmul.mubr.bf16.gmra.mrb[0].mxu0 %v359
  %v607 = vpop.f32.mrb[0].mxu0
  %v608 = vadd.f32 %v111, %v607
  %v609 = vpop.f32.mrb[0].mxu0
  %v610 = vpop.f32.mrb[0].mxu0
  %v611 = vadd.f32 %v111, %v610
  %v612 = vpop.f32.mrb[0].mxu0
  %613 = vmatprep.mubr.bf16.mxu0 0
  %614 = vmatmul.mubr.bf16.gmra.mrb[0].mxu0 %v362
  %v615 = vpop.f32.mrb[0].mxu0
  %v616 = vadd.f32 %v111, %v615
  %v617 = vpop.f32.mrb[0].mxu0
  %v618 = vpop.f32.mrb[0].mxu0
  %v619 = vadd.f32 %v111, %v618
  %v620 = vpop.f32.mrb[0].mxu0
  %621 = vmatprep.mubr.bf16.mxu0 0
  %622 = vmatmul.mubr.bf16.gmra.mrb[0].mxu0 %v365
  %v623 = vpop.f32.mrb[0].mxu0
  %v624 = vadd.f32 %v111, %v623
  %v625 = vpop.f32.mrb[0].mxu0
  %v626 = vpop.f32.mrb[0].mxu0
  %v627 = vadd.f32 %v111, %v626
  %v628 = vpop.f32.mrb[0].mxu0
  %629 = vmatprep.mubr.bf16.mxu0 0
  %630 = vmatmul.mubr.bf16.gmra.mrb[0].mxu0 %v368
  %v631 = vpop.f32.mrb[0].mxu0
  %v632 = vadd.f32 %v111, %v631
  %v633 = vpop.f32.mrb[0].mxu0
  %v634 = vpop.f32.mrb[0].mxu0
  %v635 = vadd.f32 %v111, %v634
  %v636 = vpop.f32.mrb[0].mxu0
  %637 = vmatprep.mubr.bf16.mxu0 0
  %638 = vmatmul.mubr.bf16.gmra.mrb[0].mxu0 %v371
  %v639 = vpop.f32.mrb[0].mxu0
  %v640 = vadd.f32 %v111, %v639
  %v641 = vpop.f32.mrb[0].mxu0
  %v642 = vpop.f32.mrb[0].mxu0
  %v643 = vadd.f32 %v111, %v642
  %v644 = vpop.f32.mrb[0].mxu0
  %645 = vmatprep.mubr.bf16.mxu0 0
  %646 = vmatmul.mubr.bf16.gmra.mrb[0].mxu0 %v374
  %v647 = vpop.f32.mrb[0].mxu0
  %v648 = vadd.f32 %v111, %v647
  %v649 = vpop.f32.mrb[0].mxu0
  %v650 = vpop.f32.mrb[0].mxu0
  %v651 = vadd.f32 %v111, %v650
  %v652 = vpop.f32.mrb[0].mxu0
  %653 = vmatprep.mubr.bf16.mxu0 0
  %654 = vmatmul.mubr.bf16.gmra.mrb[0].mxu0 %v377
  %v655 = vpop.f32.mrb[0].mxu0
  %v656 = vadd.f32 %v111, %v655
  %v657 = vpop.f32.mrb[0].mxu0
  %v658 = vpop.f32.mrb[0].mxu0
  %v659 = vadd.f32 %v111, %v658
  %v660 = vpop.f32.mrb[0].mxu0
  %661 = vmatprep.mubr.bf16.mxu0 0
  %662 = vmatmul.mubr.bf16.gmra.mrb[0].mxu0 %v380
  %v663 = vpop.f32.mrb[0].mxu0
  %v664 = vadd.f32 %v111, %v663
  %v665 = vpop.f32.mrb[0].mxu0
  %v666 = vpop.f32.mrb[0].mxu0
  %v667 = vadd.f32 %v111, %v666
  %v668 = vpop.f32.mrb[0].mxu0
  %669 = vmatprep.mubr.bf16.mxu0 0
  %670 = vmatmul.mubr.bf16.gmra.mrb[0].mxu0 %v383
  %v671 = vpop.f32.mrb[0].mxu0
  %v672 = vadd.f32 %v111, %v671
  %v673 = vpop.f32.mrb[0].mxu0
  %v674 = vpop.f32.mrb[0].mxu0
  %v675 = vadd.f32 %v111, %v674
  %v676 = vpop.f32.mrb[0].mxu0
  %677 = vdwg.mxu0
  %v678 = vmax.f32 %v424, 0.0
  %v679 = vmax.f32 %v427, 0.0
  %v680 = vmax.f32 %v432, 0.0
  %v681 = vmax.f32 %v435, 0.0
  %v682 = vmax.f32 %v440, 0.0
  %v683 = vmax.f32 %v443, 0.0
  %v684 = vmax.f32 %v448, 0.0
  %v685 = vmax.f32 %v451, 0.0
  %v686 = vmax.f32 %v456, 0.0
  %v687 = vmax.f32 %v459, 0.0
  %v688 = vmax.f32 %v464, 0.0
  %v689 = vmax.f32 %v467, 0.0
  %v690 = vmax.f32 %v472, 0.0
  %v691 = vmax.f32 %v475, 0.0
  %v692 = vmax.f32 %v480, 0.0
  %v693 = vmax.f32 %v483, 0.0
  %v694 = vmax.f32 %v488, 0.0
  %v695 = vmax.f32 %v491, 0.0
  %v696 = vmax.f32 %v496, 0.0
  %v697 = vmax.f32 %v499, 0.0
  %v698 = vmax.f32 %v504, 0.0
  %v699 = vmax.f32 %v507, 0.0
  %v700 = vmax.f32 %v512, 0.0
  %v701 = vmax.f32 %v515, 0.0
  %v702 = vmax.f32 %v520, 0.0
  %v703 = vmax.f32 %v523, 0.0
  %v704 = vmax.f32 %v528, 0.0
  %v705 = vmax.f32 %v531, 0.0
  %v706 = vmax.f32 %v536, 0.0
  %v707 = vmax.f32 %v539, 0.0
  %v708 = vmax.f32 %v544, 0.0
  %v709 = vmax.f32 %v547, 0.0
  %v710 = vmax.f32 %v552, 0.0
  %v711 = vmax.f32 %v555, 0.0
  %v712 = vmax.f32 %v560, 0.0
  %v713 = vmax.f32 %v563, 0.0
  %v714 = vmax.f32 %v568, 0.0
  %v715 = vmax.f32 %v571, 0.0
  %v716 = vmax.f32 %v576, 0.0
  %v717 = vmax.f32 %v579, 0.0
  %v718 = vmax.f32 %v584, 0.0
  %v719 = vmax.f32 %v587, 0.0
  %v720 = vmax.f32 %v592, 0.0
  %v721 = vmax.f32 %v595, 0.0
  %v722 = vmax.f32 %v600, 0.0
  %v723 = vmax.f32 %v603, 0.0
  %v724 = vmax.f32 %v608, 0.0
  %v725 = vmax.f32 %v611, 0.0
  %v726 = vmax.f32 %v616, 0.0
  %v727 = vmax.f32 %v619, 0.0
  %v728 = vmax.f32 %v624, 0.0
  %v729 = vmax.f32 %v627, 0.0
  %v730 = vmax.f32 %v632, 0.0
  %v731 = vmax.f32 %v635, 0.0
  %v732 = vmax.f32 %v640, 0.0
  %v733 = vmax.f32 %v643, 0.0
  %v734 = vmax.f32 %v648, 0.0
  %v735 = vmax.f32 %v651, 0.0
  %v736 = vmax.f32 %v656, 0.0
  %v737 = vmax.f32 %v659, 0.0
  %v738 = vmax.f32 %v664, 0.0
  %v739 = vmax.f32 %v667, 0.0
  %v740 = vmax.f32 %v672, 0.0
  %v741 = vmax.f32 %v675, 0.0
  %v742 = vsel %vm30, %v678, 0.0
  %v743 = vsel %vm30, %v679, 0.0
  %v744 = vadd.f32 %v742, %v743
  %v745 = vsel %vm30, %v680, 0.0
  %v746 = vadd.f32 %v744, %v745
  %v747 = vsel %vm30, %v681, 0.0
  %v748 = vadd.f32 %v746, %v747
  %v749 = vsel %vm30, %v682, 0.0
  %v750 = vadd.f32 %v748, %v749
  %v751 = vsel %vm30, %v683, 0.0
  %v752 = vadd.f32 %v750, %v751
  %v753 = vsel %vm30, %v684, 0.0
  %v754 = vadd.f32 %v752, %v753
  %v755 = vsel %vm30, %v685, 0.0
  %v756 = vadd.f32 %v754, %v755
  %v757 = vsel %vm30, %v686, 0.0
  %v758 = vadd.f32 %v756, %v757
  %v759 = vsel %vm30, %v687, 0.0
  %v760 = vadd.f32 %v758, %v759
  %v761 = vsel %vm30, %v688, 0.0
  %v762 = vadd.f32 %v760, %v761
  %v763 = vsel %vm30, %v689, 0.0
  %v764 = vadd.f32 %v762, %v763
  %v765 = vsel %vm30, %v690, 0.0
  %v766 = vadd.f32 %v764, %v765
  %v767 = vsel %vm30, %v691, 0.0
  %v768 = vadd.f32 %v766, %v767
  %v769 = vsel %vm30, %v692, 0.0
  %v770 = vadd.f32 %v768, %v769
  %v771 = vsel %vm30, %v693, 0.0
  %v772 = vadd.f32 %v770, %v771
  %v773 = vsel %vm30, %v694, 0.0
  %v774 = vadd.f32 %v772, %v773
  %v775 = vsel %vm30, %v695, 0.0
  %v776 = vadd.f32 %v774, %v775
  %v777 = vsel %vm30, %v696, 0.0
  %v778 = vadd.f32 %v776, %v777
  %v779 = vsel %vm30, %v697, 0.0
  %v780 = vadd.f32 %v778, %v779
  %v781 = vsel %vm30, %v698, 0.0
  %v782 = vadd.f32 %v780, %v781
  %v783 = vsel %vm30, %v699, 0.0
  %v784 = vadd.f32 %v782, %v783
  %v785 = vsel %vm30, %v700, 0.0
  %v786 = vadd.f32 %v784, %v785
  %v787 = vsel %vm30, %v701, 0.0
  %v788 = vadd.f32 %v786, %v787
  %v789 = vsel %vm30, %v702, 0.0
  %v790 = vadd.f32 %v788, %v789
  %v791 = vsel %vm30, %v703, 0.0
  %v792 = vadd.f32 %v790, %v791
  %v793 = vsel %vm30, %v704, 0.0
  %v794 = vadd.f32 %v792, %v793
  %v795 = vsel %vm30, %v705, 0.0
  %v796 = vadd.f32 %v794, %v795
  %v797 = vsel %vm30, %v706, 0.0
  %v798 = vadd.f32 %v796, %v797
  %v799 = vsel %vm30, %v707, 0.0
  %v800 = vadd.f32 %v798, %v799
  %v801 = vsel %vm30, %v708, 0.0
  %v802 = vadd.f32 %v800, %v801
  %v803 = vsel %vm30, %v709, 0.0
  %v804 = vadd.f32 %v802, %v803
  %v805 = vsel %vm30, %v710, 0.0
  %v806 = vadd.f32 %v804, %v805
  %v807 = vsel %vm30, %v711, 0.0
  %v808 = vadd.f32 %v806, %v807
  %v809 = vsel %vm30, %v712, 0.0
  %v810 = vadd.f32 %v808, %v809
  %v811 = vsel %vm30, %v713, 0.0
  %v812 = vadd.f32 %v810, %v811
  %v813 = vsel %vm30, %v714, 0.0
  %v814 = vadd.f32 %v812, %v813
  %v815 = vsel %vm30, %v715, 0.0
  %v816 = vadd.f32 %v814, %v815
  %v817 = vsel %vm30, %v716, 0.0
  %v818 = vadd.f32 %v816, %v817
  %v819 = vsel %vm30, %v717, 0.0
  %v820 = vadd.f32 %v818, %v819
  %v821 = vsel %vm30, %v718, 0.0
  %v822 = vadd.f32 %v820, %v821
  %v823 = vsel %vm30, %v719, 0.0
  %v824 = vadd.f32 %v822, %v823
  %v825 = vsel %vm30, %v720, 0.0
  %v826 = vadd.f32 %v824, %v825
  %v827 = vsel %vm30, %v721, 0.0
  %v828 = vadd.f32 %v826, %v827
  %v829 = vsel %vm30, %v722, 0.0
  %v830 = vadd.f32 %v828, %v829
  %v831 = vsel %vm30, %v723, 0.0
  %v832 = vadd.f32 %v830, %v831
  %v833 = vsel %vm30, %v724, 0.0
  %v834 = vadd.f32 %v832, %v833
  %v835 = vsel %vm30, %v725, 0.0
  %v836 = vadd.f32 %v834, %v835
  %v837 = vsel %vm30, %v726, 0.0
  %v838 = vadd.f32 %v836, %v837
  %v839 = vsel %vm30, %v727, 0.0
  %v840 = vadd.f32 %v838, %v839
  %v841 = vsel %vm30, %v728, 0.0
  %v842 = vadd.f32 %v840, %v841
  %v843 = vsel %vm30, %v729, 0.0
  %v844 = vadd.f32 %v842, %v843
  %v845 = vsel %vm30, %v730, 0.0
  %v846 = vadd.f32 %v844, %v845
  %v847 = vsel %vm30, %v731, 0.0
  %v848 = vadd.f32 %v846, %v847
  %v849 = vsel %vm30, %v732, 0.0
  %v850 = vadd.f32 %v848, %v849
  %v851 = vsel %vm30, %v733, 0.0
  %v852 = vadd.f32 %v850, %v851
  %v853 = vsel %vm30, %v734, 0.0
  %v854 = vadd.f32 %v852, %v853
  %v855 = vsel %vm30, %v735, 0.0
  %v856 = vadd.f32 %v854, %v855
  %v857 = vsel %vm30, %v736, 0.0
  %v858 = vadd.f32 %v856, %v857
  %v859 = vsel %vm30, %v737, 0.0
  %v860 = vadd.f32 %v858, %v859
  %v861 = vsel %vm30, %v738, 0.0
  %v862 = vadd.f32 %v860, %v861
  %v863 = vsel %vm30, %v739, 0.0
  %v864 = vadd.f32 %v862, %v863
  %v865 = vsel %vm30, %v740, 0.0
  %v866 = vadd.f32 %v864, %v865
  %v867 = vsel %vm30, %v741, 0.0
  %v868 = vadd.f32 %v866, %v867
  %v869 = vrot.slane %v868, 4
  %v870 = vadd.f32 %v868, %v869
  %v871 = vrot.slane %v870, 2
  %v872 = vadd.f32 %v870, %v871
  %v873 = vrot.slane %v872, 1
  %v874 = vadd.f32 %v872, %v873
  %v875 = vmul.f32 %v678, %v678
  %v876 = vmul.f32 %v679, %v679
  %v877 = vmul.f32 %v680, %v680
  %v878 = vmul.f32 %v681, %v681
  %v879 = vmul.f32 %v682, %v682
  %v880 = vmul.f32 %v683, %v683
  %v881 = vmul.f32 %v684, %v684
  %v882 = vmul.f32 %v685, %v685
  %v883 = vmul.f32 %v686, %v686
  %v884 = vmul.f32 %v687, %v687
  %v885 = vmul.f32 %v688, %v688
  %v886 = vmul.f32 %v689, %v689
  %v887 = vmul.f32 %v690, %v690
  %v888 = vmul.f32 %v691, %v691
  %v889 = vmul.f32 %v692, %v692
  %v890 = vmul.f32 %v693, %v693
  %v891 = vmul.f32 %v694, %v694
  %v892 = vmul.f32 %v695, %v695
  %v893 = vmul.f32 %v696, %v696
  %v894 = vmul.f32 %v697, %v697
  %v895 = vmul.f32 %v698, %v698
  %v896 = vmul.f32 %v699, %v699
  %v897 = vmul.f32 %v700, %v700
  %v898 = vmul.f32 %v701, %v701
  %v899 = vmul.f32 %v702, %v702
  %v900 = vmul.f32 %v703, %v703
  %v901 = vmul.f32 %v704, %v704
  %v902 = vmul.f32 %v705, %v705
  %v903 = vmul.f32 %v706, %v706
  %v904 = vmul.f32 %v707, %v707
  %v905 = vmul.f32 %v708, %v708
  %v906 = vmul.f32 %v709, %v709
  %v907 = vmul.f32 %v710, %v710
  %v908 = vmul.f32 %v711, %v711
  %v909 = vmul.f32 %v712, %v712
  %v910 = vmul.f32 %v713, %v713
  %v911 = vmul.f32 %v714, %v714
  %v912 = vmul.f32 %v715, %v715
  %v913 = vmul.f32 %v716, %v716
  %v914 = vmul.f32 %v717, %v717
  %v915 = vmul.f32 %v718, %v718
  %v916 = vmul.f32 %v719, %v719
  %v917 = vmul.f32 %v720, %v720
  %v918 = vmul.f32 %v721, %v721
  %v919 = vmul.f32 %v722, %v722
  %v920 = vmul.f32 %v723, %v723
  %v921 = vmul.f32 %v724, %v724
  %v922 = vmul.f32 %v725, %v725
  %v923 = vmul.f32 %v726, %v726
  %v924 = vmul.f32 %v727, %v727
  %v925 = vmul.f32 %v728, %v728
  %v926 = vmul.f32 %v729, %v729
  %v927 = vmul.f32 %v730, %v730
  %v928 = vmul.f32 %v731, %v731
  %v929 = vmul.f32 %v732, %v732
  %v930 = vmul.f32 %v733, %v733
  %v931 = vmul.f32 %v734, %v734
  %v932 = vmul.f32 %v735, %v735
  %v933 = vmul.f32 %v736, %v736
  %v934 = vmul.f32 %v737, %v737
  %v935 = vmul.f32 %v738, %v738
  %v936 = vmul.f32 %v739, %v739
  %v937 = vmul.f32 %v740, %v740
  %v938 = vmul.f32 %v741, %v741
  %v939 = vsel %vm30, %v875, 0.0
  %v940 = vsel %vm30, %v876, 0.0
  %v941 = vadd.f32 %v939, %v940
  %v942 = vsel %vm30, %v877, 0.0
  %v943 = vadd.f32 %v941, %v942
  %v944 = vsel %vm30, %v878, 0.0
  %v945 = vadd.f32 %v943, %v944
  %v946 = vsel %vm30, %v879, 0.0
  %v947 = vadd.f32 %v945, %v946
  %v948 = vsel %vm30, %v880, 0.0
  %v949 = vadd.f32 %v947, %v948
  %v950 = vsel %vm30, %v881, 0.0
  %v951 = vadd.f32 %v949, %v950
  %v952 = vsel %vm30, %v882, 0.0
  %v953 = vadd.f32 %v951, %v952
  %v954 = vsel %vm30, %v883, 0.0
  %v955 = vadd.f32 %v953, %v954
  %v956 = vsel %vm30, %v884, 0.0
  %v957 = vadd.f32 %v955, %v956
  %v958 = vsel %vm30, %v885, 0.0
  %v959 = vadd.f32 %v957, %v958
  %v960 = vsel %vm30, %v886, 0.0
  %v961 = vadd.f32 %v959, %v960
  %v962 = vsel %vm30, %v887, 0.0
  %v963 = vadd.f32 %v961, %v962
  %v964 = vsel %vm30, %v888, 0.0
  %v965 = vadd.f32 %v963, %v964
  %v966 = vsel %vm30, %v889, 0.0
  %v967 = vadd.f32 %v965, %v966
  %v968 = vsel %vm30, %v890, 0.0
  %v969 = vadd.f32 %v967, %v968
  %v970 = vsel %vm30, %v891, 0.0
  %v971 = vadd.f32 %v969, %v970
  %v972 = vsel %vm30, %v892, 0.0
  %v973 = vadd.f32 %v971, %v972
  %v974 = vsel %vm30, %v893, 0.0
  %v975 = vadd.f32 %v973, %v974
  %v976 = vsel %vm30, %v894, 0.0
  %v977 = vadd.f32 %v975, %v976
  %v978 = vsel %vm30, %v895, 0.0
  %v979 = vadd.f32 %v977, %v978
  %v980 = vsel %vm30, %v896, 0.0
  %v981 = vadd.f32 %v979, %v980
  %v982 = vsel %vm30, %v897, 0.0
  %v983 = vadd.f32 %v981, %v982
  %v984 = vsel %vm30, %v898, 0.0
  %v985 = vadd.f32 %v983, %v984
  %v986 = vsel %vm30, %v899, 0.0
  %v987 = vadd.f32 %v985, %v986
  %v988 = vsel %vm30, %v900, 0.0
  %v989 = vadd.f32 %v987, %v988
  %v990 = vsel %vm30, %v901, 0.0
  %v991 = vadd.f32 %v989, %v990
  %v992 = vsel %vm30, %v902, 0.0
  %v993 = vadd.f32 %v991, %v992
  %v994 = vsel %vm30, %v903, 0.0
  %v995 = vadd.f32 %v993, %v994
  %v996 = vsel %vm30, %v904, 0.0
  %v997 = vadd.f32 %v995, %v996
  %v998 = vsel %vm30, %v905, 0.0
  %v999 = vadd.f32 %v997, %v998
  %v1000 = vsel %vm30, %v906, 0.0
  %v1001 = vadd.f32 %v999, %v1000
  %v1002 = vsel %vm30, %v907, 0.0
  %v1003 = vadd.f32 %v1001, %v1002
  %v1004 = vsel %vm30, %v908, 0.0
  %v1005 = vadd.f32 %v1003, %v1004
  %v1006 = vsel %vm30, %v909, 0.0
  %v1007 = vadd.f32 %v1005, %v1006
  %v1008 = vsel %vm30, %v910, 0.0
  %v1009 = vadd.f32 %v1007, %v1008
  %v1010 = vsel %vm30, %v911, 0.0
  %v1011 = vadd.f32 %v1009, %v1010
  %v1012 = vsel %vm30, %v912, 0.0
  %v1013 = vadd.f32 %v1011, %v1012
  %v1014 = vsel %vm30, %v913, 0.0
  %v1015 = vadd.f32 %v1013, %v1014
  %v1016 = vsel %vm30, %v914, 0.0
  %v1017 = vadd.f32 %v1015, %v1016
  %v1018 = vsel %vm30, %v915, 0.0
  %v1019 = vadd.f32 %v1017, %v1018
  %v1020 = vsel %vm30, %v916, 0.0
  %v1021 = vadd.f32 %v1019, %v1020
  %v1022 = vsel %vm30, %v917, 0.0
  %v1023 = vadd.f32 %v1021, %v1022
  %v1024 = vsel %vm30, %v918, 0.0
  %v1025 = vadd.f32 %v1023, %v1024
  %v1026 = vsel %vm30, %v919, 0.0
  %v1027 = vadd.f32 %v1025, %v1026
  %v1028 = vsel %vm30, %v920, 0.0
  %v1029 = vadd.f32 %v1027, %v1028
  %v1030 = vsel %vm30, %v921, 0.0
  %v1031 = vadd.f32 %v1029, %v1030
  %v1032 = vsel %vm30, %v922, 0.0
  %v1033 = vadd.f32 %v1031, %v1032
  %v1034 = vsel %vm30, %v923, 0.0
  %v1035 = vadd.f32 %v1033, %v1034
  %v1036 = vsel %vm30, %v924, 0.0
  %v1037 = vadd.f32 %v1035, %v1036
  %v1038 = vsel %vm30, %v925, 0.0
  %v1039 = vadd.f32 %v1037, %v1038
  %v1040 = vsel %vm30, %v926, 0.0
  %v1041 = vadd.f32 %v1039, %v1040
  %v1042 = vsel %vm30, %v927, 0.0
  %v1043 = vadd.f32 %v1041, %v1042
  %v1044 = vsel %vm30, %v928, 0.0
  %v1045 = vadd.f32 %v1043, %v1044
  %v1046 = vsel %vm30, %v929, 0.0
  %v1047 = vadd.f32 %v1045, %v1046
  %v1048 = vsel %vm30, %v930, 0.0
  %v1049 = vadd.f32 %v1047, %v1048
  %v1050 = vsel %vm30, %v931, 0.0
  %v1051 = vadd.f32 %v1049, %v1050
  %v1052 = vsel %vm30, %v932, 0.0
  %v1053 = vadd.f32 %v1051, %v1052
  %v1054 = vsel %vm30, %v933, 0.0
  %v1055 = vadd.f32 %v1053, %v1054
  %v1056 = vsel %vm30, %v934, 0.0
  %v1057 = vadd.f32 %v1055, %v1056
  %v1058 = vsel %vm30, %v935, 0.0
  %v1059 = vadd.f32 %v1057, %v1058
  %v1060 = vsel %vm30, %v936, 0.0
  %v1061 = vadd.f32 %v1059, %v1060
  %v1062 = vsel %vm30, %v937, 0.0
  %v1063 = vadd.f32 %v1061, %v1062
  %v1064 = vsel %vm30, %v938, 0.0
  %v1065 = vadd.f32 %v1063, %v1064
  %v1066 = vrot.slane %v1065, 4
  %v1067 = vadd.f32 %v1065, %v1066
  %v1068 = vrot.slane %v1067, 2
  %v1069 = vadd.f32 %v1067, %v1068
  %v1070 = vrot.slane %v1069, 1
  %v1071 = vadd.f32 %v1069, %v1070
  %v1072 = vmul.f32 %v874, 0.001953125
  %v1073 = vmul.f32 %v1071, 0.001953125
  %v1074 = vmul.f32 %v1072, %v1072
  %v1075 = vsub.f32 %v1073, %v1074
  %v1076 = vmax.f32 %v1075, 0.0
  %v1077 = vld [vmem:[%s6] sm:$0x1]
  %v1078 = vadd.f32 %v1076, 1e-05
  %v1079 = vrsqrt.pop %v1078
  %v1080 = vmul.f32 %v1077, %v1079
  %v1081 = vld [vmem:[%s7] sm:$0x1]
  %v1082 = vmul.f32 %v1072, %v1080
  %v1083 = vsub.f32 %v1081, %v1082
  %v1085 = vlaneseq
  %v1086 = vshrl.u32 %v1085, 7
  %v1087 = vsub.s32 0, %v1086
  %v1088 = vrot.slane %v1080, %v1087
  %v1090 = vmul.f32 %v678, %v1088
  %v1091 = vmul.f32 %v679, %v1088
  %v1092 = vmul.f32 %v680, %v1088
  %v1093 = vmul.f32 %v681, %v1088
  %v1094 = vmul.f32 %v682, %v1088
  %v1095 = vmul.f32 %v683, %v1088
  %v1096 = vmul.f32 %v684, %v1088
  %v1097 = vmul.f32 %v685, %v1088
  %v1098 = vmul.f32 %v686, %v1088
  %v1099 = vmul.f32 %v687, %v1088
  %v1100 = vmul.f32 %v688, %v1088
  %v1101 = vmul.f32 %v689, %v1088
  %v1102 = vmul.f32 %v690, %v1088
  %v1103 = vmul.f32 %v691, %v1088
  %v1104 = vmul.f32 %v692, %v1088
  %v1105 = vmul.f32 %v693, %v1088
  %v1106 = vmul.f32 %v694, %v1088
  %v1107 = vmul.f32 %v695, %v1088
  %v1108 = vmul.f32 %v696, %v1088
  %v1109 = vmul.f32 %v697, %v1088
  %v1110 = vmul.f32 %v698, %v1088
  %v1111 = vmul.f32 %v699, %v1088
  %v1112 = vmul.f32 %v700, %v1088
  %v1113 = vmul.f32 %v701, %v1088
  %v1114 = vmul.f32 %v702, %v1088
  %v1115 = vmul.f32 %v703, %v1088
  %v1116 = vmul.f32 %v704, %v1088
  %v1117 = vmul.f32 %v705, %v1088
  %v1118 = vmul.f32 %v706, %v1088
  %v1119 = vmul.f32 %v707, %v1088
  %v1120 = vmul.f32 %v708, %v1088
  %v1121 = vmul.f32 %v709, %v1088
  %v1122 = vmul.f32 %v710, %v1088
  %v1123 = vmul.f32 %v711, %v1088
  %v1124 = vmul.f32 %v712, %v1088
  %v1125 = vmul.f32 %v713, %v1088
  %v1126 = vmul.f32 %v714, %v1088
  %v1127 = vmul.f32 %v715, %v1088
  %v1128 = vmul.f32 %v716, %v1088
  %v1129 = vmul.f32 %v717, %v1088
  %v1130 = vmul.f32 %v718, %v1088
  %v1131 = vmul.f32 %v719, %v1088
  %v1132 = vmul.f32 %v720, %v1088
  %v1133 = vmul.f32 %v721, %v1088
  %v1134 = vmul.f32 %v722, %v1088
  %v1135 = vmul.f32 %v723, %v1088
  %v1136 = vmul.f32 %v724, %v1088
  %v1137 = vmul.f32 %v725, %v1088
  %v1138 = vmul.f32 %v726, %v1088
  %v1139 = vmul.f32 %v727, %v1088
  %v1140 = vmul.f32 %v728, %v1088
  %v1141 = vmul.f32 %v729, %v1088
  %v1142 = vmul.f32 %v730, %v1088
  %v1143 = vmul.f32 %v731, %v1088
  %v1144 = vmul.f32 %v732, %v1088
  %v1145 = vmul.f32 %v733, %v1088
  %v1146 = vmul.f32 %v734, %v1088
  %v1147 = vmul.f32 %v735, %v1088
  %v1148 = vmul.f32 %v736, %v1088
  %v1149 = vmul.f32 %v737, %v1088
  %v1150 = vmul.f32 %v738, %v1088
  %v1151 = vmul.f32 %v739, %v1088
  %v1152 = vmul.f32 %v740, %v1088
  %v1153 = vmul.f32 %v741, %v1088
  %v1155 = vlaneseq
  %v1156 = vshrl.u32 %v1155, 7
  %v1157 = vsub.s32 0, %v1156
  %v1158 = vrot.slane %v1083, %v1157
  %v1160 = vadd.f32 %v1090, %v1158
  %v1161 = vadd.f32 %v1091, %v1158
  %v1162 = vadd.f32 %v1092, %v1158
  %v1163 = vadd.f32 %v1093, %v1158
  %v1164 = vadd.f32 %v1094, %v1158
  %v1165 = vadd.f32 %v1095, %v1158
  %v1166 = vadd.f32 %v1096, %v1158
  %v1167 = vadd.f32 %v1097, %v1158
  %v1168 = vadd.f32 %v1098, %v1158
  %v1169 = vadd.f32 %v1099, %v1158
  %v1170 = vadd.f32 %v1100, %v1158
  %v1171 = vadd.f32 %v1101, %v1158
  %v1172 = vadd.f32 %v1102, %v1158
  %v1173 = vadd.f32 %v1103, %v1158
  %v1174 = vadd.f32 %v1104, %v1158
  %v1175 = vadd.f32 %v1105, %v1158
  %v1176 = vadd.f32 %v1106, %v1158
  %v1177 = vadd.f32 %v1107, %v1158
  %v1178 = vadd.f32 %v1108, %v1158
  %v1179 = vadd.f32 %v1109, %v1158
  %v1180 = vadd.f32 %v1110, %v1158
  %v1181 = vadd.f32 %v1111, %v1158
  %v1182 = vadd.f32 %v1112, %v1158
  %v1183 = vadd.f32 %v1113, %v1158
  %v1184 = vadd.f32 %v1114, %v1158
  %v1185 = vadd.f32 %v1115, %v1158
  %v1186 = vadd.f32 %v1116, %v1158
  %v1187 = vadd.f32 %v1117, %v1158
  %v1188 = vadd.f32 %v1118, %v1158
  %v1189 = vadd.f32 %v1119, %v1158
  %v1190 = vadd.f32 %v1120, %v1158
  %v1191 = vadd.f32 %v1121, %v1158
  %v1192 = vadd.f32 %v1122, %v1158
  %v1193 = vadd.f32 %v1123, %v1158
  %v1194 = vadd.f32 %v1124, %v1158
  %v1195 = vadd.f32 %v1125, %v1158
  %v1196 = vadd.f32 %v1126, %v1158
  %v1197 = vadd.f32 %v1127, %v1158
  %v1198 = vadd.f32 %v1128, %v1158
  %v1199 = vadd.f32 %v1129, %v1158
  %v1200 = vadd.f32 %v1130, %v1158
  %v1201 = vadd.f32 %v1131, %v1158
  %v1202 = vadd.f32 %v1132, %v1158
  %v1203 = vadd.f32 %v1133, %v1158
  %v1204 = vadd.f32 %v1134, %v1158
  %v1205 = vadd.f32 %v1135, %v1158
  %v1206 = vadd.f32 %v1136, %v1158
  %v1207 = vadd.f32 %v1137, %v1158
  %v1208 = vadd.f32 %v1138, %v1158
  %v1209 = vadd.f32 %v1139, %v1158
  %v1210 = vadd.f32 %v1140, %v1158
  %v1211 = vadd.f32 %v1141, %v1158
  %v1212 = vadd.f32 %v1142, %v1158
  %v1213 = vadd.f32 %v1143, %v1158
  %v1214 = vadd.f32 %v1144, %v1158
  %v1215 = vadd.f32 %v1145, %v1158
  %v1216 = vadd.f32 %v1146, %v1158
  %v1217 = vadd.f32 %v1147, %v1158
  %v1218 = vadd.f32 %v1148, %v1158
  %v1219 = vadd.f32 %v1149, %v1158
  %v1220 = vadd.f32 %v1150, %v1158
  %v1221 = vadd.f32 %v1151, %v1158
  %v1222 = vadd.f32 %v1152, %v1158
  %v1223 = vadd.f32 %v1153, %v1158
  %1224 = vst.msk [vmem:[#allocation2 + $0x18] sm:$0xff] %vm30, %v1160
  %1225 = vst.msk [vmem:[#allocation2 + $0x20] sm:$0xff] %vm30, %v1161
  %1226 = vst.msk [vmem:[#allocation2 + $0x28] sm:$0xff] %vm30, %v1162
  %1227 = vst.msk [vmem:[#allocation2 + $0x30] sm:$0xff] %vm30, %v1163
  %1228 = vst.msk [vmem:[#allocation2 + $0x38] sm:$0xff] %vm30, %v1164
  %1229 = vst.msk [vmem:[#allocation2 + $0x40] sm:$0xff] %vm30, %v1165
  %1230 = vst.msk [vmem:[#allocation2 + $0x48] sm:$0xff] %vm30, %v1166
  %1231 = vst.msk [vmem:[#allocation2 + $0x50] sm:$0xff] %vm30, %v1167
  %1232 = vst.msk [vmem:[#allocation2 + $0x58] sm:$0xff] %vm30, %v1168
  %1233 = vst.msk [vmem:[#allocation2 + $0x60] sm:$0xff] %vm30, %v1169
  %1234 = vst.msk [vmem:[#allocation2 + $0x68] sm:$0xff] %vm30, %v1170
  %1235 = vst.msk [vmem:[#allocation2 + $0x70] sm:$0xff] %vm30, %v1171
  %1236 = vst.msk [vmem:[#allocation2 + $0x78] sm:$0xff] %vm30, %v1172
  %1237 = vst.msk [vmem:[#allocation2 + $0x80] sm:$0xff] %vm30, %v1173
  %1238 = vst.msk [vmem:[#allocation2 + $0x88] sm:$0xff] %vm30, %v1174
  %1239 = vst.msk [vmem:[#allocation2 + $0x90] sm:$0xff] %vm30, %v1175
  %1240 = vst.msk [vmem:[#allocation2 + $0x98] sm:$0xff] %vm30, %v1176
  %1241 = vst.msk [vmem:[#allocation2 + $0xa0] sm:$0xff] %vm30, %v1177
  %1242 = vst.msk [vmem:[#allocation2 + $0xa8] sm:$0xff] %vm30, %v1178
  %1243 = vst.msk [vmem:[#allocation2 + $0xb0] sm:$0xff] %vm30, %v1179
  %1244 = vst.msk [vmem:[#allocation2 + $0xb8] sm:$0xff] %vm30, %v1180
  %1245 = vst.msk [vmem:[#allocation2 + $0xc0] sm:$0xff] %vm30, %v1181
  %1246 = vst.msk [vmem:[#allocation2 + $0xc8] sm:$0xff] %vm30, %v1182
  %1247 = vst.msk [vmem:[#allocation2 + $0xd0] sm:$0xff] %vm30, %v1183
  %1248 = vst.msk [vmem:[#allocation2 + $0xd8] sm:$0xff] %vm30, %v1184
  %1249 = vst.msk [vmem:[#allocation2 + $0xe0] sm:$0xff] %vm30, %v1185
  %1250 = vst.msk [vmem:[#allocation2 + $0xe8] sm:$0xff] %vm30, %v1186
  %1251 = vst.msk [vmem:[#allocation2 + $0xf0] sm:$0xff] %vm30, %v1187
  %1252 = vst.msk [vmem:[#allocation2 + $0xf8] sm:$0xff] %vm30, %v1188
  %1253 = vst.msk [vmem:[#allocation2 + $0x100] sm:$0xff] %vm30, %v1189
  %1254 = vst.msk [vmem:[#allocation2 + $0x108] sm:$0xff] %vm30, %v1190
  %1255 = vst.msk [vmem:[#allocation2 + $0x110] sm:$0xff] %vm30, %v1191
  %1256 = vst.msk [vmem:[#allocation2 + $0x118] sm:$0xff] %vm30, %v1192
  %1257 = vst.msk [vmem:[#allocation2 + $0x120] sm:$0xff] %vm30, %v1193
  %1258 = vst.msk [vmem:[#allocation2 + $0x128] sm:$0xff] %vm30, %v1194
  %1259 = vst.msk [vmem:[#allocation2 + $0x130] sm:$0xff] %vm30, %v1195
  %1260 = vst.msk [vmem:[#allocation2 + $0x138] sm:$0xff] %vm30, %v1196
  %1261 = vst.msk [vmem:[#allocation2 + $0x140] sm:$0xff] %vm30, %v1197
  %1262 = vst.msk [vmem:[#allocation2 + $0x148] sm:$0xff] %vm30, %v1198
  %1263 = vst.msk [vmem:[#allocation2 + $0x150] sm:$0xff] %vm30, %v1199
  %1264 = vst.msk [vmem:[#allocation2 + $0x158] sm:$0xff] %vm30, %v1200
  %1265 = vst.msk [vmem:[#allocation2 + $0x160] sm:$0xff] %vm30, %v1201
  %1266 = vst.msk [vmem:[#allocation2 + $0x168] sm:$0xff] %vm30, %v1202
  %1267 = vst.msk [vmem:[#allocation2 + $0x170] sm:$0xff] %vm30, %v1203
  %1268 = vst.msk [vmem:[#allocation2 + $0x178] sm:$0xff] %vm30, %v1204
  %1269 = vst.msk [vmem:[#allocation2 + $0x180] sm:$0xff] %vm30, %v1205
  %1270 = vst.msk [vmem:[#allocation2 + $0x188] sm:$0xff] %vm30, %v1206
  %1271 = vst.msk [vmem:[#allocation2 + $0x190] sm:$0xff] %vm30, %v1207
  %1272 = vst.msk [vmem:[#allocation2 + $0x198] sm:$0xff] %vm30, %v1208
  %1273 = vst.msk [vmem:[#allocation2 + $0x1a0] sm:$0xff] %vm30, %v1209
  %1274 = vst.msk [vmem:[#allocation2 + $0x1a8] sm:$0xff] %vm30, %v1210
  %1275 = vst.msk [vmem:[#allocation2 + $0x1b0] sm:$0xff] %vm30, %v1211
  %1276 = vst.msk [vmem:[#allocation2 + $0x1b8] sm:$0xff] %vm30, %v1212
  %1277 = vst.msk [vmem:[#allocation2 + $0x1c0] sm:$0xff] %vm30, %v1213
  %1278 = vst.msk [vmem:[#allocation2 + $0x1c8] sm:$0xff] %vm30, %v1214
  %1279 = vst.msk [vmem:[#allocation2 + $0x1d0] sm:$0xff] %vm30, %v1215
  %1280 = vst.msk [vmem:[#allocation2 + $0x1d8] sm:$0xff] %vm30, %v1216
  %1281 = vst.msk [vmem:[#allocation2 + $0x1e0] sm:$0xff] %vm30, %v1217
  %1282 = vst.msk [vmem:[#allocation2 + $0x1e8] sm:$0xff] %vm30, %v1218
  %1283 = vst.msk [vmem:[#allocation2 + $0x1f0] sm:$0xff] %vm30, %v1219
  %1284 = vst.msk [vmem:[#allocation2 + $0x1f8] sm:$0xff] %vm30, %v1220
  %1285 = vst.msk [vmem:[#allocation2 + $0x200] sm:$0xff] %vm30, %v1221
  %1286 = vst.msk [vmem:[#allocation2 + $0x208] sm:$0xff] %vm30, %v1222
  %1287 = vst.msk [vmem:[#allocation2 + $0x210] sm:$0xff] %vm30, %v1223
  %v1288 = vld [vmem:[%s1] sm:$0xff]
  %v1289 = vld [vmem:[%s1 + $0x8] sm:$0xff]
  %v1290 = vld [vmem:[%s1 + $0x10] sm:$0xff]
  %v1291 = vld [vmem:[%s1 + $0x18] sm:$0xff]
  %v1292 = vld [vmem:[%s1 + $0x20] sm:$0xff]
  %v1293 = vld [vmem:[%s1 + $0x28] sm:$0xff]
  %v1294 = vld [vmem:[%s1 + $0x30] sm:$0xff]
  %v1295 = vld [vmem:[%s1 + $0x38] sm:$0xff]
  %v1296 = vld [vmem:[%s1 + $0x40] sm:$0xff]
  %v1297 = vld [vmem:[%s1 + $0x48] sm:$0xff]
  %v1298 = vld [vmem:[%s1 + $0x50] sm:$0xff]
  %v1299 = vld [vmem:[%s1 + $0x58] sm:$0xff]
  %v1300 = vld [vmem:[%s1 + $0x60] sm:$0xff]
  %v1301 = vld [vmem:[%s1 + $0x68] sm:$0xff]
  %v1302 = vld [vmem:[%s1 + $0x70] sm:$0xff]
  %v1303 = vld [vmem:[%s1 + $0x78] sm:$0xff]
  %v1304 = vld [vmem:[%s1 + $0x80] sm:$0xff]
  %v1305 = vld [vmem:[%s1 + $0x88] sm:$0xff]
  %v1306 = vld [vmem:[%s1 + $0x90] sm:$0xff]
  %v1307 = vld [vmem:[%s1 + $0x98] sm:$0xff]
  %v1308 = vld [vmem:[%s1 + $0xa0] sm:$0xff]
  %v1309 = vld [vmem:[%s1 + $0xa8] sm:$0xff]
  %v1310 = vld [vmem:[%s1 + $0xb0] sm:$0xff]
  %v1311 = vld [vmem:[%s1 + $0xb8] sm:$0xff]
  %v1312 = vld [vmem:[%s1 + $0xc0] sm:$0xff]
  %v1313 = vld [vmem:[%s1 + $0xc8] sm:$0xff]
  %v1314 = vld [vmem:[%s1 + $0xd0] sm:$0xff]
  %v1315 = vld [vmem:[%s1 + $0xd8] sm:$0xff]
  %v1316 = vld [vmem:[%s1 + $0xe0] sm:$0xff]
  %v1317 = vld [vmem:[%s1 + $0xe8] sm:$0xff]
  %v1318 = vld [vmem:[%s1 + $0xf0] sm:$0xff]
  %v1319 = vld [vmem:[%s1 + $0xf8] sm:$0xff]
  %v1320 = vld [vmem:[%s1 + $0x100] sm:$0xff]
  %v1321 = vld [vmem:[%s1 + $0x108] sm:$0xff]
  %v1322 = vld [vmem:[%s1 + $0x110] sm:$0xff]
  %v1323 = vld [vmem:[%s1 + $0x118] sm:$0xff]
  %v1324 = vld [vmem:[%s1 + $0x120] sm:$0xff]
  %v1325 = vld [vmem:[%s1 + $0x128] sm:$0xff]
  %v1326 = vld [vmem:[%s1 + $0x130] sm:$0xff]
  %v1327 = vld [vmem:[%s1 + $0x138] sm:$0xff]
  %v1328 = vld [vmem:[%s1 + $0x140] sm:$0xff]
  %v1329 = vld [vmem:[%s1 + $0x148] sm:$0xff]
  %v1330 = vld [vmem:[%s1 + $0x150] sm:$0xff]
  %v1331 = vld [vmem:[%s1 + $0x158] sm:$0xff]
  %v1332 = vld [vmem:[%s1 + $0x160] sm:$0xff]
  %v1333 = vld [vmem:[%s1 + $0x168] sm:$0xff]
  %v1334 = vld [vmem:[%s1 + $0x170] sm:$0xff]
  %v1335 = vld [vmem:[%s1 + $0x178] sm:$0xff]
  %v1336 = vld [vmem:[%s1 + $0x180] sm:$0xff]
  %v1337 = vld [vmem:[%s1 + $0x188] sm:$0xff]
  %v1338 = vld [vmem:[%s1 + $0x190] sm:$0xff]
  %v1339 = vld [vmem:[%s1 + $0x198] sm:$0xff]
  %v1340 = vld [vmem:[%s1 + $0x1a0] sm:$0xff]
  %v1341 = vld [vmem:[%s1 + $0x1a8] sm:$0xff]
  %v1342 = vld [vmem:[%s1 + $0x1b0] sm:$0xff]
  %v1343 = vld [vmem:[%s1 + $0x1b8] sm:$0xff]
  %v1344 = vld [vmem:[%s1 + $0x1c0] sm:$0xff]
  %v1345 = vld [vmem:[%s1 + $0x1c8] sm:$0xff]
  %v1346 = vld [vmem:[%s1 + $0x1d0] sm:$0xff]
  %v1347 = vld [vmem:[%s1 + $0x1d8] sm:$0xff]
  %v1348 = vld [vmem:[%s1 + $0x1e0] sm:$0xff]
  %v1349 = vld [vmem:[%s1 + $0x1e8] sm:$0xff]
  %v1350 = vld [vmem:[%s1 + $0x1f0] sm:$0xff]
  %v1351 = vld [vmem:[%s1 + $0x1f8] sm:$0xff]
  %v1352 = vld [vmem:[#allocation2 + $0x7] sm:$0xff]
  %v1353 = vld [vmem:[#allocation2 + $0xf] sm:$0xff]
  %v1354 = vld [vmem:[#allocation2 + $0x17] sm:$0xff]
  %v1355 = vld [vmem:[#allocation2 + $0x1f] sm:$0xff]
  %v1356 = vld [vmem:[#allocation2 + $0x27] sm:$0xff]
  %v1357 = vld [vmem:[#allocation2 + $0x2f] sm:$0xff]
  %v1358 = vld [vmem:[#allocation2 + $0x37] sm:$0xff]
  %v1359 = vld [vmem:[#allocation2 + $0x3f] sm:$0xff]
  %v1360 = vld [vmem:[#allocation2 + $0x47] sm:$0xff]
  %v1361 = vld [vmem:[#allocation2 + $0x4f] sm:$0xff]
  %v1362 = vld [vmem:[#allocation2 + $0x57] sm:$0xff]
  %v1363 = vld [vmem:[#allocation2 + $0x5f] sm:$0xff]
  %v1364 = vld [vmem:[#allocation2 + $0x67] sm:$0xff]
  %v1365 = vld [vmem:[#allocation2 + $0x6f] sm:$0xff]
  %v1366 = vld [vmem:[#allocation2 + $0x77] sm:$0xff]
  %v1367 = vld [vmem:[#allocation2 + $0x7f] sm:$0xff]
  %v1368 = vld [vmem:[#allocation2 + $0x87] sm:$0xff]
  %v1369 = vld [vmem:[#allocation2 + $0x8f] sm:$0xff]
  %v1370 = vld [vmem:[#allocation2 + $0x97] sm:$0xff]
  %v1371 = vld [vmem:[#allocation2 + $0x9f] sm:$0xff]
  %v1372 = vld [vmem:[#allocation2 + $0xa7] sm:$0xff]
  %v1373 = vld [vmem:[#allocation2 + $0xaf] sm:$0xff]
  %v1374 = vld [vmem:[#allocation2 + $0xb7] sm:$0xff]
  %v1375 = vld [vmem:[#allocation2 + $0xbf] sm:$0xff]
  %v1376 = vld [vmem:[#allocation2 + $0xc7] sm:$0xff]
  %v1377 = vld [vmem:[#allocation2 + $0xcf] sm:$0xff]
  %v1378 = vld [vmem:[#allocation2 + $0xd7] sm:$0xff]
  %v1379 = vld [vmem:[#allocation2 + $0xdf] sm:$0xff]
  %v1380 = vld [vmem:[#allocation2 + $0xe7] sm:$0xff]
  %v1381 = vld [vmem:[#allocation2 + $0xef] sm:$0xff]
  %v1382 = vld [vmem:[#allocation2 + $0xf7] sm:$0xff]
  %v1383 = vld [vmem:[#allocation2 + $0xff] sm:$0xff]
  %v1384 = vld [vmem:[#allocation2 + $0x107] sm:$0xff]
  %v1385 = vld [vmem:[#allocation2 + $0x10f] sm:$0xff]
  %v1386 = vld [vmem:[#allocation2 + $0x117] sm:$0xff]
  %v1387 = vld [vmem:[#allocation2 + $0x11f] sm:$0xff]
  %v1388 = vld [vmem:[#allocation2 + $0x127] sm:$0xff]
  %v1389 = vld [vmem:[#allocation2 + $0x12f] sm:$0xff]
  %v1390 = vld [vmem:[#allocation2 + $0x137] sm:$0xff]
  %v1391 = vld [vmem:[#allocation2 + $0x13f] sm:$0xff]
  %v1392 = vld [vmem:[#allocation2 + $0x147] sm:$0xff]
  %v1393 = vld [vmem:[#allocation2 + $0x14f] sm:$0xff]
  %v1394 = vld [vmem:[#allocation2 + $0x157] sm:$0xff]
  %v1395 = vld [vmem:[#allocation2 + $0x15f] sm:$0xff]
  %v1396 = vld [vmem:[#allocation2 + $0x167] sm:$0xff]
  %v1397 = vld [vmem:[#allocation2 + $0x16f] sm:$0xff]
  %v1398 = vld [vmem:[#allocation2 + $0x177] sm:$0xff]
  %v1399 = vld [vmem:[#allocation2 + $0x17f] sm:$0xff]
  %v1400 = vld [vmem:[#allocation2 + $0x187] sm:$0xff]
  %v1401 = vld [vmem:[#allocation2 + $0x18f] sm:$0xff]
  %v1402 = vld [vmem:[#allocation2 + $0x197] sm:$0xff]
  %v1403 = vld [vmem:[#allocation2 + $0x19f] sm:$0xff]
  %v1404 = vld [vmem:[#allocation2 + $0x1a7] sm:$0xff]
  %v1405 = vld [vmem:[#allocation2 + $0x1af] sm:$0xff]
  %v1406 = vld [vmem:[#allocation2 + $0x1b7] sm:$0xff]
  %v1407 = vld [vmem:[#allocation2 + $0x1bf] sm:$0xff]
  %v1408 = vld [vmem:[#allocation2 + $0x1c7] sm:$0xff]
  %v1409 = vld [vmem:[#allocation2 + $0x1cf] sm:$0xff]
  %v1410 = vld [vmem:[#allocation2 + $0x1d7] sm:$0xff]
  %v1411 = vld [vmem:[#allocation2 + $0x1df] sm:$0xff]
  %v1412 = vld [vmem:[#allocation2 + $0x1e7] sm:$0xff]
  %v1413 = vld [vmem:[#allocation2 + $0x1ef] sm:$0xff]
  %v1414 = vld [vmem:[#allocation2 + $0x1f7] sm:$0xff]
  %v1415 = vld [vmem:[#allocation2 + $0x1ff] sm:$0xff]
  %v1416 = vand.u32 %v1288, 1
  %v1417 = vand.u32 %v1289, 1
  %v1418 = vand.u32 %v1290, 1
  %v1419 = vand.u32 %v1291, 1
  %v1420 = vand.u32 %v1292, 1
  %v1421 = vand.u32 %v1293, 1
  %v1422 = vand.u32 %v1294, 1
  %v1423 = vand.u32 %v1295, 1
  %v1424 = vand.u32 %v1296, 1
  %v1425 = vand.u32 %v1297, 1
  %v1426 = vand.u32 %v1298, 1
  %v1427 = vand.u32 %v1299, 1
  %v1428 = vand.u32 %v1300, 1
  %v1429 = vand.u32 %v1301, 1
  %v1430 = vand.u32 %v1302, 1
  %v1431 = vand.u32 %v1303, 1
  %v1432 = vand.u32 %v1304, 1
  %v1433 = vand.u32 %v1305, 1
  %v1434 = vand.u32 %v1306, 1
  %v1435 = vand.u32 %v1307, 1
  %v1436 = vand.u32 %v1308, 1
  %v1437 = vand.u32 %v1309, 1
  %v1438 = vand.u32 %v1310, 1
  %v1439 = vand.u32 %v1311, 1
  %v1440 = vand.u32 %v1312, 1
  %v1441 = vand.u32 %v1313, 1
  %v1442 = vand.u32 %v1314, 1
  %v1443 = vand.u32 %v1315, 1
  %v1444 = vand.u32 %v1316, 1
  %v1445 = vand.u32 %v1317, 1
  %v1446 = vand.u32 %v1318, 1
  %v1447 = vand.u32 %v1319, 1
  %v1448 = vand.u32 %v1320, 1
  %v1449 = vand.u32 %v1321, 1
  %v1450 = vand.u32 %v1322, 1
  %v1451 = vand.u32 %v1323, 1
  %v1452 = vand.u32 %v1324, 1
  %v1453 = vand.u32 %v1325, 1
  %v1454 = vand.u32 %v1326, 1
  %v1455 = vand.u32 %v1327, 1
  %v1456 = vand.u32 %v1328, 1
  %v1457 = vand.u32 %v1329, 1
  %v1458 = vand.u32 %v1330, 1
  %v1459 = vand.u32 %v1331, 1
  %v1460 = vand.u32 %v1332, 1
  %v1461 = vand.u32 %v1333, 1
  %v1462 = vand.u32 %v1334, 1
  %v1463 = vand.u32 %v1335, 1
  %v1464 = vand.u32 %v1336, 1
  %v1465 = vand.u32 %v1337, 1
  %v1466 = vand.u32 %v1338, 1
  %v1467 = vand.u32 %v1339, 1
  %v1468 = vand.u32 %v1340, 1
  %v1469 = vand.u32 %v1341, 1
  %v1470 = vand.u32 %v1342, 1
  %v1471 = vand.u32 %v1343, 1
  %v1472 = vand.u32 %v1344, 1
  %v1473 = vand.u32 %v1345, 1
  %v1474 = vand.u32 %v1346, 1
  %v1475 = vand.u32 %v1347, 1
  %v1476 = vand.u32 %v1348, 1
  %v1477 = vand.u32 %v1349, 1
  %v1478 = vand.u32 %v1350, 1
  %v1479 = vand.u32 %v1351, 1
  %vm1480 = vcmp.ne.s32.totalorder %v1416, 0
  %vm1481 = vcmp.ne.s32.totalorder %v1417, 0
  %vm1482 = vcmp.ne.s32.totalorder %v1418, 0
  %vm1483 = vcmp.ne.s32.totalorder %v1419, 0
  %vm1484 = vcmp.ne.s32.totalorder %v1420, 0
  %vm1485 = vcmp.ne.s32.totalorder %v1421, 0
  %vm1486 = vcmp.ne.s32.totalorder %v1422, 0
  %vm1487 = vcmp.ne.s32.totalorder %v1423, 0
  %vm1488 = vcmp.ne.s32.totalorder %v1424, 0
  %vm1489 = vcmp.ne.s32.totalorder %v1425, 0
  %vm1490 = vcmp.ne.s32.totalorder %v1426, 0
  %vm1491 = vcmp.ne.s32.totalorder %v1427, 0
  %vm1492 = vcmp.ne.s32.totalorder %v1428, 0
  %vm1493 = vcmp.ne.s32.totalorder %v1429, 0
  %vm1494 = vcmp.ne.s32.totalorder %v1430, 0
  %vm1495 = vcmp.ne.s32.totalorder %v1431, 0
  %vm1496 = vcmp.ne.s32.totalorder %v1432, 0
  %vm1497 = vcmp.ne.s32.totalorder %v1433, 0
  %vm1498 = vcmp.ne.s32.totalorder %v1434, 0
  %vm1499 = vcmp.ne.s32.totalorder %v1435, 0
  %vm1500 = vcmp.ne.s32.totalorder %v1436, 0
  %vm1501 = vcmp.ne.s32.totalorder %v1437, 0
  %vm1502 = vcmp.ne.s32.totalorder %v1438, 0
  %vm1503 = vcmp.ne.s32.totalorder %v1439, 0
  %vm1504 = vcmp.ne.s32.totalorder %v1440, 0
  %vm1505 = vcmp.ne.s32.totalorder %v1441, 0
  %vm1506 = vcmp.ne.s32.totalorder %v1442, 0
  %vm1507 = vcmp.ne.s32.totalorder %v1443, 0
  %vm1508 = vcmp.ne.s32.totalorder %v1444, 0
  %vm1509 = vcmp.ne.s32.totalorder %v1445, 0
  %vm1510 = vcmp.ne.s32.totalorder %v1446, 0
  %vm1511 = vcmp.ne.s32.totalorder %v1447, 0
  %vm1512 = vcmp.ne.s32.totalorder %v1448, 0
  %vm1513 = vcmp.ne.s32.totalorder %v1449, 0
  %vm1514 = vcmp.ne.s32.totalorder %v1450, 0
  %vm1515 = vcmp.ne.s32.totalorder %v1451, 0
  %vm1516 = vcmp.ne.s32.totalorder %v1452, 0
  %vm1517 = vcmp.ne.s32.totalorder %v1453, 0
  %vm1518 = vcmp.ne.s32.totalorder %v1454, 0
  %vm1519 = vcmp.ne.s32.totalorder %v1455, 0
  %vm1520 = vcmp.ne.s32.totalorder %v1456, 0
  %vm1521 = vcmp.ne.s32.totalorder %v1457, 0
  %vm1522 = vcmp.ne.s32.totalorder %v1458, 0
  %vm1523 = vcmp.ne.s32.totalorder %v1459, 0
  %vm1524 = vcmp.ne.s32.totalorder %v1460, 0
  %vm1525 = vcmp.ne.s32.totalorder %v1461, 0
  %vm1526 = vcmp.ne.s32.totalorder %v1462, 0
  %vm1527 = vcmp.ne.s32.totalorder %v1463, 0
  %vm1528 = vcmp.ne.s32.totalorder %v1464, 0
  %vm1529 = vcmp.ne.s32.totalorder %v1465, 0
  %vm1530 = vcmp.ne.s32.totalorder %v1466, 0
  %vm1531 = vcmp.ne.s32.totalorder %v1467, 0
  %vm1532 = vcmp.ne.s32.totalorder %v1468, 0
  %vm1533 = vcmp.ne.s32.totalorder %v1469, 0
  %vm1534 = vcmp.ne.s32.totalorder %v1470, 0
  %vm1535 = vcmp.ne.s32.totalorder %v1471, 0
  %vm1536 = vcmp.ne.s32.totalorder %v1472, 0
  %vm1537 = vcmp.ne.s32.totalorder %v1473, 0
  %vm1538 = vcmp.ne.s32.totalorder %v1474, 0
  %vm1539 = vcmp.ne.s32.totalorder %v1475, 0
  %vm1540 = vcmp.ne.s32.totalorder %v1476, 0
  %vm1541 = vcmp.ne.s32.totalorder %v1477, 0
  %vm1542 = vcmp.ne.s32.totalorder %v1478, 0
  %vm1543 = vcmp.ne.s32.totalorder %v1479, 0
  %v1544 = vsel %vm1480, %v1352, 0.0
  %v1545 = vsel %vm1481, %v1353, 0.0
  %v1546 = vsel %vm1482, %v1354, 0.0
  %v1547 = vsel %vm1483, %v1355, 0.0
  %v1548 = vsel %vm1484, %v1356, 0.0
  %v1549 = vsel %vm1485, %v1357, 0.0
  %v1550 = vsel %vm1486, %v1358, 0.0
  %v1551 = vsel %vm1487, %v1359, 0.0
  %v1552 = vsel %vm1488, %v1360, 0.0
  %v1553 = vsel %vm1489, %v1361, 0.0
  %v1554 = vsel %vm1490, %v1362, 0.0
  %v1555 = vsel %vm1491, %v1363, 0.0
  %v1556 = vsel %vm1492, %v1364, 0.0
  %v1557 = vsel %vm1493, %v1365, 0.0
  %v1558 = vsel %vm1494, %v1366, 0.0
  %v1559 = vsel %vm1495, %v1367, 0.0
  %v1560 = vsel %vm1496, %v1368, 0.0
  %v1561 = vsel %vm1497, %v1369, 0.0
  %v1562 = vsel %vm1498, %v1370, 0.0
  %v1563 = vsel %vm1499, %v1371, 0.0
  %v1564 = vsel %vm1500, %v1372, 0.0
  %v1565 = vsel %vm1501, %v1373, 0.0
  %v1566 = vsel %vm1502, %v1374, 0.0
  %v1567 = vsel %vm1503, %v1375, 0.0
  %v1568 = vsel %vm1504, %v1376, 0.0
  %v1569 = vsel %vm1505, %v1377, 0.0
  %v1570 = vsel %vm1506, %v1378, 0.0
  %v1571 = vsel %vm1507, %v1379, 0.0
  %v1572 = vsel %vm1508, %v1380, 0.0
  %v1573 = vsel %vm1509, %v1381, 0.0
  %v1574 = vsel %vm1510, %v1382, 0.0
  %v1575 = vsel %vm1511, %v1383, 0.0
  %v1576 = vsel %vm1512, %v1384, 0.0
  %v1577 = vsel %vm1513, %v1385, 0.0
  %v1578 = vsel %vm1514, %v1386, 0.0
  %v1579 = vsel %vm1515, %v1387, 0.0
  %v1580 = vsel %vm1516, %v1388, 0.0
  %v1581 = vsel %vm1517, %v1389, 0.0
  %v1582 = vsel %vm1518, %v1390, 0.0
  %v1583 = vsel %vm1519, %v1391, 0.0
  %v1584 = vsel %vm1520, %v1392, 0.0
  %v1585 = vsel %vm1521, %v1393, 0.0
  %v1586 = vsel %vm1522, %v1394, 0.0
  %v1587 = vsel %vm1523, %v1395, 0.0
  %v1588 = vsel %vm1524, %v1396, 0.0
  %v1589 = vsel %vm1525, %v1397, 0.0
  %v1590 = vsel %vm1526, %v1398, 0.0
  %v1591 = vsel %vm1527, %v1399, 0.0
  %v1592 = vsel %vm1528, %v1400, 0.0
  %v1593 = vsel %vm1529, %v1401, 0.0
  %v1594 = vsel %vm1530, %v1402, 0.0
  %v1595 = vsel %vm1531, %v1403, 0.0
  %v1596 = vsel %vm1532, %v1404, 0.0
  %v1597 = vsel %vm1533, %v1405, 0.0
  %v1598 = vsel %vm1534, %v1406, 0.0
  %v1599 = vsel %vm1535, %v1407, 0.0
  %v1600 = vsel %vm1536, %v1408, 0.0
  %v1601 = vsel %vm1537, %v1409, 0.0
  %v1602 = vsel %vm1538, %v1410, 0.0
  %v1603 = vsel %vm1539, %v1411, 0.0
  %v1604 = vsel %vm1540, %v1412, 0.0
  %v1605 = vsel %vm1541, %v1413, 0.0
  %v1606 = vsel %vm1542, %v1414, 0.0
  %v1607 = vsel %vm1543, %v1415, 0.0
  %v1608 = vpack.c.bf16 %v1545, %v1544
  %v1609 = vpack.c.bf16 %v1547, %v1546
  %v1610 = vpack.c.bf16 %v1549, %v1548
  %v1611 = vpack.c.bf16 %v1551, %v1550
  %v1612 = vpack.c.bf16 %v1553, %v1552
  %v1613 = vpack.c.bf16 %v1555, %v1554
  %v1614 = vpack.c.bf16 %v1557, %v1556
  %v1615 = vpack.c.bf16 %v1559, %v1558
  %v1616 = vpack.c.bf16 %v1561, %v1560
  %v1617 = vpack.c.bf16 %v1563, %v1562
  %v1618 = vpack.c.bf16 %v1565, %v1564
  %v1619 = vpack.c.bf16 %v1567, %v1566
  %v1620 = vpack.c.bf16 %v1569, %v1568
  %v1621 = vpack.c.bf16 %v1571, %v1570
  %v1622 = vpack.c.bf16 %v1573, %v1572
  %v1623 = vpack.c.bf16 %v1575, %v1574
  %v1624 = vpack.c.bf16 %v1577, %v1576
  %v1625 = vpack.c.bf16 %v1579, %v1578
  %v1626 = vpack.c.bf16 %v1581, %v1580
  %v1627 = vpack.c.bf16 %v1583, %v1582
  %v1628 = vpack.c.bf16 %v1585, %v1584
  %v1629 = vpack.c.bf16 %v1587, %v1586
  %v1630 = vpack.c.bf16 %v1589, %v1588
  %v1631 = vpack.c.bf16 %v1591, %v1590
  %v1632 = vpack.c.bf16 %v1593, %v1592
  %v1633 = vpack.c.bf16 %v1595, %v1594
  %v1634 = vpack.c.bf16 %v1597, %v1596
  %v1635 = vpack.c.bf16 %v1599, %v1598
  %v1636 = vpack.c.bf16 %v1601, %v1600
  %v1637 = vpack.c.bf16 %v1603, %v1602
  %v1638 = vpack.c.bf16 %v1605, %v1604
  %v1639 = vpack.c.bf16 %v1607, %v1606
  %1640 = vst.msk [vmem:[#allocation3] sm:$0xff] %vm30, %v1608
  %1641 = vst.msk [vmem:[#allocation3 + $0x18] sm:$0xff] %vm30, %v1609
  %1642 = vst.msk [vmem:[#allocation3 + $0x30] sm:$0xff] %vm30, %v1610
  %1643 = vst.msk [vmem:[#allocation3 + $0x48] sm:$0xff] %vm30, %v1611
  %1644 = vst.msk [vmem:[#allocation3 + $0x60] sm:$0xff] %vm30, %v1612
  %1645 = vst.msk [vmem:[#allocation3 + $0x78] sm:$0xff] %vm30, %v1613
  %1646 = vst.msk [vmem:[#allocation3 + $0x90] sm:$0xff] %vm30, %v1614
  %1647 = vst.msk [vmem:[#allocation3 + $0xa8] sm:$0xff] %vm30, %v1615
  %1648 = vst.msk [vmem:[#allocation3 + $0xc0] sm:$0xff] %vm30, %v1616
  %1649 = vst.msk [vmem:[#allocation3 + $0xd8] sm:$0xff] %vm30, %v1617
  %1650 = vst.msk [vmem:[#allocation3 + $0xf0] sm:$0xff] %vm30, %v1618
  %1651 = vst.msk [vmem:[#allocation3 + $0x108] sm:$0xff] %vm30, %v1619
  %1652 = vst.msk [vmem:[#allocation3 + $0x120] sm:$0xff] %vm30, %v1620
  %1653 = vst.msk [vmem:[#allocation3 + $0x138] sm:$0xff] %vm30, %v1621
  %1654 = vst.msk [vmem:[#allocation3 + $0x150] sm:$0xff] %vm30, %v1622
  %1655 = vst.msk [vmem:[#allocation3 + $0x168] sm:$0xff] %vm30, %v1623
  %1656 = vst.msk [vmem:[#allocation3 + $0x180] sm:$0xff] %vm30, %v1624
  %1657 = vst.msk [vmem:[#allocation3 + $0x198] sm:$0xff] %vm30, %v1625
  %1658 = vst.msk [vmem:[#allocation3 + $0x1b0] sm:$0xff] %vm30, %v1626
  %1659 = vst.msk [vmem:[#allocation3 + $0x1c8] sm:$0xff] %vm30, %v1627
  %1660 = vst.msk [vmem:[#allocation3 + $0x1e0] sm:$0xff] %vm30, %v1628
  %1661 = vst.msk [vmem:[#allocation3 + $0x1f8] sm:$0xff] %vm30, %v1629
  %1662 = vst.msk [vmem:[#allocation3 + $0x210] sm:$0xff] %vm30, %v1630
  %1663 = vst.msk [vmem:[#allocation3 + $0x228] sm:$0xff] %vm30, %v1631
  %1664 = vst.msk [vmem:[#allocation3 + $0x240] sm:$0xff] %vm30, %v1632
  %1665 = vst.msk [vmem:[#allocation3 + $0x258] sm:$0xff] %vm30, %v1633
  %1666 = vst.msk [vmem:[#allocation3 + $0x270] sm:$0xff] %vm30, %v1634
  %1667 = vst.msk [vmem:[#allocation3 + $0x288] sm:$0xff] %vm30, %v1635
  %1668 = vst.msk [vmem:[#allocation3 + $0x2a0] sm:$0xff] %vm30, %v1636
  %1669 = vst.msk [vmem:[#allocation3 + $0x2b8] sm:$0xff] %vm30, %v1637
  %1670 = vst.msk [vmem:[#allocation3 + $0x2d0] sm:$0xff] %vm30, %v1638
  %1671 = vst.msk [vmem:[#allocation3 + $0x2e8] sm:$0xff] %vm30, %v1639
  %v1672 = vld [vmem:[#allocation2 + $0x8] sm:$0xff]
  %v1673 = vld [vmem:[#allocation2 + $0x10] sm:$0xff]
  %v1674 = vld [vmem:[#allocation2 + $0x18] sm:$0xff]
  %v1675 = vld [vmem:[#allocation2 + $0x20] sm:$0xff]
  %v1676 = vld [vmem:[#allocation2 + $0x28] sm:$0xff]
  %v1677 = vld [vmem:[#allocation2 + $0x30] sm:$0xff]
  %v1678 = vld [vmem:[#allocation2 + $0x38] sm:$0xff]
  %v1679 = vld [vmem:[#allocation2 + $0x40] sm:$0xff]
  %v1680 = vld [vmem:[#allocation2 + $0x48] sm:$0xff]
  %v1681 = vld [vmem:[#allocation2 + $0x50] sm:$0xff]
  %v1682 = vld [vmem:[#allocation2 + $0x58] sm:$0xff]
  %v1683 = vld [vmem:[#allocation2 + $0x60] sm:$0xff]
  %v1684 = vld [vmem:[#allocation2 + $0x68] sm:$0xff]
  %v1685 = vld [vmem:[#allocation2 + $0x70] sm:$0xff]
  %v1686 = vld [vmem:[#allocation2 + $0x78] sm:$0xff]
  %v1687 = vld [vmem:[#allocation2 + $0x80] sm:$0xff]
  %v1688 = vld [vmem:[#allocation2 + $0x88] sm:$0xff]
  %v1689 = vld [vmem:[#allocation2 + $0x90] sm:$0xff]
  %v1690 = vld [vmem:[#allocation2 + $0x98] sm:$0xff]
  %v1691 = vld [vmem:[#allocation2 + $0xa0] sm:$0xff]
  %v1692 = vld [vmem:[#allocation2 + $0xa8] sm:$0xff]
  %v1693 = vld [vmem:[#allocation2 + $0xb0] sm:$0xff]
  %v1694 = vld [vmem:[#allocation2 + $0xb8] sm:$0xff]
  %v1695 = vld [vmem:[#allocation2 + $0xc0] sm:$0xff]
  %v1696 = vld [vmem:[#allocation2 + $0xc8] sm:$0xff]
  %v1697 = vld [vmem:[#allocation2 + $0xd0] sm:$0xff]
  %v1698 = vld [vmem:[#allocation2 + $0xd8] sm:$0xff]
  %v1699 = vld [vmem:[#allocation2 + $0xe0] sm:$0xff]
  %v1700 = vld [vmem:[#allocation2 + $0xe8] sm:$0xff]
  %v1701 = vld [vmem:[#allocation2 + $0xf0] sm:$0xff]
  %v1702 = vld [vmem:[#allocation2 + $0xf8] sm:$0xff]
  %v1703 = vld [vmem:[#allocation2 + $0x100] sm:$0xff]
  %v1704 = vld [vmem:[#allocation2 + $0x108] sm:$0xff]
  %v1705 = vld [vmem:[#allocation2 + $0x110] sm:$0xff]
  %v1706 = vld [vmem:[#allocation2 + $0x118] sm:$0xff]
  %v1707 = vld [vmem:[#allocation2 + $0x120] sm:$0xff]
  %v1708 = vld [vmem:[#allocation2 + $0x128] sm:$0xff]
  %v1709 = vld [vmem:[#allocation2 + $0x130] sm:$0xff]
  %v1710 = vld [vmem:[#allocation2 + $0x138] sm:$0xff]
  %v1711 = vld [vmem:[#allocation2 + $0x140] sm:$0xff]
  %v1712 = vld [vmem:[#allocation2 + $0x148] sm:$0xff]
  %v1713 = vld [vmem:[#allocation2 + $0x150] sm:$0xff]
  %v1714 = vld [vmem:[#allocation2 + $0x158] sm:$0xff]
  %v1715 = vld [vmem:[#allocation2 + $0x160] sm:$0xff]
  %v1716 = vld [vmem:[#allocation2 + $0x168] sm:$0xff]
  %v1717 = vld [vmem:[#allocation2 + $0x170] sm:$0xff]
  %v1718 = vld [vmem:[#allocation2 + $0x178] sm:$0xff]
  %v1719 = vld [vmem:[#allocation2 + $0x180] sm:$0xff]
  %v1720 = vld [vmem:[#allocation2 + $0x188] sm:$0xff]
  %v1721 = vld [vmem:[#allocation2 + $0x190] sm:$0xff]
  %v1722 = vld [vmem:[#allocation2 + $0x198] sm:$0xff]
  %v1723 = vld [vmem:[#allocation2 + $0x1a0] sm:$0xff]
  %v1724 = vld [vmem:[#allocation2 + $0x1a8] sm:$0xff]
  %v1725 = vld [vmem:[#allocation2 + $0x1b0] sm:$0xff]
  %v1726 = vld [vmem:[#allocation2 + $0x1b8] sm:$0xff]
  %v1727 = vld [vmem:[#allocation2 + $0x1c0] sm:$0xff]
  %v1728 = vld [vmem:[#allocation2 + $0x1c8] sm:$0xff]
  %v1729 = vld [vmem:[#allocation2 + $0x1d0] sm:$0xff]
  %v1730 = vld [vmem:[#allocation2 + $0x1d8] sm:$0xff]
  %v1731 = vld [vmem:[#allocation2 + $0x1e0] sm:$0xff]
  %v1732 = vld [vmem:[#allocation2 + $0x1e8] sm:$0xff]
  %v1733 = vld [vmem:[#allocation2 + $0x1f0] sm:$0xff]
  %v1734 = vld [vmem:[#allocation2 + $0x1f8] sm:$0xff]
  %v1735 = vld [vmem:[#allocation2 + $0x200] sm:$0xff]
  %v1736 = vand.u32 %v1288, 2
  %v1737 = vand.u32 %v1289, 2
  %v1738 = vand.u32 %v1290, 2
  %v1739 = vand.u32 %v1291, 2
  %v1740 = vand.u32 %v1292, 2
  %v1741 = vand.u32 %v1293, 2
  %v1742 = vand.u32 %v1294, 2
  %v1743 = vand.u32 %v1295, 2
  %v1744 = vand.u32 %v1296, 2
  %v1745 = vand.u32 %v1297, 2
  %v1746 = vand.u32 %v1298, 2
  %v1747 = vand.u32 %v1299, 2
  %v1748 = vand.u32 %v1300, 2
  %v1749 = vand.u32 %v1301, 2
  %v1750 = vand.u32 %v1302, 2
  %v1751 = vand.u32 %v1303, 2
  %v1752 = vand.u32 %v1304, 2
  %v1753 = vand.u32 %v1305, 2
  %v1754 = vand.u32 %v1306, 2
  %v1755 = vand.u32 %v1307, 2
  %v1756 = vand.u32 %v1308, 2
  %v1757 = vand.u32 %v1309, 2
  %v1758 = vand.u32 %v1310, 2
  %v1759 = vand.u32 %v1311, 2
  %v1760 = vand.u32 %v1312, 2
  %v1761 = vand.u32 %v1313, 2
  %v1762 = vand.u32 %v1314, 2
  %v1763 = vand.u32 %v1315, 2
  %v1764 = vand.u32 %v1316, 2
  %v1765 = vand.u32 %v1317, 2
  %v1766 = vand.u32 %v1318, 2
  %v1767 = vand.u32 %v1319, 2
  %v1768 = vand.u32 %v1320, 2
  %v1769 = vand.u32 %v1321, 2
  %v1770 = vand.u32 %v1322, 2
  %v1771 = vand.u32 %v1323, 2
  %v1772 = vand.u32 %v1324, 2
  %v1773 = vand.u32 %v1325, 2
  %v1774 = vand.u32 %v1326, 2
  %v1775 = vand.u32 %v1327, 2
  %v1776 = vand.u32 %v1328, 2
  %v1777 = vand.u32 %v1329, 2
  %v1778 = vand.u32 %v1330, 2
  %v1779 = vand.u32 %v1331, 2
  %v1780 = vand.u32 %v1332, 2
  %v1781 = vand.u32 %v1333, 2
  %v1782 = vand.u32 %v1334, 2
  %v1783 = vand.u32 %v1335, 2
  %v1784 = vand.u32 %v1336, 2
  %v1785 = vand.u32 %v1337, 2
  %v1786 = vand.u32 %v1338, 2
  %v1787 = vand.u32 %v1339, 2
  %v1788 = vand.u32 %v1340, 2
  %v1789 = vand.u32 %v1341, 2
  %v1790 = vand.u32 %v1342, 2
  %v1791 = vand.u32 %v1343, 2
  %v1792 = vand.u32 %v1344, 2
  %v1793 = vand.u32 %v1345, 2
  %v1794 = vand.u32 %v1346, 2
  %v1795 = vand.u32 %v1347, 2
  %v1796 = vand.u32 %v1348, 2
  %v1797 = vand.u32 %v1349, 2
  %v1798 = vand.u32 %v1350, 2
  %v1799 = vand.u32 %v1351, 2
  %vm1800 = vcmp.ne.s32.totalorder %v1736, 0
  %vm1801 = vcmp.ne.s32.totalorder %v1737, 0
  %vm1802 = vcmp.ne.s32.totalorder %v1738, 0
  %vm1803 = vcmp.ne.s32.totalorder %v1739, 0
  %vm1804 = vcmp.ne.s32.totalorder %v1740, 0
  %vm1805 = vcmp.ne.s32.totalorder %v1741, 0
  %vm1806 = vcmp.ne.s32.totalorder %v1742, 0
  %vm1807 = vcmp.ne.s32.totalorder %v1743, 0
  %vm1808 = vcmp.ne.s32.totalorder %v1744, 0
  %vm1809 = vcmp.ne.s32.totalorder %v1745, 0
  %vm1810 = vcmp.ne.s32.totalorder %v1746, 0
  %vm1811 = vcmp.ne.s32.totalorder %v1747, 0
  %vm1812 = vcmp.ne.s32.totalorder %v1748, 0
  %vm1813 = vcmp.ne.s32.totalorder %v1749, 0
  %vm1814 = vcmp.ne.s32.totalorder %v1750, 0
  %vm1815 = vcmp.ne.s32.totalorder %v1751, 0
  %vm1816 = vcmp.ne.s32.totalorder %v1752, 0
  %vm1817 = vcmp.ne.s32.totalorder %v1753, 0
  %vm1818 = vcmp.ne.s32.totalorder %v1754, 0
  %vm1819 = vcmp.ne.s32.totalorder %v1755, 0
  %vm1820 = vcmp.ne.s32.totalorder %v1756, 0
  %vm1821 = vcmp.ne.s32.totalorder %v1757, 0
  %vm1822 = vcmp.ne.s32.totalorder %v1758, 0
  %vm1823 = vcmp.ne.s32.totalorder %v1759, 0
  %vm1824 = vcmp.ne.s32.totalorder %v1760, 0
  %vm1825 = vcmp.ne.s32.totalorder %v1761, 0
  %vm1826 = vcmp.ne.s32.totalorder %v1762, 0
  %vm1827 = vcmp.ne.s32.totalorder %v1763, 0
  %vm1828 = vcmp.ne.s32.totalorder %v1764, 0
  %vm1829 = vcmp.ne.s32.totalorder %v1765, 0
  %vm1830 = vcmp.ne.s32.totalorder %v1766, 0
  %vm1831 = vcmp.ne.s32.totalorder %v1767, 0
  %vm1832 = vcmp.ne.s32.totalorder %v1768, 0
  %vm1833 = vcmp.ne.s32.totalorder %v1769, 0
  %vm1834 = vcmp.ne.s32.totalorder %v1770, 0
  %vm1835 = vcmp.ne.s32.totalorder %v1771, 0
  %vm1836 = vcmp.ne.s32.totalorder %v1772, 0
  %vm1837 = vcmp.ne.s32.totalorder %v1773, 0
  %vm1838 = vcmp.ne.s32.totalorder %v1774, 0
  %vm1839 = vcmp.ne.s32.totalorder %v1775, 0
  %vm1840 = vcmp.ne.s32.totalorder %v1776, 0
  %vm1841 = vcmp.ne.s32.totalorder %v1777, 0
  %vm1842 = vcmp.ne.s32.totalorder %v1778, 0
  %vm1843 = vcmp.ne.s32.totalorder %v1779, 0
  %vm1844 = vcmp.ne.s32.totalorder %v1780, 0
  %vm1845 = vcmp.ne.s32.totalorder %v1781, 0
  %vm1846 = vcmp.ne.s32.totalorder %v1782, 0
  %vm1847 = vcmp.ne.s32.totalorder %v1783, 0
  %vm1848 = vcmp.ne.s32.totalorder %v1784, 0
  %vm1849 = vcmp.ne.s32.totalorder %v1785, 0
  %vm1850 = vcmp.ne.s32.totalorder %v1786, 0
  %vm1851 = vcmp.ne.s32.totalorder %v1787, 0
  %vm1852 = vcmp.ne.s32.totalorder %v1788, 0
  %vm1853 = vcmp.ne.s32.totalorder %v1789, 0
  %vm1854 = vcmp.ne.s32.totalorder %v1790, 0
  %vm1855 = vcmp.ne.s32.totalorder %v1791, 0
  %vm1856 = vcmp.ne.s32.totalorder %v1792, 0
  %vm1857 = vcmp.ne.s32.totalorder %v1793, 0
  %vm1858 = vcmp.ne.s32.totalorder %v1794, 0
  %vm1859 = vcmp.ne.s32.totalorder %v1795, 0
  %vm1860 = vcmp.ne.s32.totalorder %v1796, 0
  %vm1861 = vcmp.ne.s32.totalorder %v1797, 0
  %vm1862 = vcmp.ne.s32.totalorder %v1798, 0
  %vm1863 = vcmp.ne.s32.totalorder %v1799, 0
  %v1864 = vsel %vm1800, %v1672, 0.0
  %v1865 = vsel %vm1801, %v1673, 0.0
  %v1866 = vsel %vm1802, %v1674, 0.0
  %v1867 = vsel %vm1803, %v1675, 0.0
  %v1868 = vsel %vm1804, %v1676, 0.0
  %v1869 = vsel %vm1805, %v1677, 0.0
  %v1870 = vsel %vm1806, %v1678, 0.0
  %v1871 = vsel %vm1807, %v1679, 0.0
  %v1872 = vsel %vm1808, %v1680, 0.0
  %v1873 = vsel %vm1809, %v1681, 0.0
  %v1874 = vsel %vm1810, %v1682, 0.0
  %v1875 = vsel %vm1811, %v1683, 0.0
  %v1876 = vsel %vm1812, %v1684, 0.0
  %v1877 = vsel %vm1813, %v1685, 0.0
  %v1878 = vsel %vm1814, %v1686, 0.0
  %v1879 = vsel %vm1815, %v1687, 0.0
  %v1880 = vsel %vm1816, %v1688, 0.0
  %v1881 = vsel %vm1817, %v1689, 0.0
  %v1882 = vsel %vm1818, %v1690, 0.0
  %v1883 = vsel %vm1819, %v1691, 0.0
  %v1884 = vsel %vm1820, %v1692, 0.0
  %v1885 = vsel %vm1821, %v1693, 0.0
  %v1886 = vsel %vm1822, %v1694, 0.0
  %v1887 = vsel %vm1823, %v1695, 0.0
  %v1888 = vsel %vm1824, %v1696, 0.0
  %v1889 = vsel %vm1825, %v1697, 0.0
  %v1890 = vsel %vm1826, %v1698, 0.0
  %v1891 = vsel %vm1827, %v1699, 0.0
  %v1892 = vsel %vm1828, %v1700, 0.0
  %v1893 = vsel %vm1829, %v1701, 0.0
  %v1894 = vsel %vm1830, %v1702, 0.0
  %v1895 = vsel %vm1831, %v1703, 0.0
  %v1896 = vsel %vm1832, %v1704, 0.0
  %v1897 = vsel %vm1833, %v1705, 0.0
  %v1898 = vsel %vm1834, %v1706, 0.0
  %v1899 = vsel %vm1835, %v1707, 0.0
  %v1900 = vsel %vm1836, %v1708, 0.0
  %v1901 = vsel %vm1837, %v1709, 0.0
  %v1902 = vsel %vm1838, %v1710, 0.0
  %v1903 = vsel %vm1839, %v1711, 0.0
  %v1904 = vsel %vm1840, %v1712, 0.0
  %v1905 = vsel %vm1841, %v1713, 0.0
  %v1906 = vsel %vm1842, %v1714, 0.0
  %v1907 = vsel %vm1843, %v1715, 0.0
  %v1908 = vsel %vm1844, %v1716, 0.0
  %v1909 = vsel %vm1845, %v1717, 0.0
  %v1910 = vsel %vm1846, %v1718, 0.0
  %v1911 = vsel %vm1847, %v1719, 0.0
  %v1912 = vsel %vm1848, %v1720, 0.0
  %v1913 = vsel %vm1849, %v1721, 0.0
  %v1914 = vsel %vm1850, %v1722, 0.0
  %v1915 = vsel %vm1851, %v1723, 0.0
  %v1916 = vsel %vm1852, %v1724, 0.0
  %v1917 = vsel %vm1853, %v1725, 0.0
  %v1918 = vsel %vm1854, %v1726, 0.0
  %v1919 = vsel %vm1855, %v1727, 0.0
  %v1920 = vsel %vm1856, %v1728, 0.0
  %v1921 = vsel %vm1857, %v1729, 0.0
  %v1922 = vsel %vm1858, %v1730, 0.0
  %v1923 = vsel %vm1859, %v1731, 0.0
  %v1924 = vsel %vm1860, %v1732, 0.0
  %v1925 = vsel %vm1861, %v1733, 0.0
  %v1926 = vsel %vm1862, %v1734, 0.0
  %v1927 = vsel %vm1863, %v1735, 0.0
  %v1928 = vpack.c.bf16 %v1865, %v1864
  %v1929 = vpack.c.bf16 %v1867, %v1866
  %v1930 = vpack.c.bf16 %v1869, %v1868
  %v1931 = vpack.c.bf16 %v1871, %v1870
  %v1932 = vpack.c.bf16 %v1873, %v1872
  %v1933 = vpack.c.bf16 %v1875, %v1874
  %v1934 = vpack.c.bf16 %v1877, %v1876
  %v1935 = vpack.c.bf16 %v1879, %v1878
  %v1936 = vpack.c.bf16 %v1881, %v1880
  %v1937 = vpack.c.bf16 %v1883, %v1882
  %v1938 = vpack.c.bf16 %v1885, %v1884
  %v1939 = vpack.c.bf16 %v1887, %v1886
  %v1940 = vpack.c.bf16 %v1889, %v1888
  %v1941 = vpack.c.bf16 %v1891, %v1890
  %v1942 = vpack.c.bf16 %v1893, %v1892
  %v1943 = vpack.c.bf16 %v1895, %v1894
  %v1944 = vpack.c.bf16 %v1897, %v1896
  %v1945 = vpack.c.bf16 %v1899, %v1898
  %v1946 = vpack.c.bf16 %v1901, %v1900
  %v1947 = vpack.c.bf16 %v1903, %v1902
  %v1948 = vpack.c.bf16 %v1905, %v1904
  %v1949 = vpack.c.bf16 %v1907, %v1906
  %v1950 = vpack.c.bf16 %v1909, %v1908
  %v1951 = vpack.c.bf16 %v1911, %v1910
  %v1952 = vpack.c.bf16 %v1913, %v1912
  %v1953 = vpack.c.bf16 %v1915, %v1914
  %v1954 = vpack.c.bf16 %v1917, %v1916
  %v1955 = vpack.c.bf16 %v1919, %v1918
  %v1956 = vpack.c.bf16 %v1921, %v1920
  %v1957 = vpack.c.bf16 %v1923, %v1922
  %v1958 = vpack.c.bf16 %v1925, %v1924
  %v1959 = vpack.c.bf16 %v1927, %v1926
  %1992 = vrot.lane.b32.xlu0 %v1928, 32
  %v1993 = vpop.permute.xlu0 %1992
  %1994 = vrot.lane.b32.xlu0 %v1929, 32
  %v1995 = vpop.permute.xlu0 %1994
  %1996 = vrot.lane.b32.xlu0 %v1930, 32
  %v1997 = vpop.permute.xlu0 %1996
  %1998 = vrot.lane.b32.xlu0 %v1931, 32
  %v1999 = vpop.permute.xlu0 %1998
  %2000 = vrot.lane.b32.xlu0 %v1932, 32
  %v2001 = vpop.permute.xlu0 %2000
  %2002 = vrot.lane.b32.xlu0 %v1933, 32
  %v2003 = vpop.permute.xlu0 %2002
  %2004 = vrot.lane.b32.xlu0 %v1934, 32
  %v2005 = vpop.permute.xlu0 %2004
  %2006 = vrot.lane.b32.xlu0 %v1935, 32
  %v2007 = vpop.permute.xlu0 %2006
  %2008 = vrot.lane.b32.xlu0 %v1936, 32
  %v2009 = vpop.permute.xlu0 %2008
  %2010 = vrot.lane.b32.xlu0 %v1937, 32
  %v2011 = vpop.permute.xlu0 %2010
  %2012 = vrot.lane.b32.xlu0 %v1938, 32
  %v2013 = vpop.permute.xlu0 %2012
  %2014 = vrot.lane.b32.xlu0 %v1939, 32
  %v2015 = vpop.permute.xlu0 %2014
  %2016 = vrot.lane.b32.xlu0 %v1940, 32
  %v2017 = vpop.permute.xlu0 %2016
  %2018 = vrot.lane.b32.xlu0 %v1941, 32
  %v2019 = vpop.permute.xlu0 %2018
  %2020 = vrot.lane.b32.xlu0 %v1942, 32
  %v2021 = vpop.permute.xlu0 %2020
  %2022 = vrot.lane.b32.xlu0 %v1943, 32
  %v2023 = vpop.permute.xlu0 %2022
  %2024 = vrot.lane.b32.xlu0 %v1944, 32
  %v2025 = vpop.permute.xlu0 %2024
  %2026 = vrot.lane.b32.xlu0 %v1945, 32
  %v2027 = vpop.permute.xlu0 %2026
  %2028 = vrot.lane.b32.xlu0 %v1946, 32
  %v2029 = vpop.permute.xlu0 %2028
  %2030 = vrot.lane.b32.xlu0 %v1947, 32
  %v2031 = vpop.permute.xlu0 %2030
  %2032 = vrot.lane.b32.xlu0 %v1948, 32
  %v2033 = vpop.permute.xlu0 %2032
  %2034 = vrot.lane.b32.xlu0 %v1949, 32
  %v2035 = vpop.permute.xlu0 %2034
  %2036 = vrot.lane.b32.xlu0 %v1950, 32
  %v2037 = vpop.permute.xlu0 %2036
  %2038 = vrot.lane.b32.xlu0 %v1951, 32
  %v2039 = vpop.permute.xlu0 %2038
  %2040 = vrot.lane.b32.xlu0 %v1952, 32
  %v2041 = vpop.permute.xlu0 %2040
  %2042 = vrot.lane.b32.xlu0 %v1953, 32
  %v2043 = vpop.permute.xlu0 %2042
  %2044 = vrot.lane.b32.xlu0 %v1954, 32
  %v2045 = vpop.permute.xlu0 %2044
  %2046 = vrot.lane.b32.xlu0 %v1955, 32
  %v2047 = vpop.permute.xlu0 %2046
  %2048 = vrot.lane.b32.xlu0 %v1956, 32
  %v2049 = vpop.permute.xlu0 %2048
  %2050 = vrot.lane.b32.xlu0 %v1957, 32
  %v2051 = vpop.permute.xlu0 %2050
  %2052 = vrot.lane.b32.xlu0 %v1958, 32
  %v2053 = vpop.permute.xlu0 %2052
  %2054 = vrot.lane.b32.xlu0 %v1959, 32
  %v2055 = vpop.permute.xlu0 %2054
  %vm2088 = vcmask 523520
  %2089 = vst.msk [vmem:[#allocation3] sm:$0xff] %vm2088, %v1993
  %2090 = vst.msk [vmem:[#allocation3 + $0x18] sm:$0xff] %vm2088, %v1995
  %2091 = vst.msk [vmem:[#allocation3 + $0x30] sm:$0xff] %vm2088, %v1997
  %2092 = vst.msk [vmem:[#allocation3 + $0x48] sm:$0xff] %vm2088, %v1999
  %2093 = vst.msk [vmem:[#allocation3 + $0x60] sm:$0xff] %vm2088, %v2001
  %2094 = vst.msk [vmem:[#allocation3 + $0x78] sm:$0xff] %vm2088, %v2003
  %2095 = vst.msk [vmem:[#allocation3 + $0x90] sm:$0xff] %vm2088, %v2005
  %2096 = vst.msk [vmem:[#allocation3 + $0xa8] sm:$0xff] %vm2088, %v2007
  %2097 = vst.msk [vmem:[#allocation3 + $0xc0] sm:$0xff] %vm2088, %v2009
  %2098 = vst.msk [vmem:[#allocation3 + $0xd8] sm:$0xff] %vm2088, %v2011
  %2099 = vst.msk [vmem:[#allocation3 + $0xf0] sm:$0xff] %vm2088, %v2013
  %2100 = vst.msk [vmem:[#allocation3 + $0x108] sm:$0xff] %vm2088, %v2015
  %2101 = vst.msk [vmem:[#allocation3 + $0x120] sm:$0xff] %vm2088, %v2017
  %2102 = vst.msk [vmem:[#allocation3 + $0x138] sm:$0xff] %vm2088, %v2019
  %2103 = vst.msk [vmem:[#allocation3 + $0x150] sm:$0xff] %vm2088, %v2021
  %2104 = vst.msk [vmem:[#allocation3 + $0x168] sm:$0xff] %vm2088, %v2023
  %2105 = vst.msk [vmem:[#allocation3 + $0x180] sm:$0xff] %vm2088, %v2025
  %2106 = vst.msk [vmem:[#allocation3 + $0x198] sm:$0xff] %vm2088, %v2027
  %2107 = vst.msk [vmem:[#allocation3 + $0x1b0] sm:$0xff] %vm2088, %v2029
  %2108 = vst.msk [vmem:[#allocation3 + $0x1c8] sm:$0xff] %vm2088, %v2031
  %2109 = vst.msk [vmem:[#allocation3 + $0x1e0] sm:$0xff] %vm2088, %v2033
  %2110 = vst.msk [vmem:[#allocation3 + $0x1f8] sm:$0xff] %vm2088, %v2035
  %2111 = vst.msk [vmem:[#allocation3 + $0x210] sm:$0xff] %vm2088, %v2037
  %2112 = vst.msk [vmem:[#allocation3 + $0x228] sm:$0xff] %vm2088, %v2039
  %2113 = vst.msk [vmem:[#allocation3 + $0x240] sm:$0xff] %vm2088, %v2041
  %2114 = vst.msk [vmem:[#allocation3 + $0x258] sm:$0xff] %vm2088, %v2043
  %2115 = vst.msk [vmem:[#allocation3 + $0x270] sm:$0xff] %vm2088, %v2045
  %2116 = vst.msk [vmem:[#allocation3 + $0x288] sm:$0xff] %vm2088, %v2047
  %2117 = vst.msk [vmem:[#allocation3 + $0x2a0] sm:$0xff] %vm2088, %v2049
  %2118 = vst.msk [vmem:[#allocation3 + $0x2b8] sm:$0xff] %vm2088, %v2051
  %2119 = vst.msk [vmem:[#allocation3 + $0x2d0] sm:$0xff] %vm2088, %v2053
  %2120 = vst.msk [vmem:[#allocation3 + $0x2e8] sm:$0xff] %vm2088, %v2055
  %v2121 = vld [vmem:[#allocation2 + $0x9] sm:$0xff]
  %v2122 = vld [vmem:[#allocation2 + $0x11] sm:$0xff]
  %v2123 = vld [vmem:[#allocation2 + $0x19] sm:$0xff]
  %v2124 = vld [vmem:[#allocation2 + $0x21] sm:$0xff]
  %v2125 = vld [vmem:[#allocation2 + $0x29] sm:$0xff]
  %v2126 = vld [vmem:[#allocation2 + $0x31] sm:$0xff]
  %v2127 = vld [vmem:[#allocation2 + $0x39] sm:$0xff]
  %v2128 = vld [vmem:[#allocation2 + $0x41] sm:$0xff]
  %v2129 = vld [vmem:[#allocation2 + $0x49] sm:$0xff]
  %v2130 = vld [vmem:[#allocation2 + $0x51] sm:$0xff]
  %v2131 = vld [vmem:[#allocation2 + $0x59] sm:$0xff]
  %v2132 = vld [vmem:[#allocation2 + $0x61] sm:$0xff]
  %v2133 = vld [vmem:[#allocation2 + $0x69] sm:$0xff]
  %v2134 = vld [vmem:[#allocation2 + $0x71] sm:$0xff]
  %v2135 = vld [vmem:[#allocation2 + $0x79] sm:$0xff]
  %v2136 = vld [vmem:[#allocation2 + $0x81] sm:$0xff]
  %v2137 = vld [vmem:[#allocation2 + $0x89] sm:$0xff]
  %v2138 = vld [vmem:[#allocation2 + $0x91] sm:$0xff]
  %v2139 = vld [vmem:[#allocation2 + $0x99] sm:$0xff]
  %v2140 = vld [vmem:[#allocation2 + $0xa1] sm:$0xff]
  %v2141 = vld [vmem:[#allocation2 + $0xa9] sm:$0xff]
  %v2142 = vld [vmem:[#allocation2 + $0xb1] sm:$0xff]
  %v2143 = vld [vmem:[#allocation2 + $0xb9] sm:$0xff]
  %v2144 = vld [vmem:[#allocation2 + $0xc1] sm:$0xff]
  %v2145 = vld [vmem:[#allocation2 + $0xc9] sm:$0xff]
  %v2146 = vld [vmem:[#allocation2 + $0xd1] sm:$0xff]
  %v2147 = vld [vmem:[#allocation2 + $0xd9] sm:$0xff]
  %v2148 = vld [vmem:[#allocation2 + $0xe1] sm:$0xff]
  %v2149 = vld [vmem:[#allocation2 + $0xe9] sm:$0xff]
  %v2150 = vld [vmem:[#allocation2 + $0xf1] sm:$0xff]
  %v2151 = vld [vmem:[#allocation2 + $0xf9] sm:$0xff]
  %v2152 = vld [vmem:[#allocation2 + $0x101] sm:$0xff]
  %v2153 = vld [vmem:[#allocation2 + $0x109] sm:$0xff]
  %v2154 = vld [vmem:[#allocation2 + $0x111] sm:$0xff]
  %v2155 = vld [vmem:[#allocation2 + $0x119] sm:$0xff]
  %v2156 = vld [vmem:[#allocation2 + $0x121] sm:$0xff]
  %v2157 = vld [vmem:[#allocation2 + $0x129] sm:$0xff]
  %v2158 = vld [vmem:[#allocation2 + $0x131] sm:$0xff]
  %v2159 = vld [vmem:[#allocation2 + $0x139] sm:$0xff]
  %v2160 = vld [vmem:[#allocation2 + $0x141] sm:$0xff]
  %v2161 = vld [vmem:[#allocation2 + $0x149] sm:$0xff]
  %v2162 = vld [vmem:[#allocation2 + $0x151] sm:$0xff]
  %v2163 = vld [vmem:[#allocation2 + $0x159] sm:$0xff]
  %v2164 = vld [vmem:[#allocation2 + $0x161] sm:$0xff]
  %v2165 = vld [vmem:[#allocation2 + $0x169] sm:$0xff]
  %v2166 = vld [vmem:[#allocation2 + $0x171] sm:$0xff]
  %v2167 = vld [vmem:[#allocation2 + $0x179] sm:$0xff]
  %v2168 = vld [vmem:[#allocation2 + $0x181] sm:$0xff]
  %v2169 = vld [vmem:[#allocation2 + $0x189] sm:$0xff]
  %v2170 = vld [vmem:[#allocation2 + $0x191] sm:$0xff]
  %v2171 = vld [vmem:[#allocation2 + $0x199] sm:$0xff]
  %v2172 = vld [vmem:[#allocation2 + $0x1a1] sm:$0xff]
  %v2173 = vld [vmem:[#allocation2 + $0x1a9] sm:$0xff]
  %v2174 = vld [vmem:[#allocation2 + $0x1b1] sm:$0xff]
  %v2175 = vld [vmem:[#allocation2 + $0x1b9] sm:$0xff]
  %v2176 = vld [vmem:[#allocation2 + $0x1c1] sm:$0xff]
  %v2177 = vld [vmem:[#allocation2 + $0x1c9] sm:$0xff]
  %v2178 = vld [vmem:[#allocation2 + $0x1d1] sm:$0xff]
  %v2179 = vld [vmem:[#allocation2 + $0x1d9] sm:$0xff]
  %v2180 = vld [vmem:[#allocation2 + $0x1e1] sm:$0xff]
  %v2181 = vld [vmem:[#allocation2 + $0x1e9] sm:$0xff]
  %v2182 = vld [vmem:[#allocation2 + $0x1f1] sm:$0xff]
  %v2183 = vld [vmem:[#allocation2 + $0x1f9] sm:$0xff]
  %v2184 = vld [vmem:[#allocation2 + $0x201] sm:$0xff]
  %v2185 = vand.u32 %v1288, 4
  %v2186 = vand.u32 %v1289, 4
  %v2187 = vand.u32 %v1290, 4
  %v2188 = vand.u32 %v1291, 4
  %v2189 = vand.u32 %v1292, 4
  %v2190 = vand.u32 %v1293, 4
  %v2191 = vand.u32 %v1294, 4
  %v2192 = vand.u32 %v1295, 4
  %v2193 = vand.u32 %v1296, 4
  %v2194 = vand.u32 %v1297, 4
  %v2195 = vand.u32 %v1298, 4
  %v2196 = vand.u32 %v1299, 4
  %v2197 = vand.u32 %v1300, 4
  %v2198 = vand.u32 %v1301, 4
  %v2199 = vand.u32 %v1302, 4
  %v2200 = vand.u32 %v1303, 4
  %v2201 = vand.u32 %v1304, 4
  %v2202 = vand.u32 %v1305, 4
  %v2203 = vand.u32 %v1306, 4
  %v2204 = vand.u32 %v1307, 4
  %v2205 = vand.u32 %v1308, 4
  %v2206 = vand.u32 %v1309, 4
  %v2207 = vand.u32 %v1310, 4
  %v2208 = vand.u32 %v1311, 4
  %v2209 = vand.u32 %v1312, 4
  %v2210 = vand.u32 %v1313, 4
  %v2211 = vand.u32 %v1314, 4
  %v2212 = vand.u32 %v1315, 4
  %v2213 = vand.u32 %v1316, 4
  %v2214 = vand.u32 %v1317, 4
  %v2215 = vand.u32 %v1318, 4
  %v2216 = vand.u32 %v1319, 4
  %v2217 = vand.u32 %v1320, 4
  %v2218 = vand.u32 %v1321, 4
  %v2219 = vand.u32 %v1322, 4
  %v2220 = vand.u32 %v1323, 4
  %v2221 = vand.u32 %v1324, 4
  %v2222 = vand.u32 %v1325, 4
  %v2223 = vand.u32 %v1326, 4
  %v2224 = vand.u32 %v1327, 4
  %v2225 = vand.u32 %v1328, 4
  %v2226 = vand.u32 %v1329, 4
  %v2227 = vand.u32 %v1330, 4
  %v2228 = vand.u32 %v1331, 4
  %v2229 = vand.u32 %v1332, 4
  %v2230 = vand.u32 %v1333, 4
  %v2231 = vand.u32 %v1334, 4
  %v2232 = vand.u32 %v1335, 4
  %v2233 = vand.u32 %v1336, 4
  %v2234 = vand.u32 %v1337, 4
  %v2235 = vand.u32 %v1338, 4
  %v2236 = vand.u32 %v1339, 4
  %v2237 = vand.u32 %v1340, 4
  %v2238 = vand.u32 %v1341, 4
  %v2239 = vand.u32 %v1342, 4
  %v2240 = vand.u32 %v1343, 4
  %v2241 = vand.u32 %v1344, 4
  %v2242 = vand.u32 %v1345, 4
  %v2243 = vand.u32 %v1346, 4
  %v2244 = vand.u32 %v1347, 4
  %v2245 = vand.u32 %v1348, 4
  %v2246 = vand.u32 %v1349, 4
  %v2247 = vand.u32 %v1350, 4
  %v2248 = vand.u32 %v1351, 4
  %vm2249 = vcmp.ne.s32.totalorder %v2185, 0
  %vm2250 = vcmp.ne.s32.totalorder %v2186, 0
  %vm2251 = vcmp.ne.s32.totalorder %v2187, 0
  %vm2252 = vcmp.ne.s32.totalorder %v2188, 0
  %vm2253 = vcmp.ne.s32.totalorder %v2189, 0
  %vm2254 = vcmp.ne.s32.totalorder %v2190, 0
  %vm2255 = vcmp.ne.s32.totalorder %v2191, 0
  %vm2256 = vcmp.ne.s32.totalorder %v2192, 0
  %vm2257 = vcmp.ne.s32.totalorder %v2193, 0
  %vm2258 = vcmp.ne.s32.totalorder %v2194, 0
  %vm2259 = vcmp.ne.s32.totalorder %v2195, 0
  %vm2260 = vcmp.ne.s32.totalorder %v2196, 0
  %vm2261 = vcmp.ne.s32.totalorder %v2197, 0
  %vm2262 = vcmp.ne.s32.totalorder %v2198, 0
  %vm2263 = vcmp.ne.s32.totalorder %v2199, 0
  %vm2264 = vcmp.ne.s32.totalorder %v2200, 0
  %vm2265 = vcmp.ne.s32.totalorder %v2201, 0
  %vm2266 = vcmp.ne.s32.totalorder %v2202, 0
  %vm2267 = vcmp.ne.s32.totalorder %v2203, 0
  %vm2268 = vcmp.ne.s32.totalorder %v2204, 0
  %vm2269 = vcmp.ne.s32.totalorder %v2205, 0
  %vm2270 = vcmp.ne.s32.totalorder %v2206, 0
  %vm2271 = vcmp.ne.s32.totalorder %v2207, 0
  %vm2272 = vcmp.ne.s32.totalorder %v2208, 0
  %vm2273 = vcmp.ne.s32.totalorder %v2209, 0
  %vm2274 = vcmp.ne.s32.totalorder %v2210, 0
  %vm2275 = vcmp.ne.s32.totalorder %v2211, 0
  %vm2276 = vcmp.ne.s32.totalorder %v2212, 0
  %vm2277 = vcmp.ne.s32.totalorder %v2213, 0
  %vm2278 = vcmp.ne.s32.totalorder %v2214, 0
  %vm2279 = vcmp.ne.s32.totalorder %v2215, 0
  %vm2280 = vcmp.ne.s32.totalorder %v2216, 0
  %vm2281 = vcmp.ne.s32.totalorder %v2217, 0
  %vm2282 = vcmp.ne.s32.totalorder %v2218, 0
  %vm2283 = vcmp.ne.s32.totalorder %v2219, 0
  %vm2284 = vcmp.ne.s32.totalorder %v2220, 0
  %vm2285 = vcmp.ne.s32.totalorder %v2221, 0
  %vm2286 = vcmp.ne.s32.totalorder %v2222, 0
  %vm2287 = vcmp.ne.s32.totalorder %v2223, 0
  %vm2288 = vcmp.ne.s32.totalorder %v2224, 0
  %vm2289 = vcmp.ne.s32.totalorder %v2225, 0
  %vm2290 = vcmp.ne.s32.totalorder %v2226, 0
  %vm2291 = vcmp.ne.s32.totalorder %v2227, 0
  %vm2292 = vcmp.ne.s32.totalorder %v2228, 0
  %vm2293 = vcmp.ne.s32.totalorder %v2229, 0
  %vm2294 = vcmp.ne.s32.totalorder %v2230, 0
  %vm2295 = vcmp.ne.s32.totalorder %v2231, 0
  %vm2296 = vcmp.ne.s32.totalorder %v2232, 0
  %vm2297 = vcmp.ne.s32.totalorder %v2233, 0
  %vm2298 = vcmp.ne.s32.totalorder %v2234, 0
  %vm2299 = vcmp.ne.s32.totalorder %v2235, 0
  %vm2300 = vcmp.ne.s32.totalorder %v2236, 0
  %vm2301 = vcmp.ne.s32.totalorder %v2237, 0
  %vm2302 = vcmp.ne.s32.totalorder %v2238, 0
  %vm2303 = vcmp.ne.s32.totalorder %v2239, 0
  %vm2304 = vcmp.ne.s32.totalorder %v2240, 0
  %vm2305 = vcmp.ne.s32.totalorder %v2241, 0
  %vm2306 = vcmp.ne.s32.totalorder %v2242, 0
  %vm2307 = vcmp.ne.s32.totalorder %v2243, 0
  %vm2308 = vcmp.ne.s32.totalorder %v2244, 0
  %vm2309 = vcmp.ne.s32.totalorder %v2245, 0
  %vm2310 = vcmp.ne.s32.totalorder %v2246, 0
  %vm2311 = vcmp.ne.s32.totalorder %v2247, 0
  %vm2312 = vcmp.ne.s32.totalorder %v2248, 0
  %v2313 = vsel %vm2249, %v2121, 0.0
  %v2314 = vsel %vm2250, %v2122, 0.0
  %v2315 = vsel %vm2251, %v2123, 0.0
  %v2316 = vsel %vm2252, %v2124, 0.0
  %v2317 = vsel %vm2253, %v2125, 0.0
  %v2318 = vsel %vm2254, %v2126, 0.0
  %v2319 = vsel %vm2255, %v2127, 0.0
  %v2320 = vsel %vm2256, %v2128, 0.0
  %v2321 = vsel %vm2257, %v2129, 0.0
  %v2322 = vsel %vm2258, %v2130, 0.0
  %v2323 = vsel %vm2259, %v2131, 0.0
  %v2324 = vsel %vm2260, %v2132, 0.0
  %v2325 = vsel %vm2261, %v2133, 0.0
  %v2326 = vsel %vm2262, %v2134, 0.0
  %v2327 = vsel %vm2263, %v2135, 0.0
  %v2328 = vsel %vm2264, %v2136, 0.0
  %v2329 = vsel %vm2265, %v2137, 0.0
  %v2330 = vsel %vm2266, %v2138, 0.0
  %v2331 = vsel %vm2267, %v2139, 0.0
  %v2332 = vsel %vm2268, %v2140, 0.0
  %v2333 = vsel %vm2269, %v2141, 0.0
  %v2334 = vsel %vm2270, %v2142, 0.0
  %v2335 = vsel %vm2271, %v2143, 0.0
  %v2336 = vsel %vm2272, %v2144, 0.0
  %v2337 = vsel %vm2273, %v2145, 0.0
  %v2338 = vsel %vm2274, %v2146, 0.0
  %v2339 = vsel %vm2275, %v2147, 0.0
  %v2340 = vsel %vm2276, %v2148, 0.0
  %v2341 = vsel %vm2277, %v2149, 0.0
  %v2342 = vsel %vm2278, %v2150, 0.0
  %v2343 = vsel %vm2279, %v2151, 0.0
  %v2344 = vsel %vm2280, %v2152, 0.0
  %v2345 = vsel %vm2281, %v2153, 0.0
  %v2346 = vsel %vm2282, %v2154, 0.0
  %v2347 = vsel %vm2283, %v2155, 0.0
  %v2348 = vsel %vm2284, %v2156, 0.0
  %v2349 = vsel %vm2285, %v2157, 0.0
  %v2350 = vsel %vm2286, %v2158, 0.0
  %v2351 = vsel %vm2287, %v2159, 0.0
  %v2352 = vsel %vm2288, %v2160, 0.0
  %v2353 = vsel %vm2289, %v2161, 0.0
  %v2354 = vsel %vm2290, %v2162, 0.0
  %v2355 = vsel %vm2291, %v2163, 0.0
  %v2356 = vsel %vm2292, %v2164, 0.0
  %v2357 = vsel %vm2293, %v2165, 0.0
  %v2358 = vsel %vm2294, %v2166, 0.0
  %v2359 = vsel %vm2295, %v2167, 0.0
  %v2360 = vsel %vm2296, %v2168, 0.0
  %v2361 = vsel %vm2297, %v2169, 0.0
  %v2362 = vsel %vm2298, %v2170, 0.0
  %v2363 = vsel %vm2299, %v2171, 0.0
  %v2364 = vsel %vm2300, %v2172, 0.0
  %v2365 = vsel %vm2301, %v2173, 0.0
  %v2366 = vsel %vm2302, %v2174, 0.0
  %v2367 = vsel %vm2303, %v2175, 0.0
  %v2368 = vsel %vm2304, %v2176, 0.0
  %v2369 = vsel %vm2305, %v2177, 0.0
  %v2370 = vsel %vm2306, %v2178, 0.0
  %v2371 = vsel %vm2307, %v2179, 0.0
  %v2372 = vsel %vm2308, %v2180, 0.0
  %v2373 = vsel %vm2309, %v2181, 0.0
  %v2374 = vsel %vm2310, %v2182, 0.0
  %v2375 = vsel %vm2311, %v2183, 0.0
  %v2376 = vsel %vm2312, %v2184, 0.0
  %v2377 = vpack.c.bf16 %v2314, %v2313
  %v2378 = vpack.c.bf16 %v2316, %v2315
  %v2379 = vpack.c.bf16 %v2318, %v2317
  %v2380 = vpack.c.bf16 %v2320, %v2319
  %v2381 = vpack.c.bf16 %v2322, %v2321
  %v2382 = vpack.c.bf16 %v2324, %v2323
  %v2383 = vpack.c.bf16 %v2326, %v2325
  %v2384 = vpack.c.bf16 %v2328, %v2327
  %v2385 = vpack.c.bf16 %v2330, %v2329
  %v2386 = vpack.c.bf16 %v2332, %v2331
  %v2387 = vpack.c.bf16 %v2334, %v2333
  %v2388 = vpack.c.bf16 %v2336, %v2335
  %v2389 = vpack.c.bf16 %v2338, %v2337
  %v2390 = vpack.c.bf16 %v2340, %v2339
  %v2391 = vpack.c.bf16 %v2342, %v2341
  %v2392 = vpack.c.bf16 %v2344, %v2343
  %v2393 = vpack.c.bf16 %v2346, %v2345
  %v2394 = vpack.c.bf16 %v2348, %v2347
  %v2395 = vpack.c.bf16 %v2350, %v2349
  %v2396 = vpack.c.bf16 %v2352, %v2351
  %v2397 = vpack.c.bf16 %v2354, %v2353
  %v2398 = vpack.c.bf16 %v2356, %v2355
  %v2399 = vpack.c.bf16 %v2358, %v2357
  %v2400 = vpack.c.bf16 %v2360, %v2359
  %v2401 = vpack.c.bf16 %v2362, %v2361
  %v2402 = vpack.c.bf16 %v2364, %v2363
  %v2403 = vpack.c.bf16 %v2366, %v2365
  %v2404 = vpack.c.bf16 %v2368, %v2367
  %v2405 = vpack.c.bf16 %v2370, %v2369
  %v2406 = vpack.c.bf16 %v2372, %v2371
  %v2407 = vpack.c.bf16 %v2374, %v2373
  %v2408 = vpack.c.bf16 %v2376, %v2375
  %2441 = vrot.lane.b32.xlu0 %v2377, 64
  %v2442 = vpop.permute.xlu0 %2441
  %2443 = vrot.lane.b32.xlu0 %v2378, 64
  %v2444 = vpop.permute.xlu0 %2443
  %2445 = vrot.lane.b32.xlu0 %v2379, 64
  %v2446 = vpop.permute.xlu0 %2445
  %2447 = vrot.lane.b32.xlu0 %v2380, 64
  %v2448 = vpop.permute.xlu0 %2447
  %2449 = vrot.lane.b32.xlu0 %v2381, 64
  %v2450 = vpop.permute.xlu0 %2449
  %2451 = vrot.lane.b32.xlu0 %v2382, 64
  %v2452 = vpop.permute.xlu0 %2451
  %2453 = vrot.lane.b32.xlu0 %v2383, 64
  %v2454 = vpop.permute.xlu0 %2453
  %2455 = vrot.lane.b32.xlu0 %v2384, 64
  %v2456 = vpop.permute.xlu0 %2455
  %2457 = vrot.lane.b32.xlu0 %v2385, 64
  %v2458 = vpop.permute.xlu0 %2457
  %2459 = vrot.lane.b32.xlu0 %v2386, 64
  %v2460 = vpop.permute.xlu0 %2459
  %2461 = vrot.lane.b32.xlu0 %v2387, 64
  %v2462 = vpop.permute.xlu0 %2461
  %2463 = vrot.lane.b32.xlu0 %v2388, 64
  %v2464 = vpop.permute.xlu0 %2463
  %2465 = vrot.lane.b32.xlu0 %v2389, 64
  %v2466 = vpop.permute.xlu0 %2465
  %2467 = vrot.lane.b32.xlu0 %v2390, 64
  %v2468 = vpop.permute.xlu0 %2467
  %2469 = vrot.lane.b32.xlu0 %v2391, 64
  %v2470 = vpop.permute.xlu0 %2469
  %2471 = vrot.lane.b32.xlu0 %v2392, 64
  %v2472 = vpop.permute.xlu0 %2471
  %2473 = vrot.lane.b32.xlu0 %v2393, 64
  %v2474 = vpop.permute.xlu0 %2473
  %2475 = vrot.lane.b32.xlu0 %v2394, 64
  %v2476 = vpop.permute.xlu0 %2475
  %2477 = vrot.lane.b32.xlu0 %v2395, 64
  %v2478 = vpop.permute.xlu0 %2477
  %2479 = vrot.lane.b32.xlu0 %v2396, 64
  %v2480 = vpop.permute.xlu0 %2479
  %2481 = vrot.lane.b32.xlu0 %v2397, 64
  %v2482 = vpop.permute.xlu0 %2481
  %2483 = vrot.lane.b32.xlu0 %v2398, 64
  %v2484 = vpop.permute.xlu0 %2483
  %2485 = vrot.lane.b32.xlu0 %v2399, 64
  %v2486 = vpop.permute.xlu0 %2485
  %2487 = vrot.lane.b32.xlu0 %v2400, 64
  %v2488 = vpop.permute.xlu0 %2487
  %2489 = vrot.lane.b32.xlu0 %v2401, 64
  %v2490 = vpop.permute.xlu0 %2489
  %2491 = vrot.lane.b32.xlu0 %v2402, 64
  %v2492 = vpop.permute.xlu0 %2491
  %2493 = vrot.lane.b32.xlu0 %v2403, 64
  %v2494 = vpop.permute.xlu0 %2493
  %2495 = vrot.lane.b32.xlu0 %v2404, 64
  %v2496 = vpop.permute.xlu0 %2495
  %2497 = vrot.lane.b32.xlu0 %v2405, 64
  %v2498 = vpop.permute.xlu0 %2497
  %2499 = vrot.lane.b32.xlu0 %v2406, 64
  %v2500 = vpop.permute.xlu0 %2499
  %2501 = vrot.lane.b32.xlu0 %v2407, 64
  %v2502 = vpop.permute.xlu0 %2501
  %2503 = vrot.lane.b32.xlu0 %v2408, 64
  %v2504 = vpop.permute.xlu0 %2503
  %vm2537 = vcmask 785920
  %2538 = vst.msk [vmem:[#allocation3] sm:$0xff] %vm2537, %v2442
  %2539 = vst.msk [vmem:[#allocation3 + $0x18] sm:$0xff] %vm2537, %v2444
  %2540 = vst.msk [vmem:[#allocation3 + $0x30] sm:$0xff] %vm2537, %v2446
  %2541 = vst.msk [vmem:[#allocation3 + $0x48] sm:$0xff] %vm2537, %v2448
  %2542 = vst.msk [vmem:[#allocation3 + $0x60] sm:$0xff] %vm2537, %v2450
  %2543 = vst.msk [vmem:[#allocation3 + $0x78] sm:$0xff] %vm2537, %v2452
  %2544 = vst.msk [vmem:[#allocation3 + $0x90] sm:$0xff] %vm2537, %v2454
  %2545 = vst.msk [vmem:[#allocation3 + $0xa8] sm:$0xff] %vm2537, %v2456
  %2546 = vst.msk [vmem:[#allocation3 + $0xc0] sm:$0xff] %vm2537, %v2458
  %2547 = vst.msk [vmem:[#allocation3 + $0xd8] sm:$0xff] %vm2537, %v2460
  %2548 = vst.msk [vmem:[#allocation3 + $0xf0] sm:$0xff] %vm2537, %v2462
  %2549 = vst.msk [vmem:[#allocation3 + $0x108] sm:$0xff] %vm2537, %v2464
  %2550 = vst.msk [vmem:[#allocation3 + $0x120] sm:$0xff] %vm2537, %v2466
  %2551 = vst.msk [vmem:[#allocation3 + $0x138] sm:$0xff] %vm2537, %v2468
  %2552 = vst.msk [vmem:[#allocation3 + $0x150] sm:$0xff] %vm2537, %v2470
  %2553 = vst.msk [vmem:[#allocation3 + $0x168] sm:$0xff] %vm2537, %v2472
  %2554 = vst.msk [vmem:[#allocation3 + $0x180] sm:$0xff] %vm2537, %v2474
  %2555 = vst.msk [vmem:[#allocation3 + $0x198] sm:$0xff] %vm2537, %v2476
  %2556 = vst.msk [vmem:[#allocation3 + $0x1b0] sm:$0xff] %vm2537, %v2478
  %2557 = vst.msk [vmem:[#allocation3 + $0x1c8] sm:$0xff] %vm2537, %v2480
  %2558 = vst.msk [vmem:[#allocation3 + $0x1e0] sm:$0xff] %vm2537, %v2482
  %2559 = vst.msk [vmem:[#allocation3 + $0x1f8] sm:$0xff] %vm2537, %v2484
  %2560 = vst.msk [vmem:[#allocation3 + $0x210] sm:$0xff] %vm2537, %v2486
  %2561 = vst.msk [vmem:[#allocation3 + $0x228] sm:$0xff] %vm2537, %v2488
  %2562 = vst.msk [vmem:[#allocation3 + $0x240] sm:$0xff] %vm2537, %v2490
  %2563 = vst.msk [vmem:[#allocation3 + $0x258] sm:$0xff] %vm2537, %v2492
  %2564 = vst.msk [vmem:[#allocation3 + $0x270] sm:$0xff] %vm2537, %v2494
  %2565 = vst.msk [vmem:[#allocation3 + $0x288] sm:$0xff] %vm2537, %v2496
  %2566 = vst.msk [vmem:[#allocation3 + $0x2a0] sm:$0xff] %vm2537, %v2498
  %2567 = vst.msk [vmem:[#allocation3 + $0x2b8] sm:$0xff] %vm2537, %v2500
  %2568 = vst.msk [vmem:[#allocation3 + $0x2d0] sm:$0xff] %vm2537, %v2502
  %2569 = vst.msk [vmem:[#allocation3 + $0x2e8] sm:$0xff] %vm2537, %v2504
  %v2570 = vld [vmem:[#allocation2 + $0x17] sm:$0xff]
  %v2571 = vld [vmem:[#allocation2 + $0x1f] sm:$0xff]
  %v2572 = vld [vmem:[#allocation2 + $0x27] sm:$0xff]
  %v2573 = vld [vmem:[#allocation2 + $0x2f] sm:$0xff]
  %v2574 = vld [vmem:[#allocation2 + $0x37] sm:$0xff]
  %v2575 = vld [vmem:[#allocation2 + $0x3f] sm:$0xff]
  %v2576 = vld [vmem:[#allocation2 + $0x47] sm:$0xff]
  %v2577 = vld [vmem:[#allocation2 + $0x4f] sm:$0xff]
  %v2578 = vld [vmem:[#allocation2 + $0x57] sm:$0xff]
  %v2579 = vld [vmem:[#allocation2 + $0x5f] sm:$0xff]
  %v2580 = vld [vmem:[#allocation2 + $0x67] sm:$0xff]
  %v2581 = vld [vmem:[#allocation2 + $0x6f] sm:$0xff]
  %v2582 = vld [vmem:[#allocation2 + $0x77] sm:$0xff]
  %v2583 = vld [vmem:[#allocation2 + $0x7f] sm:$0xff]
  %v2584 = vld [vmem:[#allocation2 + $0x87] sm:$0xff]
  %v2585 = vld [vmem:[#allocation2 + $0x8f] sm:$0xff]
  %v2586 = vld [vmem:[#allocation2 + $0x97] sm:$0xff]
  %v2587 = vld [vmem:[#allocation2 + $0x9f] sm:$0xff]
  %v2588 = vld [vmem:[#allocation2 + $0xa7] sm:$0xff]
  %v2589 = vld [vmem:[#allocation2 + $0xaf] sm:$0xff]
  %v2590 = vld [vmem:[#allocation2 + $0xb7] sm:$0xff]
  %v2591 = vld [vmem:[#allocation2 + $0xbf] sm:$0xff]
  %v2592 = vld [vmem:[#allocation2 + $0xc7] sm:$0xff]
  %v2593 = vld [vmem:[#allocation2 + $0xcf] sm:$0xff]
  %v2594 = vld [vmem:[#allocation2 + $0xd7] sm:$0xff]
  %v2595 = vld [vmem:[#allocation2 + $0xdf] sm:$0xff]
  %v2596 = vld [vmem:[#allocation2 + $0xe7] sm:$0xff]
  %v2597 = vld [vmem:[#allocation2 + $0xef] sm:$0xff]
  %v2598 = vld [vmem:[#allocation2 + $0xf7] sm:$0xff]
  %v2599 = vld [vmem:[#allocation2 + $0xff] sm:$0xff]
  %v2600 = vld [vmem:[#allocation2 + $0x107] sm:$0xff]
  %v2601 = vld [vmem:[#allocation2 + $0x10f] sm:$0xff]
  %v2602 = vld [vmem:[#allocation2 + $0x117] sm:$0xff]
  %v2603 = vld [vmem:[#allocation2 + $0x11f] sm:$0xff]
  %v2604 = vld [vmem:[#allocation2 + $0x127] sm:$0xff]
  %v2605 = vld [vmem:[#allocation2 + $0x12f] sm:$0xff]
  %v2606 = vld [vmem:[#allocation2 + $0x137] sm:$0xff]
  %v2607 = vld [vmem:[#allocation2 + $0x13f] sm:$0xff]
  %v2608 = vld [vmem:[#allocation2 + $0x147] sm:$0xff]
  %v2609 = vld [vmem:[#allocation2 + $0x14f] sm:$0xff]
  %v2610 = vld [vmem:[#allocation2 + $0x157] sm:$0xff]
  %v2611 = vld [vmem:[#allocation2 + $0x15f] sm:$0xff]
  %v2612 = vld [vmem:[#allocation2 + $0x167] sm:$0xff]
  %v2613 = vld [vmem:[#allocation2 + $0x16f] sm:$0xff]
  %v2614 = vld [vmem:[#allocation2 + $0x177] sm:$0xff]
  %v2615 = vld [vmem:[#allocation2 + $0x17f] sm:$0xff]
  %v2616 = vld [vmem:[#allocation2 + $0x187] sm:$0xff]
  %v2617 = vld [vmem:[#allocation2 + $0x18f] sm:$0xff]
  %v2618 = vld [vmem:[#allocation2 + $0x197] sm:$0xff]
  %v2619 = vld [vmem:[#allocation2 + $0x19f] sm:$0xff]
  %v2620 = vld [vmem:[#allocation2 + $0x1a7] sm:$0xff]
  %v2621 = vld [vmem:[#allocation2 + $0x1af] sm:$0xff]
  %v2622 = vld [vmem:[#allocation2 + $0x1b7] sm:$0xff]
  %v2623 = vld [vmem:[#allocation2 + $0x1bf] sm:$0xff]
  %v2624 = vld [vmem:[#allocation2 + $0x1c7] sm:$0xff]
  %v2625 = vld [vmem:[#allocation2 + $0x1cf] sm:$0xff]
  %v2626 = vld [vmem:[#allocation2 + $0x1d7] sm:$0xff]
  %v2627 = vld [vmem:[#allocation2 + $0x1df] sm:$0xff]
  %v2628 = vld [vmem:[#allocation2 + $0x1e7] sm:$0xff]
  %v2629 = vld [vmem:[#allocation2 + $0x1ef] sm:$0xff]
  %v2630 = vld [vmem:[#allocation2 + $0x1f7] sm:$0xff]
  %v2631 = vld [vmem:[#allocation2 + $0x1ff] sm:$0xff]
  %v2632 = vld [vmem:[#allocation2 + $0x207] sm:$0xff]
  %v2633 = vld [vmem:[#allocation2 + $0x20f] sm:$0xff]
  %v2634 = vand.u32 %v1288, 8
  %v2635 = vand.u32 %v1289, 8
  %v2636 = vand.u32 %v1290, 8
  %v2637 = vand.u32 %v1291, 8
  %v2638 = vand.u32 %v1292, 8
  %v2639 = vand.u32 %v1293, 8
  %v2640 = vand.u32 %v1294, 8
  %v2641 = vand.u32 %v1295, 8
  %v2642 = vand.u32 %v1296, 8
  %v2643 = vand.u32 %v1297, 8
  %v2644 = vand.u32 %v1298, 8
  %v2645 = vand.u32 %v1299, 8
  %v2646 = vand.u32 %v1300, 8
  %v2647 = vand.u32 %v1301, 8
  %v2648 = vand.u32 %v1302, 8
  %v2649 = vand.u32 %v1303, 8
  %v2650 = vand.u32 %v1304, 8
  %v2651 = vand.u32 %v1305, 8
  %v2652 = vand.u32 %v1306, 8
  %v2653 = vand.u32 %v1307, 8
  %v2654 = vand.u32 %v1308, 8
  %v2655 = vand.u32 %v1309, 8
  %v2656 = vand.u32 %v1310, 8
  %v2657 = vand.u32 %v1311, 8
  %v2658 = vand.u32 %v1312, 8
  %v2659 = vand.u32 %v1313, 8
  %v2660 = vand.u32 %v1314, 8
  %v2661 = vand.u32 %v1315, 8
  %v2662 = vand.u32 %v1316, 8
  %v2663 = vand.u32 %v1317, 8
  %v2664 = vand.u32 %v1318, 8
  %v2665 = vand.u32 %v1319, 8
  %v2666 = vand.u32 %v1320, 8
  %v2667 = vand.u32 %v1321, 8
  %v2668 = vand.u32 %v1322, 8
  %v2669 = vand.u32 %v1323, 8
  %v2670 = vand.u32 %v1324, 8
  %v2671 = vand.u32 %v1325, 8
  %v2672 = vand.u32 %v1326, 8
  %v2673 = vand.u32 %v1327, 8
  %v2674 = vand.u32 %v1328, 8
  %v2675 = vand.u32 %v1329, 8
  %v2676 = vand.u32 %v1330, 8
  %v2677 = vand.u32 %v1331, 8
  %v2678 = vand.u32 %v1332, 8
  %v2679 = vand.u32 %v1333, 8
  %v2680 = vand.u32 %v1334, 8
  %v2681 = vand.u32 %v1335, 8
  %v2682 = vand.u32 %v1336, 8
  %v2683 = vand.u32 %v1337, 8
  %v2684 = vand.u32 %v1338, 8
  %v2685 = vand.u32 %v1339, 8
  %v2686 = vand.u32 %v1340, 8
  %v2687 = vand.u32 %v1341, 8
  %v2688 = vand.u32 %v1342, 8
  %v2689 = vand.u32 %v1343, 8
  %v2690 = vand.u32 %v1344, 8
  %v2691 = vand.u32 %v1345, 8
  %v2692 = vand.u32 %v1346, 8
  %v2693 = vand.u32 %v1347, 8
  %v2694 = vand.u32 %v1348, 8
  %v2695 = vand.u32 %v1349, 8
  %v2696 = vand.u32 %v1350, 8
  %v2697 = vand.u32 %v1351, 8
  %vm2698 = vcmp.ne.s32.totalorder %v2634, 0
  %vm2699 = vcmp.ne.s32.totalorder %v2635, 0
  %vm2700 = vcmp.ne.s32.totalorder %v2636, 0
  %vm2701 = vcmp.ne.s32.totalorder %v2637, 0
  %vm2702 = vcmp.ne.s32.totalorder %v2638, 0
  %vm2703 = vcmp.ne.s32.totalorder %v2639, 0
  %vm2704 = vcmp.ne.s32.totalorder %v2640, 0
  %vm2705 = vcmp.ne.s32.totalorder %v2641, 0
  %vm2706 = vcmp.ne.s32.totalorder %v2642, 0
  %vm2707 = vcmp.ne.s32.totalorder %v2643, 0
  %vm2708 = vcmp.ne.s32.totalorder %v2644, 0
  %vm2709 = vcmp.ne.s32.totalorder %v2645, 0
  %vm2710 = vcmp.ne.s32.totalorder %v2646, 0
  %vm2711 = vcmp.ne.s32.totalorder %v2647, 0
  %vm2712 = vcmp.ne.s32.totalorder %v2648, 0
  %vm2713 = vcmp.ne.s32.totalorder %v2649, 0
  %vm2714 = vcmp.ne.s32.totalorder %v2650, 0
  %vm2715 = vcmp.ne.s32.totalorder %v2651, 0
  %vm2716 = vcmp.ne.s32.totalorder %v2652, 0
  %vm2717 = vcmp.ne.s32.totalorder %v2653, 0
  %vm2718 = vcmp.ne.s32.totalorder %v2654, 0
  %vm2719 = vcmp.ne.s32.totalorder %v2655, 0
  %vm2720 = vcmp.ne.s32.totalorder %v2656, 0
  %vm2721 = vcmp.ne.s32.totalorder %v2657, 0
  %vm2722 = vcmp.ne.s32.totalorder %v2658, 0
  %vm2723 = vcmp.ne.s32.totalorder %v2659, 0
  %vm2724 = vcmp.ne.s32.totalorder %v2660, 0
  %vm2725 = vcmp.ne.s32.totalorder %v2661, 0
  %vm2726 = vcmp.ne.s32.totalorder %v2662, 0
  %vm2727 = vcmp.ne.s32.totalorder %v2663, 0
  %vm2728 = vcmp.ne.s32.totalorder %v2664, 0
  %vm2729 = vcmp.ne.s32.totalorder %v2665, 0
  %vm2730 = vcmp.ne.s32.totalorder %v2666, 0
  %vm2731 = vcmp.ne.s32.totalorder %v2667, 0
  %vm2732 = vcmp.ne.s32.totalorder %v2668, 0
  %vm2733 = vcmp.ne.s32.totalorder %v2669, 0
  %vm2734 = vcmp.ne.s32.totalorder %v2670, 0
  %vm2735 = vcmp.ne.s32.totalorder %v2671, 0
  %vm2736 = vcmp.ne.s32.totalorder %v2672, 0
  %vm2737 = vcmp.ne.s32.totalorder %v2673, 0
  %vm2738 = vcmp.ne.s32.totalorder %v2674, 0
  %vm2739 = vcmp.ne.s32.totalorder %v2675, 0
  %vm2740 = vcmp.ne.s32.totalorder %v2676, 0
  %vm2741 = vcmp.ne.s32.totalorder %v2677, 0
  %vm2742 = vcmp.ne.s32.totalorder %v2678, 0
  %vm2743 = vcmp.ne.s32.totalorder %v2679, 0
  %vm2744 = vcmp.ne.s32.totalorder %v2680, 0
  %vm2745 = vcmp.ne.s32.totalorder %v2681, 0
  %vm2746 = vcmp.ne.s32.totalorder %v2682, 0
  %vm2747 = vcmp.ne.s32.totalorder %v2683, 0
  %vm2748 = vcmp.ne.s32.totalorder %v2684, 0
  %vm2749 = vcmp.ne.s32.totalorder %v2685, 0
  %vm2750 = vcmp.ne.s32.totalorder %v2686, 0
  %vm2751 = vcmp.ne.s32.totalorder %v2687, 0
  %vm2752 = vcmp.ne.s32.totalorder %v2688, 0
  %vm2753 = vcmp.ne.s32.totalorder %v2689, 0
  %vm2754 = vcmp.ne.s32.totalorder %v2690, 0
  %vm2755 = vcmp.ne.s32.totalorder %v2691, 0
  %vm2756 = vcmp.ne.s32.totalorder %v2692, 0
  %vm2757 = vcmp.ne.s32.totalorder %v2693, 0
  %vm2758 = vcmp.ne.s32.totalorder %v2694, 0
  %vm2759 = vcmp.ne.s32.totalorder %v2695, 0
  %vm2760 = vcmp.ne.s32.totalorder %v2696, 0
  %vm2761 = vcmp.ne.s32.totalorder %v2697, 0
  %v2762 = vsel %vm2698, %v2570, 0.0
  %v2763 = vsel %vm2699, %v2571, 0.0
  %v2764 = vsel %vm2700, %v2572, 0.0
  %v2765 = vsel %vm2701, %v2573, 0.0
  %v2766 = vsel %vm2702, %v2574, 0.0
  %v2767 = vsel %vm2703, %v2575, 0.0
  %v2768 = vsel %vm2704, %v2576, 0.0
  %v2769 = vsel %vm2705, %v2577, 0.0
  %v2770 = vsel %vm2706, %v2578, 0.0
  %v2771 = vsel %vm2707, %v2579, 0.0
  %v2772 = vsel %vm2708, %v2580, 0.0
  %v2773 = vsel %vm2709, %v2581, 0.0
  %v2774 = vsel %vm2710, %v2582, 0.0
  %v2775 = vsel %vm2711, %v2583, 0.0
  %v2776 = vsel %vm2712, %v2584, 0.0
  %v2777 = vsel %vm2713, %v2585, 0.0
  %v2778 = vsel %vm2714, %v2586, 0.0
  %v2779 = vsel %vm2715, %v2587, 0.0
  %v2780 = vsel %vm2716, %v2588, 0.0
  %v2781 = vsel %vm2717, %v2589, 0.0
  %v2782 = vsel %vm2718, %v2590, 0.0
  %v2783 = vsel %vm2719, %v2591, 0.0
  %v2784 = vsel %vm2720, %v2592, 0.0
  %v2785 = vsel %vm2721, %v2593, 0.0
  %v2786 = vsel %vm2722, %v2594, 0.0
  %v2787 = vsel %vm2723, %v2595, 0.0
  %v2788 = vsel %vm2724, %v2596, 0.0
  %v2789 = vsel %vm2725, %v2597, 0.0
  %v2790 = vsel %vm2726, %v2598, 0.0
  %v2791 = vsel %vm2727, %v2599, 0.0
  %v2792 = vsel %vm2728, %v2600, 0.0
  %v2793 = vsel %vm2729, %v2601, 0.0
  %v2794 = vsel %vm2730, %v2602, 0.0
  %v2795 = vsel %vm2731, %v2603, 0.0
  %v2796 = vsel %vm2732, %v2604, 0.0
  %v2797 = vsel %vm2733, %v2605, 0.0
  %v2798 = vsel %vm2734, %v2606, 0.0
  %v2799 = vsel %vm2735, %v2607, 0.0
  %v2800 = vsel %vm2736, %v2608, 0.0
  %v2801 = vsel %vm2737, %v2609, 0.0
  %v2802 = vsel %vm2738, %v2610, 0.0
  %v2803 = vsel %vm2739, %v2611, 0.0
  %v2804 = vsel %vm2740, %v2612, 0.0
  %v2805 = vsel %vm2741, %v2613, 0.0
  %v2806 = vsel %vm2742, %v2614, 0.0
  %v2807 = vsel %vm2743, %v2615, 0.0
  %v2808 = vsel %vm2744, %v2616, 0.0
  %v2809 = vsel %vm2745, %v2617, 0.0
  %v2810 = vsel %vm2746, %v2618, 0.0
  %v2811 = vsel %vm2747, %v2619, 0.0
  %v2812 = vsel %vm2748, %v2620, 0.0
  %v2813 = vsel %vm2749, %v2621, 0.0
  %v2814 = vsel %vm2750, %v2622, 0.0
  %v2815 = vsel %vm2751, %v2623, 0.0
  %v2816 = vsel %vm2752, %v2624, 0.0
  %v2817 = vsel %vm2753, %v2625, 0.0
  %v2818 = vsel %vm2754, %v2626, 0.0
  %v2819 = vsel %vm2755, %v2627, 0.0
  %v2820 = vsel %vm2756, %v2628, 0.0
  %v2821 = vsel %vm2757, %v2629, 0.0
  %v2822 = vsel %vm2758, %v2630, 0.0
  %v2823 = vsel %vm2759, %v2631, 0.0
  %v2824 = vsel %vm2760, %v2632, 0.0
  %v2825 = vsel %vm2761, %v2633, 0.0
  %v2826 = vpack.c.bf16 %v2763, %v2762
  %v2827 = vpack.c.bf16 %v2765, %v2764
  %v2828 = vpack.c.bf16 %v2767, %v2766
  %v2829 = vpack.c.bf16 %v2769, %v2768
  %v2830 = vpack.c.bf16 %v2771, %v2770
  %v2831 = vpack.c.bf16 %v2773, %v2772
  %v2832 = vpack.c.bf16 %v2775, %v2774
  %v2833 = vpack.c.bf16 %v2777, %v2776
  %v2834 = vpack.c.bf16 %v2779, %v2778
  %v2835 = vpack.c.bf16 %v2781, %v2780
  %v2836 = vpack.c.bf16 %v2783, %v2782
  %v2837 = vpack.c.bf16 %v2785, %v2784
  %v2838 = vpack.c.bf16 %v2787, %v2786
  %v2839 = vpack.c.bf16 %v2789, %v2788
  %v2840 = vpack.c.bf16 %v2791, %v2790
  %v2841 = vpack.c.bf16 %v2793, %v2792
  %v2842 = vpack.c.bf16 %v2795, %v2794
  %v2843 = vpack.c.bf16 %v2797, %v2796
  %v2844 = vpack.c.bf16 %v2799, %v2798
  %v2845 = vpack.c.bf16 %v2801, %v2800
  %v2846 = vpack.c.bf16 %v2803, %v2802
  %v2847 = vpack.c.bf16 %v2805, %v2804
  %v2848 = vpack.c.bf16 %v2807, %v2806
  %v2849 = vpack.c.bf16 %v2809, %v2808
  %v2850 = vpack.c.bf16 %v2811, %v2810
  %v2851 = vpack.c.bf16 %v2813, %v2812
  %v2852 = vpack.c.bf16 %v2815, %v2814
  %v2853 = vpack.c.bf16 %v2817, %v2816
  %v2854 = vpack.c.bf16 %v2819, %v2818
  %v2855 = vpack.c.bf16 %v2821, %v2820
  %v2856 = vpack.c.bf16 %v2823, %v2822
  %v2857 = vpack.c.bf16 %v2825, %v2824
  %2890 = vrot.lane.b32.xlu0 %v2826, 96
  %v2891 = vpop.permute.xlu0 %2890
  %2892 = vrot.lane.b32.xlu0 %v2827, 96
  %v2893 = vpop.permute.xlu0 %2892
  %2894 = vrot.lane.b32.xlu0 %v2828, 96
  %v2895 = vpop.permute.xlu0 %2894
  %2896 = vrot.lane.b32.xlu0 %v2829, 96
  %v2897 = vpop.permute.xlu0 %2896
  %2898 = vrot.lane.b32.xlu0 %v2830, 96
  %v2899 = vpop.permute.xlu0 %2898
  %2900 = vrot.lane.b32.xlu0 %v2831, 96
  %v2901 = vpop.permute.xlu0 %2900
  %2902 = vrot.lane.b32.xlu0 %v2832, 96
  %v2903 = vpop.permute.xlu0 %2902
  %2904 = vrot.lane.b32.xlu0 %v2833, 96
  %v2905 = vpop.permute.xlu0 %2904
  %2906 = vrot.lane.b32.xlu0 %v2834, 96
  %v2907 = vpop.permute.xlu0 %2906
  %2908 = vrot.lane.b32.xlu0 %v2835, 96
  %v2909 = vpop.permute.xlu0 %2908
  %2910 = vrot.lane.b32.xlu0 %v2836, 96
  %v2911 = vpop.permute.xlu0 %2910
  %2912 = vrot.lane.b32.xlu0 %v2837, 96
  %v2913 = vpop.permute.xlu0 %2912
  %2914 = vrot.lane.b32.xlu0 %v2838, 96
  %v2915 = vpop.permute.xlu0 %2914
  %2916 = vrot.lane.b32.xlu0 %v2839, 96
  %v2917 = vpop.permute.xlu0 %2916
  %2918 = vrot.lane.b32.xlu0 %v2840, 96
  %v2919 = vpop.permute.xlu0 %2918
  %2920 = vrot.lane.b32.xlu0 %v2841, 96
  %v2921 = vpop.permute.xlu0 %2920
  %2922 = vrot.lane.b32.xlu0 %v2842, 96
  %v2923 = vpop.permute.xlu0 %2922
  %2924 = vrot.lane.b32.xlu0 %v2843, 96
  %v2925 = vpop.permute.xlu0 %2924
  %2926 = vrot.lane.b32.xlu0 %v2844, 96
  %v2927 = vpop.permute.xlu0 %2926
  %2928 = vrot.lane.b32.xlu0 %v2845, 96
  %v2929 = vpop.permute.xlu0 %2928
  %2930 = vrot.lane.b32.xlu0 %v2846, 96
  %v2931 = vpop.permute.xlu0 %2930
  %2932 = vrot.lane.b32.xlu0 %v2847, 96
  %v2933 = vpop.permute.xlu0 %2932
  %2934 = vrot.lane.b32.xlu0 %v2848, 96
  %v2935 = vpop.permute.xlu0 %2934
  %2936 = vrot.lane.b32.xlu0 %v2849, 96
  %v2937 = vpop.permute.xlu0 %2936
  %2938 = vrot.lane.b32.xlu0 %v2850, 96
  %v2939 = vpop.permute.xlu0 %2938
  %2940 = vrot.lane.b32.xlu0 %v2851, 96
  %v2941 = vpop.permute.xlu0 %2940
  %2942 = vrot.lane.b32.xlu0 %v2852, 96
  %v2943 = vpop.permute.xlu0 %2942
  %2944 = vrot.lane.b32.xlu0 %v2853, 96
  %v2945 = vpop.permute.xlu0 %2944
  %2946 = vrot.lane.b32.xlu0 %v2854, 96
  %v2947 = vpop.permute.xlu0 %2946
  %2948 = vrot.lane.b32.xlu0 %v2855, 96
  %v2949 = vpop.permute.xlu0 %2948
  %2950 = vrot.lane.b32.xlu0 %v2856, 96
  %v2951 = vpop.permute.xlu0 %2950
  %2952 = vrot.lane.b32.xlu0 %v2857, 96
  %v2953 = vpop.permute.xlu0 %2952
  %vm2986 = vcmask 1048320
  %2987 = vst.msk [vmem:[#allocation3] sm:$0xff] %vm2986, %v2891
  %2988 = vst.msk [vmem:[#allocation3 + $0x18] sm:$0xff] %vm2986, %v2893
  %2989 = vst.msk [vmem:[#allocation3 + $0x30] sm:$0xff] %vm2986, %v2895
  %2990 = vst.msk [vmem:[#allocation3 + $0x48] sm:$0xff] %vm2986, %v2897
  %2991 = vst.msk [vmem:[#allocation3 + $0x60] sm:$0xff] %vm2986, %v2899
  %2992 = vst.msk [vmem:[#allocation3 + $0x78] sm:$0xff] %vm2986, %v2901
  %2993 = vst.msk [vmem:[#allocation3 + $0x90] sm:$0xff] %vm2986, %v2903
  %2994 = vst.msk [vmem:[#allocation3 + $0xa8] sm:$0xff] %vm2986, %v2905
  %2995 = vst.msk [vmem:[#allocation3 + $0xc0] sm:$0xff] %vm2986, %v2907
  %2996 = vst.msk [vmem:[#allocation3 + $0xd8] sm:$0xff] %vm2986, %v2909
  %2997 = vst.msk [vmem:[#allocation3 + $0xf0] sm:$0xff] %vm2986, %v2911
  %2998 = vst.msk [vmem:[#allocation3 + $0x108] sm:$0xff] %vm2986, %v2913
  %2999 = vst.msk [vmem:[#allocation3 + $0x120] sm:$0xff] %vm2986, %v2915
  %3000 = vst.msk [vmem:[#allocation3 + $0x138] sm:$0xff] %vm2986, %v2917
  %3001 = vst.msk [vmem:[#allocation3 + $0x150] sm:$0xff] %vm2986, %v2919
  %3002 = vst.msk [vmem:[#allocation3 + $0x168] sm:$0xff] %vm2986, %v2921
  %3003 = vst.msk [vmem:[#allocation3 + $0x180] sm:$0xff] %vm2986, %v2923
  %3004 = vst.msk [vmem:[#allocation3 + $0x198] sm:$0xff] %vm2986, %v2925
  %3005 = vst.msk [vmem:[#allocation3 + $0x1b0] sm:$0xff] %vm2986, %v2927
  %3006 = vst.msk [vmem:[#allocation3 + $0x1c8] sm:$0xff] %vm2986, %v2929
  %3007 = vst.msk [vmem:[#allocation3 + $0x1e0] sm:$0xff] %vm2986, %v2931
  %3008 = vst.msk [vmem:[#allocation3 + $0x1f8] sm:$0xff] %vm2986, %v2933
  %3009 = vst.msk [vmem:[#allocation3 + $0x210] sm:$0xff] %vm2986, %v2935
  %3010 = vst.msk [vmem:[#allocation3 + $0x228] sm:$0xff] %vm2986, %v2937
  %3011 = vst.msk [vmem:[#allocation3 + $0x240] sm:$0xff] %vm2986, %v2939
  %3012 = vst.msk [vmem:[#allocation3 + $0x258] sm:$0xff] %vm2986, %v2941
  %3013 = vst.msk [vmem:[#allocation3 + $0x270] sm:$0xff] %vm2986, %v2943
  %3014 = vst.msk [vmem:[#allocation3 + $0x288] sm:$0xff] %vm2986, %v2945
  %3015 = vst.msk [vmem:[#allocation3 + $0x2a0] sm:$0xff] %vm2986, %v2947
  %3016 = vst.msk [vmem:[#allocation3 + $0x2b8] sm:$0xff] %vm2986, %v2949
  %3017 = vst.msk [vmem:[#allocation3 + $0x2d0] sm:$0xff] %vm2986, %v2951
  %3018 = vst.msk [vmem:[#allocation3 + $0x2e8] sm:$0xff] %vm2986, %v2953
  %v3019 = vld [vmem:[#allocation2 + $0x18] sm:$0xff]
  %v3020 = vld [vmem:[#allocation2 + $0x20] sm:$0xff]
  %v3021 = vld [vmem:[#allocation2 + $0x28] sm:$0xff]
  %v3022 = vld [vmem:[#allocation2 + $0x30] sm:$0xff]
  %v3023 = vld [vmem:[#allocation2 + $0x38] sm:$0xff]
  %v3024 = vld [vmem:[#allocation2 + $0x40] sm:$0xff]
  %v3025 = vld [vmem:[#allocation2 + $0x48] sm:$0xff]
  %v3026 = vld [vmem:[#allocation2 + $0x50] sm:$0xff]
  %v3027 = vld [vmem:[#allocation2 + $0x58] sm:$0xff]
  %v3028 = vld [vmem:[#allocation2 + $0x60] sm:$0xff]
  %v3029 = vld [vmem:[#allocation2 + $0x68] sm:$0xff]
  %v3030 = vld [vmem:[#allocation2 + $0x70] sm:$0xff]
  %v3031 = vld [vmem:[#allocation2 + $0x78] sm:$0xff]
  %v3032 = vld [vmem:[#allocation2 + $0x80] sm:$0xff]
  %v3033 = vld [vmem:[#allocation2 + $0x88] sm:$0xff]
  %v3034 = vld [vmem:[#allocation2 + $0x90] sm:$0xff]
  %v3035 = vld [vmem:[#allocation2 + $0x98] sm:$0xff]
  %v3036 = vld [vmem:[#allocation2 + $0xa0] sm:$0xff]
  %v3037 = vld [vmem:[#allocation2 + $0xa8] sm:$0xff]
  %v3038 = vld [vmem:[#allocation2 + $0xb0] sm:$0xff]
  %v3039 = vld [vmem:[#allocation2 + $0xb8] sm:$0xff]
  %v3040 = vld [vmem:[#allocation2 + $0xc0] sm:$0xff]
  %v3041 = vld [vmem:[#allocation2 + $0xc8] sm:$0xff]
  %v3042 = vld [vmem:[#allocation2 + $0xd0] sm:$0xff]
  %v3043 = vld [vmem:[#allocation2 + $0xd8] sm:$0xff]
  %v3044 = vld [vmem:[#allocation2 + $0xe0] sm:$0xff]
  %v3045 = vld [vmem:[#allocation2 + $0xe8] sm:$0xff]
  %v3046 = vld [vmem:[#allocation2 + $0xf0] sm:$0xff]
  %v3047 = vld [vmem:[#allocation2 + $0xf8] sm:$0xff]
  %v3048 = vld [vmem:[#allocation2 + $0x100] sm:$0xff]
  %v3049 = vld [vmem:[#allocation2 + $0x108] sm:$0xff]
  %v3050 = vld [vmem:[#allocation2 + $0x110] sm:$0xff]
  %v3051 = vld [vmem:[#allocation2 + $0x118] sm:$0xff]
  %v3052 = vld [vmem:[#allocation2 + $0x120] sm:$0xff]
  %v3053 = vld [vmem:[#allocation2 + $0x128] sm:$0xff]
  %v3054 = vld [vmem:[#allocation2 + $0x130] sm:$0xff]
  %v3055 = vld [vmem:[#allocation2 + $0x138] sm:$0xff]
  %v3056 = vld [vmem:[#allocation2 + $0x140] sm:$0xff]
  %v3057 = vld [vmem:[#allocation2 + $0x148] sm:$0xff]
  %v3058 = vld [vmem:[#allocation2 + $0x150] sm:$0xff]
  %v3059 = vld [vmem:[#allocation2 + $0x158] sm:$0xff]
  %v3060 = vld [vmem:[#allocation2 + $0x160] sm:$0xff]
  %v3061 = vld [vmem:[#allocation2 + $0x168] sm:$0xff]
  %v3062 = vld [vmem:[#allocation2 + $0x170] sm:$0xff]
  %v3063 = vld [vmem:[#allocation2 + $0x178] sm:$0xff]
  %v3064 = vld [vmem:[#allocation2 + $0x180] sm:$0xff]
  %v3065 = vld [vmem:[#allocation2 + $0x188] sm:$0xff]
  %v3066 = vld [vmem:[#allocation2 + $0x190] sm:$0xff]
  %v3067 = vld [vmem:[#allocation2 + $0x198] sm:$0xff]
  %v3068 = vld [vmem:[#allocation2 + $0x1a0] sm:$0xff]
  %v3069 = vld [vmem:[#allocation2 + $0x1a8] sm:$0xff]
  %v3070 = vld [vmem:[#allocation2 + $0x1b0] sm:$0xff]
  %v3071 = vld [vmem:[#allocation2 + $0x1b8] sm:$0xff]
  %v3072 = vld [vmem:[#allocation2 + $0x1c0] sm:$0xff]
  %v3073 = vld [vmem:[#allocation2 + $0x1c8] sm:$0xff]
  %v3074 = vld [vmem:[#allocation2 + $0x1d0] sm:$0xff]
  %v3075 = vld [vmem:[#allocation2 + $0x1d8] sm:$0xff]
  %v3076 = vld [vmem:[#allocation2 + $0x1e0] sm:$0xff]
  %v3077 = vld [vmem:[#allocation2 + $0x1e8] sm:$0xff]
  %v3078 = vld [vmem:[#allocation2 + $0x1f0] sm:$0xff]
  %v3079 = vld [vmem:[#allocation2 + $0x1f8] sm:$0xff]
  %v3080 = vld [vmem:[#allocation2 + $0x200] sm:$0xff]
  %v3081 = vld [vmem:[#allocation2 + $0x208] sm:$0xff]
  %v3082 = vld [vmem:[#allocation2 + $0x210] sm:$0xff]
  %v3083 = vpack.c.bf16 %v3020, %v3019
  %v3084 = vpack.c.bf16 %v3022, %v3021
  %v3085 = vpack.c.bf16 %v3024, %v3023
  %v3086 = vpack.c.bf16 %v3026, %v3025
  %v3087 = vpack.c.bf16 %v3028, %v3027
  %v3088 = vpack.c.bf16 %v3030, %v3029
  %v3089 = vpack.c.bf16 %v3032, %v3031
  %v3090 = vpack.c.bf16 %v3034, %v3033
  %v3091 = vpack.c.bf16 %v3036, %v3035
  %v3092 = vpack.c.bf16 %v3038, %v3037
  %v3093 = vpack.c.bf16 %v3040, %v3039
  %v3094 = vpack.c.bf16 %v3042, %v3041
  %v3095 = vpack.c.bf16 %v3044, %v3043
  %v3096 = vpack.c.bf16 %v3046, %v3045
  %v3097 = vpack.c.bf16 %v3048, %v3047
  %v3098 = vpack.c.bf16 %v3050, %v3049
  %v3099 = vpack.c.bf16 %v3052, %v3051
  %v3100 = vpack.c.bf16 %v3054, %v3053
  %v3101 = vpack.c.bf16 %v3056, %v3055
  %v3102 = vpack.c.bf16 %v3058, %v3057
  %v3103 = vpack.c.bf16 %v3060, %v3059
  %v3104 = vpack.c.bf16 %v3062, %v3061
  %v3105 = vpack.c.bf16 %v3064, %v3063
  %v3106 = vpack.c.bf16 %v3066, %v3065
  %v3107 = vpack.c.bf16 %v3068, %v3067
  %v3108 = vpack.c.bf16 %v3070, %v3069
  %v3109 = vpack.c.bf16 %v3072, %v3071
  %v3110 = vpack.c.bf16 %v3074, %v3073
  %v3111 = vpack.c.bf16 %v3076, %v3075
  %v3112 = vpack.c.bf16 %v3078, %v3077
  %v3113 = vpack.c.bf16 %v3080, %v3079
  %v3114 = vpack.c.bf16 %v3082, %v3081
  %3115 = vst.msk [vmem:[#allocation3 + $0x8] sm:$0xff] %vm30, %v3083
  %3116 = vst.msk [vmem:[#allocation3 + $0x20] sm:$0xff] %vm30, %v3084
  %3117 = vst.msk [vmem:[#allocation3 + $0x38] sm:$0xff] %vm30, %v3085
  %3118 = vst.msk [vmem:[#allocation3 + $0x50] sm:$0xff] %vm30, %v3086
  %3119 = vst.msk [vmem:[#allocation3 + $0x68] sm:$0xff] %vm30, %v3087
  %3120 = vst.msk [vmem:[#allocation3 + $0x80] sm:$0xff] %vm30, %v3088
  %3121 = vst.msk [vmem:[#allocation3 + $0x98] sm:$0xff] %vm30, %v3089
  %3122 = vst.msk [vmem:[#allocation3 + $0xb0] sm:$0xff] %vm30, %v3090
  %3123 = vst.msk [vmem:[#allocation3 + $0xc8] sm:$0xff] %vm30, %v3091
  %3124 = vst.msk [vmem:[#allocation3 + $0xe0] sm:$0xff] %vm30, %v3092
  %3125 = vst.msk [vmem:[#allocation3 + $0xf8] sm:$0xff] %vm30, %v3093
  %3126 = vst.msk [vmem:[#allocation3 + $0x110] sm:$0xff] %vm30, %v3094
  %3127 = vst.msk [vmem:[#allocation3 + $0x128] sm:$0xff] %vm30, %v3095
  %3128 = vst.msk [vmem:[#allocation3 + $0x140] sm:$0xff] %vm30, %v3096
  %3129 = vst.msk [vmem:[#allocation3 + $0x158] sm:$0xff] %vm30, %v3097
  %3130 = vst.msk [vmem:[#allocation3 + $0x170] sm:$0xff] %vm30, %v3098
  %3131 = vst.msk [vmem:[#allocation3 + $0x188] sm:$0xff] %vm30, %v3099
  %3132 = vst.msk [vmem:[#allocation3 + $0x1a0] sm:$0xff] %vm30, %v3100
  %3133 = vst.msk [vmem:[#allocation3 + $0x1b8] sm:$0xff] %vm30, %v3101
  %3134 = vst.msk [vmem:[#allocation3 + $0x1d0] sm:$0xff] %vm30, %v3102
  %3135 = vst.msk [vmem:[#allocation3 + $0x1e8] sm:$0xff] %vm30, %v3103
  %3136 = vst.msk [vmem:[#allocation3 + $0x200] sm:$0xff] %vm30, %v3104
  %3137 = vst.msk [vmem:[#allocation3 + $0x218] sm:$0xff] %vm30, %v3105
  %3138 = vst.msk [vmem:[#allocation3 + $0x230] sm:$0xff] %vm30, %v3106
  %3139 = vst.msk [vmem:[#allocation3 + $0x248] sm:$0xff] %vm30, %v3107
  %3140 = vst.msk [vmem:[#allocation3 + $0x260] sm:$0xff] %vm30, %v3108
  %3141 = vst.msk [vmem:[#allocation3 + $0x278] sm:$0xff] %vm30, %v3109
  %3142 = vst.msk [vmem:[#allocation3 + $0x290] sm:$0xff] %vm30, %v3110
  %3143 = vst.msk [vmem:[#allocation3 + $0x2a8] sm:$0xff] %vm30, %v3111
  %3144 = vst.msk [vmem:[#allocation3 + $0x2c0] sm:$0xff] %vm30, %v3112
  %3145 = vst.msk [vmem:[#allocation3 + $0x2d8] sm:$0xff] %vm30, %v3113
  %3146 = vst.msk [vmem:[#allocation3 + $0x2f0] sm:$0xff] %vm30, %v3114
  %v3147 = vld [vmem:[#allocation2 + $0x19] sm:$0xff]
  %v3148 = vld [vmem:[#allocation2 + $0x21] sm:$0xff]
  %v3149 = vld [vmem:[#allocation2 + $0x29] sm:$0xff]
  %v3150 = vld [vmem:[#allocation2 + $0x31] sm:$0xff]
  %v3151 = vld [vmem:[#allocation2 + $0x39] sm:$0xff]
  %v3152 = vld [vmem:[#allocation2 + $0x41] sm:$0xff]
  %v3153 = vld [vmem:[#allocation2 + $0x49] sm:$0xff]
  %v3154 = vld [vmem:[#allocation2 + $0x51] sm:$0xff]
  %v3155 = vld [vmem:[#allocation2 + $0x59] sm:$0xff]
  %v3156 = vld [vmem:[#allocation2 + $0x61] sm:$0xff]
  %v3157 = vld [vmem:[#allocation2 + $0x69] sm:$0xff]
  %v3158 = vld [vmem:[#allocation2 + $0x71] sm:$0xff]
  %v3159 = vld [vmem:[#allocation2 + $0x79] sm:$0xff]
  %v3160 = vld [vmem:[#allocation2 + $0x81] sm:$0xff]
  %v3161 = vld [vmem:[#allocation2 + $0x89] sm:$0xff]
  %v3162 = vld [vmem:[#allocation2 + $0x91] sm:$0xff]
  %v3163 = vld [vmem:[#allocation2 + $0x99] sm:$0xff]
  %v3164 = vld [vmem:[#allocation2 + $0xa1] sm:$0xff]
  %v3165 = vld [vmem:[#allocation2 + $0xa9] sm:$0xff]
  %v3166 = vld [vmem:[#allocation2 + $0xb1] sm:$0xff]
  %v3167 = vld [vmem:[#allocation2 + $0xb9] sm:$0xff]
  %v3168 = vld [vmem:[#allocation2 + $0xc1] sm:$0xff]
  %v3169 = vld [vmem:[#allocation2 + $0xc9] sm:$0xff]
  %v3170 = vld [vmem:[#allocation2 + $0xd1] sm:$0xff]
  %v3171 = vld [vmem:[#allocation2 + $0xd9] sm:$0xff]
  %v3172 = vld [vmem:[#allocation2 + $0xe1] sm:$0xff]
  %v3173 = vld [vmem:[#allocation2 + $0xe9] sm:$0xff]
  %v3174 = vld [vmem:[#allocation2 + $0xf1] sm:$0xff]
  %v3175 = vld [vmem:[#allocation2 + $0xf9] sm:$0xff]
  %v3176 = vld [vmem:[#allocation2 + $0x101] sm:$0xff]
  %v3177 = vld [vmem:[#allocation2 + $0x109] sm:$0xff]
  %v3178 = vld [vmem:[#allocation2 + $0x111] sm:$0xff]
  %v3179 = vld [vmem:[#allocation2 + $0x119] sm:$0xff]
  %v3180 = vld [vmem:[#allocation2 + $0x121] sm:$0xff]
  %v3181 = vld [vmem:[#allocation2 + $0x129] sm:$0xff]
  %v3182 = vld [vmem:[#allocation2 + $0x131] sm:$0xff]
  %v3183 = vld [vmem:[#allocation2 + $0x139] sm:$0xff]
  %v3184 = vld [vmem:[#allocation2 + $0x141] sm:$0xff]
  %v3185 = vld [vmem:[#allocation2 + $0x149] sm:$0xff]
  %v3186 = vld [vmem:[#allocation2 + $0x151] sm:$0xff]
  %v3187 = vld [vmem:[#allocation2 + $0x159] sm:$0xff]
  %v3188 = vld [vmem:[#allocation2 + $0x161] sm:$0xff]
  %v3189 = vld [vmem:[#allocation2 + $0x169] sm:$0xff]
  %v3190 = vld [vmem:[#allocation2 + $0x171] sm:$0xff]
  %v3191 = vld [vmem:[#allocation2 + $0x179] sm:$0xff]
  %v3192 = vld [vmem:[#allocation2 + $0x181] sm:$0xff]
  %v3193 = vld [vmem:[#allocation2 + $0x189] sm:$0xff]
  %v3194 = vld [vmem:[#allocation2 + $0x191] sm:$0xff]
  %v3195 = vld [vmem:[#allocation2 + $0x199] sm:$0xff]
  %v3196 = vld [vmem:[#allocation2 + $0x1a1] sm:$0xff]
  %v3197 = vld [vmem:[#allocation2 + $0x1a9] sm:$0xff]
  %v3198 = vld [vmem:[#allocation2 + $0x1b1] sm:$0xff]
  %v3199 = vld [vmem:[#allocation2 + $0x1b9] sm:$0xff]
  %v3200 = vld [vmem:[#allocation2 + $0x1c1] sm:$0xff]
  %v3201 = vld [vmem:[#allocation2 + $0x1c9] sm:$0xff]
  %v3202 = vld [vmem:[#allocation2 + $0x1d1] sm:$0xff]
  %v3203 = vld [vmem:[#allocation2 + $0x1d9] sm:$0xff]
  %v3204 = vld [vmem:[#allocation2 + $0x1e1] sm:$0xff]
  %v3205 = vld [vmem:[#allocation2 + $0x1e9] sm:$0xff]
  %v3206 = vld [vmem:[#allocation2 + $0x1f1] sm:$0xff]
  %v3207 = vld [vmem:[#allocation2 + $0x1f9] sm:$0xff]
  %v3208 = vld [vmem:[#allocation2 + $0x201] sm:$0xff]
  %v3209 = vld [vmem:[#allocation2 + $0x209] sm:$0xff]
  %v3210 = vld [vmem:[#allocation2 + $0x211] sm:$0xff]
  %v3211 = vand.u32 %v1288, 32
  %v3212 = vand.u32 %v1289, 32
  %v3213 = vand.u32 %v1290, 32
  %v3214 = vand.u32 %v1291, 32
  %v3215 = vand.u32 %v1292, 32
  %v3216 = vand.u32 %v1293, 32
  %v3217 = vand.u32 %v1294, 32
  %v3218 = vand.u32 %v1295, 32
  %v3219 = vand.u32 %v1296, 32
  %v3220 = vand.u32 %v1297, 32
  %v3221 = vand.u32 %v1298, 32
  %v3222 = vand.u32 %v1299, 32
  %v3223 = vand.u32 %v1300, 32
  %v3224 = vand.u32 %v1301, 32
  %v3225 = vand.u32 %v1302, 32
  %v3226 = vand.u32 %v1303, 32
  %v3227 = vand.u32 %v1304, 32
  %v3228 = vand.u32 %v1305, 32
  %v3229 = vand.u32 %v1306, 32
  %v3230 = vand.u32 %v1307, 32
  %v3231 = vand.u32 %v1308, 32
  %v3232 = vand.u32 %v1309, 32
  %v3233 = vand.u32 %v1310, 32
  %v3234 = vand.u32 %v1311, 32
  %v3235 = vand.u32 %v1312, 32
  %v3236 = vand.u32 %v1313, 32
  %v3237 = vand.u32 %v1314, 32
  %v3238 = vand.u32 %v1315, 32
  %v3239 = vand.u32 %v1316, 32
  %v3240 = vand.u32 %v1317, 32
  %v3241 = vand.u32 %v1318, 32
  %v3242 = vand.u32 %v1319, 32
  %v3243 = vand.u32 %v1320, 32
  %v3244 = vand.u32 %v1321, 32
  %v3245 = vand.u32 %v1322, 32
  %v3246 = vand.u32 %v1323, 32
  %v3247 = vand.u32 %v1324, 32
  %v3248 = vand.u32 %v1325, 32
  %v3249 = vand.u32 %v1326, 32
  %v3250 = vand.u32 %v1327, 32
  %v3251 = vand.u32 %v1328, 32
  %v3252 = vand.u32 %v1329, 32
  %v3253 = vand.u32 %v1330, 32
  %v3254 = vand.u32 %v1331, 32
  %v3255 = vand.u32 %v1332, 32
  %v3256 = vand.u32 %v1333, 32
  %v3257 = vand.u32 %v1334, 32
  %v3258 = vand.u32 %v1335, 32
  %v3259 = vand.u32 %v1336, 32
  %v3260 = vand.u32 %v1337, 32
  %v3261 = vand.u32 %v1338, 32
  %v3262 = vand.u32 %v1339, 32
  %v3263 = vand.u32 %v1340, 32
  %v3264 = vand.u32 %v1341, 32
  %v3265 = vand.u32 %v1342, 32
  %v3266 = vand.u32 %v1343, 32
  %v3267 = vand.u32 %v1344, 32
  %v3268 = vand.u32 %v1345, 32
  %v3269 = vand.u32 %v1346, 32
  %v3270 = vand.u32 %v1347, 32
  %v3271 = vand.u32 %v1348, 32
  %v3272 = vand.u32 %v1349, 32
  %v3273 = vand.u32 %v1350, 32
  %v3274 = vand.u32 %v1351, 32
  %vm3275 = vcmp.ne.s32.totalorder %v3211, 0
  %vm3276 = vcmp.ne.s32.totalorder %v3212, 0
  %vm3277 = vcmp.ne.s32.totalorder %v3213, 0
  %vm3278 = vcmp.ne.s32.totalorder %v3214, 0
  %vm3279 = vcmp.ne.s32.totalorder %v3215, 0
  %vm3280 = vcmp.ne.s32.totalorder %v3216, 0
  %vm3281 = vcmp.ne.s32.totalorder %v3217, 0
  %vm3282 = vcmp.ne.s32.totalorder %v3218, 0
  %vm3283 = vcmp.ne.s32.totalorder %v3219, 0
  %vm3284 = vcmp.ne.s32.totalorder %v3220, 0
  %vm3285 = vcmp.ne.s32.totalorder %v3221, 0
  %vm3286 = vcmp.ne.s32.totalorder %v3222, 0
  %vm3287 = vcmp.ne.s32.totalorder %v3223, 0
  %vm3288 = vcmp.ne.s32.totalorder %v3224, 0
  %vm3289 = vcmp.ne.s32.totalorder %v3225, 0
  %vm3290 = vcmp.ne.s32.totalorder %v3226, 0
  %vm3291 = vcmp.ne.s32.totalorder %v3227, 0
  %vm3292 = vcmp.ne.s32.totalorder %v3228, 0
  %vm3293 = vcmp.ne.s32.totalorder %v3229, 0
  %vm3294 = vcmp.ne.s32.totalorder %v3230, 0
  %vm3295 = vcmp.ne.s32.totalorder %v3231, 0
  %vm3296 = vcmp.ne.s32.totalorder %v3232, 0
  %vm3297 = vcmp.ne.s32.totalorder %v3233, 0
  %vm3298 = vcmp.ne.s32.totalorder %v3234, 0
  %vm3299 = vcmp.ne.s32.totalorder %v3235, 0
  %vm3300 = vcmp.ne.s32.totalorder %v3236, 0
  %vm3301 = vcmp.ne.s32.totalorder %v3237, 0
  %vm3302 = vcmp.ne.s32.totalorder %v3238, 0
  %vm3303 = vcmp.ne.s32.totalorder %v3239, 0
  %vm3304 = vcmp.ne.s32.totalorder %v3240, 0
  %vm3305 = vcmp.ne.s32.totalorder %v3241, 0
  %vm3306 = vcmp.ne.s32.totalorder %v3242, 0
  %vm3307 = vcmp.ne.s32.totalorder %v3243, 0
  %vm3308 = vcmp.ne.s32.totalorder %v3244, 0
  %vm3309 = vcmp.ne.s32.totalorder %v3245, 0
  %vm3310 = vcmp.ne.s32.totalorder %v3246, 0
  %vm3311 = vcmp.ne.s32.totalorder %v3247, 0
  %vm3312 = vcmp.ne.s32.totalorder %v3248, 0
  %vm3313 = vcmp.ne.s32.totalorder %v3249, 0
  %vm3314 = vcmp.ne.s32.totalorder %v3250, 0
  %vm3315 = vcmp.ne.s32.totalorder %v3251, 0
  %vm3316 = vcmp.ne.s32.totalorder %v3252, 0
  %vm3317 = vcmp.ne.s32.totalorder %v3253, 0
  %vm3318 = vcmp.ne.s32.totalorder %v3254, 0
  %vm3319 = vcmp.ne.s32.totalorder %v3255, 0
  %vm3320 = vcmp.ne.s32.totalorder %v3256, 0
  %vm3321 = vcmp.ne.s32.totalorder %v3257, 0
  %vm3322 = vcmp.ne.s32.totalorder %v3258, 0
  %vm3323 = vcmp.ne.s32.totalorder %v3259, 0
  %vm3324 = vcmp.ne.s32.totalorder %v3260, 0
  %vm3325 = vcmp.ne.s32.totalorder %v3261, 0
  %vm3326 = vcmp.ne.s32.totalorder %v3262, 0
  %vm3327 = vcmp.ne.s32.totalorder %v3263, 0
  %vm3328 = vcmp.ne.s32.totalorder %v3264, 0
  %vm3329 = vcmp.ne.s32.totalorder %v3265, 0
  %vm3330 = vcmp.ne.s32.totalorder %v3266, 0
  %vm3331 = vcmp.ne.s32.totalorder %v3267, 0
  %vm3332 = vcmp.ne.s32.totalorder %v3268, 0
  %vm3333 = vcmp.ne.s32.totalorder %v3269, 0
  %vm3334 = vcmp.ne.s32.totalorder %v3270, 0
  %vm3335 = vcmp.ne.s32.totalorder %v3271, 0
  %vm3336 = vcmp.ne.s32.totalorder %v3272, 0
  %vm3337 = vcmp.ne.s32.totalorder %v3273, 0
  %vm3338 = vcmp.ne.s32.totalorder %v3274, 0
  %v3339 = vsel %vm3275, %v3147, 0.0
  %v3340 = vsel %vm3276, %v3148, 0.0
  %v3341 = vsel %vm3277, %v3149, 0.0
  %v3342 = vsel %vm3278, %v3150, 0.0
  %v3343 = vsel %vm3279, %v3151, 0.0
  %v3344 = vsel %vm3280, %v3152, 0.0
  %v3345 = vsel %vm3281, %v3153, 0.0
  %v3346 = vsel %vm3282, %v3154, 0.0
  %v3347 = vsel %vm3283, %v3155, 0.0
  %v3348 = vsel %vm3284, %v3156, 0.0
  %v3349 = vsel %vm3285, %v3157, 0.0
  %v3350 = vsel %vm3286, %v3158, 0.0
  %v3351 = vsel %vm3287, %v3159, 0.0
  %v3352 = vsel %vm3288, %v3160, 0.0
  %v3353 = vsel %vm3289, %v3161, 0.0
  %v3354 = vsel %vm3290, %v3162, 0.0
  %v3355 = vsel %vm3291, %v3163, 0.0
  %v3356 = vsel %vm3292, %v3164, 0.0
  %v3357 = vsel %vm3293, %v3165, 0.0
  %v3358 = vsel %vm3294, %v3166, 0.0
  %v3359 = vsel %vm3295, %v3167, 0.0
  %v3360 = vsel %vm3296, %v3168, 0.0
  %v3361 = vsel %vm3297, %v3169, 0.0
  %v3362 = vsel %vm3298, %v3170, 0.0
  %v3363 = vsel %vm3299, %v3171, 0.0
  %v3364 = vsel %vm3300, %v3172, 0.0
  %v3365 = vsel %vm3301, %v3173, 0.0
  %v3366 = vsel %vm3302, %v3174, 0.0
  %v3367 = vsel %vm3303, %v3175, 0.0
  %v3368 = vsel %vm3304, %v3176, 0.0
  %v3369 = vsel %vm3305, %v3177, 0.0
  %v3370 = vsel %vm3306, %v3178, 0.0
  %v3371 = vsel %vm3307, %v3179, 0.0
  %v3372 = vsel %vm3308, %v3180, 0.0
  %v3373 = vsel %vm3309, %v3181, 0.0
  %v3374 = vsel %vm3310, %v3182, 0.0
  %v3375 = vsel %vm3311, %v3183, 0.0
  %v3376 = vsel %vm3312, %v3184, 0.0
  %v3377 = vsel %vm3313, %v3185, 0.0
  %v3378 = vsel %vm3314, %v3186, 0.0
  %v3379 = vsel %vm3315, %v3187, 0.0
  %v3380 = vsel %vm3316, %v3188, 0.0
  %v3381 = vsel %vm3317, %v3189, 0.0
  %v3382 = vsel %vm3318, %v3190, 0.0
  %v3383 = vsel %vm3319, %v3191, 0.0
  %v3384 = vsel %vm3320, %v3192, 0.0
  %v3385 = vsel %vm3321, %v3193, 0.0
  %v3386 = vsel %vm3322, %v3194, 0.0
  %v3387 = vsel %vm3323, %v3195, 0.0
  %v3388 = vsel %vm3324, %v3196, 0.0
  %v3389 = vsel %vm3325, %v3197, 0.0
  %v3390 = vsel %vm3326, %v3198, 0.0
  %v3391 = vsel %vm3327, %v3199, 0.0
  %v3392 = vsel %vm3328, %v3200, 0.0
  %v3393 = vsel %vm3329, %v3201, 0.0
  %v3394 = vsel %vm3330, %v3202, 0.0
  %v3395 = vsel %vm3331, %v3203, 0.0
  %v3396 = vsel %vm3332, %v3204, 0.0
  %v3397 = vsel %vm3333, %v3205, 0.0
  %v3398 = vsel %vm3334, %v3206, 0.0
  %v3399 = vsel %vm3335, %v3207, 0.0
  %v3400 = vsel %vm3336, %v3208, 0.0
  %v3401 = vsel %vm3337, %v3209, 0.0
  %v3402 = vsel %vm3338, %v3210, 0.0
  %v3403 = vpack.c.bf16 %v3340, %v3339
  %v3404 = vpack.c.bf16 %v3342, %v3341
  %v3405 = vpack.c.bf16 %v3344, %v3343
  %v3406 = vpack.c.bf16 %v3346, %v3345
  %v3407 = vpack.c.bf16 %v3348, %v3347
  %v3408 = vpack.c.bf16 %v3350, %v3349
  %v3409 = vpack.c.bf16 %v3352, %v3351
  %v3410 = vpack.c.bf16 %v3354, %v3353
  %v3411 = vpack.c.bf16 %v3356, %v3355
  %v3412 = vpack.c.bf16 %v3358, %v3357
  %v3413 = vpack.c.bf16 %v3360, %v3359
  %v3414 = vpack.c.bf16 %v3362, %v3361
  %v3415 = vpack.c.bf16 %v3364, %v3363
  %v3416 = vpack.c.bf16 %v3366, %v3365
  %v3417 = vpack.c.bf16 %v3368, %v3367
  %v3418 = vpack.c.bf16 %v3370, %v3369
  %v3419 = vpack.c.bf16 %v3372, %v3371
  %v3420 = vpack.c.bf16 %v3374, %v3373
  %v3421 = vpack.c.bf16 %v3376, %v3375
  %v3422 = vpack.c.bf16 %v3378, %v3377
  %v3423 = vpack.c.bf16 %v3380, %v3379
  %v3424 = vpack.c.bf16 %v3382, %v3381
  %v3425 = vpack.c.bf16 %v3384, %v3383
  %v3426 = vpack.c.bf16 %v3386, %v3385
  %v3427 = vpack.c.bf16 %v3388, %v3387
  %v3428 = vpack.c.bf16 %v3390, %v3389
  %v3429 = vpack.c.bf16 %v3392, %v3391
  %v3430 = vpack.c.bf16 %v3394, %v3393
  %v3431 = vpack.c.bf16 %v3396, %v3395
  %v3432 = vpack.c.bf16 %v3398, %v3397
  %v3433 = vpack.c.bf16 %v3400, %v3399
  %v3434 = vpack.c.bf16 %v3402, %v3401
  %3467 = vrot.lane.b32.xlu0 %v3403, 32
  %v3468 = vpop.permute.xlu0 %3467
  %3469 = vrot.lane.b32.xlu0 %v3404, 32
  %v3470 = vpop.permute.xlu0 %3469
  %3471 = vrot.lane.b32.xlu0 %v3405, 32
  %v3472 = vpop.permute.xlu0 %3471
  %3473 = vrot.lane.b32.xlu0 %v3406, 32
  %v3474 = vpop.permute.xlu0 %3473
  %3475 = vrot.lane.b32.xlu0 %v3407, 32
  %v3476 = vpop.permute.xlu0 %3475
  %3477 = vrot.lane.b32.xlu0 %v3408, 32
  %v3478 = vpop.permute.xlu0 %3477
  %3479 = vrot.lane.b32.xlu0 %v3409, 32
  %v3480 = vpop.permute.xlu0 %3479
  %3481 = vrot.lane.b32.xlu0 %v3410, 32
  %v3482 = vpop.permute.xlu0 %3481
  %3483 = vrot.lane.b32.xlu0 %v3411, 32
  %v3484 = vpop.permute.xlu0 %3483
  %3485 = vrot.lane.b32.xlu0 %v3412, 32
  %v3486 = vpop.permute.xlu0 %3485
  %3487 = vrot.lane.b32.xlu0 %v3413, 32
  %v3488 = vpop.permute.xlu0 %3487
  %3489 = vrot.lane.b32.xlu0 %v3414, 32
  %v3490 = vpop.permute.xlu0 %3489
  %3491 = vrot.lane.b32.xlu0 %v3415, 32
  %v3492 = vpop.permute.xlu0 %3491
  %3493 = vrot.lane.b32.xlu0 %v3416, 32
  %v3494 = vpop.permute.xlu0 %3493
  %3495 = vrot.lane.b32.xlu0 %v3417, 32
  %v3496 = vpop.permute.xlu0 %3495
  %3497 = vrot.lane.b32.xlu0 %v3418, 32
  %v3498 = vpop.permute.xlu0 %3497
  %3499 = vrot.lane.b32.xlu0 %v3419, 32
  %v3500 = vpop.permute.xlu0 %3499
  %3501 = vrot.lane.b32.xlu0 %v3420, 32
  %v3502 = vpop.permute.xlu0 %3501
  %3503 = vrot.lane.b32.xlu0 %v3421, 32
  %v3504 = vpop.permute.xlu0 %3503
  %3505 = vrot.lane.b32.xlu0 %v3422, 32
  %v3506 = vpop.permute.xlu0 %3505
  %3507 = vrot.lane.b32.xlu0 %v3423, 32
  %v3508 = vpop.permute.xlu0 %3507
  %3509 = vrot.lane.b32.xlu0 %v3424, 32
  %v3510 = vpop.permute.xlu0 %3509
  %3511 = vrot.lane.b32.xlu0 %v3425, 32
  %v3512 = vpop.permute.xlu0 %3511
  %3513 = vrot.lane.b32.xlu0 %v3426, 32
  %v3514 = vpop.permute.xlu0 %3513
  %3515 = vrot.lane.b32.xlu0 %v3427, 32
  %v3516 = vpop.permute.xlu0 %3515
  %3517 = vrot.lane.b32.xlu0 %v3428, 32
  %v3518 = vpop.permute.xlu0 %3517
  %3519 = vrot.lane.b32.xlu0 %v3429, 32
  %v3520 = vpop.permute.xlu0 %3519
  %3521 = vrot.lane.b32.xlu0 %v3430, 32
  %v3522 = vpop.permute.xlu0 %3521
  %3523 = vrot.lane.b32.xlu0 %v3431, 32
  %v3524 = vpop.permute.xlu0 %3523
  %3525 = vrot.lane.b32.xlu0 %v3432, 32
  %v3526 = vpop.permute.xlu0 %3525
  %3527 = vrot.lane.b32.xlu0 %v3433, 32
  %v3528 = vpop.permute.xlu0 %3527
  %3529 = vrot.lane.b32.xlu0 %v3434, 32
  %v3530 = vpop.permute.xlu0 %3529
  %3563 = vst.msk [vmem:[#allocation3 + $0x8] sm:$0xff] %vm2088, %v3468
  %3564 = vst.msk [vmem:[#allocation3 + $0x20] sm:$0xff] %vm2088, %v3470
  %3565 = vst.msk [vmem:[#allocation3 + $0x38] sm:$0xff] %vm2088, %v3472
  %3566 = vst.msk [vmem:[#allocation3 + $0x50] sm:$0xff] %vm2088, %v3474
  %3567 = vst.msk [vmem:[#allocation3 + $0x68] sm:$0xff] %vm2088, %v3476
  %3568 = vst.msk [vmem:[#allocation3 + $0x80] sm:$0xff] %vm2088, %v3478
  %3569 = vst.msk [vmem:[#allocation3 + $0x98] sm:$0xff] %vm2088, %v3480
  %3570 = vst.msk [vmem:[#allocation3 + $0xb0] sm:$0xff] %vm2088, %v3482
  %3571 = vst.msk [vmem:[#allocation3 + $0xc8] sm:$0xff] %vm2088, %v3484
  %3572 = vst.msk [vmem:[#allocation3 + $0xe0] sm:$0xff] %vm2088, %v3486
  %3573 = vst.msk [vmem:[#allocation3 + $0xf8] sm:$0xff] %vm2088, %v3488
  %3574 = vst.msk [vmem:[#allocation3 + $0x110] sm:$0xff] %vm2088, %v3490
  %3575 = vst.msk [vmem:[#allocation3 + $0x128] sm:$0xff] %vm2088, %v3492
  %3576 = vst.msk [vmem:[#allocation3 + $0x140] sm:$0xff] %vm2088, %v3494
  %3577 = vst.msk [vmem:[#allocation3 + $0x158] sm:$0xff] %vm2088, %v3496
  %3578 = vst.msk [vmem:[#allocation3 + $0x170] sm:$0xff] %vm2088, %v3498
  %3579 = vst.msk [vmem:[#allocation3 + $0x188] sm:$0xff] %vm2088, %v3500
  %3580 = vst.msk [vmem:[#allocation3 + $0x1a0] sm:$0xff] %vm2088, %v3502
  %3581 = vst.msk [vmem:[#allocation3 + $0x1b8] sm:$0xff] %vm2088, %v3504
  %3582 = vst.msk [vmem:[#allocation3 + $0x1d0] sm:$0xff] %vm2088, %v3506
  %3583 = vst.msk [vmem:[#allocation3 + $0x1e8] sm:$0xff] %vm2088, %v3508
  %3584 = vst.msk [vmem:[#allocation3 + $0x200] sm:$0xff] %vm2088, %v3510
  %3585 = vst.msk [vmem:[#allocation3 + $0x218] sm:$0xff] %vm2088, %v3512
  %3586 = vst.msk [vmem:[#allocation3 + $0x230] sm:$0xff] %vm2088, %v3514
  %3587 = vst.msk [vmem:[#allocation3 + $0x248] sm:$0xff] %vm2088, %v3516
  %3588 = vst.msk [vmem:[#allocation3 + $0x260] sm:$0xff] %vm2088, %v3518
  %3589 = vst.msk [vmem:[#allocation3 + $0x278] sm:$0xff] %vm2088, %v3520
  %3590 = vst.msk [vmem:[#allocation3 + $0x290] sm:$0xff] %vm2088, %v3522
  %3591 = vst.msk [vmem:[#allocation3 + $0x2a8] sm:$0xff] %vm2088, %v3524
  %3592 = vst.msk [vmem:[#allocation3 + $0x2c0] sm:$0xff] %vm2088, %v3526
  %3593 = vst.msk [vmem:[#allocation3 + $0x2d8] sm:$0xff] %vm2088, %v3528
  %3594 = vst.msk [vmem:[#allocation3 + $0x2f0] sm:$0xff] %vm2088, %v3530
  %v3595 = vld [vmem:[#allocation2 + $0x27] sm:$0xff]
  %v3596 = vld [vmem:[#allocation2 + $0x2f] sm:$0xff]
  %v3597 = vld [vmem:[#allocation2 + $0x37] sm:$0xff]
  %v3598 = vld [vmem:[#allocation2 + $0x3f] sm:$0xff]
  %v3599 = vld [vmem:[#allocation2 + $0x47] sm:$0xff]
  %v3600 = vld [vmem:[#allocation2 + $0x4f] sm:$0xff]
  %v3601 = vld [vmem:[#allocation2 + $0x57] sm:$0xff]
  %v3602 = vld [vmem:[#allocation2 + $0x5f] sm:$0xff]
  %v3603 = vld [vmem:[#allocation2 + $0x67] sm:$0xff]
  %v3604 = vld [vmem:[#allocation2 + $0x6f] sm:$0xff]
  %v3605 = vld [vmem:[#allocation2 + $0x77] sm:$0xff]
  %v3606 = vld [vmem:[#allocation2 + $0x7f] sm:$0xff]
  %v3607 = vld [vmem:[#allocation2 + $0x87] sm:$0xff]
  %v3608 = vld [vmem:[#allocation2 + $0x8f] sm:$0xff]
  %v3609 = vld [vmem:[#allocation2 + $0x97] sm:$0xff]
  %v3610 = vld [vmem:[#allocation2 + $0x9f] sm:$0xff]
  %v3611 = vld [vmem:[#allocation2 + $0xa7] sm:$0xff]
  %v3612 = vld [vmem:[#allocation2 + $0xaf] sm:$0xff]
  %v3613 = vld [vmem:[#allocation2 + $0xb7] sm:$0xff]
  %v3614 = vld [vmem:[#allocation2 + $0xbf] sm:$0xff]
  %v3615 = vld [vmem:[#allocation2 + $0xc7] sm:$0xff]
  %v3616 = vld [vmem:[#allocation2 + $0xcf] sm:$0xff]
  %v3617 = vld [vmem:[#allocation2 + $0xd7] sm:$0xff]
  %v3618 = vld [vmem:[#allocation2 + $0xdf] sm:$0xff]
  %v3619 = vld [vmem:[#allocation2 + $0xe7] sm:$0xff]
  %v3620 = vld [vmem:[#allocation2 + $0xef] sm:$0xff]
  %v3621 = vld [vmem:[#allocation2 + $0xf7] sm:$0xff]
  %v3622 = vld [vmem:[#allocation2 + $0xff] sm:$0xff]
  %v3623 = vld [vmem:[#allocation2 + $0x107] sm:$0xff]
  %v3624 = vld [vmem:[#allocation2 + $0x10f] sm:$0xff]
  %v3625 = vld [vmem:[#allocation2 + $0x117] sm:$0xff]
  %v3626 = vld [vmem:[#allocation2 + $0x11f] sm:$0xff]
  %v3627 = vld [vmem:[#allocation2 + $0x127] sm:$0xff]
  %v3628 = vld [vmem:[#allocation2 + $0x12f] sm:$0xff]
  %v3629 = vld [vmem:[#allocation2 + $0x137] sm:$0xff]
  %v3630 = vld [vmem:[#allocation2 + $0x13f] sm:$0xff]
  %v3631 = vld [vmem:[#allocation2 + $0x147] sm:$0xff]
  %v3632 = vld [vmem:[#allocation2 + $0x14f] sm:$0xff]
  %v3633 = vld [vmem:[#allocation2 + $0x157] sm:$0xff]
  %v3634 = vld [vmem:[#allocation2 + $0x15f] sm:$0xff]
  %v3635 = vld [vmem:[#allocation2 + $0x167] sm:$0xff]
  %v3636 = vld [vmem:[#allocation2 + $0x16f] sm:$0xff]
  %v3637 = vld [vmem:[#allocation2 + $0x177] sm:$0xff]
  %v3638 = vld [vmem:[#allocation2 + $0x17f] sm:$0xff]
  %v3639 = vld [vmem:[#allocation2 + $0x187] sm:$0xff]
  %v3640 = vld [vmem:[#allocation2 + $0x18f] sm:$0xff]
  %v3641 = vld [vmem:[#allocation2 + $0x197] sm:$0xff]
  %v3642 = vld [vmem:[#allocation2 + $0x19f] sm:$0xff]
  %v3643 = vld [vmem:[#allocation2 + $0x1a7] sm:$0xff]
  %v3644 = vld [vmem:[#allocation2 + $0x1af] sm:$0xff]
  %v3645 = vld [vmem:[#allocation2 + $0x1b7] sm:$0xff]
  %v3646 = vld [vmem:[#allocation2 + $0x1bf] sm:$0xff]
  %v3647 = vld [vmem:[#allocation2 + $0x1c7] sm:$0xff]
  %v3648 = vld [vmem:[#allocation2 + $0x1cf] sm:$0xff]
  %v3649 = vld [vmem:[#allocation2 + $0x1d7] sm:$0xff]
  %v3650 = vld [vmem:[#allocation2 + $0x1df] sm:$0xff]
  %v3651 = vld [vmem:[#allocation2 + $0x1e7] sm:$0xff]
  %v3652 = vld [vmem:[#allocation2 + $0x1ef] sm:$0xff]
  %v3653 = vld [vmem:[#allocation2 + $0x1f7] sm:$0xff]
  %v3654 = vld [vmem:[#allocation2 + $0x1ff] sm:$0xff]
  %v3655 = vld [vmem:[#allocation2 + $0x207] sm:$0xff]
  %v3656 = vld [vmem:[#allocation2 + $0x20f] sm:$0xff]
  %v3657 = vld [vmem:[#allocation2 + $0x217] sm:$0xff]
  %v3658 = vld [vmem:[#allocation2 + $0x21f] sm:$0xff]
  %v3659 = vand.u32 %v1288, 64
  %v3660 = vand.u32 %v1289, 64
  %v3661 = vand.u32 %v1290, 64
  %v3662 = vand.u32 %v1291, 64
  %v3663 = vand.u32 %v1292, 64
  %v3664 = vand.u32 %v1293, 64
  %v3665 = vand.u32 %v1294, 64
  %v3666 = vand.u32 %v1295, 64
  %v3667 = vand.u32 %v1296, 64
  %v3668 = vand.u32 %v1297, 64
  %v3669 = vand.u32 %v1298, 64
  %v3670 = vand.u32 %v1299, 64
  %v3671 = vand.u32 %v1300, 64
  %v3672 = vand.u32 %v1301, 64
  %v3673 = vand.u32 %v1302, 64
  %v3674 = vand.u32 %v1303, 64
  %v3675 = vand.u32 %v1304, 64
  %v3676 = vand.u32 %v1305, 64
  %v3677 = vand.u32 %v1306, 64
  %v3678 = vand.u32 %v1307, 64
  %v3679 = vand.u32 %v1308, 64
  %v3680 = vand.u32 %v1309, 64
  %v3681 = vand.u32 %v1310, 64
  %v3682 = vand.u32 %v1311, 64
  %v3683 = vand.u32 %v1312, 64
  %v3684 = vand.u32 %v1313, 64
  %v3685 = vand.u32 %v1314, 64
  %v3686 = vand.u32 %v1315, 64
  %v3687 = vand.u32 %v1316, 64
  %v3688 = vand.u32 %v1317, 64
  %v3689 = vand.u32 %v1318, 64
  %v3690 = vand.u32 %v1319, 64
  %v3691 = vand.u32 %v1320, 64
  %v3692 = vand.u32 %v1321, 64
  %v3693 = vand.u32 %v1322, 64
  %v3694 = vand.u32 %v1323, 64
  %v3695 = vand.u32 %v1324, 64
  %v3696 = vand.u32 %v1325, 64
  %v3697 = vand.u32 %v1326, 64
  %v3698 = vand.u32 %v1327, 64
  %v3699 = vand.u32 %v1328, 64
  %v3700 = vand.u32 %v1329, 64
  %v3701 = vand.u32 %v1330, 64
  %v3702 = vand.u32 %v1331, 64
  %v3703 = vand.u32 %v1332, 64
  %v3704 = vand.u32 %v1333, 64
  %v3705 = vand.u32 %v1334, 64
  %v3706 = vand.u32 %v1335, 64
  %v3707 = vand.u32 %v1336, 64
  %v3708 = vand.u32 %v1337, 64
  %v3709 = vand.u32 %v1338, 64
  %v3710 = vand.u32 %v1339, 64
  %v3711 = vand.u32 %v1340, 64
  %v3712 = vand.u32 %v1341, 64
  %v3713 = vand.u32 %v1342, 64
  %v3714 = vand.u32 %v1343, 64
  %v3715 = vand.u32 %v1344, 64
  %v3716 = vand.u32 %v1345, 64
  %v3717 = vand.u32 %v1346, 64
  %v3718 = vand.u32 %v1347, 64
  %v3719 = vand.u32 %v1348, 64
  %v3720 = vand.u32 %v1349, 64
  %v3721 = vand.u32 %v1350, 64
  %v3722 = vand.u32 %v1351, 64
  %vm3723 = vcmp.ne.s32.totalorder %v3659, 0
  %vm3724 = vcmp.ne.s32.totalorder %v3660, 0
  %vm3725 = vcmp.ne.s32.totalorder %v3661, 0
  %vm3726 = vcmp.ne.s32.totalorder %v3662, 0
  %vm3727 = vcmp.ne.s32.totalorder %v3663, 0
  %vm3728 = vcmp.ne.s32.totalorder %v3664, 0
  %vm3729 = vcmp.ne.s32.totalorder %v3665, 0
  %vm3730 = vcmp.ne.s32.totalorder %v3666, 0
  %vm3731 = vcmp.ne.s32.totalorder %v3667, 0
  %vm3732 = vcmp.ne.s32.totalorder %v3668, 0
  %vm3733 = vcmp.ne.s32.totalorder %v3669, 0
  %vm3734 = vcmp.ne.s32.totalorder %v3670, 0
  %vm3735 = vcmp.ne.s32.totalorder %v3671, 0
  %vm3736 = vcmp.ne.s32.totalorder %v3672, 0
  %vm3737 = vcmp.ne.s32.totalorder %v3673, 0
  %vm3738 = vcmp.ne.s32.totalorder %v3674, 0
  %vm3739 = vcmp.ne.s32.totalorder %v3675, 0
  %vm3740 = vcmp.ne.s32.totalorder %v3676, 0
  %vm3741 = vcmp.ne.s32.totalorder %v3677, 0
  %vm3742 = vcmp.ne.s32.totalorder %v3678, 0
  %vm3743 = vcmp.ne.s32.totalorder %v3679, 0
  %vm3744 = vcmp.ne.s32.totalorder %v3680, 0
  %vm3745 = vcmp.ne.s32.totalorder %v3681, 0
  %vm3746 = vcmp.ne.s32.totalorder %v3682, 0
  %vm3747 = vcmp.ne.s32.totalorder %v3683, 0
  %vm3748 = vcmp.ne.s32.totalorder %v3684, 0
  %vm3749 = vcmp.ne.s32.totalorder %v3685, 0
  %vm3750 = vcmp.ne.s32.totalorder %v3686, 0
  %vm3751 = vcmp.ne.s32.totalorder %v3687, 0
  %vm3752 = vcmp.ne.s32.totalorder %v3688, 0
  %vm3753 = vcmp.ne.s32.totalorder %v3689, 0
  %vm3754 = vcmp.ne.s32.totalorder %v3690, 0
  %vm3755 = vcmp.ne.s32.totalorder %v3691, 0
  %vm3756 = vcmp.ne.s32.totalorder %v3692, 0
  %vm3757 = vcmp.ne.s32.totalorder %v3693, 0
  %vm3758 = vcmp.ne.s32.totalorder %v3694, 0
  %vm3759 = vcmp.ne.s32.totalorder %v3695, 0
  %vm3760 = vcmp.ne.s32.totalorder %v3696, 0
  %vm3761 = vcmp.ne.s32.totalorder %v3697, 0
  %vm3762 = vcmp.ne.s32.totalorder %v3698, 0
  %vm3763 = vcmp.ne.s32.totalorder %v3699, 0
  %vm3764 = vcmp.ne.s32.totalorder %v3700, 0
  %vm3765 = vcmp.ne.s32.totalorder %v3701, 0
  %vm3766 = vcmp.ne.s32.totalorder %v3702, 0
  %vm3767 = vcmp.ne.s32.totalorder %v3703, 0
  %vm3768 = vcmp.ne.s32.totalorder %v3704, 0
  %vm3769 = vcmp.ne.s32.totalorder %v3705, 0
  %vm3770 = vcmp.ne.s32.totalorder %v3706, 0
  %vm3771 = vcmp.ne.s32.totalorder %v3707, 0
  %vm3772 = vcmp.ne.s32.totalorder %v3708, 0
  %vm3773 = vcmp.ne.s32.totalorder %v3709, 0
  %vm3774 = vcmp.ne.s32.totalorder %v3710, 0
  %vm3775 = vcmp.ne.s32.totalorder %v3711, 0
  %vm3776 = vcmp.ne.s32.totalorder %v3712, 0
  %vm3777 = vcmp.ne.s32.totalorder %v3713, 0
  %vm3778 = vcmp.ne.s32.totalorder %v3714, 0
  %vm3779 = vcmp.ne.s32.totalorder %v3715, 0
  %vm3780 = vcmp.ne.s32.totalorder %v3716, 0
  %vm3781 = vcmp.ne.s32.totalorder %v3717, 0
  %vm3782 = vcmp.ne.s32.totalorder %v3718, 0
  %vm3783 = vcmp.ne.s32.totalorder %v3719, 0
  %vm3784 = vcmp.ne.s32.totalorder %v3720, 0
  %vm3785 = vcmp.ne.s32.totalorder %v3721, 0
  %vm3786 = vcmp.ne.s32.totalorder %v3722, 0
  %v3787 = vsel %vm3723, %v3595, 0.0
  %v3788 = vsel %vm3724, %v3596, 0.0
  %v3789 = vsel %vm3725, %v3597, 0.0
  %v3790 = vsel %vm3726, %v3598, 0.0
  %v3791 = vsel %vm3727, %v3599, 0.0
  %v3792 = vsel %vm3728, %v3600, 0.0
  %v3793 = vsel %vm3729, %v3601, 0.0
  %v3794 = vsel %vm3730, %v3602, 0.0
  %v3795 = vsel %vm3731, %v3603, 0.0
  %v3796 = vsel %vm3732, %v3604, 0.0
  %v3797 = vsel %vm3733, %v3605, 0.0
  %v3798 = vsel %vm3734, %v3606, 0.0
  %v3799 = vsel %vm3735, %v3607, 0.0
  %v3800 = vsel %vm3736, %v3608, 0.0
  %v3801 = vsel %vm3737, %v3609, 0.0
  %v3802 = vsel %vm3738, %v3610, 0.0
  %v3803 = vsel %vm3739, %v3611, 0.0
  %v3804 = vsel %vm3740, %v3612, 0.0
  %v3805 = vsel %vm3741, %v3613, 0.0
  %v3806 = vsel %vm3742, %v3614, 0.0
  %v3807 = vsel %vm3743, %v3615, 0.0
  %v3808 = vsel %vm3744, %v3616, 0.0
  %v3809 = vsel %vm3745, %v3617, 0.0
  %v3810 = vsel %vm3746, %v3618, 0.0
  %v3811 = vsel %vm3747, %v3619, 0.0
  %v3812 = vsel %vm3748, %v3620, 0.0
  %v3813 = vsel %vm3749, %v3621, 0.0
  %v3814 = vsel %vm3750, %v3622, 0.0
  %v3815 = vsel %vm3751, %v3623, 0.0
  %v3816 = vsel %vm3752, %v3624, 0.0
  %v3817 = vsel %vm3753, %v3625, 0.0
  %v3818 = vsel %vm3754, %v3626, 0.0
  %v3819 = vsel %vm3755, %v3627, 0.0
  %v3820 = vsel %vm3756, %v3628, 0.0
  %v3821 = vsel %vm3757, %v3629, 0.0
  %v3822 = vsel %vm3758, %v3630, 0.0
  %v3823 = vsel %vm3759, %v3631, 0.0
  %v3824 = vsel %vm3760, %v3632, 0.0
  %v3825 = vsel %vm3761, %v3633, 0.0
  %v3826 = vsel %vm3762, %v3634, 0.0
  %v3827 = vsel %vm3763, %v3635, 0.0
  %v3828 = vsel %vm3764, %v3636, 0.0
  %v3829 = vsel %vm3765, %v3637, 0.0
  %v3830 = vsel %vm3766, %v3638, 0.0
  %v3831 = vsel %vm3767, %v3639, 0.0
  %v3832 = vsel %vm3768, %v3640, 0.0
  %v3833 = vsel %vm3769, %v3641, 0.0
  %v3834 = vsel %vm3770, %v3642, 0.0
  %v3835 = vsel %vm3771, %v3643, 0.0
  %v3836 = vsel %vm3772, %v3644, 0.0
  %v3837 = vsel %vm3773, %v3645, 0.0
  %v3838 = vsel %vm3774, %v3646, 0.0
  %v3839 = vsel %vm3775, %v3647, 0.0
  %v3840 = vsel %vm3776, %v3648, 0.0
  %v3841 = vsel %vm3777, %v3649, 0.0
  %v3842 = vsel %vm3778, %v3650, 0.0
  %v3843 = vsel %vm3779, %v3651, 0.0
  %v3844 = vsel %vm3780, %v3652, 0.0
  %v3845 = vsel %vm3781, %v3653, 0.0
  %v3846 = vsel %vm3782, %v3654, 0.0
  %v3847 = vsel %vm3783, %v3655, 0.0
  %v3848 = vsel %vm3784, %v3656, 0.0
  %v3849 = vsel %vm3785, %v3657, 0.0
  %v3850 = vsel %vm3786, %v3658, 0.0
  %v3851 = vpack.c.bf16 %v3788, %v3787
  %v3852 = vpack.c.bf16 %v3790, %v3789
  %v3853 = vpack.c.bf16 %v3792, %v3791
  %v3854 = vpack.c.bf16 %v3794, %v3793
  %v3855 = vpack.c.bf16 %v3796, %v3795
  %v3856 = vpack.c.bf16 %v3798, %v3797
  %v3857 = vpack.c.bf16 %v3800, %v3799
  %v3858 = vpack.c.bf16 %v3802, %v3801
  %v3859 = vpack.c.bf16 %v3804, %v3803
  %v3860 = vpack.c.bf16 %v3806, %v3805
  %v3861 = vpack.c.bf16 %v3808, %v3807
  %v3862 = vpack.c.bf16 %v3810, %v3809
  %v3863 = vpack.c.bf16 %v3812, %v3811
  %v3864 = vpack.c.bf16 %v3814, %v3813
  %v3865 = vpack.c.bf16 %v3816, %v3815
  %v3866 = vpack.c.bf16 %v3818, %v3817
  %v3867 = vpack.c.bf16 %v3820, %v3819
  %v3868 = vpack.c.bf16 %v3822, %v3821
  %v3869 = vpack.c.bf16 %v3824, %v3823
  %v3870 = vpack.c.bf16 %v3826, %v3825
  %v3871 = vpack.c.bf16 %v3828, %v3827
  %v3872 = vpack.c.bf16 %v3830, %v3829
  %v3873 = vpack.c.bf16 %v3832, %v3831
  %v3874 = vpack.c.bf16 %v3834, %v3833
  %v3875 = vpack.c.bf16 %v3836, %v3835
  %v3876 = vpack.c.bf16 %v3838, %v3837
  %v3877 = vpack.c.bf16 %v3840, %v3839
  %v3878 = vpack.c.bf16 %v3842, %v3841
  %v3879 = vpack.c.bf16 %v3844, %v3843
  %v3880 = vpack.c.bf16 %v3846, %v3845
  %v3881 = vpack.c.bf16 %v3848, %v3847
  %v3882 = vpack.c.bf16 %v3850, %v3849
  %3915 = vrot.lane.b32.xlu0 %v3851, 64
  %v3916 = vpop.permute.xlu0 %3915
  %3917 = vrot.lane.b32.xlu0 %v3852, 64
  %v3918 = vpop.permute.xlu0 %3917
  %3919 = vrot.lane.b32.xlu0 %v3853, 64
  %v3920 = vpop.permute.xlu0 %3919
  %3921 = vrot.lane.b32.xlu0 %v3854, 64
  %v3922 = vpop.permute.xlu0 %3921
  %3923 = vrot.lane.b32.xlu0 %v3855, 64
  %v3924 = vpop.permute.xlu0 %3923
  %3925 = vrot.lane.b32.xlu0 %v3856, 64
  %v3926 = vpop.permute.xlu0 %3925
  %3927 = vrot.lane.b32.xlu0 %v3857, 64
  %v3928 = vpop.permute.xlu0 %3927
  %3929 = vrot.lane.b32.xlu0 %v3858, 64
  %v3930 = vpop.permute.xlu0 %3929
  %3931 = vrot.lane.b32.xlu0 %v3859, 64
  %v3932 = vpop.permute.xlu0 %3931
  %3933 = vrot.lane.b32.xlu0 %v3860, 64
  %v3934 = vpop.permute.xlu0 %3933
  %3935 = vrot.lane.b32.xlu0 %v3861, 64
  %v3936 = vpop.permute.xlu0 %3935
  %3937 = vrot.lane.b32.xlu0 %v3862, 64
  %v3938 = vpop.permute.xlu0 %3937
  %3939 = vrot.lane.b32.xlu0 %v3863, 64
  %v3940 = vpop.permute.xlu0 %3939
  %3941 = vrot.lane.b32.xlu0 %v3864, 64
  %v3942 = vpop.permute.xlu0 %3941
  %3943 = vrot.lane.b32.xlu0 %v3865, 64
  %v3944 = vpop.permute.xlu0 %3943
  %3945 = vrot.lane.b32.xlu0 %v3866, 64
  %v3946 = vpop.permute.xlu0 %3945
  %3947 = vrot.lane.b32.xlu0 %v3867, 64
  %v3948 = vpop.permute.xlu0 %3947
  %3949 = vrot.lane.b32.xlu0 %v3868, 64
  %v3950 = vpop.permute.xlu0 %3949
  %3951 = vrot.lane.b32.xlu0 %v3869, 64
  %v3952 = vpop.permute.xlu0 %3951
  %3953 = vrot.lane.b32.xlu0 %v3870, 64
  %v3954 = vpop.permute.xlu0 %3953
  %3955 = vrot.lane.b32.xlu0 %v3871, 64
  %v3956 = vpop.permute.xlu0 %3955
  %3957 = vrot.lane.b32.xlu0 %v3872, 64
  %v3958 = vpop.permute.xlu0 %3957
  %3959 = vrot.lane.b32.xlu0 %v3873, 64
  %v3960 = vpop.permute.xlu0 %3959
  %3961 = vrot.lane.b32.xlu0 %v3874, 64
  %v3962 = vpop.permute.xlu0 %3961
  %3963 = vrot.lane.b32.xlu0 %v3875, 64
  %v3964 = vpop.permute.xlu0 %3963
  %3965 = vrot.lane.b32.xlu0 %v3876, 64
  %v3966 = vpop.permute.xlu0 %3965
  %3967 = vrot.lane.b32.xlu0 %v3877, 64
  %v3968 = vpop.permute.xlu0 %3967
  %3969 = vrot.lane.b32.xlu0 %v3878, 64
  %v3970 = vpop.permute.xlu0 %3969
  %3971 = vrot.lane.b32.xlu0 %v3879, 64
  %v3972 = vpop.permute.xlu0 %3971
  %3973 = vrot.lane.b32.xlu0 %v3880, 64
  %v3974 = vpop.permute.xlu0 %3973
  %3975 = vrot.lane.b32.xlu0 %v3881, 64
  %v3976 = vpop.permute.xlu0 %3975
  %3977 = vrot.lane.b32.xlu0 %v3882, 64
  %v3978 = vpop.permute.xlu0 %3977
  %4011 = vst.msk [vmem:[#allocation3 + $0x8] sm:$0xff] %vm2537, %v3916
  %4012 = vst.msk [vmem:[#allocation3 + $0x20] sm:$0xff] %vm2537, %v3918
  %4013 = vst.msk [vmem:[#allocation3 + $0x38] sm:$0xff] %vm2537, %v3920
  %4014 = vst.msk [vmem:[#allocation3 + $0x50] sm:$0xff] %vm2537, %v3922
  %4015 = vst.msk [vmem:[#allocation3 + $0x68] sm:$0xff] %vm2537, %v3924
  %4016 = vst.msk [vmem:[#allocation3 + $0x80] sm:$0xff] %vm2537, %v3926
  %4017 = vst.msk [vmem:[#allocation3 + $0x98] sm:$0xff] %vm2537, %v3928
  %4018 = vst.msk [vmem:[#allocation3 + $0xb0] sm:$0xff] %vm2537, %v3930
  %4019 = vst.msk [vmem:[#allocation3 + $0xc8] sm:$0xff] %vm2537, %v3932
  %4020 = vst.msk [vmem:[#allocation3 + $0xe0] sm:$0xff] %vm2537, %v3934
  %4021 = vst.msk [vmem:[#allocation3 + $0xf8] sm:$0xff] %vm2537, %v3936
  %4022 = vst.msk [vmem:[#allocation3 + $0x110] sm:$0xff] %vm2537, %v3938
  %4023 = vst.msk [vmem:[#allocation3 + $0x128] sm:$0xff] %vm2537, %v3940
  %4024 = vst.msk [vmem:[#allocation3 + $0x140] sm:$0xff] %vm2537, %v3942
  %4025 = vst.msk [vmem:[#allocation3 + $0x158] sm:$0xff] %vm2537, %v3944
  %4026 = vst.msk [vmem:[#allocation3 + $0x170] sm:$0xff] %vm2537, %v3946
  %4027 = vst.msk [vmem:[#allocation3 + $0x188] sm:$0xff] %vm2537, %v3948
  %4028 = vst.msk [vmem:[#allocation3 + $0x1a0] sm:$0xff] %vm2537, %v3950
  %4029 = vst.msk [vmem:[#allocation3 + $0x1b8] sm:$0xff] %vm2537, %v3952
  %4030 = vst.msk [vmem:[#allocation3 + $0x1d0] sm:$0xff] %vm2537, %v3954
  %4031 = vst.msk [vmem:[#allocation3 + $0x1e8] sm:$0xff] %vm2537, %v3956
  %4032 = vst.msk [vmem:[#allocation3 + $0x200] sm:$0xff] %vm2537, %v3958
  %4033 = vst.msk [vmem:[#allocation3 + $0x218] sm:$0xff] %vm2537, %v3960
  %4034 = vst.msk [vmem:[#allocation3 + $0x230] sm:$0xff] %vm2537, %v3962
  %4035 = vst.msk [vmem:[#allocation3 + $0x248] sm:$0xff] %vm2537, %v3964
  %4036 = vst.msk [vmem:[#allocation3 + $0x260] sm:$0xff] %vm2537, %v3966
  %4037 = vst.msk [vmem:[#allocation3 + $0x278] sm:$0xff] %vm2537, %v3968
  %4038 = vst.msk [vmem:[#allocation3 + $0x290] sm:$0xff] %vm2537, %v3970
  %4039 = vst.msk [vmem:[#allocation3 + $0x2a8] sm:$0xff] %vm2537, %v3972
  %4040 = vst.msk [vmem:[#allocation3 + $0x2c0] sm:$0xff] %vm2537, %v3974
  %4041 = vst.msk [vmem:[#allocation3 + $0x2d8] sm:$0xff] %vm2537, %v3976
  %4042 = vst.msk [vmem:[#allocation3 + $0x2f0] sm:$0xff] %vm2537, %v3978
  %v4043 = vld [vmem:[#allocation2 + $0x28] sm:$0xff]
  %v4044 = vld [vmem:[#allocation2 + $0x30] sm:$0xff]
  %v4045 = vld [vmem:[#allocation2 + $0x38] sm:$0xff]
  %v4046 = vld [vmem:[#allocation2 + $0x40] sm:$0xff]
  %v4047 = vld [vmem:[#allocation2 + $0x48] sm:$0xff]
  %v4048 = vld [vmem:[#allocation2 + $0x50] sm:$0xff]
  %v4049 = vld [vmem:[#allocation2 + $0x58] sm:$0xff]
  %v4050 = vld [vmem:[#allocation2 + $0x60] sm:$0xff]
  %v4051 = vld [vmem:[#allocation2 + $0x68] sm:$0xff]
  %v4052 = vld [vmem:[#allocation2 + $0x70] sm:$0xff]
  %v4053 = vld [vmem:[#allocation2 + $0x78] sm:$0xff]
  %v4054 = vld [vmem:[#allocation2 + $0x80] sm:$0xff]
  %v4055 = vld [vmem:[#allocation2 + $0x88] sm:$0xff]
  %v4056 = vld [vmem:[#allocation2 + $0x90] sm:$0xff]
  %v4057 = vld [vmem:[#allocation2 + $0x98] sm:$0xff]
  %v4058 = vld [vmem:[#allocation2 + $0xa0] sm:$0xff]
  %v4059 = vld [vmem:[#allocation2 + $0xa8] sm:$0xff]
  %v4060 = vld [vmem:[#allocation2 + $0xb0] sm:$0xff]
  %v4061 = vld [vmem:[#allocation2 + $0xb8] sm:$0xff]
  %v4062 = vld [vmem:[#allocation2 + $0xc0] sm:$0xff]
  %v4063 = vld [vmem:[#allocation2 + $0xc8] sm:$0xff]
  %v4064 = vld [vmem:[#allocation2 + $0xd0] sm:$0xff]
  %v4065 = vld [vmem:[#allocation2 + $0xd8] sm:$0xff]
  %v4066 = vld [vmem:[#allocation2 + $0xe0] sm:$0xff]
  %v4067 = vld [vmem:[#allocation2 + $0xe8] sm:$0xff]
  %v4068 = vld [vmem:[#allocation2 + $0xf0] sm:$0xff]
  %v4069 = vld [vmem:[#allocation2 + $0xf8] sm:$0xff]
  %v4070 = vld [vmem:[#allocation2 + $0x100] sm:$0xff]
  %v4071 = vld [vmem:[#allocation2 + $0x108] sm:$0xff]
  %v4072 = vld [vmem:[#allocation2 + $0x110] sm:$0xff]
  %v4073 = vld [vmem:[#allocation2 + $0x118] sm:$0xff]
  %v4074 = vld [vmem:[#allocation2 + $0x120] sm:$0xff]
  %v4075 = vld [vmem:[#allocation2 + $0x128] sm:$0xff]
  %v4076 = vld [vmem:[#allocation2 + $0x130] sm:$0xff]
  %v4077 = vld [vmem:[#allocation2 + $0x138] sm:$0xff]
  %v4078 = vld [vmem:[#allocation2 + $0x140] sm:$0xff]
  %v4079 = vld [vmem:[#allocation2 + $0x148] sm:$0xff]
  %v4080 = vld [vmem:[#allocation2 + $0x150] sm:$0xff]
  %v4081 = vld [vmem:[#allocation2 + $0x158] sm:$0xff]
  %v4082 = vld [vmem:[#allocation2 + $0x160] sm:$0xff]
  %v4083 = vld [vmem:[#allocation2 + $0x168] sm:$0xff]
  %v4084 = vld [vmem:[#allocation2 + $0x170] sm:$0xff]
  %v4085 = vld [vmem:[#allocation2 + $0x178] sm:$0xff]
  %v4086 = vld [vmem:[#allocation2 + $0x180] sm:$0xff]
  %v4087 = vld [vmem:[#allocation2 + $0x188] sm:$0xff]
  %v4088 = vld [vmem:[#allocation2 + $0x190] sm:$0xff]
  %v4089 = vld [vmem:[#allocation2 + $0x198] sm:$0xff]
  %v4090 = vld [vmem:[#allocation2 + $0x1a0] sm:$0xff]
  %v4091 = vld [vmem:[#allocation2 + $0x1a8] sm:$0xff]
  %v4092 = vld [vmem:[#allocation2 + $0x1b0] sm:$0xff]
  %v4093 = vld [vmem:[#allocation2 + $0x1b8] sm:$0xff]
  %v4094 = vld [vmem:[#allocation2 + $0x1c0] sm:$0xff]
  %v4095 = vld [vmem:[#allocation2 + $0x1c8] sm:$0xff]
  %v4096 = vld [vmem:[#allocation2 + $0x1d0] sm:$0xff]
  %v4097 = vld [vmem:[#allocation2 + $0x1d8] sm:$0xff]
  %v4098 = vld [vmem:[#allocation2 + $0x1e0] sm:$0xff]
  %v4099 = vld [vmem:[#allocation2 + $0x1e8] sm:$0xff]
  %v4100 = vld [vmem:[#allocation2 + $0x1f0] sm:$0xff]
  %v4101 = vld [vmem:[#allocation2 + $0x1f8] sm:$0xff]
  %v4102 = vld [vmem:[#allocation2 + $0x200] sm:$0xff]
  %v4103 = vld [vmem:[#allocation2 + $0x208] sm:$0xff]
  %v4104 = vld [vmem:[#allocation2 + $0x210] sm:$0xff]
  %v4105 = vld [vmem:[#allocation2 + $0x218] sm:$0xff]
  %v4106 = vld [vmem:[#allocation2 + $0x220] sm:$0xff]
  %v4107 = vand.u32 %v1288, 128
  %v4108 = vand.u32 %v1289, 128
  %v4109 = vand.u32 %v1290, 128
  %v4110 = vand.u32 %v1291, 128
  %v4111 = vand.u32 %v1292, 128
  %v4112 = vand.u32 %v1293, 128
  %v4113 = vand.u32 %v1294, 128
  %v4114 = vand.u32 %v1295, 128
  %v4115 = vand.u32 %v1296, 128
  %v4116 = vand.u32 %v1297, 128
  %v4117 = vand.u32 %v1298, 128
  %v4118 = vand.u32 %v1299, 128
  %v4119 = vand.u32 %v1300, 128
  %v4120 = vand.u32 %v1301, 128
  %v4121 = vand.u32 %v1302, 128
  %v4122 = vand.u32 %v1303, 128
  %v4123 = vand.u32 %v1304, 128
  %v4124 = vand.u32 %v1305, 128
  %v4125 = vand.u32 %v1306, 128
  %v4126 = vand.u32 %v1307, 128
  %v4127 = vand.u32 %v1308, 128
  %v4128 = vand.u32 %v1309, 128
  %v4129 = vand.u32 %v1310, 128
  %v4130 = vand.u32 %v1311, 128
  %v4131 = vand.u32 %v1312, 128
  %v4132 = vand.u32 %v1313, 128
  %v4133 = vand.u32 %v1314, 128
  %v4134 = vand.u32 %v1315, 128
  %v4135 = vand.u32 %v1316, 128
  %v4136 = vand.u32 %v1317, 128
  %v4137 = vand.u32 %v1318, 128
  %v4138 = vand.u32 %v1319, 128
  %v4139 = vand.u32 %v1320, 128
  %v4140 = vand.u32 %v1321, 128
  %v4141 = vand.u32 %v1322, 128
  %v4142 = vand.u32 %v1323, 128
  %v4143 = vand.u32 %v1324, 128
  %v4144 = vand.u32 %v1325, 128
  %v4145 = vand.u32 %v1326, 128
  %v4146 = vand.u32 %v1327, 128
  %v4147 = vand.u32 %v1328, 128
  %v4148 = vand.u32 %v1329, 128
  %v4149 = vand.u32 %v1330, 128
  %v4150 = vand.u32 %v1331, 128
  %v4151 = vand.u32 %v1332, 128
  %v4152 = vand.u32 %v1333, 128
  %v4153 = vand.u32 %v1334, 128
  %v4154 = vand.u32 %v1335, 128
  %v4155 = vand.u32 %v1336, 128
  %v4156 = vand.u32 %v1337, 128
  %v4157 = vand.u32 %v1338, 128
  %v4158 = vand.u32 %v1339, 128
  %v4159 = vand.u32 %v1340, 128
  %v4160 = vand.u32 %v1341, 128
  %v4161 = vand.u32 %v1342, 128
  %v4162 = vand.u32 %v1343, 128
  %v4163 = vand.u32 %v1344, 128
  %v4164 = vand.u32 %v1345, 128
  %v4165 = vand.u32 %v1346, 128
  %v4166 = vand.u32 %v1347, 128
  %v4167 = vand.u32 %v1348, 128
  %v4168 = vand.u32 %v1349, 128
  %v4169 = vand.u32 %v1350, 128
  %v4170 = vand.u32 %v1351, 128
  %vm4171 = vcmp.ne.s32.totalorder %v4107, 0
  %vm4172 = vcmp.ne.s32.totalorder %v4108, 0
  %vm4173 = vcmp.ne.s32.totalorder %v4109, 0
  %vm4174 = vcmp.ne.s32.totalorder %v4110, 0
  %vm4175 = vcmp.ne.s32.totalorder %v4111, 0
  %vm4176 = vcmp.ne.s32.totalorder %v4112, 0
  %vm4177 = vcmp.ne.s32.totalorder %v4113, 0
  %vm4178 = vcmp.ne.s32.totalorder %v4114, 0
  %vm4179 = vcmp.ne.s32.totalorder %v4115, 0
  %vm4180 = vcmp.ne.s32.totalorder %v4116, 0
  %vm4181 = vcmp.ne.s32.totalorder %v4117, 0
  %vm4182 = vcmp.ne.s32.totalorder %v4118, 0
  %vm4183 = vcmp.ne.s32.totalorder %v4119, 0
  %vm4184 = vcmp.ne.s32.totalorder %v4120, 0
  %vm4185 = vcmp.ne.s32.totalorder %v4121, 0
  %vm4186 = vcmp.ne.s32.totalorder %v4122, 0
  %vm4187 = vcmp.ne.s32.totalorder %v4123, 0
  %vm4188 = vcmp.ne.s32.totalorder %v4124, 0
  %vm4189 = vcmp.ne.s32.totalorder %v4125, 0
  %vm4190 = vcmp.ne.s32.totalorder %v4126, 0
  %vm4191 = vcmp.ne.s32.totalorder %v4127, 0
  %vm4192 = vcmp.ne.s32.totalorder %v4128, 0
  %vm4193 = vcmp.ne.s32.totalorder %v4129, 0
  %vm4194 = vcmp.ne.s32.totalorder %v4130, 0
  %vm4195 = vcmp.ne.s32.totalorder %v4131, 0
  %vm4196 = vcmp.ne.s32.totalorder %v4132, 0
  %vm4197 = vcmp.ne.s32.totalorder %v4133, 0
  %vm4198 = vcmp.ne.s32.totalorder %v4134, 0
  %vm4199 = vcmp.ne.s32.totalorder %v4135, 0
  %vm4200 = vcmp.ne.s32.totalorder %v4136, 0
  %vm4201 = vcmp.ne.s32.totalorder %v4137, 0
  %vm4202 = vcmp.ne.s32.totalorder %v4138, 0
  %vm4203 = vcmp.ne.s32.totalorder %v4139, 0
  %vm4204 = vcmp.ne.s32.totalorder %v4140, 0
  %vm4205 = vcmp.ne.s32.totalorder %v4141, 0
  %vm4206 = vcmp.ne.s32.totalorder %v4142, 0
  %vm4207 = vcmp.ne.s32.totalorder %v4143, 0
  %vm4208 = vcmp.ne.s32.totalorder %v4144, 0
  %vm4209 = vcmp.ne.s32.totalorder %v4145, 0
  %vm4210 = vcmp.ne.s32.totalorder %v4146, 0
  %vm4211 = vcmp.ne.s32.totalorder %v4147, 0
  %vm4212 = vcmp.ne.s32.totalorder %v4148, 0
  %vm4213 = vcmp.ne.s32.totalorder %v4149, 0
  %vm4214 = vcmp.ne.s32.totalorder %v4150, 0
  %vm4215 = vcmp.ne.s32.totalorder %v4151, 0
  %vm4216 = vcmp.ne.s32.totalorder %v4152, 0
  %vm4217 = vcmp.ne.s32.totalorder %v4153, 0
  %vm4218 = vcmp.ne.s32.totalorder %v4154, 0
  %vm4219 = vcmp.ne.s32.totalorder %v4155, 0
  %vm4220 = vcmp.ne.s32.totalorder %v4156, 0
  %vm4221 = vcmp.ne.s32.totalorder %v4157, 0
  %vm4222 = vcmp.ne.s32.totalorder %v4158, 0
  %vm4223 = vcmp.ne.s32.totalorder %v4159, 0
  %vm4224 = vcmp.ne.s32.totalorder %v4160, 0
  %vm4225 = vcmp.ne.s32.totalorder %v4161, 0
  %vm4226 = vcmp.ne.s32.totalorder %v4162, 0
  %vm4227 = vcmp.ne.s32.totalorder %v4163, 0
  %vm4228 = vcmp.ne.s32.totalorder %v4164, 0
  %vm4229 = vcmp.ne.s32.totalorder %v4165, 0
  %vm4230 = vcmp.ne.s32.totalorder %v4166, 0
  %vm4231 = vcmp.ne.s32.totalorder %v4167, 0
  %vm4232 = vcmp.ne.s32.totalorder %v4168, 0
  %vm4233 = vcmp.ne.s32.totalorder %v4169, 0
  %vm4234 = vcmp.ne.s32.totalorder %v4170, 0
  %v4235 = vsel %vm4171, %v4043, 0.0
  %v4236 = vsel %vm4172, %v4044, 0.0
  %v4237 = vsel %vm4173, %v4045, 0.0
  %v4238 = vsel %vm4174, %v4046, 0.0
  %v4239 = vsel %vm4175, %v4047, 0.0
  %v4240 = vsel %vm4176, %v4048, 0.0
  %v4241 = vsel %vm4177, %v4049, 0.0
  %v4242 = vsel %vm4178, %v4050, 0.0
  %v4243 = vsel %vm4179, %v4051, 0.0
  %v4244 = vsel %vm4180, %v4052, 0.0
  %v4245 = vsel %vm4181, %v4053, 0.0
  %v4246 = vsel %vm4182, %v4054, 0.0
  %v4247 = vsel %vm4183, %v4055, 0.0
  %v4248 = vsel %vm4184, %v4056, 0.0
  %v4249 = vsel %vm4185, %v4057, 0.0
  %v4250 = vsel %vm4186, %v4058, 0.0
  %v4251 = vsel %vm4187, %v4059, 0.0
  %v4252 = vsel %vm4188, %v4060, 0.0
  %v4253 = vsel %vm4189, %v4061, 0.0
  %v4254 = vsel %vm4190, %v4062, 0.0
  %v4255 = vsel %vm4191, %v4063, 0.0
  %v4256 = vsel %vm4192, %v4064, 0.0
  %v4257 = vsel %vm4193, %v4065, 0.0
  %v4258 = vsel %vm4194, %v4066, 0.0
  %v4259 = vsel %vm4195, %v4067, 0.0
  %v4260 = vsel %vm4196, %v4068, 0.0
  %v4261 = vsel %vm4197, %v4069, 0.0
  %v4262 = vsel %vm4198, %v4070, 0.0
  %v4263 = vsel %vm4199, %v4071, 0.0
  %v4264 = vsel %vm4200, %v4072, 0.0
  %v4265 = vsel %vm4201, %v4073, 0.0
  %v4266 = vsel %vm4202, %v4074, 0.0
  %v4267 = vsel %vm4203, %v4075, 0.0
  %v4268 = vsel %vm4204, %v4076, 0.0
  %v4269 = vsel %vm4205, %v4077, 0.0
  %v4270 = vsel %vm4206, %v4078, 0.0
  %v4271 = vsel %vm4207, %v4079, 0.0
  %v4272 = vsel %vm4208, %v4080, 0.0
  %v4273 = vsel %vm4209, %v4081, 0.0
  %v4274 = vsel %vm4210, %v4082, 0.0
  %v4275 = vsel %vm4211, %v4083, 0.0
  %v4276 = vsel %vm4212, %v4084, 0.0
  %v4277 = vsel %vm4213, %v4085, 0.0
  %v4278 = vsel %vm4214, %v4086, 0.0
  %v4279 = vsel %vm4215, %v4087, 0.0
  %v4280 = vsel %vm4216, %v4088, 0.0
  %v4281 = vsel %vm4217, %v4089, 0.0
  %v4282 = vsel %vm4218, %v4090, 0.0
  %v4283 = vsel %vm4219, %v4091, 0.0
  %v4284 = vsel %vm4220, %v4092, 0.0
  %v4285 = vsel %vm4221, %v4093, 0.0
  %v4286 = vsel %vm4222, %v4094, 0.0
  %v4287 = vsel %vm4223, %v4095, 0.0
  %v4288 = vsel %vm4224, %v4096, 0.0
  %v4289 = vsel %vm4225, %v4097, 0.0
  %v4290 = vsel %vm4226, %v4098, 0.0
  %v4291 = vsel %vm4227, %v4099, 0.0
  %v4292 = vsel %vm4228, %v4100, 0.0
  %v4293 = vsel %vm4229, %v4101, 0.0
  %v4294 = vsel %vm4230, %v4102, 0.0
  %v4295 = vsel %vm4231, %v4103, 0.0
  %v4296 = vsel %vm4232, %v4104, 0.0
  %v4297 = vsel %vm4233, %v4105, 0.0
  %v4298 = vsel %vm4234, %v4106, 0.0
  %v4299 = vpack.c.bf16 %v4236, %v4235
  %v4300 = vpack.c.bf16 %v4238, %v4237
  %v4301 = vpack.c.bf16 %v4240, %v4239
  %v4302 = vpack.c.bf16 %v4242, %v4241
  %v4303 = vpack.c.bf16 %v4244, %v4243
  %v4304 = vpack.c.bf16 %v4246, %v4245
  %v4305 = vpack.c.bf16 %v4248, %v4247
  %v4306 = vpack.c.bf16 %v4250, %v4249
  %v4307 = vpack.c.bf16 %v4252, %v4251
  %v4308 = vpack.c.bf16 %v4254, %v4253
  %v4309 = vpack.c.bf16 %v4256, %v4255
  %v4310 = vpack.c.bf16 %v4258, %v4257
  %v4311 = vpack.c.bf16 %v4260, %v4259
  %v4312 = vpack.c.bf16 %v4262, %v4261
  %v4313 = vpack.c.bf16 %v4264, %v4263
  %v4314 = vpack.c.bf16 %v4266, %v4265
  %v4315 = vpack.c.bf16 %v4268, %v4267
  %v4316 = vpack.c.bf16 %v4270, %v4269
  %v4317 = vpack.c.bf16 %v4272, %v4271
  %v4318 = vpack.c.bf16 %v4274, %v4273
  %v4319 = vpack.c.bf16 %v4276, %v4275
  %v4320 = vpack.c.bf16 %v4278, %v4277
  %v4321 = vpack.c.bf16 %v4280, %v4279
  %v4322 = vpack.c.bf16 %v4282, %v4281
  %v4323 = vpack.c.bf16 %v4284, %v4283
  %v4324 = vpack.c.bf16 %v4286, %v4285
  %v4325 = vpack.c.bf16 %v4288, %v4287
  %v4326 = vpack.c.bf16 %v4290, %v4289
  %v4327 = vpack.c.bf16 %v4292, %v4291
  %v4328 = vpack.c.bf16 %v4294, %v4293
  %v4329 = vpack.c.bf16 %v4296, %v4295
  %v4330 = vpack.c.bf16 %v4298, %v4297
  %4363 = vrot.lane.b32.xlu0 %v4299, 96
  %v4364 = vpop.permute.xlu0 %4363
  %4365 = vrot.lane.b32.xlu0 %v4300, 96
  %v4366 = vpop.permute.xlu0 %4365
  %4367 = vrot.lane.b32.xlu0 %v4301, 96
  %v4368 = vpop.permute.xlu0 %4367
  %4369 = vrot.lane.b32.xlu0 %v4302, 96
  %v4370 = vpop.permute.xlu0 %4369
  %4371 = vrot.lane.b32.xlu0 %v4303, 96
  %v4372 = vpop.permute.xlu0 %4371
  %4373 = vrot.lane.b32.xlu0 %v4304, 96
  %v4374 = vpop.permute.xlu0 %4373
  %4375 = vrot.lane.b32.xlu0 %v4305, 96
  %v4376 = vpop.permute.xlu0 %4375
  %4377 = vrot.lane.b32.xlu0 %v4306, 96
  %v4378 = vpop.permute.xlu0 %4377
  %4379 = vrot.lane.b32.xlu0 %v4307, 96
  %v4380 = vpop.permute.xlu0 %4379
  %4381 = vrot.lane.b32.xlu0 %v4308, 96
  %v4382 = vpop.permute.xlu0 %4381
  %4383 = vrot.lane.b32.xlu0 %v4309, 96
  %v4384 = vpop.permute.xlu0 %4383
  %4385 = vrot.lane.b32.xlu0 %v4310, 96
  %v4386 = vpop.permute.xlu0 %4385
  %4387 = vrot.lane.b32.xlu0 %v4311, 96
  %v4388 = vpop.permute.xlu0 %4387
  %4389 = vrot.lane.b32.xlu0 %v4312, 96
  %v4390 = vpop.permute.xlu0 %4389
  %4391 = vrot.lane.b32.xlu0 %v4313, 96
  %v4392 = vpop.permute.xlu0 %4391
  %4393 = vrot.lane.b32.xlu0 %v4314, 96
  %v4394 = vpop.permute.xlu0 %4393
  %4395 = vrot.lane.b32.xlu0 %v4315, 96
  %v4396 = vpop.permute.xlu0 %4395
  %4397 = vrot.lane.b32.xlu0 %v4316, 96
  %v4398 = vpop.permute.xlu0 %4397
  %4399 = vrot.lane.b32.xlu0 %v4317, 96
  %v4400 = vpop.permute.xlu0 %4399
  %4401 = vrot.lane.b32.xlu0 %v4318, 96
  %v4402 = vpop.permute.xlu0 %4401
  %4403 = vrot.lane.b32.xlu0 %v4319, 96
  %v4404 = vpop.permute.xlu0 %4403
  %4405 = vrot.lane.b32.xlu0 %v4320, 96
  %v4406 = vpop.permute.xlu0 %4405
  %4407 = vrot.lane.b32.xlu0 %v4321, 96
  %v4408 = vpop.permute.xlu0 %4407
  %4409 = vrot.lane.b32.xlu0 %v4322, 96
  %v4410 = vpop.permute.xlu0 %4409
  %4411 = vrot.lane.b32.xlu0 %v4323, 96
  %v4412 = vpop.permute.xlu0 %4411
  %4413 = vrot.lane.b32.xlu0 %v4324, 96
  %v4414 = vpop.permute.xlu0 %4413
  %4415 = vrot.lane.b32.xlu0 %v4325, 96
  %v4416 = vpop.permute.xlu0 %4415
  %4417 = vrot.lane.b32.xlu0 %v4326, 96
  %v4418 = vpop.permute.xlu0 %4417
  %4419 = vrot.lane.b32.xlu0 %v4327, 96
  %v4420 = vpop.permute.xlu0 %4419
  %4421 = vrot.lane.b32.xlu0 %v4328, 96
  %v4422 = vpop.permute.xlu0 %4421
  %4423 = vrot.lane.b32.xlu0 %v4329, 96
  %v4424 = vpop.permute.xlu0 %4423
  %4425 = vrot.lane.b32.xlu0 %v4330, 96
  %v4426 = vpop.permute.xlu0 %4425
  %4459 = vst.msk [vmem:[#allocation3 + $0x8] sm:$0xff] %vm2986, %v4364
  %4460 = vst.msk [vmem:[#allocation3 + $0x20] sm:$0xff] %vm2986, %v4366
  %4461 = vst.msk [vmem:[#allocation3 + $0x38] sm:$0xff] %vm2986, %v4368
  %4462 = vst.msk [vmem:[#allocation3 + $0x50] sm:$0xff] %vm2986, %v4370
  %4463 = vst.msk [vmem:[#allocation3 + $0x68] sm:$0xff] %vm2986, %v4372
  %4464 = vst.msk [vmem:[#allocation3 + $0x80] sm:$0xff] %vm2986, %v4374
  %4465 = vst.msk [vmem:[#allocation3 + $0x98] sm:$0xff] %vm2986, %v4376
  %4466 = vst.msk [vmem:[#allocation3 + $0xb0] sm:$0xff] %vm2986, %v4378
  %4467 = vst.msk [vmem:[#allocation3 + $0xc8] sm:$0xff] %vm2986, %v4380
  %4468 = vst.msk [vmem:[#allocation3 + $0xe0] sm:$0xff] %vm2986, %v4382
  %4469 = vst.msk [vmem:[#allocation3 + $0xf8] sm:$0xff] %vm2986, %v4384
  %4470 = vst.msk [vmem:[#allocation3 + $0x110] sm:$0xff] %vm2986, %v4386
  %4471 = vst.msk [vmem:[#allocation3 + $0x128] sm:$0xff] %vm2986, %v4388
  %4472 = vst.msk [vmem:[#allocation3 + $0x140] sm:$0xff] %vm2986, %v4390
  %4473 = vst.msk [vmem:[#allocation3 + $0x158] sm:$0xff] %vm2986, %v4392
  %4474 = vst.msk [vmem:[#allocation3 + $0x170] sm:$0xff] %vm2986, %v4394
  %4475 = vst.msk [vmem:[#allocation3 + $0x188] sm:$0xff] %vm2986, %v4396
  %4476 = vst.msk [vmem:[#allocation3 + $0x1a0] sm:$0xff] %vm2986, %v4398
  %4477 = vst.msk [vmem:[#allocation3 + $0x1b8] sm:$0xff] %vm2986, %v4400
  %4478 = vst.msk [vmem:[#allocation3 + $0x1d0] sm:$0xff] %vm2986, %v4402
  %4479 = vst.msk [vmem:[#allocation3 + $0x1e8] sm:$0xff] %vm2986, %v4404
  %4480 = vst.msk [vmem:[#allocation3 + $0x200] sm:$0xff] %vm2986, %v4406
  %4481 = vst.msk [vmem:[#allocation3 + $0x218] sm:$0xff] %vm2986, %v4408
  %4482 = vst.msk [vmem:[#allocation3 + $0x230] sm:$0xff] %vm2986, %v4410
  %4483 = vst.msk [vmem:[#allocation3 + $0x248] sm:$0xff] %vm2986, %v4412
  %4484 = vst.msk [vmem:[#allocation3 + $0x260] sm:$0xff] %vm2986, %v4414
  %4485 = vst.msk [vmem:[#allocation3 + $0x278] sm:$0xff] %vm2986, %v4416
  %4486 = vst.msk [vmem:[#allocation3 + $0x290] sm:$0xff] %vm2986, %v4418
  %4487 = vst.msk [vmem:[#allocation3 + $0x2a8] sm:$0xff] %vm2986, %v4420
  %4488 = vst.msk [vmem:[#allocation3 + $0x2c0] sm:$0xff] %vm2986, %v4422
  %4489 = vst.msk [vmem:[#allocation3 + $0x2d8] sm:$0xff] %vm2986, %v4424
  %4490 = vst.msk [vmem:[#allocation3 + $0x2f0] sm:$0xff] %vm2986, %v4426
  %v4491 = vld [vmem:[#allocation2 + $0x29] sm:$0xff]
  %v4492 = vld [vmem:[#allocation2 + $0x31] sm:$0xff]
  %v4493 = vld [vmem:[#allocation2 + $0x39] sm:$0xff]
  %v4494 = vld [vmem:[#allocation2 + $0x41] sm:$0xff]
  %v4495 = vld [vmem:[#allocation2 + $0x49] sm:$0xff]
  %v4496 = vld [vmem:[#allocation2 + $0x51] sm:$0xff]
  %v4497 = vld [vmem:[#allocation2 + $0x59] sm:$0xff]
  %v4498 = vld [vmem:[#allocation2 + $0x61] sm:$0xff]
  %v4499 = vld [vmem:[#allocation2 + $0x69] sm:$0xff]
  %v4500 = vld [vmem:[#allocation2 + $0x71] sm:$0xff]
  %v4501 = vld [vmem:[#allocation2 + $0x79] sm:$0xff]
  %v4502 = vld [vmem:[#allocation2 + $0x81] sm:$0xff]
  %v4503 = vld [vmem:[#allocation2 + $0x89] sm:$0xff]
  %v4504 = vld [vmem:[#allocation2 + $0x91] sm:$0xff]
  %v4505 = vld [vmem:[#allocation2 + $0x99] sm:$0xff]
  %v4506 = vld [vmem:[#allocation2 + $0xa1] sm:$0xff]
  %v4507 = vld [vmem:[#allocation2 + $0xa9] sm:$0xff]
  %v4508 = vld [vmem:[#allocation2 + $0xb1] sm:$0xff]
  %v4509 = vld [vmem:[#allocation2 + $0xb9] sm:$0xff]
  %v4510 = vld [vmem:[#allocation2 + $0xc1] sm:$0xff]
  %v4511 = vld [vmem:[#allocation2 + $0xc9] sm:$0xff]
  %v4512 = vld [vmem:[#allocation2 + $0xd1] sm:$0xff]
  %v4513 = vld [vmem:[#allocation2 + $0xd9] sm:$0xff]
  %v4514 = vld [vmem:[#allocation2 + $0xe1] sm:$0xff]
  %v4515 = vld [vmem:[#allocation2 + $0xe9] sm:$0xff]
  %v4516 = vld [vmem:[#allocation2 + $0xf1] sm:$0xff]
  %v4517 = vld [vmem:[#allocation2 + $0xf9] sm:$0xff]
  %v4518 = vld [vmem:[#allocation2 + $0x101] sm:$0xff]
  %v4519 = vld [vmem:[#allocation2 + $0x109] sm:$0xff]
  %v4520 = vld [vmem:[#allocation2 + $0x111] sm:$0xff]
  %v4521 = vld [vmem:[#allocation2 + $0x119] sm:$0xff]
  %v4522 = vld [vmem:[#allocation2 + $0x121] sm:$0xff]
  %v4523 = vld [vmem:[#allocation2 + $0x129] sm:$0xff]
  %v4524 = vld [vmem:[#allocation2 + $0x131] sm:$0xff]
  %v4525 = vld [vmem:[#allocation2 + $0x139] sm:$0xff]
  %v4526 = vld [vmem:[#allocation2 + $0x141] sm:$0xff]
  %v4527 = vld [vmem:[#allocation2 + $0x149] sm:$0xff]
  %v4528 = vld [vmem:[#allocation2 + $0x151] sm:$0xff]
  %v4529 = vld [vmem:[#allocation2 + $0x159] sm:$0xff]
  %v4530 = vld [vmem:[#allocation2 + $0x161] sm:$0xff]
  %v4531 = vld [vmem:[#allocation2 + $0x169] sm:$0xff]
  %v4532 = vld [vmem:[#allocation2 + $0x171] sm:$0xff]
  %v4533 = vld [vmem:[#allocation2 + $0x179] sm:$0xff]
  %v4534 = vld [vmem:[#allocation2 + $0x181] sm:$0xff]
  %v4535 = vld [vmem:[#allocation2 + $0x189] sm:$0xff]
  %v4536 = vld [vmem:[#allocation2 + $0x191] sm:$0xff]
  %v4537 = vld [vmem:[#allocation2 + $0x199] sm:$0xff]
  %v4538 = vld [vmem:[#allocation2 + $0x1a1] sm:$0xff]
  %v4539 = vld [vmem:[#allocation2 + $0x1a9] sm:$0xff]
  %v4540 = vld [vmem:[#allocation2 + $0x1b1] sm:$0xff]
  %v4541 = vld [vmem:[#allocation2 + $0x1b9] sm:$0xff]
  %v4542 = vld [vmem:[#allocation2 + $0x1c1] sm:$0xff]
  %v4543 = vld [vmem:[#allocation2 + $0x1c9] sm:$0xff]
  %v4544 = vld [vmem:[#allocation2 + $0x1d1] sm:$0xff]
  %v4545 = vld [vmem:[#allocation2 + $0x1d9] sm:$0xff]
  %v4546 = vld [vmem:[#allocation2 + $0x1e1] sm:$0xff]
  %v4547 = vld [vmem:[#allocation2 + $0x1e9] sm:$0xff]
  %v4548 = vld [vmem:[#allocation2 + $0x1f1] sm:$0xff]
  %v4549 = vld [vmem:[#allocation2 + $0x1f9] sm:$0xff]
  %v4550 = vld [vmem:[#allocation2 + $0x201] sm:$0xff]
  %v4551 = vld [vmem:[#allocation2 + $0x209] sm:$0xff]
  %v4552 = vld [vmem:[#allocation2 + $0x211] sm:$0xff]
  %v4553 = vld [vmem:[#allocation2 + $0x219] sm:$0xff]
  %v4554 = vld [vmem:[#allocation2 + $0x221] sm:$0xff]
  %v4555 = vand.u32 %v1288, 256
  %v4556 = vand.u32 %v1289, 256
  %v4557 = vand.u32 %v1290, 256
  %v4558 = vand.u32 %v1291, 256
  %v4559 = vand.u32 %v1292, 256
  %v4560 = vand.u32 %v1293, 256
  %v4561 = vand.u32 %v1294, 256
  %v4562 = vand.u32 %v1295, 256
  %v4563 = vand.u32 %v1296, 256
  %v4564 = vand.u32 %v1297, 256
  %v4565 = vand.u32 %v1298, 256
  %v4566 = vand.u32 %v1299, 256
  %v4567 = vand.u32 %v1300, 256
  %v4568 = vand.u32 %v1301, 256
  %v4569 = vand.u32 %v1302, 256
  %v4570 = vand.u32 %v1303, 256
  %v4571 = vand.u32 %v1304, 256
  %v4572 = vand.u32 %v1305, 256
  %v4573 = vand.u32 %v1306, 256
  %v4574 = vand.u32 %v1307, 256
  %v4575 = vand.u32 %v1308, 256
  %v4576 = vand.u32 %v1309, 256
  %v4577 = vand.u32 %v1310, 256
  %v4578 = vand.u32 %v1311, 256
  %v4579 = vand.u32 %v1312, 256
  %v4580 = vand.u32 %v1313, 256
  %v4581 = vand.u32 %v1314, 256
  %v4582 = vand.u32 %v1315, 256
  %v4583 = vand.u32 %v1316, 256
  %v4584 = vand.u32 %v1317, 256
  %v4585 = vand.u32 %v1318, 256
  %v4586 = vand.u32 %v1319, 256
  %v4587 = vand.u32 %v1320, 256
  %v4588 = vand.u32 %v1321, 256
  %v4589 = vand.u32 %v1322, 256
  %v4590 = vand.u32 %v1323, 256
  %v4591 = vand.u32 %v1324, 256
  %v4592 = vand.u32 %v1325, 256
  %v4593 = vand.u32 %v1326, 256
  %v4594 = vand.u32 %v1327, 256
  %v4595 = vand.u32 %v1328, 256
  %v4596 = vand.u32 %v1329, 256
  %v4597 = vand.u32 %v1330, 256
  %v4598 = vand.u32 %v1331, 256
  %v4599 = vand.u32 %v1332, 256
  %v4600 = vand.u32 %v1333, 256
  %v4601 = vand.u32 %v1334, 256
  %v4602 = vand.u32 %v1335, 256
  %v4603 = vand.u32 %v1336, 256
  %v4604 = vand.u32 %v1337, 256
  %v4605 = vand.u32 %v1338, 256
  %v4606 = vand.u32 %v1339, 256
  %v4607 = vand.u32 %v1340, 256
  %v4608 = vand.u32 %v1341, 256
  %v4609 = vand.u32 %v1342, 256
  %v4610 = vand.u32 %v1343, 256
  %v4611 = vand.u32 %v1344, 256
  %v4612 = vand.u32 %v1345, 256
  %v4613 = vand.u32 %v1346, 256
  %v4614 = vand.u32 %v1347, 256
  %v4615 = vand.u32 %v1348, 256
  %v4616 = vand.u32 %v1349, 256
  %v4617 = vand.u32 %v1350, 256
  %v4618 = vand.u32 %v1351, 256
  %vm4619 = vcmp.ne.s32.totalorder %v4555, 0
  %vm4620 = vcmp.ne.s32.totalorder %v4556, 0
  %vm4621 = vcmp.ne.s32.totalorder %v4557, 0
  %vm4622 = vcmp.ne.s32.totalorder %v4558, 0
  %vm4623 = vcmp.ne.s32.totalorder %v4559, 0
  %vm4624 = vcmp.ne.s32.totalorder %v4560, 0
  %vm4625 = vcmp.ne.s32.totalorder %v4561, 0
  %vm4626 = vcmp.ne.s32.totalorder %v4562, 0
  %vm4627 = vcmp.ne.s32.totalorder %v4563, 0
  %vm4628 = vcmp.ne.s32.totalorder %v4564, 0
  %vm4629 = vcmp.ne.s32.totalorder %v4565, 0
  %vm4630 = vcmp.ne.s32.totalorder %v4566, 0
  %vm4631 = vcmp.ne.s32.totalorder %v4567, 0
  %vm4632 = vcmp.ne.s32.totalorder %v4568, 0
  %vm4633 = vcmp.ne.s32.totalorder %v4569, 0
  %vm4634 = vcmp.ne.s32.totalorder %v4570, 0
  %vm4635 = vcmp.ne.s32.totalorder %v4571, 0
  %vm4636 = vcmp.ne.s32.totalorder %v4572, 0
  %vm4637 = vcmp.ne.s32.totalorder %v4573, 0
  %vm4638 = vcmp.ne.s32.totalorder %v4574, 0
  %vm4639 = vcmp.ne.s32.totalorder %v4575, 0
  %vm4640 = vcmp.ne.s32.totalorder %v4576, 0
  %vm4641 = vcmp.ne.s32.totalorder %v4577, 0
  %vm4642 = vcmp.ne.s32.totalorder %v4578, 0
  %vm4643 = vcmp.ne.s32.totalorder %v4579, 0
  %vm4644 = vcmp.ne.s32.totalorder %v4580, 0
  %vm4645 = vcmp.ne.s32.totalorder %v4581, 0
  %vm4646 = vcmp.ne.s32.totalorder %v4582, 0
  %vm4647 = vcmp.ne.s32.totalorder %v4583, 0
  %vm4648 = vcmp.ne.s32.totalorder %v4584, 0
  %vm4649 = vcmp.ne.s32.totalorder %v4585, 0
  %vm4650 = vcmp.ne.s32.totalorder %v4586, 0
  %vm4651 = vcmp.ne.s32.totalorder %v4587, 0
  %vm4652 = vcmp.ne.s32.totalorder %v4588, 0
  %vm4653 = vcmp.ne.s32.totalorder %v4589, 0
  %vm4654 = vcmp.ne.s32.totalorder %v4590, 0
  %vm4655 = vcmp.ne.s32.totalorder %v4591, 0
  %vm4656 = vcmp.ne.s32.totalorder %v4592, 0
  %vm4657 = vcmp.ne.s32.totalorder %v4593, 0
  %vm4658 = vcmp.ne.s32.totalorder %v4594, 0
  %vm4659 = vcmp.ne.s32.totalorder %v4595, 0
  %vm4660 = vcmp.ne.s32.totalorder %v4596, 0
  %vm4661 = vcmp.ne.s32.totalorder %v4597, 0
  %vm4662 = vcmp.ne.s32.totalorder %v4598, 0
  %vm4663 = vcmp.ne.s32.totalorder %v4599, 0
  %vm4664 = vcmp.ne.s32.totalorder %v4600, 0
  %vm4665 = vcmp.ne.s32.totalorder %v4601, 0
  %vm4666 = vcmp.ne.s32.totalorder %v4602, 0
  %vm4667 = vcmp.ne.s32.totalorder %v4603, 0
  %vm4668 = vcmp.ne.s32.totalorder %v4604, 0
  %vm4669 = vcmp.ne.s32.totalorder %v4605, 0
  %vm4670 = vcmp.ne.s32.totalorder %v4606, 0
  %vm4671 = vcmp.ne.s32.totalorder %v4607, 0
  %vm4672 = vcmp.ne.s32.totalorder %v4608, 0
  %vm4673 = vcmp.ne.s32.totalorder %v4609, 0
  %vm4674 = vcmp.ne.s32.totalorder %v4610, 0
  %vm4675 = vcmp.ne.s32.totalorder %v4611, 0
  %vm4676 = vcmp.ne.s32.totalorder %v4612, 0
  %vm4677 = vcmp.ne.s32.totalorder %v4613, 0
  %vm4678 = vcmp.ne.s32.totalorder %v4614, 0
  %vm4679 = vcmp.ne.s32.totalorder %v4615, 0
  %vm4680 = vcmp.ne.s32.totalorder %v4616, 0
  %vm4681 = vcmp.ne.s32.totalorder %v4617, 0
  %vm4682 = vcmp.ne.s32.totalorder %v4618, 0
  %v4683 = vsel %vm4619, %v4491, 0.0
  %v4684 = vsel %vm4620, %v4492, 0.0
  %v4685 = vsel %vm4621, %v4493, 0.0
  %v4686 = vsel %vm4622, %v4494, 0.0
  %v4687 = vsel %vm4623, %v4495, 0.0
  %v4688 = vsel %vm4624, %v4496, 0.0
  %v4689 = vsel %vm4625, %v4497, 0.0
  %v4690 = vsel %vm4626, %v4498, 0.0
  %v4691 = vsel %vm4627, %v4499, 0.0
  %v4692 = vsel %vm4628, %v4500, 0.0
  %v4693 = vsel %vm4629, %v4501, 0.0
  %v4694 = vsel %vm4630, %v4502, 0.0
  %v4695 = vsel %vm4631, %v4503, 0.0
  %v4696 = vsel %vm4632, %v4504, 0.0
  %v4697 = vsel %vm4633, %v4505, 0.0
  %v4698 = vsel %vm4634, %v4506, 0.0
  %v4699 = vsel %vm4635, %v4507, 0.0
  %v4700 = vsel %vm4636, %v4508, 0.0
  %v4701 = vsel %vm4637, %v4509, 0.0
  %v4702 = vsel %vm4638, %v4510, 0.0
  %v4703 = vsel %vm4639, %v4511, 0.0
  %v4704 = vsel %vm4640, %v4512, 0.0
  %v4705 = vsel %vm4641, %v4513, 0.0
  %v4706 = vsel %vm4642, %v4514, 0.0
  %v4707 = vsel %vm4643, %v4515, 0.0
  %v4708 = vsel %vm4644, %v4516, 0.0
  %v4709 = vsel %vm4645, %v4517, 0.0
  %v4710 = vsel %vm4646, %v4518, 0.0
  %v4711 = vsel %vm4647, %v4519, 0.0
  %v4712 = vsel %vm4648, %v4520, 0.0
  %v4713 = vsel %vm4649, %v4521, 0.0
  %v4714 = vsel %vm4650, %v4522, 0.0
  %v4715 = vsel %vm4651, %v4523, 0.0
  %v4716 = vsel %vm4652, %v4524, 0.0
  %v4717 = vsel %vm4653, %v4525, 0.0
  %v4718 = vsel %vm4654, %v4526, 0.0
  %v4719 = vsel %vm4655, %v4527, 0.0
  %v4720 = vsel %vm4656, %v4528, 0.0
  %v4721 = vsel %vm4657, %v4529, 0.0
  %v4722 = vsel %vm4658, %v4530, 0.0
  %v4723 = vsel %vm4659, %v4531, 0.0
  %v4724 = vsel %vm4660, %v4532, 0.0
  %v4725 = vsel %vm4661, %v4533, 0.0
  %v4726 = vsel %vm4662, %v4534, 0.0
  %v4727 = vsel %vm4663, %v4535, 0.0
  %v4728 = vsel %vm4664, %v4536, 0.0
  %v4729 = vsel %vm4665, %v4537, 0.0
  %v4730 = vsel %vm4666, %v4538, 0.0
  %v4731 = vsel %vm4667, %v4539, 0.0
  %v4732 = vsel %vm4668, %v4540, 0.0
  %v4733 = vsel %vm4669, %v4541, 0.0
  %v4734 = vsel %vm4670, %v4542, 0.0
  %v4735 = vsel %vm4671, %v4543, 0.0
  %v4736 = vsel %vm4672, %v4544, 0.0
  %v4737 = vsel %vm4673, %v4545, 0.0
  %v4738 = vsel %vm4674, %v4546, 0.0
  %v4739 = vsel %vm4675, %v4547, 0.0
  %v4740 = vsel %vm4676, %v4548, 0.0
  %v4741 = vsel %vm4677, %v4549, 0.0
  %v4742 = vsel %vm4678, %v4550, 0.0
  %v4743 = vsel %vm4679, %v4551, 0.0
  %v4744 = vsel %vm4680, %v4552, 0.0
  %v4745 = vsel %vm4681, %v4553, 0.0
  %v4746 = vsel %vm4682, %v4554, 0.0
  %v4747 = vpack.c.bf16 %v4684, %v4683
  %v4748 = vpack.c.bf16 %v4686, %v4685
  %v4749 = vpack.c.bf16 %v4688, %v4687
  %v4750 = vpack.c.bf16 %v4690, %v4689
  %v4751 = vpack.c.bf16 %v4692, %v4691
  %v4752 = vpack.c.bf16 %v4694, %v4693
  %v4753 = vpack.c.bf16 %v4696, %v4695
  %v4754 = vpack.c.bf16 %v4698, %v4697
  %v4755 = vpack.c.bf16 %v4700, %v4699
  %v4756 = vpack.c.bf16 %v4702, %v4701
  %v4757 = vpack.c.bf16 %v4704, %v4703
  %v4758 = vpack.c.bf16 %v4706, %v4705
  %v4759 = vpack.c.bf16 %v4708, %v4707
  %v4760 = vpack.c.bf16 %v4710, %v4709
  %v4761 = vpack.c.bf16 %v4712, %v4711
  %v4762 = vpack.c.bf16 %v4714, %v4713
  %v4763 = vpack.c.bf16 %v4716, %v4715
  %v4764 = vpack.c.bf16 %v4718, %v4717
  %v4765 = vpack.c.bf16 %v4720, %v4719
  %v4766 = vpack.c.bf16 %v4722, %v4721
  %v4767 = vpack.c.bf16 %v4724, %v4723
  %v4768 = vpack.c.bf16 %v4726, %v4725
  %v4769 = vpack.c.bf16 %v4728, %v4727
  %v4770 = vpack.c.bf16 %v4730, %v4729
  %v4771 = vpack.c.bf16 %v4732, %v4731
  %v4772 = vpack.c.bf16 %v4734, %v4733
  %v4773 = vpack.c.bf16 %v4736, %v4735
  %v4774 = vpack.c.bf16 %v4738, %v4737
  %v4775 = vpack.c.bf16 %v4740, %v4739
  %v4776 = vpack.c.bf16 %v4742, %v4741
  %v4777 = vpack.c.bf16 %v4744, %v4743
  %v4778 = vpack.c.bf16 %v4746, %v4745
  %4779 = vst.msk [vmem:[#allocation3 + $0x10] sm:$0xff] %vm30, %v4747
  %4780 = vst.msk [vmem:[#allocation3 + $0x28] sm:$0xff] %vm30, %v4748
  %4781 = vst.msk [vmem:[#allocation3 + $0x40] sm:$0xff] %vm30, %v4749
  %4782 = vst.msk [vmem:[#allocation3 + $0x58] sm:$0xff] %vm30, %v4750
  %4783 = vst.msk [vmem:[#allocation3 + $0x70] sm:$0xff] %vm30, %v4751
  %4784 = vst.msk [vmem:[#allocation3 + $0x88] sm:$0xff] %vm30, %v4752
  %4785 = vst.msk [vmem:[#allocation3 + $0xa0] sm:$0xff] %vm30, %v4753
  %4786 = vst.msk [vmem:[#allocation3 + $0xb8] sm:$0xff] %vm30, %v4754
  %4787 = vst.msk [vmem:[#allocation3 + $0xd0] sm:$0xff] %vm30, %v4755
  %4788 = vst.msk [vmem:[#allocation3 + $0xe8] sm:$0xff] %vm30, %v4756
  %4789 = vst.msk [vmem:[#allocation3 + $0x100] sm:$0xff] %vm30, %v4757
  %4790 = vst.msk [vmem:[#allocation3 + $0x118] sm:$0xff] %vm30, %v4758
  %4791 = vst.msk [vmem:[#allocation3 + $0x130] sm:$0xff] %vm30, %v4759
  %4792 = vst.msk [vmem:[#allocation3 + $0x148] sm:$0xff] %vm30, %v4760
  %4793 = vst.msk [vmem:[#allocation3 + $0x160] sm:$0xff] %vm30, %v4761
  %4794 = vst.msk [vmem:[#allocation3 + $0x178] sm:$0xff] %vm30, %v4762
  %4795 = vst.msk [vmem:[#allocation3 + $0x190] sm:$0xff] %vm30, %v4763
  %4796 = vst.msk [vmem:[#allocation3 + $0x1a8] sm:$0xff] %vm30, %v4764
  %4797 = vst.msk [vmem:[#allocation3 + $0x1c0] sm:$0xff] %vm30, %v4765
  %4798 = vst.msk [vmem:[#allocation3 + $0x1d8] sm:$0xff] %vm30, %v4766
  %4799 = vst.msk [vmem:[#allocation3 + $0x1f0] sm:$0xff] %vm30, %v4767
  %4800 = vst.msk [vmem:[#allocation3 + $0x208] sm:$0xff] %vm30, %v4768
  %4801 = vst.msk [vmem:[#allocation3 + $0x220] sm:$0xff] %vm30, %v4769
  %4802 = vst.msk [vmem:[#allocation3 + $0x238] sm:$0xff] %vm30, %v4770
  %4803 = vst.msk [vmem:[#allocation3 + $0x250] sm:$0xff] %vm30, %v4771
  %4804 = vst.msk [vmem:[#allocation3 + $0x268] sm:$0xff] %vm30, %v4772
  %4805 = vst.msk [vmem:[#allocation3 + $0x280] sm:$0xff] %vm30, %v4773
  %4806 = vst.msk [vmem:[#allocation3 + $0x298] sm:$0xff] %vm30, %v4774
  %4807 = vst.msk [vmem:[#allocation3 + $0x2b0] sm:$0xff] %vm30, %v4775
  %4808 = vst.msk [vmem:[#allocation3 + $0x2c8] sm:$0xff] %vm30, %v4776
  %4809 = vst.msk [vmem:[#allocation3 + $0x2e0] sm:$0xff] %vm30, %v4777
  %4810 = vst.msk [vmem:[#allocation3 + $0x2f8] sm:$0xff] %vm30, %v4778
  %v4811 = vld [vmem:[#allocation3] sm:$0xff]
  %v4812 = vld [vmem:[#allocation3 + $0x8] sm:$0xff]
  %v4813 = vld [vmem:[#allocation3 + $0x10] sm:$0xff]
  %v4814 = vld [vmem:[#allocation3 + $0x18] sm:$0xff]
  %v4815 = vld [vmem:[#allocation3 + $0x20] sm:$0xff]
  %v4816 = vld [vmem:[#allocation3 + $0x28] sm:$0xff]
  %v4817 = vld [vmem:[#allocation3 + $0x30] sm:$0xff]
  %v4818 = vld [vmem:[#allocation3 + $0x38] sm:$0xff]
  %v4819 = vld [vmem:[#allocation3 + $0x40] sm:$0xff]
  %v4820 = vld [vmem:[#allocation3 + $0x48] sm:$0xff]
  %v4821 = vld [vmem:[#allocation3 + $0x50] sm:$0xff]
  %v4822 = vld [vmem:[#allocation3 + $0x58] sm:$0xff]
  %v4823 = vld [vmem:[#allocation3 + $0x60] sm:$0xff]
  %v4824 = vld [vmem:[#allocation3 + $0x68] sm:$0xff]
  %v4825 = vld [vmem:[#allocation3 + $0x70] sm:$0xff]
  %v4826 = vld [vmem:[#allocation3 + $0x78] sm:$0xff]
  %v4827 = vld [vmem:[#allocation3 + $0x80] sm:$0xff]
  %v4828 = vld [vmem:[#allocation3 + $0x88] sm:$0xff]
  %v4829 = vld [vmem:[#allocation3 + $0x90] sm:$0xff]
  %v4830 = vld [vmem:[#allocation3 + $0x98] sm:$0xff]
  %v4831 = vld [vmem:[#allocation3 + $0xa0] sm:$0xff]
  %v4832 = vld [vmem:[#allocation3 + $0xa8] sm:$0xff]
  %v4833 = vld [vmem:[#allocation3 + $0xb0] sm:$0xff]
  %v4834 = vld [vmem:[#allocation3 + $0xb8] sm:$0xff]
  %v4835 = vld [vmem:[#allocation3 + $0xc0] sm:$0xff]
  %v4836 = vld [vmem:[#allocation3 + $0xc8] sm:$0xff]
  %v4837 = vld [vmem:[#allocation3 + $0xd0] sm:$0xff]
  %v4838 = vld [vmem:[#allocation3 + $0xd8] sm:$0xff]
  %v4839 = vld [vmem:[#allocation3 + $0xe0] sm:$0xff]
  %v4840 = vld [vmem:[#allocation3 + $0xe8] sm:$0xff]
  %v4841 = vld [vmem:[#allocation3 + $0xf0] sm:$0xff]
  %v4842 = vld [vmem:[#allocation3 + $0xf8] sm:$0xff]
  %v4843 = vld [vmem:[#allocation3 + $0x100] sm:$0xff]
  %v4844 = vld [vmem:[#allocation3 + $0x108] sm:$0xff]
  %v4845 = vld [vmem:[#allocation3 + $0x110] sm:$0xff]
  %v4846 = vld [vmem:[#allocation3 + $0x118] sm:$0xff]
  %v4847 = vld [vmem:[#allocation3 + $0x120] sm:$0xff]
  %v4848 = vld [vmem:[#allocation3 + $0x128] sm:$0xff]
  %v4849 = vld [vmem:[#allocation3 + $0x130] sm:$0xff]
  %v4850 = vld [vmem:[#allocation3 + $0x138] sm:$0xff]
  %v4851 = vld [vmem:[#allocation3 + $0x140] sm:$0xff]
  %v4852 = vld [vmem:[#allocation3 + $0x148] sm:$0xff]
  %v4853 = vld [vmem:[#allocation3 + $0x150] sm:$0xff]
  %v4854 = vld [vmem:[#allocation3 + $0x158] sm:$0xff]
  %v4855 = vld [vmem:[#allocation3 + $0x160] sm:$0xff]
  %v4856 = vld [vmem:[#allocation3 + $0x168] sm:$0xff]
  %v4857 = vld [vmem:[#allocation3 + $0x170] sm:$0xff]
  %v4858 = vld [vmem:[#allocation3 + $0x178] sm:$0xff]
  %v4859 = vld [vmem:[#allocation3 + $0x180] sm:$0xff]
  %v4860 = vld [vmem:[#allocation3 + $0x188] sm:$0xff]
  %v4861 = vld [vmem:[#allocation3 + $0x190] sm:$0xff]
  %v4862 = vld [vmem:[#allocation3 + $0x198] sm:$0xff]
  %v4863 = vld [vmem:[#allocation3 + $0x1a0] sm:$0xff]
  %v4864 = vld [vmem:[#allocation3 + $0x1a8] sm:$0xff]
  %v4865 = vld [vmem:[#allocation3 + $0x1b0] sm:$0xff]
  %v4866 = vld [vmem:[#allocation3 + $0x1b8] sm:$0xff]
  %v4867 = vld [vmem:[#allocation3 + $0x1c0] sm:$0xff]
  %v4868 = vld [vmem:[#allocation3 + $0x1c8] sm:$0xff]
  %v4869 = vld [vmem:[#allocation3 + $0x1d0] sm:$0xff]
  %v4870 = vld [vmem:[#allocation3 + $0x1d8] sm:$0xff]
  %v4871 = vld [vmem:[#allocation3 + $0x1e0] sm:$0xff]
  %v4872 = vld [vmem:[#allocation3 + $0x1e8] sm:$0xff]
  %v4873 = vld [vmem:[#allocation3 + $0x1f0] sm:$0xff]
  %v4874 = vld [vmem:[#allocation3 + $0x1f8] sm:$0xff]
  %v4875 = vld [vmem:[#allocation3 + $0x200] sm:$0xff]
  %v4876 = vld [vmem:[#allocation3 + $0x208] sm:$0xff]
  %v4877 = vld [vmem:[#allocation3 + $0x210] sm:$0xff]
  %v4878 = vld [vmem:[#allocation3 + $0x218] sm:$0xff]
  %v4879 = vld [vmem:[#allocation3 + $0x220] sm:$0xff]
  %v4880 = vld [vmem:[#allocation3 + $0x228] sm:$0xff]
  %v4881 = vld [vmem:[#allocation3 + $0x230] sm:$0xff]
  %v4882 = vld [vmem:[#allocation3 + $0x238] sm:$0xff]
  %v4883 = vld [vmem:[#allocation3 + $0x240] sm:$0xff]
  %v4884 = vld [vmem:[#allocation3 + $0x248] sm:$0xff]
  %v4885 = vld [vmem:[#allocation3 + $0x250] sm:$0xff]
  %v4886 = vld [vmem:[#allocation3 + $0x258] sm:$0xff]
  %v4887 = vld [vmem:[#allocation3 + $0x260] sm:$0xff]
  %v4888 = vld [vmem:[#allocation3 + $0x268] sm:$0xff]
  %v4889 = vld [vmem:[#allocation3 + $0x270] sm:$0xff]
  %v4890 = vld [vmem:[#allocation3 + $0x278] sm:$0xff]
  %v4891 = vld [vmem:[#allocation3 + $0x280] sm:$0xff]
  %v4892 = vld [vmem:[#allocation3 + $0x288] sm:$0xff]
  %v4893 = vld [vmem:[#allocation3 + $0x290] sm:$0xff]
  %v4894 = vld [vmem:[#allocation3 + $0x298] sm:$0xff]
  %v4895 = vld [vmem:[#allocation3 + $0x2a0] sm:$0xff]
  %v4896 = vld [vmem:[#allocation3 + $0x2a8] sm:$0xff]
  %v4897 = vld [vmem:[#allocation3 + $0x2b0] sm:$0xff]
  %v4898 = vld [vmem:[#allocation3 + $0x2b8] sm:$0xff]
  %v4899 = vld [vmem:[#allocation3 + $0x2c0] sm:$0xff]
  %v4900 = vld [vmem:[#allocation3 + $0x2c8] sm:$0xff]
  %v4901 = vld [vmem:[#allocation3 + $0x2d0] sm:$0xff]
  %v4902 = vld [vmem:[#allocation3 + $0x2d8] sm:$0xff]
  %v4903 = vld [vmem:[#allocation3 + $0x2e0] sm:$0xff]
  %v4904 = vld [vmem:[#allocation3 + $0x2e8] sm:$0xff]
  %v4905 = vld [vmem:[#allocation3 + $0x2f0] sm:$0xff]
  %v4906 = vld [vmem:[#allocation3 + $0x2f8] sm:$0xff]
  %v4907 = vld [vmem:[%s3] sm:$0xf]
  %v4908 = vld [vmem:[%s3 + $0x4] sm:$0xf]
  %v4909 = vld [vmem:[%s3 + $0x8] sm:$0xf]
  %v4910 = vld [vmem:[%s3 + $0xc] sm:$0xf]
  %v4911 = vld [vmem:[%s3 + $0x10] sm:$0xf]
  %v4912 = vld [vmem:[%s3 + $0x14] sm:$0xf]
  %v4913 = vld [vmem:[%s3 + $0x18] sm:$0xf]
  %v4914 = vld [vmem:[%s3 + $0x1c] sm:$0xf]
  %v4915 = vld [vmem:[%s3 + $0x20] sm:$0xf]
  %v4916 = vld [vmem:[%s3 + $0x24] sm:$0xf]
  %v4917 = vld [vmem:[%s3 + $0x28] sm:$0xf]
  %v4918 = vld [vmem:[%s3 + $0x2c] sm:$0xf]
  %v4919 = vld [vmem:[%s3 + $0x30] sm:$0xf]
  %v4920 = vld [vmem:[%s3 + $0x34] sm:$0xf]
  %v4921 = vld [vmem:[%s3 + $0x38] sm:$0xf]
  %v4922 = vld [vmem:[%s3 + $0x3c] sm:$0xf]
  %v4923 = vld [vmem:[%s3 + $0x40] sm:$0xf]
  %v4924 = vld [vmem:[%s3 + $0x44] sm:$0xf]
  %v4925 = vld [vmem:[%s3 + $0x48] sm:$0xf]
  %v4926 = vld [vmem:[%s3 + $0x4c] sm:$0xf]
  %v4927 = vld [vmem:[%s3 + $0x50] sm:$0xf]
  %v4928 = vld [vmem:[%s3 + $0x54] sm:$0xf]
  %v4929 = vld [vmem:[%s3 + $0x58] sm:$0xf]
  %v4930 = vld [vmem:[%s3 + $0x5c] sm:$0xf]
  %v4931 = vld [vmem:[%s3 + $0x60] sm:$0xf]
  %v4932 = vld [vmem:[%s3 + $0x64] sm:$0xf]
  %v4933 = vld [vmem:[%s3 + $0x68] sm:$0xf]
  %v4934 = vld [vmem:[%s3 + $0x6c] sm:$0xf]
  %v4935 = vld [vmem:[%s3 + $0x70] sm:$0xf]
  %v4936 = vld [vmem:[%s3 + $0x74] sm:$0xf]
  %v4937 = vld [vmem:[%s3 + $0x78] sm:$0xf]
  %v4938 = vld [vmem:[%s3 + $0x7c] sm:$0xf]
  %v4939 = vld [vmem:[%s3 + $0x80] sm:$0xf]
  %v4940 = vld [vmem:[%s3 + $0x84] sm:$0xf]
  %v4941 = vld [vmem:[%s3 + $0x88] sm:$0xf]
  %v4942 = vld [vmem:[%s3 + $0x8c] sm:$0xf]
  %s4943 = scalar_lea.vmem %s5, 1
  %v4944 = vld [vmem:[%s4943] sm:$0x1]
  %v4946 = vlaneseq
  %v4947 = vshrl.u32 %v4946, 7
  %v4948 = vsub.s32 0, %v4947
  %v4949 = vrot.slane %v4944, %v4948
  %v4987 = vunpack.c.l.b16 %v4907
  %v4988 = vunpack.c.l.b16 %v4908
  %v4989 = vunpack.c.l.b16 %v4909
  %v4990 = vunpack.c.l.b16 %v4910
  %v4991 = vunpack.c.l.b16 %v4911
  %v4992 = vunpack.c.l.b16 %v4912
  %v4993 = vunpack.c.l.b16 %v4913
  %v4994 = vunpack.c.l.b16 %v4914
  %v4995 = vunpack.c.l.b16 %v4915
  %v4996 = vunpack.c.l.b16 %v4916
  %v4997 = vunpack.c.l.b16 %v4917
  %v4998 = vunpack.c.l.b16 %v4918
  %v4999 = vunpack.c.l.b16 %v4919
  %v5000 = vunpack.c.l.b16 %v4920
  %v5001 = vunpack.c.l.b16 %v4921
  %v5002 = vunpack.c.l.b16 %v4922
  %v5003 = vunpack.c.l.b16 %v4923
  %v5004 = vunpack.c.l.b16 %v4924
  %v5005 = vunpack.c.l.b16 %v4925
  %v5006 = vunpack.c.l.b16 %v4926
  %v5007 = vunpack.c.l.b16 %v4927
  %v5008 = vunpack.c.l.b16 %v4928
  %v5009 = vunpack.c.l.b16 %v4929
  %v5010 = vunpack.c.l.b16 %v4930
  %v5011 = vunpack.c.l.b16 %v4931
  %v5012 = vunpack.c.l.b16 %v4932
  %v5013 = vunpack.c.l.b16 %v4933
  %v5014 = vunpack.c.l.b16 %v4934
  %v5015 = vunpack.c.l.b16 %v4935
  %v5016 = vunpack.c.l.b16 %v4936
  %v5017 = vunpack.c.l.b16 %v4937
  %v5018 = vunpack.c.l.b16 %v4938
  %v5019 = vunpack.c.l.b16 %v4939
  %v5020 = vunpack.c.l.b16 %v4940
  %v5021 = vunpack.c.l.b16 %v4941
  %v5022 = vunpack.c.l.b16 %v4942
  %v5023 = vpack.c.b16 %v4988, %v4987
  %v5024 = vpack.c.b16 %v4990, %v4989
  %v5025 = vpack.c.b16 %v4992, %v4991
  %v5026 = vpack.c.b16 %v4994, %v4993
  %v5027 = vpack.c.b16 %v4996, %v4995
  %v5028 = vpack.c.b16 %v4998, %v4997
  %v5029 = vpack.c.b16 %v5000, %v4999
  %v5030 = vpack.c.b16 %v5002, %v5001
  %v5031 = vpack.c.b16 %v5004, %v5003
  %v5032 = vpack.c.b16 %v5006, %v5005
  %v5033 = vpack.c.b16 %v5008, %v5007
  %v5034 = vpack.c.b16 %v5010, %v5009
  %v5035 = vpack.c.b16 %v5012, %v5011
  %v5036 = vpack.c.b16 %v5014, %v5013
  %v5037 = vpack.c.b16 %v5016, %v5015
  %v5038 = vpack.c.b16 %v5018, %v5017
  %v5039 = vpack.c.b16 %v5020, %v5019
  %v5040 = vpack.c.b16 %v5022, %v5021
  %v5060 = vsel %vm30, %v4813, 0
  %v5063 = vsel %vm30, %v4816, 0
  %v5066 = vsel %vm30, %v4819, 0
  %v5069 = vsel %vm30, %v4822, 0
  %v5072 = vsel %vm30, %v4825, 0
  %v5075 = vsel %vm30, %v4828, 0
  %v5078 = vsel %vm30, %v4831, 0
  %v5081 = vsel %vm30, %v4834, 0
  %v5084 = vsel %vm30, %v4837, 0
  %v5087 = vsel %vm30, %v4840, 0
  %v5090 = vsel %vm30, %v4843, 0
  %v5093 = vsel %vm30, %v4846, 0
  %v5096 = vsel %vm30, %v4849, 0
  %v5099 = vsel %vm30, %v4852, 0
  %v5102 = vsel %vm30, %v4855, 0
  %v5105 = vsel %vm30, %v4858, 0
  %v5108 = vsel %vm30, %v4861, 0
  %v5111 = vsel %vm30, %v4864, 0
  %v5114 = vsel %vm30, %v4867, 0
  %v5117 = vsel %vm30, %v4870, 0
  %v5120 = vsel %vm30, %v4873, 0
  %v5123 = vsel %vm30, %v4876, 0
  %v5126 = vsel %vm30, %v4879, 0
  %v5129 = vsel %vm30, %v4882, 0
  %v5132 = vsel %vm30, %v4885, 0
  %v5135 = vsel %vm30, %v4888, 0
  %v5138 = vsel %vm30, %v4891, 0
  %v5141 = vsel %vm30, %v4894, 0
  %v5144 = vsel %vm30, %v4897, 0
  %v5147 = vsel %vm30, %v4900, 0
  %v5150 = vsel %vm30, %v4903, 0
  %v5153 = vsel %vm30, %v4906, 0
  %5155 = vmatprep.subr.bf16.mxu0 0
  %5156 = vmatpush1.bf16.msra.mxu0 %v5023
  %5157 = vmatprep.subr.bf16.mxu0 0
  %5158 = vmatpush1.bf16.msra.mxu0 %v5024
  %5159 = vmatprep.subr.bf16.mxu0 0
  %5160 = vmatpush1.bf16.msra.mxu0 %v5025
  %5161 = vmatprep.subr.bf16.mxu0 0
  %5162 = vmatpush1.bf16.msra.mxu0 %v5026
  %5163 = vmatprep.subr.bf16.mxu0 0
  %5164 = vmatpush1.bf16.msra.mxu0 %v5027
  %5165 = vmatprep.subr.bf16.mxu0 0
  %5166 = vmatpush1.bf16.msra.mxu0 %v5028
  %5167 = vmatprep.subr.bf16.mxu0 0
  %5168 = vmatpush1.bf16.msra.mxu0 %v5029
  %5169 = vmatprep.subr.bf16.mxu0 0
  %5170 = vmatpush1.bf16.msra.mxu0 %v5030
  %5171 = vmatprep.subr.bf16.mxu0 0
  %5172 = vmatpush1.bf16.msra.mxu0 %v5031
  %5173 = vmatprep.subr.bf16.mxu0 0
  %5174 = vmatpush1.bf16.msra.mxu0 %v5032
  %5175 = vmatprep.subr.bf16.mxu0 0
  %5176 = vmatpush1.bf16.msra.mxu0 %v5033
  %5177 = vmatprep.subr.bf16.mxu0 0
  %5178 = vmatpush1.bf16.msra.mxu0 %v5034
  %5179 = vmatprep.subr.bf16.mxu0 0
  %5180 = vmatpush1.bf16.msra.mxu0 %v5035
  %5181 = vmatprep.subr.bf16.mxu0 0
  %5182 = vmatpush1.bf16.msra.mxu0 %v5036
  %5183 = vmatprep.subr.bf16.mxu0 0
  %5184 = vmatpush1.bf16.msra.mxu0 %v5037
  %5185 = vmatprep.subr.bf16.mxu0 0
  %5186 = vmatpush1.bf16.msra.mxu0 %v5038
  %5187 = vmatprep.mubr.bf16.mxu0 %v4812
  %5188 = vmatmul.mubr.bf16.gmra.mrb[0].mxu0 %v4811
  %v5189 = vpop.f32.mrb[0].mxu0
  %v5190 = vadd.f32 %v4949, %v5189
  %v5191 = vpop.f32.mrb[0].mxu0
  %v5192 = vpop.f32.mrb[0].mxu0
  %v5193 = vadd.f32 %v4949, %v5192
  %v5194 = vpop.f32.mrb[0].mxu0
  %5195 = vmatprep.mubr.bf16.mxu0 %v4815
  %5196 = vmatmul.mubr.bf16.gmra.mrb[0].mxu0 %v4814
  %v5197 = vpop.f32.mrb[0].mxu0
  %v5198 = vadd.f32 %v4949, %v5197
  %v5199 = vpop.f32.mrb[0].mxu0
  %v5200 = vpop.f32.mrb[0].mxu0
  %v5201 = vadd.f32 %v4949, %v5200
  %v5202 = vpop.f32.mrb[0].mxu0
  %5203 = vmatprep.mubr.bf16.mxu0 %v4818
  %5204 = vmatmul.mubr.bf16.gmra.mrb[0].mxu0 %v4817
  %v5205 = vpop.f32.mrb[0].mxu0
  %v5206 = vadd.f32 %v4949, %v5205
  %v5207 = vpop.f32.mrb[0].mxu0
  %v5208 = vpop.f32.mrb[0].mxu0
  %v5209 = vadd.f32 %v4949, %v5208
  %v5210 = vpop.f32.mrb[0].mxu0
  %5211 = vmatprep.mubr.bf16.mxu0 %v4821
  %5212 = vmatmul.mubr.bf16.gmra.mrb[0].mxu0 %v4820
  %v5213 = vpop.f32.mrb[0].mxu0
  %v5214 = vadd.f32 %v4949, %v5213
  %v5215 = vpop.f32.mrb[0].mxu0
  %v5216 = vpop.f32.mrb[0].mxu0
  %v5217 = vadd.f32 %v4949, %v5216
  %v5218 = vpop.f32.mrb[0].mxu0
  %5219 = vmatprep.mubr.bf16.mxu0 %v4824
  %5220 = vmatmul.mubr.bf16.gmra.mrb[0].mxu0 %v4823
  %v5221 = vpop.f32.mrb[0].mxu0
  %v5222 = vadd.f32 %v4949, %v5221
  %v5223 = vpop.f32.mrb[0].mxu0
  %v5224 = vpop.f32.mrb[0].mxu0
  %v5225 = vadd.f32 %v4949, %v5224
  %v5226 = vpop.f32.mrb[0].mxu0
  %5227 = vmatprep.mubr.bf16.mxu0 %v4827
  %5228 = vmatmul.mubr.bf16.gmra.mrb[0].mxu0 %v4826
  %v5229 = vpop.f32.mrb[0].mxu0
  %v5230 = vadd.f32 %v4949, %v5229
  %v5231 = vpop.f32.mrb[0].mxu0
  %v5232 = vpop.f32.mrb[0].mxu0
  %v5233 = vadd.f32 %v4949, %v5232
  %v5234 = vpop.f32.mrb[0].mxu0
  %5235 = vmatprep.mubr.bf16.mxu0 %v4830
  %5236 = vmatmul.mubr.bf16.gmra.mrb[0].mxu0 %v4829
  %v5237 = vpop.f32.mrb[0].mxu0
  %v5238 = vadd.f32 %v4949, %v5237
  %v5239 = vpop.f32.mrb[0].mxu0
  %v5240 = vpop.f32.mrb[0].mxu0
  %v5241 = vadd.f32 %v4949, %v5240
  %v5242 = vpop.f32.mrb[0].mxu0
  %5243 = vmatprep.mubr.bf16.mxu0 %v4833
  %5244 = vmatmul.mubr.bf16.gmra.mrb[0].mxu0 %v4832
  %v5245 = vpop.f32.mrb[0].mxu0
  %v5246 = vadd.f32 %v4949, %v5245
  %v5247 = vpop.f32.mrb[0].mxu0
  %v5248 = vpop.f32.mrb[0].mxu0
  %v5249 = vadd.f32 %v4949, %v5248
  %v5250 = vpop.f32.mrb[0].mxu0
  %5251 = vmatprep.mubr.bf16.mxu0 %v4836
  %5252 = vmatmul.mubr.bf16.gmra.mrb[0].mxu0 %v4835
  %v5253 = vpop.f32.mrb[0].mxu0
  %v5254 = vadd.f32 %v4949, %v5253
  %v5255 = vpop.f32.mrb[0].mxu0
  %v5256 = vpop.f32.mrb[0].mxu0
  %v5257 = vadd.f32 %v4949, %v5256
  %v5258 = vpop.f32.mrb[0].mxu0
  %5259 = vmatprep.mubr.bf16.mxu0 %v4839
  %5260 = vmatmul.mubr.bf16.gmra.mrb[0].mxu0 %v4838
  %v5261 = vpop.f32.mrb[0].mxu0
  %v5262 = vadd.f32 %v4949, %v5261
  %v5263 = vpop.f32.mrb[0].mxu0
  %v5264 = vpop.f32.mrb[0].mxu0
  %v5265 = vadd.f32 %v4949, %v5264
  %v5266 = vpop.f32.mrb[0].mxu0
  %5267 = vmatprep.mubr.bf16.mxu0 %v4842
  %5268 = vmatmul.mubr.bf16.gmra.mrb[0].mxu0 %v4841
  %v5269 = vpop.f32.mrb[0].mxu0
  %v5270 = vadd.f32 %v4949, %v5269
  %v5271 = vpop.f32.mrb[0].mxu0
  %v5272 = vpop.f32.mrb[0].mxu0
  %v5273 = vadd.f32 %v4949, %v5272
  %v5274 = vpop.f32.mrb[0].mxu0
  %5275 = vmatprep.mubr.bf16.mxu0 %v4845
  %5276 = vmatmul.mubr.bf16.gmra.mrb[0].mxu0 %v4844
  %v5277 = vpop.f32.mrb[0].mxu0
  %v5278 = vadd.f32 %v4949, %v5277
  %v5279 = vpop.f32.mrb[0].mxu0
  %v5280 = vpop.f32.mrb[0].mxu0
  %v5281 = vadd.f32 %v4949, %v5280
  %v5282 = vpop.f32.mrb[0].mxu0
  %5283 = vmatprep.mubr.bf16.mxu0 %v4848
  %5284 = vmatmul.mubr.bf16.gmra.mrb[0].mxu0 %v4847
  %v5285 = vpop.f32.mrb[0].mxu0
  %v5286 = vadd.f32 %v4949, %v5285
  %v5287 = vpop.f32.mrb[0].mxu0
  %v5288 = vpop.f32.mrb[0].mxu0
  %v5289 = vadd.f32 %v4949, %v5288
  %v5290 = vpop.f32.mrb[0].mxu0
  %5291 = vmatprep.mubr.bf16.mxu0 %v4851
  %5292 = vmatmul.mubr.bf16.gmra.mrb[0].mxu0 %v4850
  %v5293 = vpop.f32.mrb[0].mxu0
  %v5294 = vadd.f32 %v4949, %v5293
  %v5295 = vpop.f32.mrb[0].mxu0
  %v5296 = vpop.f32.mrb[0].mxu0
  %v5297 = vadd.f32 %v4949, %v5296
  %v5298 = vpop.f32.mrb[0].mxu0
  %5299 = vmatprep.mubr.bf16.mxu0 %v4854
  %5300 = vmatmul.mubr.bf16.gmra.mrb[0].mxu0 %v4853
  %v5301 = vpop.f32.mrb[0].mxu0
  %v5302 = vadd.f32 %v4949, %v5301
  %v5303 = vpop.f32.mrb[0].mxu0
  %v5304 = vpop.f32.mrb[0].mxu0
  %v5305 = vadd.f32 %v4949, %v5304
  %v5306 = vpop.f32.mrb[0].mxu0
  %5307 = vmatprep.mubr.bf16.mxu0 %v4857
  %5308 = vmatmul.mubr.bf16.gmra.mrb[0].mxu0 %v4856
  %v5309 = vpop.f32.mrb[0].mxu0
  %v5310 = vadd.f32 %v4949, %v5309
  %v5311 = vpop.f32.mrb[0].mxu0
  %v5312 = vpop.f32.mrb[0].mxu0
  %v5313 = vadd.f32 %v4949, %v5312
  %v5314 = vpop.f32.mrb[0].mxu0
  %5315 = vmatprep.mubr.bf16.mxu0 %v4860
  %5316 = vmatmul.mubr.bf16.gmra.mrb[0].mxu0 %v4859
  %v5317 = vpop.f32.mrb[0].mxu0
  %v5318 = vadd.f32 %v4949, %v5317
  %v5319 = vpop.f32.mrb[0].mxu0
  %v5320 = vpop.f32.mrb[0].mxu0
  %v5321 = vadd.f32 %v4949, %v5320
  %v5322 = vpop.f32.mrb[0].mxu0
  %5323 = vmatprep.mubr.bf16.mxu0 %v4863
  %5324 = vmatmul.mubr.bf16.gmra.mrb[0].mxu0 %v4862
  %v5325 = vpop.f32.mrb[0].mxu0
  %v5326 = vadd.f32 %v4949, %v5325
  %v5327 = vpop.f32.mrb[0].mxu0
  %v5328 = vpop.f32.mrb[0].mxu0
  %v5329 = vadd.f32 %v4949, %v5328
  %v5330 = vpop.f32.mrb[0].mxu0
  %5331 = vmatprep.mubr.bf16.mxu0 %v4866
  %5332 = vmatmul.mubr.bf16.gmra.mrb[0].mxu0 %v4865
  %v5333 = vpop.f32.mrb[0].mxu0
  %v5334 = vadd.f32 %v4949, %v5333
  %v5335 = vpop.f32.mrb[0].mxu0
  %v5336 = vpop.f32.mrb[0].mxu0
  %v5337 = vadd.f32 %v4949, %v5336
  %v5338 = vpop.f32.mrb[0].mxu0
  %5339 = vmatprep.mubr.bf16.mxu0 %v4869
  %5340 = vmatmul.mubr.bf16.gmra.mrb[0].mxu0 %v4868
  %v5341 = vpop.f32.mrb[0].mxu0
  %v5342 = vadd.f32 %v4949, %v5341
  %v5343 = vpop.f32.mrb[0].mxu0
  %v5344 = vpop.f32.mrb[0].mxu0
  %v5345 = vadd.f32 %v4949, %v5344
  %v5346 = vpop.f32.mrb[0].mxu0
  %5347 = vmatprep.mubr.bf16.mxu0 %v4872
  %5348 = vmatmul.mubr.bf16.gmra.mrb[0].mxu0 %v4871
  %v5349 = vpop.f32.mrb[0].mxu0
  %v5350 = vadd.f32 %v4949, %v5349
  %v5351 = vpop.f32.mrb[0].mxu0
  %v5352 = vpop.f32.mrb[0].mxu0
  %v5353 = vadd.f32 %v4949, %v5352
  %v5354 = vpop.f32.mrb[0].mxu0
  %5355 = vmatprep.mubr.bf16.mxu0 %v4875
  %5356 = vmatmul.mubr.bf16.gmra.mrb[0].mxu0 %v4874
  %v5357 = vpop.f32.mrb[0].mxu0
  %v5358 = vadd.f32 %v4949, %v5357
  %v5359 = vpop.f32.mrb[0].mxu0
  %v5360 = vpop.f32.mrb[0].mxu0
  %v5361 = vadd.f32 %v4949, %v5360
  %v5362 = vpop.f32.mrb[0].mxu0
  %5363 = vmatprep.mubr.bf16.mxu0 %v4878
  %5364 = vmatmul.mubr.bf16.gmra.mrb[0].mxu0 %v4877
  %v5365 = vpop.f32.mrb[0].mxu0
  %v5366 = vadd.f32 %v4949, %v5365
  %v5367 = vpop.f32.mrb[0].mxu0
  %v5368 = vpop.f32.mrb[0].mxu0
  %v5369 = vadd.f32 %v4949, %v5368
  %v5370 = vpop.f32.mrb[0].mxu0
  %5371 = vmatprep.mubr.bf16.mxu0 %v4881
  %5372 = vmatmul.mubr.bf16.gmra.mrb[0].mxu0 %v4880
  %v5373 = vpop.f32.mrb[0].mxu0
  %v5374 = vadd.f32 %v4949, %v5373
  %v5375 = vpop.f32.mrb[0].mxu0
  %v5376 = vpop.f32.mrb[0].mxu0
  %v5377 = vadd.f32 %v4949, %v5376
  %v5378 = vpop.f32.mrb[0].mxu0
  %5379 = vmatprep.mubr.bf16.mxu0 %v4884
  %5380 = vmatmul.mubr.bf16.gmra.mrb[0].mxu0 %v4883
  %v5381 = vpop.f32.mrb[0].mxu0
  %v5382 = vadd.f32 %v4949, %v5381
  %v5383 = vpop.f32.mrb[0].mxu0
  %v5384 = vpop.f32.mrb[0].mxu0
  %v5385 = vadd.f32 %v4949, %v5384
  %v5386 = vpop.f32.mrb[0].mxu0
  %5387 = vmatprep.mubr.bf16.mxu0 %v4887
  %5388 = vmatmul.mubr.bf16.gmra.mrb[0].mxu0 %v4886
  %v5389 = vpop.f32.mrb[0].mxu0
  %v5390 = vadd.f32 %v4949, %v5389
  %v5391 = vpop.f32.mrb[0].mxu0
  %v5392 = vpop.f32.mrb[0].mxu0
  %v5393 = vadd.f32 %v4949, %v5392
  %v5394 = vpop.f32.mrb[0].mxu0
  %5395 = vmatprep.mubr.bf16.mxu0 %v4890
  %5396 = vmatmul.mubr.bf16.gmra.mrb[0].mxu0 %v4889
  %v5397 = vpop.f32.mrb[0].mxu0
  %v5398 = vadd.f32 %v4949, %v5397
  %v5399 = vpop.f32.mrb[0].mxu0
  %v5400 = vpop.f32.mrb[0].mxu0
  %v5401 = vadd.f32 %v4949, %v5400
  %v5402 = vpop.f32.mrb[0].mxu0
  %5403 = vmatprep.mubr.bf16.mxu0 %v4893
  %5404 = vmatmul.mubr.bf16.gmra.mrb[0].mxu0 %v4892
  %v5405 = vpop.f32.mrb[0].mxu0
  %v5406 = vadd.f32 %v4949, %v5405
  %v5407 = vpop.f32.mrb[0].mxu0
  %v5408 = vpop.f32.mrb[0].mxu0
  %v5409 = vadd.f32 %v4949, %v5408
  %v5410 = vpop.f32.mrb[0].mxu0
  %5411 = vmatprep.mubr.bf16.mxu0 %v4896
  %5412 = vmatmul.mubr.bf16.gmra.mrb[0].mxu0 %v4895
  %v5413 = vpop.f32.mrb[0].mxu0
  %v5414 = vadd.f32 %v4949, %v5413
  %v5415 = vpop.f32.mrb[0].mxu0
  %v5416 = vpop.f32.mrb[0].mxu0
  %v5417 = vadd.f32 %v4949, %v5416
  %v5418 = vpop.f32.mrb[0].mxu0
  %5419 = vmatprep.mubr.bf16.mxu0 %v4899
  %5420 = vmatmul.mubr.bf16.gmra.mrb[0].mxu0 %v4898
  %v5421 = vpop.f32.mrb[0].mxu0
  %v5422 = vadd.f32 %v4949, %v5421
  %v5423 = vpop.f32.mrb[0].mxu0
  %v5424 = vpop.f32.mrb[0].mxu0
  %v5425 = vadd.f32 %v4949, %v5424
  %v5426 = vpop.f32.mrb[0].mxu0
  %5427 = vmatprep.mubr.bf16.mxu0 %v4902
  %5428 = vmatmul.mubr.bf16.gmra.mrb[0].mxu0 %v4901
  %v5429 = vpop.f32.mrb[0].mxu0
  %v5430 = vadd.f32 %v4949, %v5429
  %v5431 = vpop.f32.mrb[0].mxu0
  %v5432 = vpop.f32.mrb[0].mxu0
  %v5433 = vadd.f32 %v4949, %v5432
  %v5434 = vpop.f32.mrb[0].mxu0
  %5435 = vmatprep.mubr.bf16.mxu0 %v4905
  %5436 = vmatmul.mubr.bf16.gmra.mrb[0].mxu0 %v4904
  %v5437 = vpop.f32.mrb[0].mxu0
  %v5438 = vadd.f32 %v4949, %v5437
  %v5439 = vpop.f32.mrb[0].mxu0
  %v5440 = vpop.f32.mrb[0].mxu0
  %v5441 = vadd.f32 %v4949, %v5440
  %v5442 = vpop.f32.mrb[0].mxu0
  %5443 = vdwg.mxu0
  %5444 = vmatprep.subr.bf16.mxu0 0
  %5445 = vmatpush1.bf16.msra.mxu0 %v5039
  %5446 = vmatprep.subr.bf16.mxu0 0
  %5447 = vmatpush1.bf16.msra.mxu0 %v5040
  %5448 = vmatprep.subr.bf16.mxu0 0
  %5449 = vmatpush1.bf16.msra.mxu0 0
  %5450 = vmatprep.subr.bf16.mxu0 0
  %5451 = vmatpush1.bf16.msra.mxu0 0
  %5452 = vmatprep.subr.bf16.mxu0 0
  %5453 = vmatpush1.bf16.msra.mxu0 0
  %5454 = vmatprep.subr.bf16.mxu0 0
  %5455 = vmatpush1.bf16.msra.mxu0 0
  %5456 = vmatprep.subr.bf16.mxu0 0
  %5457 = vmatpush1.bf16.msra.mxu0 0
  %5458 = vmatprep.subr.bf16.mxu0 0
  %5459 = vmatpush1.bf16.msra.mxu0 0
  %5460 = vmatprep.subr.bf16.mxu0 0
  %5461 = vmatpush1.bf16.msra.mxu0 0
  %5462 = vmatprep.subr.bf16.mxu0 0
  %5463 = vmatpush1.bf16.msra.mxu0 0
  %5464 = vmatprep.subr.bf16.mxu0 0
  %5465 = vmatpush1.bf16.msra.mxu0 0
  %5466 = vmatprep.subr.bf16.mxu0 0
  %5467 = vmatpush1.bf16.msra.mxu0 0
  %5468 = vmatprep.subr.bf16.mxu0 0
  %5469 = vmatpush1.bf16.msra.mxu0 0
  %5470 = vmatprep.subr.bf16.mxu0 0
  %5471 = vmatpush1.bf16.msra.mxu0 0
  %5472 = vmatprep.subr.bf16.mxu0 0
  %5473 = vmatpush1.bf16.msra.mxu0 0
  %5474 = vmatprep.subr.bf16.mxu0 0
  %5475 = vmatpush1.bf16.msra.mxu0 0
  %5476 = vmatprep.mubr.bf16.mxu0 0
  %5477 = vmatmul.mubr.bf16.gmra.mrb[0].mxu0 %v5060
  %v5478 = vpop.f32.mrb[0].mxu0
  %v5479 = vadd.f32 %v5190, %v5478
  %v5480 = vpop.f32.mrb[0].mxu0
  %v5481 = vpop.f32.mrb[0].mxu0
  %v5482 = vadd.f32 %v5193, %v5481
  %v5483 = vpop.f32.mrb[0].mxu0
  %5484 = vmatprep.mubr.bf16.mxu0 0
  %5485 = vmatmul.mubr.bf16.gmra.mrb[0].mxu0 %v5063
  %v5486 = vpop.f32.mrb[0].mxu0
  %v5487 = vadd.f32 %v5198, %v5486
  %v5488 = vpop.f32.mrb[0].mxu0
  %v5489 = vpop.f32.mrb[0].mxu0
  %v5490 = vadd.f32 %v5201, %v5489
  %v5491 = vpop.f32.mrb[0].mxu0
  %5492 = vmatprep.mubr.bf16.mxu0 0
  %5493 = vmatmul.mubr.bf16.gmra.mrb[0].mxu0 %v5066
  %v5494 = vpop.f32.mrb[0].mxu0
  %v5495 = vadd.f32 %v5206, %v5494
  %v5496 = vpop.f32.mrb[0].mxu0
  %v5497 = vpop.f32.mrb[0].mxu0
  %v5498 = vadd.f32 %v5209, %v5497
  %v5499 = vpop.f32.mrb[0].mxu0
  %5500 = vmatprep.mubr.bf16.mxu0 0
  %5501 = vmatmul.mubr.bf16.gmra.mrb[0].mxu0 %v5069
  %v5502 = vpop.f32.mrb[0].mxu0
  %v5503 = vadd.f32 %v5214, %v5502
  %v5504 = vpop.f32.mrb[0].mxu0
  %v5505 = vpop.f32.mrb[0].mxu0
  %v5506 = vadd.f32 %v5217, %v5505
  %v5507 = vpop.f32.mrb[0].mxu0
  %5508 = vmatprep.mubr.bf16.mxu0 0
  %5509 = vmatmul.mubr.bf16.gmra.mrb[0].mxu0 %v5072
  %v5510 = vpop.f32.mrb[0].mxu0
  %v5511 = vadd.f32 %v5222, %v5510
  %v5512 = vpop.f32.mrb[0].mxu0
  %v5513 = vpop.f32.mrb[0].mxu0
  %v5514 = vadd.f32 %v5225, %v5513
  %v5515 = vpop.f32.mrb[0].mxu0
  %5516 = vmatprep.mubr.bf16.mxu0 0
  %5517 = vmatmul.mubr.bf16.gmra.mrb[0].mxu0 %v5075
  %v5518 = vpop.f32.mrb[0].mxu0
  %v5519 = vadd.f32 %v5230, %v5518
  %v5520 = vpop.f32.mrb[0].mxu0
  %v5521 = vpop.f32.mrb[0].mxu0
  %v5522 = vadd.f32 %v5233, %v5521
  %v5523 = vpop.f32.mrb[0].mxu0
  %5524 = vmatprep.mubr.bf16.mxu0 0
  %5525 = vmatmul.mubr.bf16.gmra.mrb[0].mxu0 %v5078
  %v5526 = vpop.f32.mrb[0].mxu0
  %v5527 = vadd.f32 %v5238, %v5526
  %v5528 = vpop.f32.mrb[0].mxu0
  %v5529 = vpop.f32.mrb[0].mxu0
  %v5530 = vadd.f32 %v5241, %v5529
  %v5531 = vpop.f32.mrb[0].mxu0
  %5532 = vmatprep.mubr.bf16.mxu0 0
  %5533 = vmatmul.mubr.bf16.gmra.mrb[0].mxu0 %v5081
  %v5534 = vpop.f32.mrb[0].mxu0
  %v5535 = vadd.f32 %v5246, %v5534
  %v5536 = vpop.f32.mrb[0].mxu0
  %v5537 = vpop.f32.mrb[0].mxu0
  %v5538 = vadd.f32 %v5249, %v5537
  %v5539 = vpop.f32.mrb[0].mxu0
  %5540 = vmatprep.mubr.bf16.mxu0 0
  %5541 = vmatmul.mubr.bf16.gmra.mrb[0].mxu0 %v5084
  %v5542 = vpop.f32.mrb[0].mxu0
  %v5543 = vadd.f32 %v5254, %v5542
  %v5544 = vpop.f32.mrb[0].mxu0
  %v5545 = vpop.f32.mrb[0].mxu0
  %v5546 = vadd.f32 %v5257, %v5545
  %v5547 = vpop.f32.mrb[0].mxu0
  %5548 = vmatprep.mubr.bf16.mxu0 0
  %5549 = vmatmul.mubr.bf16.gmra.mrb[0].mxu0 %v5087
  %v5550 = vpop.f32.mrb[0].mxu0
  %v5551 = vadd.f32 %v5262, %v5550
  %v5552 = vpop.f32.mrb[0].mxu0
  %v5553 = vpop.f32.mrb[0].mxu0
  %v5554 = vadd.f32 %v5265, %v5553
  %v5555 = vpop.f32.mrb[0].mxu0
  %5556 = vmatprep.mubr.bf16.mxu0 0
  %5557 = vmatmul.mubr.bf16.gmra.mrb[0].mxu0 %v5090
  %v5558 = vpop.f32.mrb[0].mxu0
  %v5559 = vadd.f32 %v5270, %v5558
  %v5560 = vpop.f32.mrb[0].mxu0
  %v5561 = vpop.f32.mrb[0].mxu0
  %v5562 = vadd.f32 %v5273, %v5561
  %v5563 = vpop.f32.mrb[0].mxu0
  %5564 = vmatprep.mubr.bf16.mxu0 0
  %5565 = vmatmul.mubr.bf16.gmra.mrb[0].mxu0 %v5093
  %v5566 = vpop.f32.mrb[0].mxu0
  %v5567 = vadd.f32 %v5278, %v5566
  %v5568 = vpop.f32.mrb[0].mxu0
  %v5569 = vpop.f32.mrb[0].mxu0
  %v5570 = vadd.f32 %v5281, %v5569
  %v5571 = vpop.f32.mrb[0].mxu0
  %5572 = vmatprep.mubr.bf16.mxu0 0
  %5573 = vmatmul.mubr.bf16.gmra.mrb[0].mxu0 %v5096
  %v5574 = vpop.f32.mrb[0].mxu0
  %v5575 = vadd.f32 %v5286, %v5574
  %v5576 = vpop.f32.mrb[0].mxu0
  %v5577 = vpop.f32.mrb[0].mxu0
  %v5578 = vadd.f32 %v5289, %v5577
  %v5579 = vpop.f32.mrb[0].mxu0
  %5580 = vmatprep.mubr.bf16.mxu0 0
  %5581 = vmatmul.mubr.bf16.gmra.mrb[0].mxu0 %v5099
  %v5582 = vpop.f32.mrb[0].mxu0
  %v5583 = vadd.f32 %v5294, %v5582
  %v5584 = vpop.f32.mrb[0].mxu0
  %v5585 = vpop.f32.mrb[0].mxu0
  %v5586 = vadd.f32 %v5297, %v5585
  %v5587 = vpop.f32.mrb[0].mxu0
  %5588 = vmatprep.mubr.bf16.mxu0 0
  %5589 = vmatmul.mubr.bf16.gmra.mrb[0].mxu0 %v5102
  %v5590 = vpop.f32.mrb[0].mxu0
  %v5591 = vadd.f32 %v5302, %v5590
  %v5592 = vpop.f32.mrb[0].mxu0
  %v5593 = vpop.f32.mrb[0].mxu0
  %v5594 = vadd.f32 %v5305, %v5593
  %v5595 = vpop.f32.mrb[0].mxu0
  %5596 = vmatprep.mubr.bf16.mxu0 0
  %5597 = vmatmul.mubr.bf16.gmra.mrb[0].mxu0 %v5105
  %v5598 = vpop.f32.mrb[0].mxu0
  %v5599 = vadd.f32 %v5310, %v5598
  %v5600 = vpop.f32.mrb[0].mxu0
  %v5601 = vpop.f32.mrb[0].mxu0
  %v5602 = vadd.f32 %v5313, %v5601
  %v5603 = vpop.f32.mrb[0].mxu0
  %5604 = vmatprep.mubr.bf16.mxu0 0
  %5605 = vmatmul.mubr.bf16.gmra.mrb[0].mxu0 %v5108
  %v5606 = vpop.f32.mrb[0].mxu0
  %v5607 = vadd.f32 %v5318, %v5606
  %v5608 = vpop.f32.mrb[0].mxu0
  %v5609 = vpop.f32.mrb[0].mxu0
  %v5610 = vadd.f32 %v5321, %v5609
  %v5611 = vpop.f32.mrb[0].mxu0
  %5612 = vmatprep.mubr.bf16.mxu0 0
  %5613 = vmatmul.mubr.bf16.gmra.mrb[0].mxu0 %v5111
  %v5614 = vpop.f32.mrb[0].mxu0
  %v5615 = vadd.f32 %v5326, %v5614
  %v5616 = vpop.f32.mrb[0].mxu0
  %v5617 = vpop.f32.mrb[0].mxu0
  %v5618 = vadd.f32 %v5329, %v5617
  %v5619 = vpop.f32.mrb[0].mxu0
  %5620 = vmatprep.mubr.bf16.mxu0 0
  %5621 = vmatmul.mubr.bf16.gmra.mrb[0].mxu0 %v5114
  %v5622 = vpop.f32.mrb[0].mxu0
  %v5623 = vadd.f32 %v5334, %v5622
  %v5624 = vpop.f32.mrb[0].mxu0
  %v5625 = vpop.f32.mrb[0].mxu0
  %v5626 = vadd.f32 %v5337, %v5625
  %v5627 = vpop.f32.mrb[0].mxu0
  %5628 = vmatprep.mubr.bf16.mxu0 0
  %5629 = vmatmul.mubr.bf16.gmra.mrb[0].mxu0 %v5117
  %v5630 = vpop.f32.mrb[0].mxu0
  %v5631 = vadd.f32 %v5342, %v5630
  %v5632 = vpop.f32.mrb[0].mxu0
  %v5633 = vpop.f32.mrb[0].mxu0
  %v5634 = vadd.f32 %v5345, %v5633
  %v5635 = vpop.f32.mrb[0].mxu0
  %5636 = vmatprep.mubr.bf16.mxu0 0
  %5637 = vmatmul.mubr.bf16.gmra.mrb[0].mxu0 %v5120
  %v5638 = vpop.f32.mrb[0].mxu0
  %v5639 = vadd.f32 %v5350, %v5638
  %v5640 = vpop.f32.mrb[0].mxu0
  %v5641 = vpop.f32.mrb[0].mxu0
  %v5642 = vadd.f32 %v5353, %v5641
  %v5643 = vpop.f32.mrb[0].mxu0
  %5644 = vmatprep.mubr.bf16.mxu0 0
  %5645 = vmatmul.mubr.bf16.gmra.mrb[0].mxu0 %v5123
  %v5646 = vpop.f32.mrb[0].mxu0
  %v5647 = vadd.f32 %v5358, %v5646
  %v5648 = vpop.f32.mrb[0].mxu0
  %v5649 = vpop.f32.mrb[0].mxu0
  %v5650 = vadd.f32 %v5361, %v5649
  %v5651 = vpop.f32.mrb[0].mxu0
  %5652 = vmatprep.mubr.bf16.mxu0 0
  %5653 = vmatmul.mubr.bf16.gmra.mrb[0].mxu0 %v5126
  %v5654 = vpop.f32.mrb[0].mxu0
  %v5655 = vadd.f32 %v5366, %v5654
  %v5656 = vpop.f32.mrb[0].mxu0
  %v5657 = vpop.f32.mrb[0].mxu0
  %v5658 = vadd.f32 %v5369, %v5657
  %v5659 = vpop.f32.mrb[0].mxu0
  %5660 = vmatprep.mubr.bf16.mxu0 0
  %5661 = vmatmul.mubr.bf16.gmra.mrb[0].mxu0 %v5129
  %v5662 = vpop.f32.mrb[0].mxu0
  %v5663 = vadd.f32 %v5374, %v5662
  %v5664 = vpop.f32.mrb[0].mxu0
  %v5665 = vpop.f32.mrb[0].mxu0
  %v5666 = vadd.f32 %v5377, %v5665
  %v5667 = vpop.f32.mrb[0].mxu0
  %5668 = vmatprep.mubr.bf16.mxu0 0
  %5669 = vmatmul.mubr.bf16.gmra.mrb[0].mxu0 %v5132
  %v5670 = vpop.f32.mrb[0].mxu0
  %v5671 = vadd.f32 %v5382, %v5670
  %v5672 = vpop.f32.mrb[0].mxu0
  %v5673 = vpop.f32.mrb[0].mxu0
  %v5674 = vadd.f32 %v5385, %v5673
  %v5675 = vpop.f32.mrb[0].mxu0
  %5676 = vmatprep.mubr.bf16.mxu0 0
  %5677 = vmatmul.mubr.bf16.gmra.mrb[0].mxu0 %v5135
  %v5678 = vpop.f32.mrb[0].mxu0
  %v5679 = vadd.f32 %v5390, %v5678
  %v5680 = vpop.f32.mrb[0].mxu0
  %v5681 = vpop.f32.mrb[0].mxu0
  %v5682 = vadd.f32 %v5393, %v5681
  %v5683 = vpop.f32.mrb[0].mxu0
  %5684 = vmatprep.mubr.bf16.mxu0 0
  %5685 = vmatmul.mubr.bf16.gmra.mrb[0].mxu0 %v5138
  %v5686 = vpop.f32.mrb[0].mxu0
  %v5687 = vadd.f32 %v5398, %v5686
  %v5688 = vpop.f32.mrb[0].mxu0
  %v5689 = vpop.f32.mrb[0].mxu0
  %v5690 = vadd.f32 %v5401, %v5689
  %v5691 = vpop.f32.mrb[0].mxu0
  %5692 = vmatprep.mubr.bf16.mxu0 0
  %5693 = vmatmul.mubr.bf16.gmra.mrb[0].mxu0 %v5141
  %v5694 = vpop.f32.mrb[0].mxu0
  %v5695 = vadd.f32 %v5406, %v5694
  %v5696 = vpop.f32.mrb[0].mxu0
  %v5697 = vpop.f32.mrb[0].mxu0
  %v5698 = vadd.f32 %v5409, %v5697
  %v5699 = vpop.f32.mrb[0].mxu0
  %5700 = vmatprep.mubr.bf16.mxu0 0
  %5701 = vmatmul.mubr.bf16.gmra.mrb[0].mxu0 %v5144
  %v5702 = vpop.f32.mrb[0].mxu0
  %v5703 = vadd.f32 %v5414, %v5702
  %v5704 = vpop.f32.mrb[0].mxu0
  %v5705 = vpop.f32.mrb[0].mxu0
  %v5706 = vadd.f32 %v5417, %v5705
  %v5707 = vpop.f32.mrb[0].mxu0
  %5708 = vmatprep.mubr.bf16.mxu0 0
  %5709 = vmatmul.mubr.bf16.gmra.mrb[0].mxu0 %v5147
  %v5710 = vpop.f32.mrb[0].mxu0
  %v5711 = vadd.f32 %v5422, %v5710
  %v5712 = vpop.f32.mrb[0].mxu0
  %v5713 = vpop.f32.mrb[0].mxu0
  %v5714 = vadd.f32 %v5425, %v5713
  %v5715 = vpop.f32.mrb[0].mxu0
  %5716 = vmatprep.mubr.bf16.mxu0 0
  %5717 = vmatmul.mubr.bf16.gmra.mrb[0].mxu0 %v5150
  %v5718 = vpop.f32.mrb[0].mxu0
  %v5719 = vadd.f32 %v5430, %v5718
  %v5720 = vpop.f32.mrb[0].mxu0
  %v5721 = vpop.f32.mrb[0].mxu0
  %v5722 = vadd.f32 %v5433, %v5721
  %v5723 = vpop.f32.mrb[0].mxu0
  %5724 = vmatprep.mubr.bf16.mxu0 0
  %5725 = vmatmul.mubr.bf16.gmra.mrb[0].mxu0 %v5153
  %v5726 = vpop.f32.mrb[0].mxu0
  %v5727 = vadd.f32 %v5438, %v5726
  %v5728 = vpop.f32.mrb[0].mxu0
  %v5729 = vpop.f32.mrb[0].mxu0
  %v5730 = vadd.f32 %v5441, %v5729
  %v5731 = vpop.f32.mrb[0].mxu0
  %5732 = vdwg.mxu0
  %v5733 = vmax.f32 %v5479, 0.0
  %v5734 = vmax.f32 %v5482, 0.0
  %v5735 = vmax.f32 %v5487, 0.0
  %v5736 = vmax.f32 %v5490, 0.0
  %v5737 = vmax.f32 %v5495, 0.0
  %v5738 = vmax.f32 %v5498, 0.0
  %v5739 = vmax.f32 %v5503, 0.0
  %v5740 = vmax.f32 %v5506, 0.0
  %v5741 = vmax.f32 %v5511, 0.0
  %v5742 = vmax.f32 %v5514, 0.0
  %v5743 = vmax.f32 %v5519, 0.0
  %v5744 = vmax.f32 %v5522, 0.0
  %v5745 = vmax.f32 %v5527, 0.0
  %v5746 = vmax.f32 %v5530, 0.0
  %v5747 = vmax.f32 %v5535, 0.0
  %v5748 = vmax.f32 %v5538, 0.0
  %v5749 = vmax.f32 %v5543, 0.0
  %v5750 = vmax.f32 %v5546, 0.0
  %v5751 = vmax.f32 %v5551, 0.0
  %v5752 = vmax.f32 %v5554, 0.0
  %v5753 = vmax.f32 %v5559, 0.0
  %v5754 = vmax.f32 %v5562, 0.0
  %v5755 = vmax.f32 %v5567, 0.0
  %v5756 = vmax.f32 %v5570, 0.0
  %v5757 = vmax.f32 %v5575, 0.0
  %v5758 = vmax.f32 %v5578, 0.0
  %v5759 = vmax.f32 %v5583, 0.0
  %v5760 = vmax.f32 %v5586, 0.0
  %v5761 = vmax.f32 %v5591, 0.0
  %v5762 = vmax.f32 %v5594, 0.0
  %v5763 = vmax.f32 %v5599, 0.0
  %v5764 = vmax.f32 %v5602, 0.0
  %v5765 = vmax.f32 %v5607, 0.0
  %v5766 = vmax.f32 %v5610, 0.0
  %v5767 = vmax.f32 %v5615, 0.0
  %v5768 = vmax.f32 %v5618, 0.0
  %v5769 = vmax.f32 %v5623, 0.0
  %v5770 = vmax.f32 %v5626, 0.0
  %v5771 = vmax.f32 %v5631, 0.0
  %v5772 = vmax.f32 %v5634, 0.0
  %v5773 = vmax.f32 %v5639, 0.0
  %v5774 = vmax.f32 %v5642, 0.0
  %v5775 = vmax.f32 %v5647, 0.0
  %v5776 = vmax.f32 %v5650, 0.0
  %v5777 = vmax.f32 %v5655, 0.0
  %v5778 = vmax.f32 %v5658, 0.0
  %v5779 = vmax.f32 %v5663, 0.0
  %v5780 = vmax.f32 %v5666, 0.0
  %v5781 = vmax.f32 %v5671, 0.0
  %v5782 = vmax.f32 %v5674, 0.0
  %v5783 = vmax.f32 %v5679, 0.0
  %v5784 = vmax.f32 %v5682, 0.0
  %v5785 = vmax.f32 %v5687, 0.0
  %v5786 = vmax.f32 %v5690, 0.0
  %v5787 = vmax.f32 %v5695, 0.0
  %v5788 = vmax.f32 %v5698, 0.0
  %v5789 = vmax.f32 %v5703, 0.0
  %v5790 = vmax.f32 %v5706, 0.0
  %v5791 = vmax.f32 %v5711, 0.0
  %v5792 = vmax.f32 %v5714, 0.0
  %v5793 = vmax.f32 %v5719, 0.0
  %v5794 = vmax.f32 %v5722, 0.0
  %v5795 = vmax.f32 %v5727, 0.0
  %v5796 = vmax.f32 %v5730, 0.0
  %v5797 = vsel %vm30, %v5733, 0.0
  %v5798 = vsel %vm30, %v5734, 0.0
  %v5799 = vadd.f32 %v5797, %v5798
  %v5800 = vsel %vm30, %v5735, 0.0
  %v5801 = vadd.f32 %v5799, %v5800
  %v5802 = vsel %vm30, %v5736, 0.0
  %v5803 = vadd.f32 %v5801, %v5802
  %v5804 = vsel %vm30, %v5737, 0.0
  %v5805 = vadd.f32 %v5803, %v5804
  %v5806 = vsel %vm30, %v5738, 0.0
  %v5807 = vadd.f32 %v5805, %v5806
  %v5808 = vsel %vm30, %v5739, 0.0
  %v5809 = vadd.f32 %v5807, %v5808
  %v5810 = vsel %vm30, %v5740, 0.0
  %v5811 = vadd.f32 %v5809, %v5810
  %v5812 = vsel %vm30, %v5741, 0.0
  %v5813 = vadd.f32 %v5811, %v5812
  %v5814 = vsel %vm30, %v5742, 0.0
  %v5815 = vadd.f32 %v5813, %v5814
  %v5816 = vsel %vm30, %v5743, 0.0
  %v5817 = vadd.f32 %v5815, %v5816
  %v5818 = vsel %vm30, %v5744, 0.0
  %v5819 = vadd.f32 %v5817, %v5818
  %v5820 = vsel %vm30, %v5745, 0.0
  %v5821 = vadd.f32 %v5819, %v5820
  %v5822 = vsel %vm30, %v5746, 0.0
  %v5823 = vadd.f32 %v5821, %v5822
  %v5824 = vsel %vm30, %v5747, 0.0
  %v5825 = vadd.f32 %v5823, %v5824
  %v5826 = vsel %vm30, %v5748, 0.0
  %v5827 = vadd.f32 %v5825, %v5826
  %v5828 = vsel %vm30, %v5749, 0.0
  %v5829 = vadd.f32 %v5827, %v5828
  %v5830 = vsel %vm30, %v5750, 0.0
  %v5831 = vadd.f32 %v5829, %v5830
  %v5832 = vsel %vm30, %v5751, 0.0
  %v5833 = vadd.f32 %v5831, %v5832
  %v5834 = vsel %vm30, %v5752, 0.0
  %v5835 = vadd.f32 %v5833, %v5834
  %v5836 = vsel %vm30, %v5753, 0.0
  %v5837 = vadd.f32 %v5835, %v5836
  %v5838 = vsel %vm30, %v5754, 0.0
  %v5839 = vadd.f32 %v5837, %v5838
  %v5840 = vsel %vm30, %v5755, 0.0
  %v5841 = vadd.f32 %v5839, %v5840
  %v5842 = vsel %vm30, %v5756, 0.0
  %v5843 = vadd.f32 %v5841, %v5842
  %v5844 = vsel %vm30, %v5757, 0.0
  %v5845 = vadd.f32 %v5843, %v5844
  %v5846 = vsel %vm30, %v5758, 0.0
  %v5847 = vadd.f32 %v5845, %v5846
  %v5848 = vsel %vm30, %v5759, 0.0
  %v5849 = vadd.f32 %v5847, %v5848
  %v5850 = vsel %vm30, %v5760, 0.0
  %v5851 = vadd.f32 %v5849, %v5850
  %v5852 = vsel %vm30, %v5761, 0.0
  %v5853 = vadd.f32 %v5851, %v5852
  %v5854 = vsel %vm30, %v5762, 0.0
  %v5855 = vadd.f32 %v5853, %v5854
  %v5856 = vsel %vm30, %v5763, 0.0
  %v5857 = vadd.f32 %v5855, %v5856
  %v5858 = vsel %vm30, %v5764, 0.0
  %v5859 = vadd.f32 %v5857, %v5858
  %v5860 = vsel %vm30, %v5765, 0.0
  %v5861 = vadd.f32 %v5859, %v5860
  %v5862 = vsel %vm30, %v5766, 0.0
  %v5863 = vadd.f32 %v5861, %v5862
  %v5864 = vsel %vm30, %v5767, 0.0
  %v5865 = vadd.f32 %v5863, %v5864
  %v5866 = vsel %vm30, %v5768, 0.0
  %v5867 = vadd.f32 %v5865, %v5866
  %v5868 = vsel %vm30, %v5769, 0.0
  %v5869 = vadd.f32 %v5867, %v5868
  %v5870 = vsel %vm30, %v5770, 0.0
  %v5871 = vadd.f32 %v5869, %v5870
  %v5872 = vsel %vm30, %v5771, 0.0
  %v5873 = vadd.f32 %v5871, %v5872
  %v5874 = vsel %vm30, %v5772, 0.0
  %v5875 = vadd.f32 %v5873, %v5874
  %v5876 = vsel %vm30, %v5773, 0.0
  %v5877 = vadd.f32 %v5875, %v5876
  %v5878 = vsel %vm30, %v5774, 0.0
  %v5879 = vadd.f32 %v5877, %v5878
  %v5880 = vsel %vm30, %v5775, 0.0
  %v5881 = vadd.f32 %v5879, %v5880
  %v5882 = vsel %vm30, %v5776, 0.0
  %v5883 = vadd.f32 %v5881, %v5882
  %v5884 = vsel %vm30, %v5777, 0.0
  %v5885 = vadd.f32 %v5883, %v5884
  %v5886 = vsel %vm30, %v5778, 0.0
  %v5887 = vadd.f32 %v5885, %v5886
  %v5888 = vsel %vm30, %v5779, 0.0
  %v5889 = vadd.f32 %v5887, %v5888
  %v5890 = vsel %vm30, %v5780, 0.0
  %v5891 = vadd.f32 %v5889, %v5890
  %v5892 = vsel %vm30, %v5781, 0.0
  %v5893 = vadd.f32 %v5891, %v5892
  %v5894 = vsel %vm30, %v5782, 0.0
  %v5895 = vadd.f32 %v5893, %v5894
  %v5896 = vsel %vm30, %v5783, 0.0
  %v5897 = vadd.f32 %v5895, %v5896
  %v5898 = vsel %vm30, %v5784, 0.0
  %v5899 = vadd.f32 %v5897, %v5898
  %v5900 = vsel %vm30, %v5785, 0.0
  %v5901 = vadd.f32 %v5899, %v5900
  %v5902 = vsel %vm30, %v5786, 0.0
  %v5903 = vadd.f32 %v5901, %v5902
  %v5904 = vsel %vm30, %v5787, 0.0
  %v5905 = vadd.f32 %v5903, %v5904
  %v5906 = vsel %vm30, %v5788, 0.0
  %v5907 = vadd.f32 %v5905, %v5906
  %v5908 = vsel %vm30, %v5789, 0.0
  %v5909 = vadd.f32 %v5907, %v5908
  %v5910 = vsel %vm30, %v5790, 0.0
  %v5911 = vadd.f32 %v5909, %v5910
  %v5912 = vsel %vm30, %v5791, 0.0
  %v5913 = vadd.f32 %v5911, %v5912
  %v5914 = vsel %vm30, %v5792, 0.0
  %v5915 = vadd.f32 %v5913, %v5914
  %v5916 = vsel %vm30, %v5793, 0.0
  %v5917 = vadd.f32 %v5915, %v5916
  %v5918 = vsel %vm30, %v5794, 0.0
  %v5919 = vadd.f32 %v5917, %v5918
  %v5920 = vsel %vm30, %v5795, 0.0
  %v5921 = vadd.f32 %v5919, %v5920
  %v5922 = vsel %vm30, %v5796, 0.0
  %v5923 = vadd.f32 %v5921, %v5922
  %v5924 = vrot.slane %v5923, 4
  %v5925 = vadd.f32 %v5923, %v5924
  %v5926 = vrot.slane %v5925, 2
  %v5927 = vadd.f32 %v5925, %v5926
  %v5928 = vrot.slane %v5927, 1
  %v5929 = vadd.f32 %v5927, %v5928
  %v5930 = vmul.f32 %v5733, %v5733
  %v5931 = vmul.f32 %v5734, %v5734
  %v5932 = vmul.f32 %v5735, %v5735
  %v5933 = vmul.f32 %v5736, %v5736
  %v5934 = vmul.f32 %v5737, %v5737
  %v5935 = vmul.f32 %v5738, %v5738
  %v5936 = vmul.f32 %v5739, %v5739
  %v5937 = vmul.f32 %v5740, %v5740
  %v5938 = vmul.f32 %v5741, %v5741
  %v5939 = vmul.f32 %v5742, %v5742
  %v5940 = vmul.f32 %v5743, %v5743
  %v5941 = vmul.f32 %v5744, %v5744
  %v5942 = vmul.f32 %v5745, %v5745
  %v5943 = vmul.f32 %v5746, %v5746
  %v5944 = vmul.f32 %v5747, %v5747
  %v5945 = vmul.f32 %v5748, %v5748
  %v5946 = vmul.f32 %v5749, %v5749
  %v5947 = vmul.f32 %v5750, %v5750
  %v5948 = vmul.f32 %v5751, %v5751
  %v5949 = vmul.f32 %v5752, %v5752
  %v5950 = vmul.f32 %v5753, %v5753
  %v5951 = vmul.f32 %v5754, %v5754
  %v5952 = vmul.f32 %v5755, %v5755
  %v5953 = vmul.f32 %v5756, %v5756
  %v5954 = vmul.f32 %v5757, %v5757
  %v5955 = vmul.f32 %v5758, %v5758
  %v5956 = vmul.f32 %v5759, %v5759
  %v5957 = vmul.f32 %v5760, %v5760
  %v5958 = vmul.f32 %v5761, %v5761
  %v5959 = vmul.f32 %v5762, %v5762
  %v5960 = vmul.f32 %v5763, %v5763
  %v5961 = vmul.f32 %v5764, %v5764
  %v5962 = vmul.f32 %v5765, %v5765
  %v5963 = vmul.f32 %v5766, %v5766
  %v5964 = vmul.f32 %v5767, %v5767
  %v5965 = vmul.f32 %v5768, %v5768
  %v5966 = vmul.f32 %v5769, %v5769
  %v5967 = vmul.f32 %v5770, %v5770
  %v5968 = vmul.f32 %v5771, %v5771
  %v5969 = vmul.f32 %v5772, %v5772
  %v5970 = vmul.f32 %v5773, %v5773
  %v5971 = vmul.f32 %v5774, %v5774
  %v5972 = vmul.f32 %v5775, %v5775
  %v5973 = vmul.f32 %v5776, %v5776
  %v5974 = vmul.f32 %v5777, %v5777
  %v5975 = vmul.f32 %v5778, %v5778
  %v5976 = vmul.f32 %v5779, %v5779
  %v5977 = vmul.f32 %v5780, %v5780
  %v5978 = vmul.f32 %v5781, %v5781
  %v5979 = vmul.f32 %v5782, %v5782
  %v5980 = vmul.f32 %v5783, %v5783
  %v5981 = vmul.f32 %v5784, %v5784
  %v5982 = vmul.f32 %v5785, %v5785
  %v5983 = vmul.f32 %v5786, %v5786
  %v5984 = vmul.f32 %v5787, %v5787
  %v5985 = vmul.f32 %v5788, %v5788
  %v5986 = vmul.f32 %v5789, %v5789
  %v5987 = vmul.f32 %v5790, %v5790
  %v5988 = vmul.f32 %v5791, %v5791
  %v5989 = vmul.f32 %v5792, %v5792
  %v5990 = vmul.f32 %v5793, %v5793
  %v5991 = vmul.f32 %v5794, %v5794
  %v5992 = vmul.f32 %v5795, %v5795
  %v5993 = vmul.f32 %v5796, %v5796
  %v5994 = vsel %vm30, %v5930, 0.0
  %v5995 = vsel %vm30, %v5931, 0.0
  %v5996 = vadd.f32 %v5994, %v5995
  %v5997 = vsel %vm30, %v5932, 0.0
  %v5998 = vadd.f32 %v5996, %v5997
  %v5999 = vsel %vm30, %v5933, 0.0
  %v6000 = vadd.f32 %v5998, %v5999
  %v6001 = vsel %vm30, %v5934, 0.0
  %v6002 = vadd.f32 %v6000, %v6001
  %v6003 = vsel %vm30, %v5935, 0.0
  %v6004 = vadd.f32 %v6002, %v6003
  %v6005 = vsel %vm30, %v5936, 0.0
  %v6006 = vadd.f32 %v6004, %v6005
  %v6007 = vsel %vm30, %v5937, 0.0
  %v6008 = vadd.f32 %v6006, %v6007
  %v6009 = vsel %vm30, %v5938, 0.0
  %v6010 = vadd.f32 %v6008, %v6009
  %v6011 = vsel %vm30, %v5939, 0.0
  %v6012 = vadd.f32 %v6010, %v6011
  %v6013 = vsel %vm30, %v5940, 0.0
  %v6014 = vadd.f32 %v6012, %v6013
  %v6015 = vsel %vm30, %v5941, 0.0
  %v6016 = vadd.f32 %v6014, %v6015
  %v6017 = vsel %vm30, %v5942, 0.0
  %v6018 = vadd.f32 %v6016, %v6017
  %v6019 = vsel %vm30, %v5943, 0.0
  %v6020 = vadd.f32 %v6018, %v6019
  %v6021 = vsel %vm30, %v5944, 0.0
  %v6022 = vadd.f32 %v6020, %v6021
  %v6023 = vsel %vm30, %v5945, 0.0
  %v6024 = vadd.f32 %v6022, %v6023
  %v6025 = vsel %vm30, %v5946, 0.0
  %v6026 = vadd.f32 %v6024, %v6025
  %v6027 = vsel %vm30, %v5947, 0.0
  %v6028 = vadd.f32 %v6026, %v6027
  %v6029 = vsel %vm30, %v5948, 0.0
  %v6030 = vadd.f32 %v6028, %v6029
  %v6031 = vsel %vm30, %v5949, 0.0
  %v6032 = vadd.f32 %v6030, %v6031
  %v6033 = vsel %vm30, %v5950, 0.0
  %v6034 = vadd.f32 %v6032, %v6033
  %v6035 = vsel %vm30, %v5951, 0.0
  %v6036 = vadd.f32 %v6034, %v6035
  %v6037 = vsel %vm30, %v5952, 0.0
  %v6038 = vadd.f32 %v6036, %v6037
  %v6039 = vsel %vm30, %v5953, 0.0
  %v6040 = vadd.f32 %v6038, %v6039
  %v6041 = vsel %vm30, %v5954, 0.0
  %v6042 = vadd.f32 %v6040, %v6041
  %v6043 = vsel %vm30, %v5955, 0.0
  %v6044 = vadd.f32 %v6042, %v6043
  %v6045 = vsel %vm30, %v5956, 0.0
  %v6046 = vadd.f32 %v6044, %v6045
  %v6047 = vsel %vm30, %v5957, 0.0
  %v6048 = vadd.f32 %v6046, %v6047
  %v6049 = vsel %vm30, %v5958, 0.0
  %v6050 = vadd.f32 %v6048, %v6049
  %v6051 = vsel %vm30, %v5959, 0.0
  %v6052 = vadd.f32 %v6050, %v6051
  %v6053 = vsel %vm30, %v5960, 0.0
  %v6054 = vadd.f32 %v6052, %v6053
  %v6055 = vsel %vm30, %v5961, 0.0
  %v6056 = vadd.f32 %v6054, %v6055
  %v6057 = vsel %vm30, %v5962, 0.0
  %v6058 = vadd.f32 %v6056, %v6057
  %v6059 = vsel %vm30, %v5963, 0.0
  %v6060 = vadd.f32 %v6058, %v6059
  %v6061 = vsel %vm30, %v5964, 0.0
  %v6062 = vadd.f32 %v6060, %v6061
  %v6063 = vsel %vm30, %v5965, 0.0
  %v6064 = vadd.f32 %v6062, %v6063
  %v6065 = vsel %vm30, %v5966, 0.0
  %v6066 = vadd.f32 %v6064, %v6065
  %v6067 = vsel %vm30, %v5967, 0.0
  %v6068 = vadd.f32 %v6066, %v6067
  %v6069 = vsel %vm30, %v5968, 0.0
  %v6070 = vadd.f32 %v6068, %v6069
  %v6071 = vsel %vm30, %v5969, 0.0
  %v6072 = vadd.f32 %v6070, %v6071
  %v6073 = vsel %vm30, %v5970, 0.0
  %v6074 = vadd.f32 %v6072, %v6073
  %v6075 = vsel %vm30, %v5971, 0.0
  %v6076 = vadd.f32 %v6074, %v6075
  %v6077 = vsel %vm30, %v5972, 0.0
  %v6078 = vadd.f32 %v6076, %v6077
  %v6079 = vsel %vm30, %v5973, 0.0
  %v6080 = vadd.f32 %v6078, %v6079
  %v6081 = vsel %vm30, %v5974, 0.0
  %v6082 = vadd.f32 %v6080, %v6081
  %v6083 = vsel %vm30, %v5975, 0.0
  %v6084 = vadd.f32 %v6082, %v6083
  %v6085 = vsel %vm30, %v5976, 0.0
  %v6086 = vadd.f32 %v6084, %v6085
  %v6087 = vsel %vm30, %v5977, 0.0
  %v6088 = vadd.f32 %v6086, %v6087
  %v6089 = vsel %vm30, %v5978, 0.0
  %v6090 = vadd.f32 %v6088, %v6089
  %v6091 = vsel %vm30, %v5979, 0.0
  %v6092 = vadd.f32 %v6090, %v6091
  %v6093 = vsel %vm30, %v5980, 0.0
  %v6094 = vadd.f32 %v6092, %v6093
  %v6095 = vsel %vm30, %v5981, 0.0
  %v6096 = vadd.f32 %v6094, %v6095
  %v6097 = vsel %vm30, %v5982, 0.0
  %v6098 = vadd.f32 %v6096, %v6097
  %v6099 = vsel %vm30, %v5983, 0.0
  %v6100 = vadd.f32 %v6098, %v6099
  %v6101 = vsel %vm30, %v5984, 0.0
  %v6102 = vadd.f32 %v6100, %v6101
  %v6103 = vsel %vm30, %v5985, 0.0
  %v6104 = vadd.f32 %v6102, %v6103
  %v6105 = vsel %vm30, %v5986, 0.0
  %v6106 = vadd.f32 %v6104, %v6105
  %v6107 = vsel %vm30, %v5987, 0.0
  %v6108 = vadd.f32 %v6106, %v6107
  %v6109 = vsel %vm30, %v5988, 0.0
  %v6110 = vadd.f32 %v6108, %v6109
  %v6111 = vsel %vm30, %v5989, 0.0
  %v6112 = vadd.f32 %v6110, %v6111
  %v6113 = vsel %vm30, %v5990, 0.0
  %v6114 = vadd.f32 %v6112, %v6113
  %v6115 = vsel %vm30, %v5991, 0.0
  %v6116 = vadd.f32 %v6114, %v6115
  %v6117 = vsel %vm30, %v5992, 0.0
  %v6118 = vadd.f32 %v6116, %v6117
  %v6119 = vsel %vm30, %v5993, 0.0
  %v6120 = vadd.f32 %v6118, %v6119
  %v6121 = vrot.slane %v6120, 4
  %v6122 = vadd.f32 %v6120, %v6121
  %v6123 = vrot.slane %v6122, 2
  %v6124 = vadd.f32 %v6122, %v6123
  %v6125 = vrot.slane %v6124, 1
  %v6126 = vadd.f32 %v6124, %v6125
  %v6127 = vmul.f32 %v5929, 0.001953125
  %v6128 = vmul.f32 %v6126, 0.001953125
  %v6129 = vmul.f32 %v6127, %v6127
  %v6130 = vsub.f32 %v6128, %v6129
  %v6131 = vmax.f32 %v6130, 0.0
  %s6132 = scalar_lea.vmem %s6, 1
  %v6133 = vld [vmem:[%s6132] sm:$0x1]
  %v6134 = vadd.f32 %v6131, 1e-05
  %v6135 = vrsqrt.pop %v6134
  %v6136 = vmul.f32 %v6133, %v6135
  %s6137 = scalar_lea.vmem %s7, 1
  %v6138 = vld [vmem:[%s6137] sm:$0x1]
  %v6139 = vmul.f32 %v6127, %v6136
  %v6140 = vsub.f32 %v6138, %v6139
  %v6142 = vlaneseq
  %v6143 = vshrl.u32 %v6142, 7
  %v6144 = vsub.s32 0, %v6143
  %v6145 = vrot.slane %v6136, %v6144
  %v6147 = vmul.f32 %v5733, %v6145
  %v6148 = vmul.f32 %v5734, %v6145
  %v6149 = vmul.f32 %v5735, %v6145
  %v6150 = vmul.f32 %v5736, %v6145
  %v6151 = vmul.f32 %v5737, %v6145
  %v6152 = vmul.f32 %v5738, %v6145
  %v6153 = vmul.f32 %v5739, %v6145
  %v6154 = vmul.f32 %v5740, %v6145
  %v6155 = vmul.f32 %v5741, %v6145
  %v6156 = vmul.f32 %v5742, %v6145
  %v6157 = vmul.f32 %v5743, %v6145
  %v6158 = vmul.f32 %v5744, %v6145
  %v6159 = vmul.f32 %v5745, %v6145
  %v6160 = vmul.f32 %v5746, %v6145
  %v6161 = vmul.f32 %v5747, %v6145
  %v6162 = vmul.f32 %v5748, %v6145
  %v6163 = vmul.f32 %v5749, %v6145
  %v6164 = vmul.f32 %v5750, %v6145
  %v6165 = vmul.f32 %v5751, %v6145
  %v6166 = vmul.f32 %v5752, %v6145
  %v6167 = vmul.f32 %v5753, %v6145
  %v6168 = vmul.f32 %v5754, %v6145
  %v6169 = vmul.f32 %v5755, %v6145
  %v6170 = vmul.f32 %v5756, %v6145
  %v6171 = vmul.f32 %v5757, %v6145
  %v6172 = vmul.f32 %v5758, %v6145
  %v6173 = vmul.f32 %v5759, %v6145
  %v6174 = vmul.f32 %v5760, %v6145
  %v6175 = vmul.f32 %v5761, %v6145
  %v6176 = vmul.f32 %v5762, %v6145
  %v6177 = vmul.f32 %v5763, %v6145
  %v6178 = vmul.f32 %v5764, %v6145
  %v6179 = vmul.f32 %v5765, %v6145
  %v6180 = vmul.f32 %v5766, %v6145
  %v6181 = vmul.f32 %v5767, %v6145
  %v6182 = vmul.f32 %v5768, %v6145
  %v6183 = vmul.f32 %v5769, %v6145
  %v6184 = vmul.f32 %v5770, %v6145
  %v6185 = vmul.f32 %v5771, %v6145
  %v6186 = vmul.f32 %v5772, %v6145
  %v6187 = vmul.f32 %v5773, %v6145
  %v6188 = vmul.f32 %v5774, %v6145
  %v6189 = vmul.f32 %v5775, %v6145
  %v6190 = vmul.f32 %v5776, %v6145
  %v6191 = vmul.f32 %v5777, %v6145
  %v6192 = vmul.f32 %v5778, %v6145
  %v6193 = vmul.f32 %v5779, %v6145
  %v6194 = vmul.f32 %v5780, %v6145
  %v6195 = vmul.f32 %v5781, %v6145
  %v6196 = vmul.f32 %v5782, %v6145
  %v6197 = vmul.f32 %v5783, %v6145
  %v6198 = vmul.f32 %v5784, %v6145
  %v6199 = vmul.f32 %v5785, %v6145
  %v6200 = vmul.f32 %v5786, %v6145
  %v6201 = vmul.f32 %v5787, %v6145
  %v6202 = vmul.f32 %v5788, %v6145
  %v6203 = vmul.f32 %v5789, %v6145
  %v6204 = vmul.f32 %v5790, %v6145
  %v6205 = vmul.f32 %v5791, %v6145
  %v6206 = vmul.f32 %v5792, %v6145
  %v6207 = vmul.f32 %v5793, %v6145
  %v6208 = vmul.f32 %v5794, %v6145
  %v6209 = vmul.f32 %v5795, %v6145
  %v6210 = vmul.f32 %v5796, %v6145
  %v6212 = vlaneseq
  %v6213 = vshrl.u32 %v6212, 7
  %v6214 = vsub.s32 0, %v6213
  %v6215 = vrot.slane %v6140, %v6214
  %v6217 = vadd.f32 %v6147, %v6215
  %v6218 = vadd.f32 %v6148, %v6215
  %v6219 = vadd.f32 %v6149, %v6215
  %v6220 = vadd.f32 %v6150, %v6215
  %v6221 = vadd.f32 %v6151, %v6215
  %v6222 = vadd.f32 %v6152, %v6215
  %v6223 = vadd.f32 %v6153, %v6215
  %v6224 = vadd.f32 %v6154, %v6215
  %v6225 = vadd.f32 %v6155, %v6215
  %v6226 = vadd.f32 %v6156, %v6215
  %v6227 = vadd.f32 %v6157, %v6215
  %v6228 = vadd.f32 %v6158, %v6215
  %v6229 = vadd.f32 %v6159, %v6215
  %v6230 = vadd.f32 %v6160, %v6215
  %v6231 = vadd.f32 %v6161, %v6215
  %v6232 = vadd.f32 %v6162, %v6215
  %v6233 = vadd.f32 %v6163, %v6215
  %v6234 = vadd.f32 %v6164, %v6215
  %v6235 = vadd.f32 %v6165, %v6215
  %v6236 = vadd.f32 %v6166, %v6215
  %v6237 = vadd.f32 %v6167, %v6215
  %v6238 = vadd.f32 %v6168, %v6215
  %v6239 = vadd.f32 %v6169, %v6215
  %v6240 = vadd.f32 %v6170, %v6215
  %v6241 = vadd.f32 %v6171, %v6215
  %v6242 = vadd.f32 %v6172, %v6215
  %v6243 = vadd.f32 %v6173, %v6215
  %v6244 = vadd.f32 %v6174, %v6215
  %v6245 = vadd.f32 %v6175, %v6215
  %v6246 = vadd.f32 %v6176, %v6215
  %v6247 = vadd.f32 %v6177, %v6215
  %v6248 = vadd.f32 %v6178, %v6215
  %v6249 = vadd.f32 %v6179, %v6215
  %v6250 = vadd.f32 %v6180, %v6215
  %v6251 = vadd.f32 %v6181, %v6215
  %v6252 = vadd.f32 %v6182, %v6215
  %v6253 = vadd.f32 %v6183, %v6215
  %v6254 = vadd.f32 %v6184, %v6215
  %v6255 = vadd.f32 %v6185, %v6215
  %v6256 = vadd.f32 %v6186, %v6215
  %v6257 = vadd.f32 %v6187, %v6215
  %v6258 = vadd.f32 %v6188, %v6215
  %v6259 = vadd.f32 %v6189, %v6215
  %v6260 = vadd.f32 %v6190, %v6215
  %v6261 = vadd.f32 %v6191, %v6215
  %v6262 = vadd.f32 %v6192, %v6215
  %v6263 = vadd.f32 %v6193, %v6215
  %v6264 = vadd.f32 %v6194, %v6215
  %v6265 = vadd.f32 %v6195, %v6215
  %v6266 = vadd.f32 %v6196, %v6215
  %v6267 = vadd.f32 %v6197, %v6215
  %v6268 = vadd.f32 %v6198, %v6215
  %v6269 = vadd.f32 %v6199, %v6215
  %v6270 = vadd.f32 %v6200, %v6215
  %v6271 = vadd.f32 %v6201, %v6215
  %v6272 = vadd.f32 %v6202, %v6215
  %v6273 = vadd.f32 %v6203, %v6215
  %v6274 = vadd.f32 %v6204, %v6215
  %v6275 = vadd.f32 %v6205, %v6215
  %v6276 = vadd.f32 %v6206, %v6215
  %v6277 = vadd.f32 %v6207, %v6215
  %v6278 = vadd.f32 %v6208, %v6215
  %v6279 = vadd.f32 %v6209, %v6215
  %v6280 = vadd.f32 %v6210, %v6215
  %6281 = vst.msk [vmem:[#allocation2 + $0x18] sm:$0xff] %vm30, %v6217
  %6282 = vst.msk [vmem:[#allocation2 + $0x20] sm:$0xff] %vm30, %v6218
  %6283 = vst.msk [vmem:[#allocation2 + $0x28] sm:$0xff] %vm30, %v6219
  %6284 = vst.msk [vmem:[#allocation2 + $0x30] sm:$0xff] %vm30, %v6220
  %6285 = vst.msk [vmem:[#allocation2 + $0x38] sm:$0xff] %vm30, %v6221
  %6286 = vst.msk [vmem:[#allocation2 + $0x40] sm:$0xff] %vm30, %v6222
  %6287 = vst.msk [vmem:[#allocation2 + $0x48] sm:$0xff] %vm30, %v6223
  %6288 = vst.msk [vmem:[#allocation2 + $0x50] sm:$0xff] %vm30, %v6224
  %6289 = vst.msk [vmem:[#allocation2 + $0x58] sm:$0xff] %vm30, %v6225
  %6290 = vst.msk [vmem:[#allocation2 + $0x60] sm:$0xff] %vm30, %v6226
  %6291 = vst.msk [vmem:[#allocation2 + $0x68] sm:$0xff] %vm30, %v6227
  %6292 = vst.msk [vmem:[#allocation2 + $0x70] sm:$0xff] %vm30, %v6228
  %6293 = vst.msk [vmem:[#allocation2 + $0x78] sm:$0xff] %vm30, %v6229
  %6294 = vst.msk [vmem:[#allocation2 + $0x80] sm:$0xff] %vm30, %v6230
  %6295 = vst.msk [vmem:[#allocation2 + $0x88] sm:$0xff] %vm30, %v6231
  %6296 = vst.msk [vmem:[#allocation2 + $0x90] sm:$0xff] %vm30, %v6232
  %6297 = vst.msk [vmem:[#allocation2 + $0x98] sm:$0xff] %vm30, %v6233
  %6298 = vst.msk [vmem:[#allocation2 + $0xa0] sm:$0xff] %vm30, %v6234
  %6299 = vst.msk [vmem:[#allocation2 + $0xa8] sm:$0xff] %vm30, %v6235
  %6300 = vst.msk [vmem:[#allocation2 + $0xb0] sm:$0xff] %vm30, %v6236
  %6301 = vst.msk [vmem:[#allocation2 + $0xb8] sm:$0xff] %vm30, %v6237
  %6302 = vst.msk [vmem:[#allocation2 + $0xc0] sm:$0xff] %vm30, %v6238
  %6303 = vst.msk [vmem:[#allocation2 + $0xc8] sm:$0xff] %vm30, %v6239
  %6304 = vst.msk [vmem:[#allocation2 + $0xd0] sm:$0xff] %vm30, %v6240
  %6305 = vst.msk [vmem:[#allocation2 + $0xd8] sm:$0xff] %vm30, %v6241
  %6306 = vst.msk [vmem:[#allocation2 + $0xe0] sm:$0xff] %vm30, %v6242
  %6307 = vst.msk [vmem:[#allocation2 + $0xe8] sm:$0xff] %vm30, %v6243
  %6308 = vst.msk [vmem:[#allocation2 + $0xf0] sm:$0xff] %vm30, %v6244
  %6309 = vst.msk [vmem:[#allocation2 + $0xf8] sm:$0xff] %vm30, %v6245
  %6310 = vst.msk [vmem:[#allocation2 + $0x100] sm:$0xff] %vm30, %v6246
  %6311 = vst.msk [vmem:[#allocation2 + $0x108] sm:$0xff] %vm30, %v6247
  %6312 = vst.msk [vmem:[#allocation2 + $0x110] sm:$0xff] %vm30, %v6248
  %6313 = vst.msk [vmem:[#allocation2 + $0x118] sm:$0xff] %vm30, %v6249
  %6314 = vst.msk [vmem:[#allocation2 + $0x120] sm:$0xff] %vm30, %v6250
  %6315 = vst.msk [vmem:[#allocation2 + $0x128] sm:$0xff] %vm30, %v6251
  %6316 = vst.msk [vmem:[#allocation2 + $0x130] sm:$0xff] %vm30, %v6252
  %6317 = vst.msk [vmem:[#allocation2 + $0x138] sm:$0xff] %vm30, %v6253
  %6318 = vst.msk [vmem:[#allocation2 + $0x140] sm:$0xff] %vm30, %v6254
  %6319 = vst.msk [vmem:[#allocation2 + $0x148] sm:$0xff] %vm30, %v6255
  %6320 = vst.msk [vmem:[#allocation2 + $0x150] sm:$0xff] %vm30, %v6256
  %6321 = vst.msk [vmem:[#allocation2 + $0x158] sm:$0xff] %vm30, %v6257
  %6322 = vst.msk [vmem:[#allocation2 + $0x160] sm:$0xff] %vm30, %v6258
  %6323 = vst.msk [vmem:[#allocation2 + $0x168] sm:$0xff] %vm30, %v6259
  %6324 = vst.msk [vmem:[#allocation2 + $0x170] sm:$0xff] %vm30, %v6260
  %6325 = vst.msk [vmem:[#allocation2 + $0x178] sm:$0xff] %vm30, %v6261
  %6326 = vst.msk [vmem:[#allocation2 + $0x180] sm:$0xff] %vm30, %v6262
  %6327 = vst.msk [vmem:[#allocation2 + $0x188] sm:$0xff] %vm30, %v6263
  %6328 = vst.msk [vmem:[#allocation2 + $0x190] sm:$0xff] %vm30, %v6264
  %6329 = vst.msk [vmem:[#allocation2 + $0x198] sm:$0xff] %vm30, %v6265
  %6330 = vst.msk [vmem:[#allocation2 + $0x1a0] sm:$0xff] %vm30, %v6266
  %6331 = vst.msk [vmem:[#allocation2 + $0x1a8] sm:$0xff] %vm30, %v6267
  %6332 = vst.msk [vmem:[#allocation2 + $0x1b0] sm:$0xff] %vm30, %v6268
  %6333 = vst.msk [vmem:[#allocation2 + $0x1b8] sm:$0xff] %vm30, %v6269
  %6334 = vst.msk [vmem:[#allocation2 + $0x1c0] sm:$0xff] %vm30, %v6270
  %6335 = vst.msk [vmem:[#allocation2 + $0x1c8] sm:$0xff] %vm30, %v6271
  %6336 = vst.msk [vmem:[#allocation2 + $0x1d0] sm:$0xff] %vm30, %v6272
  %6337 = vst.msk [vmem:[#allocation2 + $0x1d8] sm:$0xff] %vm30, %v6273
  %6338 = vst.msk [vmem:[#allocation2 + $0x1e0] sm:$0xff] %vm30, %v6274
  %6339 = vst.msk [vmem:[#allocation2 + $0x1e8] sm:$0xff] %vm30, %v6275
  %6340 = vst.msk [vmem:[#allocation2 + $0x1f0] sm:$0xff] %vm30, %v6276
  %6341 = vst.msk [vmem:[#allocation2 + $0x1f8] sm:$0xff] %vm30, %v6277
  %6342 = vst.msk [vmem:[#allocation2 + $0x200] sm:$0xff] %vm30, %v6278
  %6343 = vst.msk [vmem:[#allocation2 + $0x208] sm:$0xff] %vm30, %v6279
  %6344 = vst.msk [vmem:[#allocation2 + $0x210] sm:$0xff] %vm30, %v6280
  %v6345 = vld [vmem:[#allocation2 + $0x7] sm:$0xff]
  %v6346 = vld [vmem:[#allocation2 + $0xf] sm:$0xff]
  %v6347 = vld [vmem:[#allocation2 + $0x17] sm:$0xff]
  %v6348 = vld [vmem:[#allocation2 + $0x1f] sm:$0xff]
  %v6349 = vld [vmem:[#allocation2 + $0x27] sm:$0xff]
  %v6350 = vld [vmem:[#allocation2 + $0x2f] sm:$0xff]
  %v6351 = vld [vmem:[#allocation2 + $0x37] sm:$0xff]
  %v6352 = vld [vmem:[#allocation2 + $0x3f] sm:$0xff]
  %v6353 = vld [vmem:[#allocation2 + $0x47] sm:$0xff]
  %v6354 = vld [vmem:[#allocation2 + $0x4f] sm:$0xff]
  %v6355 = vld [vmem:[#allocation2 + $0x57] sm:$0xff]
  %v6356 = vld [vmem:[#allocation2 + $0x5f] sm:$0xff]
  %v6357 = vld [vmem:[#allocation2 + $0x67] sm:$0xff]
  %v6358 = vld [vmem:[#allocation2 + $0x6f] sm:$0xff]
  %v6359 = vld [vmem:[#allocation2 + $0x77] sm:$0xff]
  %v6360 = vld [vmem:[#allocation2 + $0x7f] sm:$0xff]
  %v6361 = vld [vmem:[#allocation2 + $0x87] sm:$0xff]
  %v6362 = vld [vmem:[#allocation2 + $0x8f] sm:$0xff]
  %v6363 = vld [vmem:[#allocation2 + $0x97] sm:$0xff]
  %v6364 = vld [vmem:[#allocation2 + $0x9f] sm:$0xff]
  %v6365 = vld [vmem:[#allocation2 + $0xa7] sm:$0xff]
  %v6366 = vld [vmem:[#allocation2 + $0xaf] sm:$0xff]
  %v6367 = vld [vmem:[#allocation2 + $0xb7] sm:$0xff]
  %v6368 = vld [vmem:[#allocation2 + $0xbf] sm:$0xff]
  %v6369 = vld [vmem:[#allocation2 + $0xc7] sm:$0xff]
  %v6370 = vld [vmem:[#allocation2 + $0xcf] sm:$0xff]
  %v6371 = vld [vmem:[#allocation2 + $0xd7] sm:$0xff]
  %v6372 = vld [vmem:[#allocation2 + $0xdf] sm:$0xff]
  %v6373 = vld [vmem:[#allocation2 + $0xe7] sm:$0xff]
  %v6374 = vld [vmem:[#allocation2 + $0xef] sm:$0xff]
  %v6375 = vld [vmem:[#allocation2 + $0xf7] sm:$0xff]
  %v6376 = vld [vmem:[#allocation2 + $0xff] sm:$0xff]
  %v6377 = vld [vmem:[#allocation2 + $0x107] sm:$0xff]
  %v6378 = vld [vmem:[#allocation2 + $0x10f] sm:$0xff]
  %v6379 = vld [vmem:[#allocation2 + $0x117] sm:$0xff]
  %v6380 = vld [vmem:[#allocation2 + $0x11f] sm:$0xff]
  %v6381 = vld [vmem:[#allocation2 + $0x127] sm:$0xff]
  %v6382 = vld [vmem:[#allocation2 + $0x12f] sm:$0xff]
  %v6383 = vld [vmem:[#allocation2 + $0x137] sm:$0xff]
  %v6384 = vld [vmem:[#allocation2 + $0x13f] sm:$0xff]
  %v6385 = vld [vmem:[#allocation2 + $0x147] sm:$0xff]
  %v6386 = vld [vmem:[#allocation2 + $0x14f] sm:$0xff]
  %v6387 = vld [vmem:[#allocation2 + $0x157] sm:$0xff]
  %v6388 = vld [vmem:[#allocation2 + $0x15f] sm:$0xff]
  %v6389 = vld [vmem:[#allocation2 + $0x167] sm:$0xff]
  %v6390 = vld [vmem:[#allocation2 + $0x16f] sm:$0xff]
  %v6391 = vld [vmem:[#allocation2 + $0x177] sm:$0xff]
  %v6392 = vld [vmem:[#allocation2 + $0x17f] sm:$0xff]
  %v6393 = vld [vmem:[#allocation2 + $0x187] sm:$0xff]
  %v6394 = vld [vmem:[#allocation2 + $0x18f] sm:$0xff]
  %v6395 = vld [vmem:[#allocation2 + $0x197] sm:$0xff]
  %v6396 = vld [vmem:[#allocation2 + $0x19f] sm:$0xff]
  %v6397 = vld [vmem:[#allocation2 + $0x1a7] sm:$0xff]
  %v6398 = vld [vmem:[#allocation2 + $0x1af] sm:$0xff]
  %v6399 = vld [vmem:[#allocation2 + $0x1b7] sm:$0xff]
  %v6400 = vld [vmem:[#allocation2 + $0x1bf] sm:$0xff]
  %v6401 = vld [vmem:[#allocation2 + $0x1c7] sm:$0xff]
  %v6402 = vld [vmem:[#allocation2 + $0x1cf] sm:$0xff]
  %v6403 = vld [vmem:[#allocation2 + $0x1d7] sm:$0xff]
  %v6404 = vld [vmem:[#allocation2 + $0x1df] sm:$0xff]
  %v6405 = vld [vmem:[#allocation2 + $0x1e7] sm:$0xff]
  %v6406 = vld [vmem:[#allocation2 + $0x1ef] sm:$0xff]
  %v6407 = vld [vmem:[#allocation2 + $0x1f7] sm:$0xff]
  %v6408 = vld [vmem:[#allocation2 + $0x1ff] sm:$0xff]
  %v6409 = vsel %vm1480, %v6345, 0.0
  %v6410 = vsel %vm1481, %v6346, 0.0
  %v6411 = vsel %vm1482, %v6347, 0.0
  %v6412 = vsel %vm1483, %v6348, 0.0
  %v6413 = vsel %vm1484, %v6349, 0.0
  %v6414 = vsel %vm1485, %v6350, 0.0
  %v6415 = vsel %vm1486, %v6351, 0.0
  %v6416 = vsel %vm1487, %v6352, 0.0
  %v6417 = vsel %vm1488, %v6353, 0.0
  %v6418 = vsel %vm1489, %v6354, 0.0
  %v6419 = vsel %vm1490, %v6355, 0.0
  %v6420 = vsel %vm1491, %v6356, 0.0
  %v6421 = vsel %vm1492, %v6357, 0.0
  %v6422 = vsel %vm1493, %v6358, 0.0
  %v6423 = vsel %vm1494, %v6359, 0.0
  %v6424 = vsel %vm1495, %v6360, 0.0
  %v6425 = vsel %vm1496, %v6361, 0.0
  %v6426 = vsel %vm1497, %v6362, 0.0
  %v6427 = vsel %vm1498, %v6363, 0.0
  %v6428 = vsel %vm1499, %v6364, 0.0
  %v6429 = vsel %vm1500, %v6365, 0.0
  %v6430 = vsel %vm1501, %v6366, 0.0
  %v6431 = vsel %vm1502, %v6367, 0.0
  %v6432 = vsel %vm1503, %v6368, 0.0
  %v6433 = vsel %vm1504, %v6369, 0.0
  %v6434 = vsel %vm1505, %v6370, 0.0
  %v6435 = vsel %vm1506, %v6371, 0.0
  %v6436 = vsel %vm1507, %v6372, 0.0
  %v6437 = vsel %vm1508, %v6373, 0.0
  %v6438 = vsel %vm1509, %v6374, 0.0
  %v6439 = vsel %vm1510, %v6375, 0.0
  %v6440 = vsel %vm1511, %v6376, 0.0
  %v6441 = vsel %vm1512, %v6377, 0.0
  %v6442 = vsel %vm1513, %v6378, 0.0
  %v6443 = vsel %vm1514, %v6379, 0.0
  %v6444 = vsel %vm1515, %v6380, 0.0
  %v6445 = vsel %vm1516, %v6381, 0.0
  %v6446 = vsel %vm1517, %v6382, 0.0
  %v6447 = vsel %vm1518, %v6383, 0.0
  %v6448 = vsel %vm1519, %v6384, 0.0
  %v6449 = vsel %vm1520, %v6385, 0.0
  %v6450 = vsel %vm1521, %v6386, 0.0
  %v6451 = vsel %vm1522, %v6387, 0.0
  %v6452 = vsel %vm1523, %v6388, 0.0
  %v6453 = vsel %vm1524, %v6389, 0.0
  %v6454 = vsel %vm1525, %v6390, 0.0
  %v6455 = vsel %vm1526, %v6391, 0.0
  %v6456 = vsel %vm1527, %v6392, 0.0
  %v6457 = vsel %vm1528, %v6393, 0.0
  %v6458 = vsel %vm1529, %v6394, 0.0
  %v6459 = vsel %vm1530, %v6395, 0.0
  %v6460 = vsel %vm1531, %v6396, 0.0
  %v6461 = vsel %vm1532, %v6397, 0.0
  %v6462 = vsel %vm1533, %v6398, 0.0
  %v6463 = vsel %vm1534, %v6399, 0.0
  %v6464 = vsel %vm1535, %v6400, 0.0
  %v6465 = vsel %vm1536, %v6401, 0.0
  %v6466 = vsel %vm1537, %v6402, 0.0
  %v6467 = vsel %vm1538, %v6403, 0.0
  %v6468 = vsel %vm1539, %v6404, 0.0
  %v6469 = vsel %vm1540, %v6405, 0.0
  %v6470 = vsel %vm1541, %v6406, 0.0
  %v6471 = vsel %vm1542, %v6407, 0.0
  %v6472 = vsel %vm1543, %v6408, 0.0
  %v6473 = vpack.c.bf16 %v6410, %v6409
  %v6474 = vpack.c.bf16 %v6412, %v6411
  %v6475 = vpack.c.bf16 %v6414, %v6413
  %v6476 = vpack.c.bf16 %v6416, %v6415
  %v6477 = vpack.c.bf16 %v6418, %v6417
  %v6478 = vpack.c.bf16 %v6420, %v6419
  %v6479 = vpack.c.bf16 %v6422, %v6421
  %v6480 = vpack.c.bf16 %v6424, %v6423
  %v6481 = vpack.c.bf16 %v6426, %v6425
  %v6482 = vpack.c.bf16 %v6428, %v6427
  %v6483 = vpack.c.bf16 %v6430, %v6429
  %v6484 = vpack.c.bf16 %v6432, %v6431
  %v6485 = vpack.c.bf16 %v6434, %v6433
  %v6486 = vpack.c.bf16 %v6436, %v6435
  %v6487 = vpack.c.bf16 %v6438, %v6437
  %v6488 = vpack.c.bf16 %v6440, %v6439
  %v6489 = vpack.c.bf16 %v6442, %v6441
  %v6490 = vpack.c.bf16 %v6444, %v6443
  %v6491 = vpack.c.bf16 %v6446, %v6445
  %v6492 = vpack.c.bf16 %v6448, %v6447
  %v6493 = vpack.c.bf16 %v6450, %v6449
  %v6494 = vpack.c.bf16 %v6452, %v6451
  %v6495 = vpack.c.bf16 %v6454, %v6453
  %v6496 = vpack.c.bf16 %v6456, %v6455
  %v6497 = vpack.c.bf16 %v6458, %v6457
  %v6498 = vpack.c.bf16 %v6460, %v6459
  %v6499 = vpack.c.bf16 %v6462, %v6461
  %v6500 = vpack.c.bf16 %v6464, %v6463
  %v6501 = vpack.c.bf16 %v6466, %v6465
  %v6502 = vpack.c.bf16 %v6468, %v6467
  %v6503 = vpack.c.bf16 %v6470, %v6469
  %v6504 = vpack.c.bf16 %v6472, %v6471
  %6505 = vst.msk [vmem:[#allocation3] sm:$0xff] %vm30, %v6473
  %6506 = vst.msk [vmem:[#allocation3 + $0x18] sm:$0xff] %vm30, %v6474
  %6507 = vst.msk [vmem:[#allocation3 + $0x30] sm:$0xff] %vm30, %v6475
  %6508 = vst.msk [vmem:[#allocation3 + $0x48] sm:$0xff] %vm30, %v6476
  %6509 = vst.msk [vmem:[#allocation3 + $0x60] sm:$0xff] %vm30, %v6477
  %6510 = vst.msk [vmem:[#allocation3 + $0x78] sm:$0xff] %vm30, %v6478
  %6511 = vst.msk [vmem:[#allocation3 + $0x90] sm:$0xff] %vm30, %v6479
  %6512 = vst.msk [vmem:[#allocation3 + $0xa8] sm:$0xff] %vm30, %v6480
  %6513 = vst.msk [vmem:[#allocation3 + $0xc0] sm:$0xff] %vm30, %v6481
  %6514 = vst.msk [vmem:[#allocation3 + $0xd8] sm:$0xff] %vm30, %v6482
  %6515 = vst.msk [vmem:[#allocation3 + $0xf0] sm:$0xff] %vm30, %v6483
  %6516 = vst.msk [vmem:[#allocation3 + $0x108] sm:$0xff] %vm30, %v6484
  %6517 = vst.msk [vmem:[#allocation3 + $0x120] sm:$0xff] %vm30, %v6485
  %6518 = vst.msk [vmem:[#allocation3 + $0x138] sm:$0xff] %vm30, %v6486
  %6519 = vst.msk [vmem:[#allocation3 + $0x150] sm:$0xff] %vm30, %v6487
  %6520 = vst.msk [vmem:[#allocation3 + $0x168] sm:$0xff] %vm30, %v6488
  %6521 = vst.msk [vmem:[#allocation3 + $0x180] sm:$0xff] %vm30, %v6489
  %6522 = vst.msk [vmem:[#allocation3 + $0x198] sm:$0xff] %vm30, %v6490
  %6523 = vst.msk [vmem:[#allocation3 + $0x1b0] sm:$0xff] %vm30, %v6491
  %6524 = vst.msk [vmem:[#allocation3 + $0x1c8] sm:$0xff] %vm30, %v6492
  %6525 = vst.msk [vmem:[#allocation3 + $0x1e0] sm:$0xff] %vm30, %v6493
  %6526 = vst.msk [vmem:[#allocation3 + $0x1f8] sm:$0xff] %vm30, %v6494
  %6527 = vst.msk [vmem:[#allocation3 + $0x210] sm:$0xff] %vm30, %v6495
  %6528 = vst.msk [vmem:[#allocation3 + $0x228] sm:$0xff] %vm30, %v6496
  %6529 = vst.msk [vmem:[#allocation3 + $0x240] sm:$0xff] %vm30, %v6497
  %6530 = vst.msk [vmem:[#allocation3 + $0x258] sm:$0xff] %vm30, %v6498
  %6531 = vst.msk [vmem:[#allocation3 + $0x270] sm:$0xff] %vm30, %v6499
  %6532 = vst.msk [vmem:[#allocation3 + $0x288] sm:$0xff] %vm30, %v6500
  %6533 = vst.msk [vmem:[#allocation3 + $0x2a0] sm:$0xff] %vm30, %v6501
  %6534 = vst.msk [vmem:[#allocation3 + $0x2b8] sm:$0xff] %vm30, %v6502
  %6535 = vst.msk [vmem:[#allocation3 + $0x2d0] sm:$0xff] %vm30, %v6503
  %6536 = vst.msk [vmem:[#allocation3 + $0x2e8] sm:$0xff] %vm30, %v6504
  %v6537 = vld [vmem:[#allocation2 + $0x8] sm:$0xff]
  %v6538 = vld [vmem:[#allocation2 + $0x10] sm:$0xff]
  %v6539 = vld [vmem:[#allocation2 + $0x18] sm:$0xff]
  %v6540 = vld [vmem:[#allocation2 + $0x20] sm:$0xff]
  %v6541 = vld [vmem:[#allocation2 + $0x28] sm:$0xff]
  %v6542 = vld [vmem:[#allocation2 + $0x30] sm:$0xff]
  %v6543 = vld [vmem:[#allocation2 + $0x38] sm:$0xff]
  %v6544 = vld [vmem:[#allocation2 + $0x40] sm:$0xff]
  %v6545 = vld [vmem:[#allocation2 + $0x48] sm:$0xff]
  %v6546 = vld [vmem:[#allocation2 + $0x50] sm:$0xff]
  %v6547 = vld [vmem:[#allocation2 + $0x58] sm:$0xff]
  %v6548 = vld [vmem:[#allocation2 + $0x60] sm:$0xff]
  %v6549 = vld [vmem:[#allocation2 + $0x68] sm:$0xff]
  %v6550 = vld [vmem:[#allocation2 + $0x70] sm:$0xff]
  %v6551 = vld [vmem:[#allocation2 + $0x78] sm:$0xff]
  %v6552 = vld [vmem:[#allocation2 + $0x80] sm:$0xff]
  %v6553 = vld [vmem:[#allocation2 + $0x88] sm:$0xff]
  %v6554 = vld [vmem:[#allocation2 + $0x90] sm:$0xff]
  %v6555 = vld [vmem:[#allocation2 + $0x98] sm:$0xff]
  %v6556 = vld [vmem:[#allocation2 + $0xa0] sm:$0xff]
  %v6557 = vld [vmem:[#allocation2 + $0xa8] sm:$0xff]
  %v6558 = vld [vmem:[#allocation2 + $0xb0] sm:$0xff]
  %v6559 = vld [vmem:[#allocation2 + $0xb8] sm:$0xff]
  %v6560 = vld [vmem:[#allocation2 + $0xc0] sm:$0xff]
  %v6561 = vld [vmem:[#allocation2 + $0xc8] sm:$0xff]
  %v6562 = vld [vmem:[#allocation2 + $0xd0] sm:$0xff]
  %v6563 = vld [vmem:[#allocation2 + $0xd8] sm:$0xff]
  %v6564 = vld [vmem:[#allocation2 + $0xe0] sm:$0xff]
  %v6565 = vld [vmem:[#allocation2 + $0xe8] sm:$0xff]
  %v6566 = vld [vmem:[#allocation2 + $0xf0] sm:$0xff]
  %v6567 = vld [vmem:[#allocation2 + $0xf8] sm:$0xff]
  %v6568 = vld [vmem:[#allocation2 + $0x100] sm:$0xff]
  %v6569 = vld [vmem:[#allocation2 + $0x108] sm:$0xff]
  %v6570 = vld [vmem:[#allocation2 + $0x110] sm:$0xff]
  %v6571 = vld [vmem:[#allocation2 + $0x118] sm:$0xff]
  %v6572 = vld [vmem:[#allocation2 + $0x120] sm:$0xff]
  %v6573 = vld [vmem:[#allocation2 + $0x128] sm:$0xff]
  %v6574 = vld [vmem:[#allocation2 + $0x130] sm:$0xff]
  %v6575 = vld [vmem:[#allocation2 + $0x138] sm:$0xff]
  %v6576 = vld [vmem:[#allocation2 + $0x140] sm:$0xff]
  %v6577 = vld [vmem:[#allocation2 + $0x148] sm:$0xff]
  %v6578 = vld [vmem:[#allocation2 + $0x150] sm:$0xff]
  %v6579 = vld [vmem:[#allocation2 + $0x158] sm:$0xff]
  %v6580 = vld [vmem:[#allocation2 + $0x160] sm:$0xff]
  %v6581 = vld [vmem:[#allocation2 + $0x168] sm:$0xff]
  %v6582 = vld [vmem:[#allocation2 + $0x170] sm:$0xff]
  %v6583 = vld [vmem:[#allocation2 + $0x178] sm:$0xff]
  %v6584 = vld [vmem:[#allocation2 + $0x180] sm:$0xff]
  %v6585 = vld [vmem:[#allocation2 + $0x188] sm:$0xff]
  %v6586 = vld [vmem:[#allocation2 + $0x190] sm:$0xff]
  %v6587 = vld [vmem:[#allocation2 + $0x198] sm:$0xff]
  %v6588 = vld [vmem:[#allocation2 + $0x1a0] sm:$0xff]
  %v6589 = vld [vmem:[#allocation2 + $0x1a8] sm:$0xff]
  %v6590 = vld [vmem:[#allocation2 + $0x1b0] sm:$0xff]
  %v6591 = vld [vmem:[#allocation2 + $0x1b8] sm:$0xff]
  %v6592 = vld [vmem:[#allocation2 + $0x1c0] sm:$0xff]
  %v6593 = vld [vmem:[#allocation2 + $0x1c8] sm:$0xff]
  %v6594 = vld [vmem:[#allocation2 + $0x1d0] sm:$0xff]
  %v6595 = vld [vmem:[#allocation2 + $0x1d8] sm:$0xff]
  %v6596 = vld [vmem:[#allocation2 + $0x1e0] sm:$0xff]
  %v6597 = vld [vmem:[#allocation2 + $0x1e8] sm:$0xff]
  %v6598 = vld [vmem:[#allocation2 + $0x1f0] sm:$0xff]
  %v6599 = vld [vmem:[#allocation2 + $0x1f8] sm:$0xff]
  %v6600 = vld [vmem:[#allocation2 + $0x200] sm:$0xff]
  %v6601 = vsel %vm1800, %v6537, 0.0
  %v6602 = vsel %vm1801, %v6538, 0.0
  %v6603 = vsel %vm1802, %v6539, 0.0
  %v6604 = vsel %vm1803, %v6540, 0.0
  %v6605 = vsel %vm1804, %v6541, 0.0
  %v6606 = vsel %vm1805, %v6542, 0.0
  %v6607 = vsel %vm1806, %v6543, 0.0
  %v6608 = vsel %vm1807, %v6544, 0.0
  %v6609 = vsel %vm1808, %v6545, 0.0
  %v6610 = vsel %vm1809, %v6546, 0.0
  %v6611 = vsel %vm1810, %v6547, 0.0
  %v6612 = vsel %vm1811, %v6548, 0.0
  %v6613 = vsel %vm1812, %v6549, 0.0
  %v6614 = vsel %vm1813, %v6550, 0.0
  %v6615 = vsel %vm1814, %v6551, 0.0
  %v6616 = vsel %vm1815, %v6552, 0.0
  %v6617 = vsel %vm1816, %v6553, 0.0
  %v6618 = vsel %vm1817, %v6554, 0.0
  %v6619 = vsel %vm1818, %v6555, 0.0
  %v6620 = vsel %vm1819, %v6556, 0.0
  %v6621 = vsel %vm1820, %v6557, 0.0
  %v6622 = vsel %vm1821, %v6558, 0.0
  %v6623 = vsel %vm1822, %v6559, 0.0
  %v6624 = vsel %vm1823, %v6560, 0.0
  %v6625 = vsel %vm1824, %v6561, 0.0
  %v6626 = vsel %vm1825, %v6562, 0.0
  %v6627 = vsel %vm1826, %v6563, 0.0
  %v6628 = vsel %vm1827, %v6564, 0.0
  %v6629 = vsel %vm1828, %v6565, 0.0
  %v6630 = vsel %vm1829, %v6566, 0.0
  %v6631 = vsel %vm1830, %v6567, 0.0
  %v6632 = vsel %vm1831, %v6568, 0.0
  %v6633 = vsel %vm1832, %v6569, 0.0
  %v6634 = vsel %vm1833, %v6570, 0.0
  %v6635 = vsel %vm1834, %v6571, 0.0
  %v6636 = vsel %vm1835, %v6572, 0.0
  %v6637 = vsel %vm1836, %v6573, 0.0
  %v6638 = vsel %vm1837, %v6574, 0.0
  %v6639 = vsel %vm1838, %v6575, 0.0
  %v6640 = vsel %vm1839, %v6576, 0.0
  %v6641 = vsel %vm1840, %v6577, 0.0
  %v6642 = vsel %vm1841, %v6578, 0.0
  %v6643 = vsel %vm1842, %v6579, 0.0
  %v6644 = vsel %vm1843, %v6580, 0.0
  %v6645 = vsel %vm1844, %v6581, 0.0
  %v6646 = vsel %vm1845, %v6582, 0.0
  %v6647 = vsel %vm1846, %v6583, 0.0
  %v6648 = vsel %vm1847, %v6584, 0.0
  %v6649 = vsel %vm1848, %v6585, 0.0
  %v6650 = vsel %vm1849, %v6586, 0.0
  %v6651 = vsel %vm1850, %v6587, 0.0
  %v6652 = vsel %vm1851, %v6588, 0.0
  %v6653 = vsel %vm1852, %v6589, 0.0
  %v6654 = vsel %vm1853, %v6590, 0.0
  %v6655 = vsel %vm1854, %v6591, 0.0
  %v6656 = vsel %vm1855, %v6592, 0.0
  %v6657 = vsel %vm1856, %v6593, 0.0
  %v6658 = vsel %vm1857, %v6594, 0.0
  %v6659 = vsel %vm1858, %v6595, 0.0
  %v6660 = vsel %vm1859, %v6596, 0.0
  %v6661 = vsel %vm1860, %v6597, 0.0
  %v6662 = vsel %vm1861, %v6598, 0.0
  %v6663 = vsel %vm1862, %v6599, 0.0
  %v6664 = vsel %vm1863, %v6600, 0.0
  %v6665 = vpack.c.bf16 %v6602, %v6601
  %v6666 = vpack.c.bf16 %v6604, %v6603
  %v6667 = vpack.c.bf16 %v6606, %v6605
  %v6668 = vpack.c.bf16 %v6608, %v6607
  %v6669 = vpack.c.bf16 %v6610, %v6609
  %v6670 = vpack.c.bf16 %v6612, %v6611
  %v6671 = vpack.c.bf16 %v6614, %v6613
  %v6672 = vpack.c.bf16 %v6616, %v6615
  %v6673 = vpack.c.bf16 %v6618, %v6617
  %v6674 = vpack.c.bf16 %v6620, %v6619
  %v6675 = vpack.c.bf16 %v6622, %v6621
  %v6676 = vpack.c.bf16 %v6624, %v6623
  %v6677 = vpack.c.bf16 %v6626, %v6625
  %v6678 = vpack.c.bf16 %v6628, %v6627
  %v6679 = vpack.c.bf16 %v6630, %v6629
  %v6680 = vpack.c.bf16 %v6632, %v6631
  %v6681 = vpack.c.bf16 %v6634, %v6633
  %v6682 = vpack.c.bf16 %v6636, %v6635
  %v6683 = vpack.c.bf16 %v6638, %v6637
  %v6684 = vpack.c.bf16 %v6640, %v6639
  %v6685 = vpack.c.bf16 %v6642, %v6641
  %v6686 = vpack.c.bf16 %v6644, %v6643
  %v6687 = vpack.c.bf16 %v6646, %v6645
  %v6688 = vpack.c.bf16 %v6648, %v6647
  %v6689 = vpack.c.bf16 %v6650, %v6649
  %v6690 = vpack.c.bf16 %v6652, %v6651
  %v6691 = vpack.c.bf16 %v6654, %v6653
  %v6692 = vpack.c.bf16 %v6656, %v6655
  %v6693 = vpack.c.bf16 %v6658, %v6657
  %v6694 = vpack.c.bf16 %v6660, %v6659
  %v6695 = vpack.c.bf16 %v6662, %v6661
  %v6696 = vpack.c.bf16 %v6664, %v6663
  %6729 = vrot.lane.b32.xlu0 %v6665, 32
  %v6730 = vpop.permute.xlu0 %6729
  %6731 = vrot.lane.b32.xlu0 %v6666, 32
  %v6732 = vpop.permute.xlu0 %6731
  %6733 = vrot.lane.b32.xlu0 %v6667, 32
  %v6734 = vpop.permute.xlu0 %6733
  %6735 = vrot.lane.b32.xlu0 %v6668, 32
  %v6736 = vpop.permute.xlu0 %6735
  %6737 = vrot.lane.b32.xlu0 %v6669, 32
  %v6738 = vpop.permute.xlu0 %6737
  %6739 = vrot.lane.b32.xlu0 %v6670, 32
  %v6740 = vpop.permute.xlu0 %6739
  %6741 = vrot.lane.b32.xlu0 %v6671, 32
  %v6742 = vpop.permute.xlu0 %6741
  %6743 = vrot.lane.b32.xlu0 %v6672, 32
  %v6744 = vpop.permute.xlu0 %6743
  %6745 = vrot.lane.b32.xlu0 %v6673, 32
  %v6746 = vpop.permute.xlu0 %6745
  %6747 = vrot.lane.b32.xlu0 %v6674, 32
  %v6748 = vpop.permute.xlu0 %6747
  %6749 = vrot.lane.b32.xlu0 %v6675, 32
  %v6750 = vpop.permute.xlu0 %6749
  %6751 = vrot.lane.b32.xlu0 %v6676, 32
  %v6752 = vpop.permute.xlu0 %6751
  %6753 = vrot.lane.b32.xlu0 %v6677, 32
  %v6754 = vpop.permute.xlu0 %6753
  %6755 = vrot.lane.b32.xlu0 %v6678, 32
  %v6756 = vpop.permute.xlu0 %6755
  %6757 = vrot.lane.b32.xlu0 %v6679, 32
  %v6758 = vpop.permute.xlu0 %6757
  %6759 = vrot.lane.b32.xlu0 %v6680, 32
  %v6760 = vpop.permute.xlu0 %6759
  %6761 = vrot.lane.b32.xlu0 %v6681, 32
  %v6762 = vpop.permute.xlu0 %6761
  %6763 = vrot.lane.b32.xlu0 %v6682, 32
  %v6764 = vpop.permute.xlu0 %6763
  %6765 = vrot.lane.b32.xlu0 %v6683, 32
  %v6766 = vpop.permute.xlu0 %6765
  %6767 = vrot.lane.b32.xlu0 %v6684, 32
  %v6768 = vpop.permute.xlu0 %6767
  %6769 = vrot.lane.b32.xlu0 %v6685, 32
  %v6770 = vpop.permute.xlu0 %6769
  %6771 = vrot.lane.b32.xlu0 %v6686, 32
  %v6772 = vpop.permute.xlu0 %6771
  %6773 = vrot.lane.b32.xlu0 %v6687, 32
  %v6774 = vpop.permute.xlu0 %6773
  %6775 = vrot.lane.b32.xlu0 %v6688, 32
  %v6776 = vpop.permute.xlu0 %6775
  %6777 = vrot.lane.b32.xlu0 %v6689, 32
  %v6778 = vpop.permute.xlu0 %6777
  %6779 = vrot.lane.b32.xlu0 %v6690, 32
  %v6780 = vpop.permute.xlu0 %6779
  %6781 = vrot.lane.b32.xlu0 %v6691, 32
  %v6782 = vpop.permute.xlu0 %6781
  %6783 = vrot.lane.b32.xlu0 %v6692, 32
  %v6784 = vpop.permute.xlu0 %6783
  %6785 = vrot.lane.b32.xlu0 %v6693, 32
  %v6786 = vpop.permute.xlu0 %6785
  %6787 = vrot.lane.b32.xlu0 %v6694, 32
  %v6788 = vpop.permute.xlu0 %6787
  %6789 = vrot.lane.b32.xlu0 %v6695, 32
  %v6790 = vpop.permute.xlu0 %6789
  %6791 = vrot.lane.b32.xlu0 %v6696, 32
  %v6792 = vpop.permute.xlu0 %6791
  %6825 = vst.msk [vmem:[#allocation3] sm:$0xff] %vm2088, %v6730
  %6826 = vst.msk [vmem:[#allocation3 + $0x18] sm:$0xff] %vm2088, %v6732
  %6827 = vst.msk [vmem:[#allocation3 + $0x30] sm:$0xff] %vm2088, %v6734
  %6828 = vst.msk [vmem:[#allocation3 + $0x48] sm:$0xff] %vm2088, %v6736
  %6829 = vst.msk [vmem:[#allocation3 + $0x60] sm:$0xff] %vm2088, %v6738
  %6830 = vst.msk [vmem:[#allocation3 + $0x78] sm:$0xff] %vm2088, %v6740
  %6831 = vst.msk [vmem:[#allocation3 + $0x90] sm:$0xff] %vm2088, %v6742
  %6832 = vst.msk [vmem:[#allocation3 + $0xa8] sm:$0xff] %vm2088, %v6744
  %6833 = vst.msk [vmem:[#allocation3 + $0xc0] sm:$0xff] %vm2088, %v6746
  %6834 = vst.msk [vmem:[#allocation3 + $0xd8] sm:$0xff] %vm2088, %v6748
  %6835 = vst.msk [vmem:[#allocation3 + $0xf0] sm:$0xff] %vm2088, %v6750
  %6836 = vst.msk [vmem:[#allocation3 + $0x108] sm:$0xff] %vm2088, %v6752
  %6837 = vst.msk [vmem:[#allocation3 + $0x120] sm:$0xff] %vm2088, %v6754
  %6838 = vst.msk [vmem:[#allocation3 + $0x138] sm:$0xff] %vm2088, %v6756
  %6839 = vst.msk [vmem:[#allocation3 + $0x150] sm:$0xff] %vm2088, %v6758
  %6840 = vst.msk [vmem:[#allocation3 + $0x168] sm:$0xff] %vm2088, %v6760
  %6841 = vst.msk [vmem:[#allocation3 + $0x180] sm:$0xff] %vm2088, %v6762
  %6842 = vst.msk [vmem:[#allocation3 + $0x198] sm:$0xff] %vm2088, %v6764
  %6843 = vst.msk [vmem:[#allocation3 + $0x1b0] sm:$0xff] %vm2088, %v6766
  %6844 = vst.msk [vmem:[#allocation3 + $0x1c8] sm:$0xff] %vm2088, %v6768
  %6845 = vst.msk [vmem:[#allocation3 + $0x1e0] sm:$0xff] %vm2088, %v6770
  %6846 = vst.msk [vmem:[#allocation3 + $0x1f8] sm:$0xff] %vm2088, %v6772
  %6847 = vst.msk [vmem:[#allocation3 + $0x210] sm:$0xff] %vm2088, %v6774
  %6848 = vst.msk [vmem:[#allocation3 + $0x228] sm:$0xff] %vm2088, %v6776
  %6849 = vst.msk [vmem:[#allocation3 + $0x240] sm:$0xff] %vm2088, %v6778
  %6850 = vst.msk [vmem:[#allocation3 + $0x258] sm:$0xff] %vm2088, %v6780
  %6851 = vst.msk [vmem:[#allocation3 + $0x270] sm:$0xff] %vm2088, %v6782
  %6852 = vst.msk [vmem:[#allocation3 + $0x288] sm:$0xff] %vm2088, %v6784
  %6853 = vst.msk [vmem:[#allocation3 + $0x2a0] sm:$0xff] %vm2088, %v6786
  %6854 = vst.msk [vmem:[#allocation3 + $0x2b8] sm:$0xff] %vm2088, %v6788
  %6855 = vst.msk [vmem:[#allocation3 + $0x2d0] sm:$0xff] %vm2088, %v6790
  %6856 = vst.msk [vmem:[#allocation3 + $0x2e8] sm:$0xff] %vm2088, %v6792
  %v6857 = vld [vmem:[#allocation2 + $0x9] sm:$0xff]
  %v6858 = vld [vmem:[#allocation2 + $0x11] sm:$0xff]
  %v6859 = vld [vmem:[#allocation2 + $0x19] sm:$0xff]
  %v6860 = vld [vmem:[#allocation2 + $0x21] sm:$0xff]
  %v6861 = vld [vmem:[#allocation2 + $0x29] sm:$0xff]
  %v6862 = vld [vmem:[#allocation2 + $0x31] sm:$0xff]
  %v6863 = vld [vmem:[#allocation2 + $0x39] sm:$0xff]
  %v6864 = vld [vmem:[#allocation2 + $0x41] sm:$0xff]
  %v6865 = vld [vmem:[#allocation2 + $0x49] sm:$0xff]
  %v6866 = vld [vmem:[#allocation2 + $0x51] sm:$0xff]
  %v6867 = vld [vmem:[#allocation2 + $0x59] sm:$0xff]
  %v6868 = vld [vmem:[#allocation2 + $0x61] sm:$0xff]
  %v6869 = vld [vmem:[#allocation2 + $0x69] sm:$0xff]
  %v6870 = vld [vmem:[#allocation2 + $0x71] sm:$0xff]
  %v6871 = vld [vmem:[#allocation2 + $0x79] sm:$0xff]
  %v6872 = vld [vmem:[#allocation2 + $0x81] sm:$0xff]
  %v6873 = vld [vmem:[#allocation2 + $0x89] sm:$0xff]
  %v6874 = vld [vmem:[#allocation2 + $0x91] sm:$0xff]
  %v6875 = vld [vmem:[#allocation2 + $0x99] sm:$0xff]
  %v6876 = vld [vmem:[#allocation2 + $0xa1] sm:$0xff]
  %v6877 = vld [vmem:[#allocation2 + $0xa9] sm:$0xff]
  %v6878 = vld [vmem:[#allocation2 + $0xb1] sm:$0xff]
  %v6879 = vld [vmem:[#allocation2 + $0xb9] sm:$0xff]
  %v6880 = vld [vmem:[#allocation2 + $0xc1] sm:$0xff]
  %v6881 = vld [vmem:[#allocation2 + $0xc9] sm:$0xff]
  %v6882 = vld [vmem:[#allocation2 + $0xd1] sm:$0xff]
  %v6883 = vld [vmem:[#allocation2 + $0xd9] sm:$0xff]
  %v6884 = vld [vmem:[#allocation2 + $0xe1] sm:$0xff]
  %v6885 = vld [vmem:[#allocation2 + $0xe9] sm:$0xff]
  %v6886 = vld [vmem:[#allocation2 + $0xf1] sm:$0xff]
  %v6887 = vld [vmem:[#allocation2 + $0xf9] sm:$0xff]
  %v6888 = vld [vmem:[#allocation2 + $0x101] sm:$0xff]
  %v6889 = vld [vmem:[#allocation2 + $0x109] sm:$0xff]
  %v6890 = vld [vmem:[#allocation2 + $0x111] sm:$0xff]
  %v6891 = vld [vmem:[#allocation2 + $0x119] sm:$0xff]
  %v6892 = vld [vmem:[#allocation2 + $0x121] sm:$0xff]
  %v6893 = vld [vmem:[#allocation2 + $0x129] sm:$0xff]
  %v6894 = vld [vmem:[#allocation2 + $0x131] sm:$0xff]
  %v6895 = vld [vmem:[#allocation2 + $0x139] sm:$0xff]
  %v6896 = vld [vmem:[#allocation2 + $0x141] sm:$0xff]
  %v6897 = vld [vmem:[#allocation2 + $0x149] sm:$0xff]
  %v6898 = vld [vmem:[#allocation2 + $0x151] sm:$0xff]
  %v6899 = vld [vmem:[#allocation2 + $0x159] sm:$0xff]
  %v6900 = vld [vmem:[#allocation2 + $0x161] sm:$0xff]
  %v6901 = vld [vmem:[#allocation2 + $0x169] sm:$0xff]
  %v6902 = vld [vmem:[#allocation2 + $0x171] sm:$0xff]
  %v6903 = vld [vmem:[#allocation2 + $0x179] sm:$0xff]
  %v6904 = vld [vmem:[#allocation2 + $0x181] sm:$0xff]
  %v6905 = vld [vmem:[#allocation2 + $0x189] sm:$0xff]
  %v6906 = vld [vmem:[#allocation2 + $0x191] sm:$0xff]
  %v6907 = vld [vmem:[#allocation2 + $0x199] sm:$0xff]
  %v6908 = vld [vmem:[#allocation2 + $0x1a1] sm:$0xff]
  %v6909 = vld [vmem:[#allocation2 + $0x1a9] sm:$0xff]
  %v6910 = vld [vmem:[#allocation2 + $0x1b1] sm:$0xff]
  %v6911 = vld [vmem:[#allocation2 + $0x1b9] sm:$0xff]
  %v6912 = vld [vmem:[#allocation2 + $0x1c1] sm:$0xff]
  %v6913 = vld [vmem:[#allocation2 + $0x1c9] sm:$0xff]
  %v6914 = vld [vmem:[#allocation2 + $0x1d1] sm:$0xff]
  %v6915 = vld [vmem:[#allocation2 + $0x1d9] sm:$0xff]
  %v6916 = vld [vmem:[#allocation2 + $0x1e1] sm:$0xff]
  %v6917 = vld [vmem:[#allocation2 + $0x1e9] sm:$0xff]
  %v6918 = vld [vmem:[#allocation2 + $0x1f1] sm:$0xff]
  %v6919 = vld [vmem:[#allocation2 + $0x1f9] sm:$0xff]
  %v6920 = vld [vmem:[#allocation2 + $0x201] sm:$0xff]
  %v6921 = vsel %vm2249, %v6857, 0.0
  %v6922 = vsel %vm2250, %v6858, 0.0
  %v6923 = vsel %vm2251, %v6859, 0.0
  %v6924 = vsel %vm2252, %v6860, 0.0
  %v6925 = vsel %vm2253, %v6861, 0.0
  %v6926 = vsel %vm2254, %v6862, 0.0
  %v6927 = vsel %vm2255, %v6863, 0.0
  %v6928 = vsel %vm2256, %v6864, 0.0
  %v6929 = vsel %vm2257, %v6865, 0.0
  %v6930 = vsel %vm2258, %v6866, 0.0
  %v6931 = vsel %vm2259, %v6867, 0.0
  %v6932 = vsel %vm2260, %v6868, 0.0
  %v6933 = vsel %vm2261, %v6869, 0.0
  %v6934 = vsel %vm2262, %v6870, 0.0
  %v6935 = vsel %vm2263, %v6871, 0.0
  %v6936 = vsel %vm2264, %v6872, 0.0
  %v6937 = vsel %vm2265, %v6873, 0.0
  %v6938 = vsel %vm2266, %v6874, 0.0
  %v6939 = vsel %vm2267, %v6875, 0.0
  %v6940 = vsel %vm2268, %v6876, 0.0
  %v6941 = vsel %vm2269, %v6877, 0.0
  %v6942 = vsel %vm2270, %v6878, 0.0
  %v6943 = vsel %vm2271, %v6879, 0.0
  %v6944 = vsel %vm2272, %v6880, 0.0
  %v6945 = vsel %vm2273, %v6881, 0.0
  %v6946 = vsel %vm2274, %v6882, 0.0
  %v6947 = vsel %vm2275, %v6883, 0.0
  %v6948 = vsel %vm2276, %v6884, 0.0
  %v6949 = vsel %vm2277, %v6885, 0.0
  %v6950 = vsel %vm2278, %v6886, 0.0
  %v6951 = vsel %vm2279, %v6887, 0.0
  %v6952 = vsel %vm2280, %v6888, 0.0
  %v6953 = vsel %vm2281, %v6889, 0.0
  %v6954 = vsel %vm2282, %v6890, 0.0
  %v6955 = vsel %vm2283, %v6891, 0.0
  %v6956 = vsel %vm2284, %v6892, 0.0
  %v6957 = vsel %vm2285, %v6893, 0.0
  %v6958 = vsel %vm2286, %v6894, 0.0
  %v6959 = vsel %vm2287, %v6895, 0.0
  %v6960 = vsel %vm2288, %v6896, 0.0
  %v6961 = vsel %vm2289, %v6897, 0.0
  %v6962 = vsel %vm2290, %v6898, 0.0
  %v6963 = vsel %vm2291, %v6899, 0.0
  %v6964 = vsel %vm2292, %v6900, 0.0
  %v6965 = vsel %vm2293, %v6901, 0.0
  %v6966 = vsel %vm2294, %v6902, 0.0
  %v6967 = vsel %vm2295, %v6903, 0.0
  %v6968 = vsel %vm2296, %v6904, 0.0
  %v6969 = vsel %vm2297, %v6905, 0.0
  %v6970 = vsel %vm2298, %v6906, 0.0
  %v6971 = vsel %vm2299, %v6907, 0.0
  %v6972 = vsel %vm2300, %v6908, 0.0
  %v6973 = vsel %vm2301, %v6909, 0.0
  %v6974 = vsel %vm2302, %v6910, 0.0
  %v6975 = vsel %vm2303, %v6911, 0.0
  %v6976 = vsel %vm2304, %v6912, 0.0
  %v6977 = vsel %vm2305, %v6913, 0.0
  %v6978 = vsel %vm2306, %v6914, 0.0
  %v6979 = vsel %vm2307, %v6915, 0.0
  %v6980 = vsel %vm2308, %v6916, 0.0
  %v6981 = vsel %vm2309, %v6917, 0.0
  %v6982 = vsel %vm2310, %v6918, 0.0
  %v6983 = vsel %vm2311, %v6919, 0.0
  %v6984 = vsel %vm2312, %v6920, 0.0
  %v6985 = vpack.c.bf16 %v6922, %v6921
  %v6986 = vpack.c.bf16 %v6924, %v6923
  %v6987 = vpack.c.bf16 %v6926, %v6925
  %v6988 = vpack.c.bf16 %v6928, %v6927
  %v6989 = vpack.c.bf16 %v6930, %v6929
  %v6990 = vpack.c.bf16 %v6932, %v6931
  %v6991 = vpack.c.bf16 %v6934, %v6933
  %v6992 = vpack.c.bf16 %v6936, %v6935
  %v6993 = vpack.c.bf16 %v6938, %v6937
  %v6994 = vpack.c.bf16 %v6940, %v6939
  %v6995 = vpack.c.bf16 %v6942, %v6941
  %v6996 = vpack.c.bf16 %v6944, %v6943
  %v6997 = vpack.c.bf16 %v6946, %v6945
  %v6998 = vpack.c.bf16 %v6948, %v6947
  %v6999 = vpack.c.bf16 %v6950, %v6949
  %v7000 = vpack.c.bf16 %v6952, %v6951
  %v7001 = vpack.c.bf16 %v6954, %v6953
  %v7002 = vpack.c.bf16 %v6956, %v6955
  %v7003 = vpack.c.bf16 %v6958, %v6957
  %v7004 = vpack.c.bf16 %v6960, %v6959
  %v7005 = vpack.c.bf16 %v6962, %v6961
  %v7006 = vpack.c.bf16 %v6964, %v6963
  %v7007 = vpack.c.bf16 %v6966, %v6965
  %v7008 = vpack.c.bf16 %v6968, %v6967
  %v7009 = vpack.c.bf16 %v6970, %v6969
  %v7010 = vpack.c.bf16 %v6972, %v6971
  %v7011 = vpack.c.bf16 %v6974, %v6973
  %v7012 = vpack.c.bf16 %v6976, %v6975
  %v7013 = vpack.c.bf16 %v6978, %v6977
  %v7014 = vpack.c.bf16 %v6980, %v6979
  %v7015 = vpack.c.bf16 %v6982, %v6981
  %v7016 = vpack.c.bf16 %v6984, %v6983
  %7049 = vrot.lane.b32.xlu0 %v6985, 64
  %v7050 = vpop.permute.xlu0 %7049
  %7051 = vrot.lane.b32.xlu0 %v6986, 64
  %v7052 = vpop.permute.xlu0 %7051
  %7053 = vrot.lane.b32.xlu0 %v6987, 64
  %v7054 = vpop.permute.xlu0 %7053
  %7055 = vrot.lane.b32.xlu0 %v6988, 64
  %v7056 = vpop.permute.xlu0 %7055
  %7057 = vrot.lane.b32.xlu0 %v6989, 64
  %v7058 = vpop.permute.xlu0 %7057
  %7059 = vrot.lane.b32.xlu0 %v6990, 64
  %v7060 = vpop.permute.xlu0 %7059
  %7061 = vrot.lane.b32.xlu0 %v6991, 64
  %v7062 = vpop.permute.xlu0 %7061
  %7063 = vrot.lane.b32.xlu0 %v6992, 64
  %v7064 = vpop.permute.xlu0 %7063
  %7065 = vrot.lane.b32.xlu0 %v6993, 64
  %v7066 = vpop.permute.xlu0 %7065
  %7067 = vrot.lane.b32.xlu0 %v6994, 64
  %v7068 = vpop.permute.xlu0 %7067
  %7069 = vrot.lane.b32.xlu0 %v6995, 64
  %v7070 = vpop.permute.xlu0 %7069
  %7071 = vrot.lane.b32.xlu0 %v6996, 64
  %v7072 = vpop.permute.xlu0 %7071
  %7073 = vrot.lane.b32.xlu0 %v6997, 64
  %v7074 = vpop.permute.xlu0 %7073
  %7075 = vrot.lane.b32.xlu0 %v6998, 64
  %v7076 = vpop.permute.xlu0 %7075
  %7077 = vrot.lane.b32.xlu0 %v6999, 64
  %v7078 = vpop.permute.xlu0 %7077
  %7079 = vrot.lane.b32.xlu0 %v7000, 64
  %v7080 = vpop.permute.xlu0 %7079
  %7081 = vrot.lane.b32.xlu0 %v7001, 64
  %v7082 = vpop.permute.xlu0 %7081
  %7083 = vrot.lane.b32.xlu0 %v7002, 64
  %v7084 = vpop.permute.xlu0 %7083
  %7085 = vrot.lane.b32.xlu0 %v7003, 64
  %v7086 = vpop.permute.xlu0 %7085
  %7087 = vrot.lane.b32.xlu0 %v7004, 64
  %v7088 = vpop.permute.xlu0 %7087
  %7089 = vrot.lane.b32.xlu0 %v7005, 64
  %v7090 = vpop.permute.xlu0 %7089
  %7091 = vrot.lane.b32.xlu0 %v7006, 64
  %v7092 = vpop.permute.xlu0 %7091
  %7093 = vrot.lane.b32.xlu0 %v7007, 64
  %v7094 = vpop.permute.xlu0 %7093
  %7095 = vrot.lane.b32.xlu0 %v7008, 64
  %v7096 = vpop.permute.xlu0 %7095
  %7097 = vrot.lane.b32.xlu0 %v7009, 64
  %v7098 = vpop.permute.xlu0 %7097
  %7099 = vrot.lane.b32.xlu0 %v7010, 64
  %v7100 = vpop.permute.xlu0 %7099
  %7101 = vrot.lane.b32.xlu0 %v7011, 64
  %v7102 = vpop.permute.xlu0 %7101
  %7103 = vrot.lane.b32.xlu0 %v7012, 64
  %v7104 = vpop.permute.xlu0 %7103
  %7105 = vrot.lane.b32.xlu0 %v7013, 64
  %v7106 = vpop.permute.xlu0 %7105
  %7107 = vrot.lane.b32.xlu0 %v7014, 64
  %v7108 = vpop.permute.xlu0 %7107
  %7109 = vrot.lane.b32.xlu0 %v7015, 64
  %v7110 = vpop.permute.xlu0 %7109
  %7111 = vrot.lane.b32.xlu0 %v7016, 64
  %v7112 = vpop.permute.xlu0 %7111
  %7145 = vst.msk [vmem:[#allocation3] sm:$0xff] %vm2537, %v7050
  %7146 = vst.msk [vmem:[#allocation3 + $0x18] sm:$0xff] %vm2537, %v7052
  %7147 = vst.msk [vmem:[#allocation3 + $0x30] sm:$0xff] %vm2537, %v7054
  %7148 = vst.msk [vmem:[#allocation3 + $0x48] sm:$0xff] %vm2537, %v7056
  %7149 = vst.msk [vmem:[#allocation3 + $0x60] sm:$0xff] %vm2537, %v7058
  %7150 = vst.msk [vmem:[#allocation3 + $0x78] sm:$0xff] %vm2537, %v7060
  %7151 = vst.msk [vmem:[#allocation3 + $0x90] sm:$0xff] %vm2537, %v7062
  %7152 = vst.msk [vmem:[#allocation3 + $0xa8] sm:$0xff] %vm2537, %v7064
  %7153 = vst.msk [vmem:[#allocation3 + $0xc0] sm:$0xff] %vm2537, %v7066
  %7154 = vst.msk [vmem:[#allocation3 + $0xd8] sm:$0xff] %vm2537, %v7068
  %7155 = vst.msk [vmem:[#allocation3 + $0xf0] sm:$0xff] %vm2537, %v7070
  %7156 = vst.msk [vmem:[#allocation3 + $0x108] sm:$0xff] %vm2537, %v7072
  %7157 = vst.msk [vmem:[#allocation3 + $0x120] sm:$0xff] %vm2537, %v7074
  %7158 = vst.msk [vmem:[#allocation3 + $0x138] sm:$0xff] %vm2537, %v7076
  %7159 = vst.msk [vmem:[#allocation3 + $0x150] sm:$0xff] %vm2537, %v7078
  %7160 = vst.msk [vmem:[#allocation3 + $0x168] sm:$0xff] %vm2537, %v7080
  %7161 = vst.msk [vmem:[#allocation3 + $0x180] sm:$0xff] %vm2537, %v7082
  %7162 = vst.msk [vmem:[#allocation3 + $0x198] sm:$0xff] %vm2537, %v7084
  %7163 = vst.msk [vmem:[#allocation3 + $0x1b0] sm:$0xff] %vm2537, %v7086
  %7164 = vst.msk [vmem:[#allocation3 + $0x1c8] sm:$0xff] %vm2537, %v7088
  %7165 = vst.msk [vmem:[#allocation3 + $0x1e0] sm:$0xff] %vm2537, %v7090
  %7166 = vst.msk [vmem:[#allocation3 + $0x1f8] sm:$0xff] %vm2537, %v7092
  %7167 = vst.msk [vmem:[#allocation3 + $0x210] sm:$0xff] %vm2537, %v7094
  %7168 = vst.msk [vmem:[#allocation3 + $0x228] sm:$0xff] %vm2537, %v7096
  %7169 = vst.msk [vmem:[#allocation3 + $0x240] sm:$0xff] %vm2537, %v7098
  %7170 = vst.msk [vmem:[#allocation3 + $0x258] sm:$0xff] %vm2537, %v7100
  %7171 = vst.msk [vmem:[#allocation3 + $0x270] sm:$0xff] %vm2537, %v7102
  %7172 = vst.msk [vmem:[#allocation3 + $0x288] sm:$0xff] %vm2537, %v7104
  %7173 = vst.msk [vmem:[#allocation3 + $0x2a0] sm:$0xff] %vm2537, %v7106
  %7174 = vst.msk [vmem:[#allocation3 + $0x2b8] sm:$0xff] %vm2537, %v7108
  %7175 = vst.msk [vmem:[#allocation3 + $0x2d0] sm:$0xff] %vm2537, %v7110
  %7176 = vst.msk [vmem:[#allocation3 + $0x2e8] sm:$0xff] %vm2537, %v7112
  %v7177 = vld [vmem:[#allocation2 + $0x17] sm:$0xff]
  %v7178 = vld [vmem:[#allocation2 + $0x1f] sm:$0xff]
  %v7179 = vld [vmem:[#allocation2 + $0x27] sm:$0xff]
  %v7180 = vld [vmem:[#allocation2 + $0x2f] sm:$0xff]
  %v7181 = vld [vmem:[#allocation2 + $0x37] sm:$0xff]
  %v7182 = vld [vmem:[#allocation2 + $0x3f] sm:$0xff]
  %v7183 = vld [vmem:[#allocation2 + $0x47] sm:$0xff]
  %v7184 = vld [vmem:[#allocation2 + $0x4f] sm:$0xff]
  %v7185 = vld [vmem:[#allocation2 + $0x57] sm:$0xff]
  %v7186 = vld [vmem:[#allocation2 + $0x5f] sm:$0xff]
  %v7187 = vld [vmem:[#allocation2 + $0x67] sm:$0xff]
  %v7188 = vld [vmem:[#allocation2 + $0x6f] sm:$0xff]
  %v7189 = vld [vmem:[#allocation2 + $0x77] sm:$0xff]
  %v7190 = vld [vmem:[#allocation2 + $0x7f] sm:$0xff]
  %v7191 = vld [vmem:[#allocation2 + $0x87] sm:$0xff]
  %v7192 = vld [vmem:[#allocation2 + $0x8f] sm:$0xff]
  %v7193 = vld [vmem:[#allocation2 + $0x97] sm:$0xff]
  %v7194 = vld [vmem:[#allocation2 + $0x9f] sm:$0xff]
  %v7195 = vld [vmem:[#allocation2 + $0xa7] sm:$0xff]
  %v7196 = vld [vmem:[#allocation2 + $0xaf] sm:$0xff]
  %v7197 = vld [vmem:[#allocation2 + $0xb7] sm:$0xff]
  %v7198 = vld [vmem:[#allocation2 + $0xbf] sm:$0xff]
  %v7199 = vld [vmem:[#allocation2 + $0xc7] sm:$0xff]
  %v7200 = vld [vmem:[#allocation2 + $0xcf] sm:$0xff]
  %v7201 = vld [vmem:[#allocation2 + $0xd7] sm:$0xff]
  %v7202 = vld [vmem:[#allocation2 + $0xdf] sm:$0xff]
  %v7203 = vld [vmem:[#allocation2 + $0xe7] sm:$0xff]
  %v7204 = vld [vmem:[#allocation2 + $0xef] sm:$0xff]
  %v7205 = vld [vmem:[#allocation2 + $0xf7] sm:$0xff]
  %v7206 = vld [vmem:[#allocation2 + $0xff] sm:$0xff]
  %v7207 = vld [vmem:[#allocation2 + $0x107] sm:$0xff]
  %v7208 = vld [vmem:[#allocation2 + $0x10f] sm:$0xff]
  %v7209 = vld [vmem:[#allocation2 + $0x117] sm:$0xff]
  %v7210 = vld [vmem:[#allocation2 + $0x11f] sm:$0xff]
  %v7211 = vld [vmem:[#allocation2 + $0x127] sm:$0xff]
  %v7212 = vld [vmem:[#allocation2 + $0x12f] sm:$0xff]
  %v7213 = vld [vmem:[#allocation2 + $0x137] sm:$0xff]
  %v7214 = vld [vmem:[#allocation2 + $0x13f] sm:$0xff]
  %v7215 = vld [vmem:[#allocation2 + $0x147] sm:$0xff]
  %v7216 = vld [vmem:[#allocation2 + $0x14f] sm:$0xff]
  %v7217 = vld [vmem:[#allocation2 + $0x157] sm:$0xff]
  %v7218 = vld [vmem:[#allocation2 + $0x15f] sm:$0xff]
  %v7219 = vld [vmem:[#allocation2 + $0x167] sm:$0xff]
  %v7220 = vld [vmem:[#allocation2 + $0x16f] sm:$0xff]
  %v7221 = vld [vmem:[#allocation2 + $0x177] sm:$0xff]
  %v7222 = vld [vmem:[#allocation2 + $0x17f] sm:$0xff]
  %v7223 = vld [vmem:[#allocation2 + $0x187] sm:$0xff]
  %v7224 = vld [vmem:[#allocation2 + $0x18f] sm:$0xff]
  %v7225 = vld [vmem:[#allocation2 + $0x197] sm:$0xff]
  %v7226 = vld [vmem:[#allocation2 + $0x19f] sm:$0xff]
  %v7227 = vld [vmem:[#allocation2 + $0x1a7] sm:$0xff]
  %v7228 = vld [vmem:[#allocation2 + $0x1af] sm:$0xff]
  %v7229 = vld [vmem:[#allocation2 + $0x1b7] sm:$0xff]
  %v7230 = vld [vmem:[#allocation2 + $0x1bf] sm:$0xff]
  %v7231 = vld [vmem:[#allocation2 + $0x1c7] sm:$0xff]
  %v7232 = vld [vmem:[#allocation2 + $0x1cf] sm:$0xff]
  %v7233 = vld [vmem:[#allocation2 + $0x1d7] sm:$0xff]
  %v7234 = vld [vmem:[#allocation2 + $0x1df] sm:$0xff]
  %v7235 = vld [vmem:[#allocation2 + $0x1e7] sm:$0xff]
  %v7236 = vld [vmem:[#allocation2 + $0x1ef] sm:$0xff]
  %v7237 = vld [vmem:[#allocation2 + $0x1f7] sm:$0xff]
  %v7238 = vld [vmem:[#allocation2 + $0x1ff] sm:$0xff]
  %v7239 = vld [vmem:[#allocation2 + $0x207] sm:$0xff]
  %v7240 = vld [vmem:[#allocation2 + $0x20f] sm:$0xff]
  %v7241 = vsel %vm2698, %v7177, 0.0
  %v7242 = vsel %vm2699, %v7178, 0.0
  %v7243 = vsel %vm2700, %v7179, 0.0
  %v7244 = vsel %vm2701, %v7180, 0.0
  %v7245 = vsel %vm2702, %v7181, 0.0
  %v7246 = vsel %vm2703, %v7182, 0.0
  %v7247 = vsel %vm2704, %v7183, 0.0
  %v7248 = vsel %vm2705, %v7184, 0.0
  %v7249 = vsel %vm2706, %v7185, 0.0
  %v7250 = vsel %vm2707, %v7186, 0.0
  %v7251 = vsel %vm2708, %v7187, 0.0
  %v7252 = vsel %vm2709, %v7188, 0.0
  %v7253 = vsel %vm2710, %v7189, 0.0
  %v7254 = vsel %vm2711, %v7190, 0.0
  %v7255 = vsel %vm2712, %v7191, 0.0
  %v7256 = vsel %vm2713, %v7192, 0.0
  %v7257 = vsel %vm2714, %v7193, 0.0
  %v7258 = vsel %vm2715, %v7194, 0.0
  %v7259 = vsel %vm2716, %v7195, 0.0
  %v7260 = vsel %vm2717, %v7196, 0.0
  %v7261 = vsel %vm2718, %v7197, 0.0
  %v7262 = vsel %vm2719, %v7198, 0.0
  %v7263 = vsel %vm2720, %v7199, 0.0
  %v7264 = vsel %vm2721, %v7200, 0.0
  %v7265 = vsel %vm2722, %v7201, 0.0
  %v7266 = vsel %vm2723, %v7202, 0.0
  %v7267 = vsel %vm2724, %v7203, 0.0
  %v7268 = vsel %vm2725, %v7204, 0.0
  %v7269 = vsel %vm2726, %v7205, 0.0
  %v7270 = vsel %vm2727, %v7206, 0.0
  %v7271 = vsel %vm2728, %v7207, 0.0
  %v7272 = vsel %vm2729, %v7208, 0.0
  %v7273 = vsel %vm2730, %v7209, 0.0
  %v7274 = vsel %vm2731, %v7210, 0.0
  %v7275 = vsel %vm2732, %v7211, 0.0
  %v7276 = vsel %vm2733, %v7212, 0.0
  %v7277 = vsel %vm2734, %v7213, 0.0
  %v7278 = vsel %vm2735, %v7214, 0.0
  %v7279 = vsel %vm2736, %v7215, 0.0
  %v7280 = vsel %vm2737, %v7216, 0.0
  %v7281 = vsel %vm2738, %v7217, 0.0
  %v7282 = vsel %vm2739, %v7218, 0.0
  %v7283 = vsel %vm2740, %v7219, 0.0
  %v7284 = vsel %vm2741, %v7220, 0.0
  %v7285 = vsel %vm2742, %v7221, 0.0
  %v7286 = vsel %vm2743, %v7222, 0.0
  %v7287 = vsel %vm2744, %v7223, 0.0
  %v7288 = vsel %vm2745, %v7224, 0.0
  %v7289 = vsel %vm2746, %v7225, 0.0
  %v7290 = vsel %vm2747, %v7226, 0.0
  %v7291 = vsel %vm2748, %v7227, 0.0
  %v7292 = vsel %vm2749, %v7228, 0.0
  %v7293 = vsel %vm2750, %v7229, 0.0
  %v7294 = vsel %vm2751, %v7230, 0.0
  %v7295 = vsel %vm2752, %v7231, 0.0
  %v7296 = vsel %vm2753, %v7232, 0.0
  %v7297 = vsel %vm2754, %v7233, 0.0
  %v7298 = vsel %vm2755, %v7234, 0.0
  %v7299 = vsel %vm2756, %v7235, 0.0
  %v7300 = vsel %vm2757, %v7236, 0.0
  %v7301 = vsel %vm2758, %v7237, 0.0
  %v7302 = vsel %vm2759, %v7238, 0.0
  %v7303 = vsel %vm2760, %v7239, 0.0
  %v7304 = vsel %vm2761, %v7240, 0.0
  %v7305 = vpack.c.bf16 %v7242, %v7241
  %v7306 = vpack.c.bf16 %v7244, %v7243
  %v7307 = vpack.c.bf16 %v7246, %v7245
  %v7308 = vpack.c.bf16 %v7248, %v7247
  %v7309 = vpack.c.bf16 %v7250, %v7249
  %v7310 = vpack.c.bf16 %v7252, %v7251
  %v7311 = vpack.c.bf16 %v7254, %v7253
  %v7312 = vpack.c.bf16 %v7256, %v7255
  %v7313 = vpack.c.bf16 %v7258, %v7257
  %v7314 = vpack.c.bf16 %v7260, %v7259
  %v7315 = vpack.c.bf16 %v7262, %v7261
  %v7316 = vpack.c.bf16 %v7264, %v7263
  %v7317 = vpack.c.bf16 %v7266, %v7265
  %v7318 = vpack.c.bf16 %v7268, %v7267
  %v7319 = vpack.c.bf16 %v7270, %v7269
  %v7320 = vpack.c.bf16 %v7272, %v7271
  %v7321 = vpack.c.bf16 %v7274, %v7273
  %v7322 = vpack.c.bf16 %v7276, %v7275
  %v7323 = vpack.c.bf16 %v7278, %v7277
  %v7324 = vpack.c.bf16 %v7280, %v7279
  %v7325 = vpack.c.bf16 %v7282, %v7281
  %v7326 = vpack.c.bf16 %v7284, %v7283
  %v7327 = vpack.c.bf16 %v7286, %v7285
  %v7328 = vpack.c.bf16 %v7288, %v7287
  %v7329 = vpack.c.bf16 %v7290, %v7289
  %v7330 = vpack.c.bf16 %v7292, %v7291
  %v7331 = vpack.c.bf16 %v7294, %v7293
  %v7332 = vpack.c.bf16 %v7296, %v7295
  %v7333 = vpack.c.bf16 %v7298, %v7297
  %v7334 = vpack.c.bf16 %v7300, %v7299
  %v7335 = vpack.c.bf16 %v7302, %v7301
  %v7336 = vpack.c.bf16 %v7304, %v7303
  %7369 = vrot.lane.b32.xlu0 %v7305, 96
  %v7370 = vpop.permute.xlu0 %7369
  %7371 = vrot.lane.b32.xlu0 %v7306, 96
  %v7372 = vpop.permute.xlu0 %7371
  %7373 = vrot.lane.b32.xlu0 %v7307, 96
  %v7374 = vpop.permute.xlu0 %7373
  %7375 = vrot.lane.b32.xlu0 %v7308, 96
  %v7376 = vpop.permute.xlu0 %7375
  %7377 = vrot.lane.b32.xlu0 %v7309, 96
  %v7378 = vpop.permute.xlu0 %7377
  %7379 = vrot.lane.b32.xlu0 %v7310, 96
  %v7380 = vpop.permute.xlu0 %7379
  %7381 = vrot.lane.b32.xlu0 %v7311, 96
  %v7382 = vpop.permute.xlu0 %7381
  %7383 = vrot.lane.b32.xlu0 %v7312, 96
  %v7384 = vpop.permute.xlu0 %7383
  %7385 = vrot.lane.b32.xlu0 %v7313, 96
  %v7386 = vpop.permute.xlu0 %7385
  %7387 = vrot.lane.b32.xlu0 %v7314, 96
  %v7388 = vpop.permute.xlu0 %7387
  %7389 = vrot.lane.b32.xlu0 %v7315, 96
  %v7390 = vpop.permute.xlu0 %7389
  %7391 = vrot.lane.b32.xlu0 %v7316, 96
  %v7392 = vpop.permute.xlu0 %7391
  %7393 = vrot.lane.b32.xlu0 %v7317, 96
  %v7394 = vpop.permute.xlu0 %7393
  %7395 = vrot.lane.b32.xlu0 %v7318, 96
  %v7396 = vpop.permute.xlu0 %7395
  %7397 = vrot.lane.b32.xlu0 %v7319, 96
  %v7398 = vpop.permute.xlu0 %7397
  %7399 = vrot.lane.b32.xlu0 %v7320, 96
  %v7400 = vpop.permute.xlu0 %7399
  %7401 = vrot.lane.b32.xlu0 %v7321, 96
  %v7402 = vpop.permute.xlu0 %7401
  %7403 = vrot.lane.b32.xlu0 %v7322, 96
  %v7404 = vpop.permute.xlu0 %7403
  %7405 = vrot.lane.b32.xlu0 %v7323, 96
  %v7406 = vpop.permute.xlu0 %7405
  %7407 = vrot.lane.b32.xlu0 %v7324, 96
  %v7408 = vpop.permute.xlu0 %7407
  %7409 = vrot.lane.b32.xlu0 %v7325, 96
  %v7410 = vpop.permute.xlu0 %7409
  %7411 = vrot.lane.b32.xlu0 %v7326, 96
  %v7412 = vpop.permute.xlu0 %7411
  %7413 = vrot.lane.b32.xlu0 %v7327, 96
  %v7414 = vpop.permute.xlu0 %7413
  %7415 = vrot.lane.b32.xlu0 %v7328, 96
  %v7416 = vpop.permute.xlu0 %7415
  %7417 = vrot.lane.b32.xlu0 %v7329, 96
  %v7418 = vpop.permute.xlu0 %7417
  %7419 = vrot.lane.b32.xlu0 %v7330, 96
  %v7420 = vpop.permute.xlu0 %7419
  %7421 = vrot.lane.b32.xlu0 %v7331, 96
  %v7422 = vpop.permute.xlu0 %7421
  %7423 = vrot.lane.b32.xlu0 %v7332, 96
  %v7424 = vpop.permute.xlu0 %7423
  %7425 = vrot.lane.b32.xlu0 %v7333, 96
  %v7426 = vpop.permute.xlu0 %7425
  %7427 = vrot.lane.b32.xlu0 %v7334, 96
  %v7428 = vpop.permute.xlu0 %7427
  %7429 = vrot.lane.b32.xlu0 %v7335, 96
  %v7430 = vpop.permute.xlu0 %7429
  %7431 = vrot.lane.b32.xlu0 %v7336, 96
  %v7432 = vpop.permute.xlu0 %7431
  %7465 = vst.msk [vmem:[#allocation3] sm:$0xff] %vm2986, %v7370
  %7466 = vst.msk [vmem:[#allocation3 + $0x18] sm:$0xff] %vm2986, %v7372
  %7467 = vst.msk [vmem:[#allocation3 + $0x30] sm:$0xff] %vm2986, %v7374
  %7468 = vst.msk [vmem:[#allocation3 + $0x48] sm:$0xff] %vm2986, %v7376
  %7469 = vst.msk [vmem:[#allocation3 + $0x60] sm:$0xff] %vm2986, %v7378
  %7470 = vst.msk [vmem:[#allocation3 + $0x78] sm:$0xff] %vm2986, %v7380
  %7471 = vst.msk [vmem:[#allocation3 + $0x90] sm:$0xff] %vm2986, %v7382
  %7472 = vst.msk [vmem:[#allocation3 + $0xa8] sm:$0xff] %vm2986, %v7384
  %7473 = vst.msk [vmem:[#allocation3 + $0xc0] sm:$0xff] %vm2986, %v7386
  %7474 = vst.msk [vmem:[#allocation3 + $0xd8] sm:$0xff] %vm2986, %v7388
  %7475 = vst.msk [vmem:[#allocation3 + $0xf0] sm:$0xff] %vm2986, %v7390
  %7476 = vst.msk [vmem:[#allocation3 + $0x108] sm:$0xff] %vm2986, %v7392
  %7477 = vst.msk [vmem:[#allocation3 + $0x120] sm:$0xff] %vm2986, %v7394
  %7478 = vst.msk [vmem:[#allocation3 + $0x138] sm:$0xff] %vm2986, %v7396
  %7479 = vst.msk [vmem:[#allocation3 + $0x150] sm:$0xff] %vm2986, %v7398
  %7480 = vst.msk [vmem:[#allocation3 + $0x168] sm:$0xff] %vm2986, %v7400
  %7481 = vst.msk [vmem:[#allocation3 + $0x180] sm:$0xff] %vm2986, %v7402
  %7482 = vst.msk [vmem:[#allocation3 + $0x198] sm:$0xff] %vm2986, %v7404
  %7483 = vst.msk [vmem:[#allocation3 + $0x1b0] sm:$0xff] %vm2986, %v7406
  %7484 = vst.msk [vmem:[#allocation3 + $0x1c8] sm:$0xff] %vm2986, %v7408
  %7485 = vst.msk [vmem:[#allocation3 + $0x1e0] sm:$0xff] %vm2986, %v7410
  %7486 = vst.msk [vmem:[#allocation3 + $0x1f8] sm:$0xff] %vm2986, %v7412
  %7487 = vst.msk [vmem:[#allocation3 + $0x210] sm:$0xff] %vm2986, %v7414
  %7488 = vst.msk [vmem:[#allocation3 + $0x228] sm:$0xff] %vm2986, %v7416
  %7489 = vst.msk [vmem:[#allocation3 + $0x240] sm:$0xff] %vm2986, %v7418
  %7490 = vst.msk [vmem:[#allocation3 + $0x258] sm:$0xff] %vm2986, %v7420
  %7491 = vst.msk [vmem:[#allocation3 + $0x270] sm:$0xff] %vm2986, %v7422
  %7492 = vst.msk [vmem:[#allocation3 + $0x288] sm:$0xff] %vm2986, %v7424
  %7493 = vst.msk [vmem:[#allocation3 + $0x2a0] sm:$0xff] %vm2986, %v7426
  %7494 = vst.msk [vmem:[#allocation3 + $0x2b8] sm:$0xff] %vm2986, %v7428
  %7495 = vst.msk [vmem:[#allocation3 + $0x2d0] sm:$0xff] %vm2986, %v7430
  %7496 = vst.msk [vmem:[#allocation3 + $0x2e8] sm:$0xff] %vm2986, %v7432
  %v7497 = vld [vmem:[#allocation2 + $0x18] sm:$0xff]
  %v7498 = vld [vmem:[#allocation2 + $0x20] sm:$0xff]
  %v7499 = vld [vmem:[#allocation2 + $0x28] sm:$0xff]
  %v7500 = vld [vmem:[#allocation2 + $0x30] sm:$0xff]
  %v7501 = vld [vmem:[#allocation2 + $0x38] sm:$0xff]
  %v7502 = vld [vmem:[#allocation2 + $0x40] sm:$0xff]
  %v7503 = vld [vmem:[#allocation2 + $0x48] sm:$0xff]
  %v7504 = vld [vmem:[#allocation2 + $0x50] sm:$0xff]
  %v7505 = vld [vmem:[#allocation2 + $0x58] sm:$0xff]
  %v7506 = vld [vmem:[#allocation2 + $0x60] sm:$0xff]
  %v7507 = vld [vmem:[#allocation2 + $0x68] sm:$0xff]
  %v7508 = vld [vmem:[#allocation2 + $0x70] sm:$0xff]
  %v7509 = vld [vmem:[#allocation2 + $0x78] sm:$0xff]
  %v7510 = vld [vmem:[#allocation2 + $0x80] sm:$0xff]
  %v7511 = vld [vmem:[#allocation2 + $0x88] sm:$0xff]
  %v7512 = vld [vmem:[#allocation2 + $0x90] sm:$0xff]
  %v7513 = vld [vmem:[#allocation2 + $0x98] sm:$0xff]
  %v7514 = vld [vmem:[#allocation2 + $0xa0] sm:$0xff]
  %v7515 = vld [vmem:[#allocation2 + $0xa8] sm:$0xff]
  %v7516 = vld [vmem:[#allocation2 + $0xb0] sm:$0xff]
  %v7517 = vld [vmem:[#allocation2 + $0xb8] sm:$0xff]
  %v7518 = vld [vmem:[#allocation2 + $0xc0] sm:$0xff]
  %v7519 = vld [vmem:[#allocation2 + $0xc8] sm:$0xff]
  %v7520 = vld [vmem:[#allocation2 + $0xd0] sm:$0xff]
  %v7521 = vld [vmem:[#allocation2 + $0xd8] sm:$0xff]
  %v7522 = vld [vmem:[#allocation2 + $0xe0] sm:$0xff]
  %v7523 = vld [vmem:[#allocation2 + $0xe8] sm:$0xff]
  %v7524 = vld [vmem:[#allocation2 + $0xf0] sm:$0xff]
  %v7525 = vld [vmem:[#allocation2 + $0xf8] sm:$0xff]
  %v7526 = vld [vmem:[#allocation2 + $0x100] sm:$0xff]
  %v7527 = vld [vmem:[#allocation2 + $0x108] sm:$0xff]
  %v7528 = vld [vmem:[#allocation2 + $0x110] sm:$0xff]
  %v7529 = vld [vmem:[#allocation2 + $0x118] sm:$0xff]
  %v7530 = vld [vmem:[#allocation2 + $0x120] sm:$0xff]
  %v7531 = vld [vmem:[#allocation2 + $0x128] sm:$0xff]
  %v7532 = vld [vmem:[#allocation2 + $0x130] sm:$0xff]
  %v7533 = vld [vmem:[#allocation2 + $0x138] sm:$0xff]
  %v7534 = vld [vmem:[#allocation2 + $0x140] sm:$0xff]
  %v7535 = vld [vmem:[#allocation2 + $0x148] sm:$0xff]
  %v7536 = vld [vmem:[#allocation2 + $0x150] sm:$0xff]
  %v7537 = vld [vmem:[#allocation2 + $0x158] sm:$0xff]
  %v7538 = vld [vmem:[#allocation2 + $0x160] sm:$0xff]
  %v7539 = vld [vmem:[#allocation2 + $0x168] sm:$0xff]
  %v7540 = vld [vmem:[#allocation2 + $0x170] sm:$0xff]
  %v7541 = vld [vmem:[#allocation2 + $0x178] sm:$0xff]
  %v7542 = vld [vmem:[#allocation2 + $0x180] sm:$0xff]
  %v7543 = vld [vmem:[#allocation2 + $0x188] sm:$0xff]
  %v7544 = vld [vmem:[#allocation2 + $0x190] sm:$0xff]
  %v7545 = vld [vmem:[#allocation2 + $0x198] sm:$0xff]
  %v7546 = vld [vmem:[#allocation2 + $0x1a0] sm:$0xff]
  %v7547 = vld [vmem:[#allocation2 + $0x1a8] sm:$0xff]
  %v7548 = vld [vmem:[#allocation2 + $0x1b0] sm:$0xff]
  %v7549 = vld [vmem:[#allocation2 + $0x1b8] sm:$0xff]
  %v7550 = vld [vmem:[#allocation2 + $0x1c0] sm:$0xff]
  %v7551 = vld [vmem:[#allocation2 + $0x1c8] sm:$0xff]
  %v7552 = vld [vmem:[#allocation2 + $0x1d0] sm:$0xff]
  %v7553 = vld [vmem:[#allocation2 + $0x1d8] sm:$0xff]
  %v7554 = vld [vmem:[#allocation2 + $0x1e0] sm:$0xff]
  %v7555 = vld [vmem:[#allocation2 + $0x1e8] sm:$0xff]
  %v7556 = vld [vmem:[#allocation2 + $0x1f0] sm:$0xff]
  %v7557 = vld [vmem:[#allocation2 + $0x1f8] sm:$0xff]
  %v7558 = vld [vmem:[#allocation2 + $0x200] sm:$0xff]
  %v7559 = vld [vmem:[#allocation2 + $0x208] sm:$0xff]
  %v7560 = vld [vmem:[#allocation2 + $0x210] sm:$0xff]
  %v7561 = vpack.c.bf16 %v7498, %v7497
  %v7562 = vpack.c.bf16 %v7500, %v7499
  %v7563 = vpack.c.bf16 %v7502, %v7501
  %v7564 = vpack.c.bf16 %v7504, %v7503
  %v7565 = vpack.c.bf16 %v7506, %v7505
  %v7566 = vpack.c.bf16 %v7508, %v7507
  %v7567 = vpack.c.bf16 %v7510, %v7509
  %v7568 = vpack.c.bf16 %v7512, %v7511
  %v7569 = vpack.c.bf16 %v7514, %v7513
  %v7570 = vpack.c.bf16 %v7516, %v7515
  %v7571 = vpack.c.bf16 %v7518, %v7517
  %v7572 = vpack.c.bf16 %v7520, %v7519
  %v7573 = vpack.c.bf16 %v7522, %v7521
  %v7574 = vpack.c.bf16 %v7524, %v7523
  %v7575 = vpack.c.bf16 %v7526, %v7525
  %v7576 = vpack.c.bf16 %v7528, %v7527
  %v7577 = vpack.c.bf16 %v7530, %v7529
  %v7578 = vpack.c.bf16 %v7532, %v7531
  %v7579 = vpack.c.bf16 %v7534, %v7533
  %v7580 = vpack.c.bf16 %v7536, %v7535
  %v7581 = vpack.c.bf16 %v7538, %v7537
  %v7582 = vpack.c.bf16 %v7540, %v7539
  %v7583 = vpack.c.bf16 %v7542, %v7541
  %v7584 = vpack.c.bf16 %v7544, %v7543
  %v7585 = vpack.c.bf16 %v7546, %v7545
  %v7586 = vpack.c.bf16 %v7548, %v7547
  %v7587 = vpack.c.bf16 %v7550, %v7549
  %v7588 = vpack.c.bf16 %v7552, %v7551
  %v7589 = vpack.c.bf16 %v7554, %v7553
  %v7590 = vpack.c.bf16 %v7556, %v7555
  %v7591 = vpack.c.bf16 %v7558, %v7557
  %v7592 = vpack.c.bf16 %v7560, %v7559
  %7593 = vst.msk [vmem:[#allocation3 + $0x8] sm:$0xff] %vm30, %v7561
  %7594 = vst.msk [vmem:[#allocation3 + $0x20] sm:$0xff] %vm30, %v7562
  %7595 = vst.msk [vmem:[#allocation3 + $0x38] sm:$0xff] %vm30, %v7563
  %7596 = vst.msk [vmem:[#allocation3 + $0x50] sm:$0xff] %vm30, %v7564
  %7597 = vst.msk [vmem:[#allocation3 + $0x68] sm:$0xff] %vm30, %v7565
  %7598 = vst.msk [vmem:[#allocation3 + $0x80] sm:$0xff] %vm30, %v7566
  %7599 = vst.msk [vmem:[#allocation3 + $0x98] sm:$0xff] %vm30, %v7567
  %7600 = vst.msk [vmem:[#allocation3 + $0xb0] sm:$0xff] %vm30, %v7568
  %7601 = vst.msk [vmem:[#allocation3 + $0xc8] sm:$0xff] %vm30, %v7569
  %7602 = vst.msk [vmem:[#allocation3 + $0xe0] sm:$0xff] %vm30, %v7570
  %7603 = vst.msk [vmem:[#allocation3 + $0xf8] sm:$0xff] %vm30, %v7571
  %7604 = vst.msk [vmem:[#allocation3 + $0x110] sm:$0xff] %vm30, %v7572
  %7605 = vst.msk [vmem:[#allocation3 + $0x128] sm:$0xff] %vm30, %v7573
  %7606 = vst.msk [vmem:[#allocation3 + $0x140] sm:$0xff] %vm30, %v7574
  %7607 = vst.msk [vmem:[#allocation3 + $0x158] sm:$0xff] %vm30, %v7575
  %7608 = vst.msk [vmem:[#allocation3 + $0x170] sm:$0xff] %vm30, %v7576
  %7609 = vst.msk [vmem:[#allocation3 + $0x188] sm:$0xff] %vm30, %v7577
  %7610 = vst.msk [vmem:[#allocation3 + $0x1a0] sm:$0xff] %vm30, %v7578
  %7611 = vst.msk [vmem:[#allocation3 + $0x1b8] sm:$0xff] %vm30, %v7579
  %7612 = vst.msk [vmem:[#allocation3 + $0x1d0] sm:$0xff] %vm30, %v7580
  %7613 = vst.msk [vmem:[#allocation3 + $0x1e8] sm:$0xff] %vm30, %v7581
  %7614 = vst.msk [vmem:[#allocation3 + $0x200] sm:$0xff] %vm30, %v7582
  %7615 = vst.msk [vmem:[#allocation3 + $0x218] sm:$0xff] %vm30, %v7583
  %7616 = vst.msk [vmem:[#allocation3 + $0x230] sm:$0xff] %vm30, %v7584
  %7617 = vst.msk [vmem:[#allocation3 + $0x248] sm:$0xff] %vm30, %v7585
  %7618 = vst.msk [vmem:[#allocation3 + $0x260] sm:$0xff] %vm30, %v7586
  %7619 = vst.msk [vmem:[#allocation3 + $0x278] sm:$0xff] %vm30, %v7587
  %7620 = vst.msk [vmem:[#allocation3 + $0x290] sm:$0xff] %vm30, %v7588
  %7621 = vst.msk [vmem:[#allocation3 + $0x2a8] sm:$0xff] %vm30, %v7589
  %7622 = vst.msk [vmem:[#allocation3 + $0x2c0] sm:$0xff] %vm30, %v7590
  %7623 = vst.msk [vmem:[#allocation3 + $0x2d8] sm:$0xff] %vm30, %v7591
  %7624 = vst.msk [vmem:[#allocation3 + $0x2f0] sm:$0xff] %vm30, %v7592
  %v7625 = vld [vmem:[#allocation2 + $0x19] sm:$0xff]
  %v7626 = vld [vmem:[#allocation2 + $0x21] sm:$0xff]
  %v7627 = vld [vmem:[#allocation2 + $0x29] sm:$0xff]
  %v7628 = vld [vmem:[#allocation2 + $0x31] sm:$0xff]
  %v7629 = vld [vmem:[#allocation2 + $0x39] sm:$0xff]
  %v7630 = vld [vmem:[#allocation2 + $0x41] sm:$0xff]
  %v7631 = vld [vmem:[#allocation2 + $0x49] sm:$0xff]
  %v7632 = vld [vmem:[#allocation2 + $0x51] sm:$0xff]
  %v7633 = vld [vmem:[#allocation2 + $0x59] sm:$0xff]
  %v7634 = vld [vmem:[#allocation2 + $0x61] sm:$0xff]
  %v7635 = vld [vmem:[#allocation2 + $0x69] sm:$0xff]
  %v7636 = vld [vmem:[#allocation2 + $0x71] sm:$0xff]
  %v7637 = vld [vmem:[#allocation2 + $0x79] sm:$0xff]
  %v7638 = vld [vmem:[#allocation2 + $0x81] sm:$0xff]
  %v7639 = vld [vmem:[#allocation2 + $0x89] sm:$0xff]
  %v7640 = vld [vmem:[#allocation2 + $0x91] sm:$0xff]
  %v7641 = vld [vmem:[#allocation2 + $0x99] sm:$0xff]
  %v7642 = vld [vmem:[#allocation2 + $0xa1] sm:$0xff]
  %v7643 = vld [vmem:[#allocation2 + $0xa9] sm:$0xff]
  %v7644 = vld [vmem:[#allocation2 + $0xb1] sm:$0xff]
  %v7645 = vld [vmem:[#allocation2 + $0xb9] sm:$0xff]
  %v7646 = vld [vmem:[#allocation2 + $0xc1] sm:$0xff]
  %v7647 = vld [vmem:[#allocation2 + $0xc9] sm:$0xff]
  %v7648 = vld [vmem:[#allocation2 + $0xd1] sm:$0xff]
  %v7649 = vld [vmem:[#allocation2 + $0xd9] sm:$0xff]
  %v7650 = vld [vmem:[#allocation2 + $0xe1] sm:$0xff]
  %v7651 = vld [vmem:[#allocation2 + $0xe9] sm:$0xff]
  %v7652 = vld [vmem:[#allocation2 + $0xf1] sm:$0xff]
  %v7653 = vld [vmem:[#allocation2 + $0xf9] sm:$0xff]
  %v7654 = vld [vmem:[#allocation2 + $0x101] sm:$0xff]
  %v7655 = vld [vmem:[#allocation2 + $0x109] sm:$0xff]
  %v7656 = vld [vmem:[#allocation2 + $0x111] sm:$0xff]
  %v7657 = vld [vmem:[#allocation2 + $0x119] sm:$0xff]
  %v7658 = vld [vmem:[#allocation2 + $0x121] sm:$0xff]
  %v7659 = vld [vmem:[#allocation2 + $0x129] sm:$0xff]
  %v7660 = vld [vmem:[#allocation2 + $0x131] sm:$0xff]
  %v7661 = vld [vmem:[#allocation2 + $0x139] sm:$0xff]
  %v7662 = vld [vmem:[#allocation2 + $0x141] sm:$0xff]
  %v7663 = vld [vmem:[#allocation2 + $0x149] sm:$0xff]
  %v7664 = vld [vmem:[#allocation2 + $0x151] sm:$0xff]
  %v7665 = vld [vmem:[#allocation2 + $0x159] sm:$0xff]
  %v7666 = vld [vmem:[#allocation2 + $0x161] sm:$0xff]
  %v7667 = vld [vmem:[#allocation2 + $0x169] sm:$0xff]
  %v7668 = vld [vmem:[#allocation2 + $0x171] sm:$0xff]
  %v7669 = vld [vmem:[#allocation2 + $0x179] sm:$0xff]
  %v7670 = vld [vmem:[#allocation2 + $0x181] sm:$0xff]
  %v7671 = vld [vmem:[#allocation2 + $0x189] sm:$0xff]
  %v7672 = vld [vmem:[#allocation2 + $0x191] sm:$0xff]
  %v7673 = vld [vmem:[#allocation2 + $0x199] sm:$0xff]
  %v7674 = vld [vmem:[#allocation2 + $0x1a1] sm:$0xff]
  %v7675 = vld [vmem:[#allocation2 + $0x1a9] sm:$0xff]
  %v7676 = vld [vmem:[#allocation2 + $0x1b1] sm:$0xff]
  %v7677 = vld [vmem:[#allocation2 + $0x1b9] sm:$0xff]
  %v7678 = vld [vmem:[#allocation2 + $0x1c1] sm:$0xff]
  %v7679 = vld [vmem:[#allocation2 + $0x1c9] sm:$0xff]
  %v7680 = vld [vmem:[#allocation2 + $0x1d1] sm:$0xff]
  %v7681 = vld [vmem:[#allocation2 + $0x1d9] sm:$0xff]
  %v7682 = vld [vmem:[#allocation2 + $0x1e1] sm:$0xff]
  %v7683 = vld [vmem:[#allocation2 + $0x1e9] sm:$0xff]
  %v7684 = vld [vmem:[#allocation2 + $0x1f1] sm:$0xff]
  %v7685 = vld [vmem:[#allocation2 + $0x1f9] sm:$0xff]
  %v7686 = vld [vmem:[#allocation2 + $0x201] sm:$0xff]
  %v7687 = vld [vmem:[#allocation2 + $0x209] sm:$0xff]
  %v7688 = vld [vmem:[#allocation2 + $0x211] sm:$0xff]
  %v7689 = vsel %vm3275, %v7625, 0.0
  %v7690 = vsel %vm3276, %v7626, 0.0
  %v7691 = vsel %vm3277, %v7627, 0.0
  %v7692 = vsel %vm3278, %v7628, 0.0
  %v7693 = vsel %vm3279, %v7629, 0.0
  %v7694 = vsel %vm3280, %v7630, 0.0
  %v7695 = vsel %vm3281, %v7631, 0.0
  %v7696 = vsel %vm3282, %v7632, 0.0
  %v7697 = vsel %vm3283, %v7633, 0.0
  %v7698 = vsel %vm3284, %v7634, 0.0
  %v7699 = vsel %vm3285, %v7635, 0.0
  %v7700 = vsel %vm3286, %v7636, 0.0
  %v7701 = vsel %vm3287, %v7637, 0.0
  %v7702 = vsel %vm3288, %v7638, 0.0
  %v7703 = vsel %vm3289, %v7639, 0.0
  %v7704 = vsel %vm3290, %v7640, 0.0
  %v7705 = vsel %vm3291, %v7641, 0.0
  %v7706 = vsel %vm3292, %v7642, 0.0
  %v7707 = vsel %vm3293, %v7643, 0.0
  %v7708 = vsel %vm3294, %v7644, 0.0
  %v7709 = vsel %vm3295, %v7645, 0.0
  %v7710 = vsel %vm3296, %v7646, 0.0
  %v7711 = vsel %vm3297, %v7647, 0.0
  %v7712 = vsel %vm3298, %v7648, 0.0
  %v7713 = vsel %vm3299, %v7649, 0.0
  %v7714 = vsel %vm3300, %v7650, 0.0
  %v7715 = vsel %vm3301, %v7651, 0.0
  %v7716 = vsel %vm3302, %v7652, 0.0
  %v7717 = vsel %vm3303, %v7653, 0.0
  %v7718 = vsel %vm3304, %v7654, 0.0
  %v7719 = vsel %vm3305, %v7655, 0.0
  %v7720 = vsel %vm3306, %v7656, 0.0
  %v7721 = vsel %vm3307, %v7657, 0.0
  %v7722 = vsel %vm3308, %v7658, 0.0
  %v7723 = vsel %vm3309, %v7659, 0.0
  %v7724 = vsel %vm3310, %v7660, 0.0
  %v7725 = vsel %vm3311, %v7661, 0.0
  %v7726 = vsel %vm3312, %v7662, 0.0
  %v7727 = vsel %vm3313, %v7663, 0.0
  %v7728 = vsel %vm3314, %v7664, 0.0
  %v7729 = vsel %vm3315, %v7665, 0.0
  %v7730 = vsel %vm3316, %v7666, 0.0
  %v7731 = vsel %vm3317, %v7667, 0.0
  %v7732 = vsel %vm3318, %v7668, 0.0
  %v7733 = vsel %vm3319, %v7669, 0.0
  %v7734 = vsel %vm3320, %v7670, 0.0
  %v7735 = vsel %vm3321, %v7671, 0.0
  %v7736 = vsel %vm3322, %v7672, 0.0
  %v7737 = vsel %vm3323, %v7673, 0.0
  %v7738 = vsel %vm3324, %v7674, 0.0
  %v7739 = vsel %vm3325, %v7675, 0.0
  %v7740 = vsel %vm3326, %v7676, 0.0
  %v7741 = vsel %vm3327, %v7677, 0.0
  %v7742 = vsel %vm3328, %v7678, 0.0
  %v7743 = vsel %vm3329, %v7679, 0.0
  %v7744 = vsel %vm3330, %v7680, 0.0
  %v7745 = vsel %vm3331, %v7681, 0.0
  %v7746 = vsel %vm3332, %v7682, 0.0
  %v7747 = vsel %vm3333, %v7683, 0.0
  %v7748 = vsel %vm3334, %v7684, 0.0
  %v7749 = vsel %vm3335, %v7685, 0.0
  %v7750 = vsel %vm3336, %v7686, 0.0
  %v7751 = vsel %vm3337, %v7687, 0.0
  %v7752 = vsel %vm3338, %v7688, 0.0
  %v7753 = vpack.c.bf16 %v7690, %v7689
  %v7754 = vpack.c.bf16 %v7692, %v7691
  %v7755 = vpack.c.bf16 %v7694, %v7693
  %v7756 = vpack.c.bf16 %v7696, %v7695
  %v7757 = vpack.c.bf16 %v7698, %v7697
  %v7758 = vpack.c.bf16 %v7700, %v7699
  %v7759 = vpack.c.bf16 %v7702, %v7701
  %v7760 = vpack.c.bf16 %v7704, %v7703
  %v7761 = vpack.c.bf16 %v7706, %v7705
  %v7762 = vpack.c.bf16 %v7708, %v7707
  %v7763 = vpack.c.bf16 %v7710, %v7709
  %v7764 = vpack.c.bf16 %v7712, %v7711
  %v7765 = vpack.c.bf16 %v7714, %v7713
  %v7766 = vpack.c.bf16 %v7716, %v7715
  %v7767 = vpack.c.bf16 %v7718, %v7717
  %v7768 = vpack.c.bf16 %v7720, %v7719
  %v7769 = vpack.c.bf16 %v7722, %v7721
  %v7770 = vpack.c.bf16 %v7724, %v7723
  %v7771 = vpack.c.bf16 %v7726, %v7725
  %v7772 = vpack.c.bf16 %v7728, %v7727
  %v7773 = vpack.c.bf16 %v7730, %v7729
  %v7774 = vpack.c.bf16 %v7732, %v7731
  %v7775 = vpack.c.bf16 %v7734, %v7733
  %v7776 = vpack.c.bf16 %v7736, %v7735
  %v7777 = vpack.c.bf16 %v7738, %v7737
  %v7778 = vpack.c.bf16 %v7740, %v7739
  %v7779 = vpack.c.bf16 %v7742, %v7741
  %v7780 = vpack.c.bf16 %v7744, %v7743
  %v7781 = vpack.c.bf16 %v7746, %v7745
  %v7782 = vpack.c.bf16 %v7748, %v7747
  %v7783 = vpack.c.bf16 %v7750, %v7749
  %v7784 = vpack.c.bf16 %v7752, %v7751
  %7817 = vrot.lane.b32.xlu0 %v7753, 32
  %v7818 = vpop.permute.xlu0 %7817
  %7819 = vrot.lane.b32.xlu0 %v7754, 32
  %v7820 = vpop.permute.xlu0 %7819
  %7821 = vrot.lane.b32.xlu0 %v7755, 32
  %v7822 = vpop.permute.xlu0 %7821
  %7823 = vrot.lane.b32.xlu0 %v7756, 32
  %v7824 = vpop.permute.xlu0 %7823
  %7825 = vrot.lane.b32.xlu0 %v7757, 32
  %v7826 = vpop.permute.xlu0 %7825
  %7827 = vrot.lane.b32.xlu0 %v7758, 32
  %v7828 = vpop.permute.xlu0 %7827
  %7829 = vrot.lane.b32.xlu0 %v7759, 32
  %v7830 = vpop.permute.xlu0 %7829
  %7831 = vrot.lane.b32.xlu0 %v7760, 32
  %v7832 = vpop.permute.xlu0 %7831
  %7833 = vrot.lane.b32.xlu0 %v7761, 32
  %v7834 = vpop.permute.xlu0 %7833
  %7835 = vrot.lane.b32.xlu0 %v7762, 32
  %v7836 = vpop.permute.xlu0 %7835
  %7837 = vrot.lane.b32.xlu0 %v7763, 32
  %v7838 = vpop.permute.xlu0 %7837
  %7839 = vrot.lane.b32.xlu0 %v7764, 32
  %v7840 = vpop.permute.xlu0 %7839
  %7841 = vrot.lane.b32.xlu0 %v7765, 32
  %v7842 = vpop.permute.xlu0 %7841
  %7843 = vrot.lane.b32.xlu0 %v7766, 32
  %v7844 = vpop.permute.xlu0 %7843
  %7845 = vrot.lane.b32.xlu0 %v7767, 32
  %v7846 = vpop.permute.xlu0 %7845
  %7847 = vrot.lane.b32.xlu0 %v7768, 32
  %v7848 = vpop.permute.xlu0 %7847
  %7849 = vrot.lane.b32.xlu0 %v7769, 32
  %v7850 = vpop.permute.xlu0 %7849
  %7851 = vrot.lane.b32.xlu0 %v7770, 32
  %v7852 = vpop.permute.xlu0 %7851
  %7853 = vrot.lane.b32.xlu0 %v7771, 32
  %v7854 = vpop.permute.xlu0 %7853
  %7855 = vrot.lane.b32.xlu0 %v7772, 32
  %v7856 = vpop.permute.xlu0 %7855
  %7857 = vrot.lane.b32.xlu0 %v7773, 32
  %v7858 = vpop.permute.xlu0 %7857
  %7859 = vrot.lane.b32.xlu0 %v7774, 32
  %v7860 = vpop.permute.xlu0 %7859
  %7861 = vrot.lane.b32.xlu0 %v7775, 32
  %v7862 = vpop.permute.xlu0 %7861
  %7863 = vrot.lane.b32.xlu0 %v7776, 32
  %v7864 = vpop.permute.xlu0 %7863
  %7865 = vrot.lane.b32.xlu0 %v7777, 32
  %v7866 = vpop.permute.xlu0 %7865
  %7867 = vrot.lane.b32.xlu0 %v7778, 32
  %v7868 = vpop.permute.xlu0 %7867
  %7869 = vrot.lane.b32.xlu0 %v7779, 32
  %v7870 = vpop.permute.xlu0 %7869
  %7871 = vrot.lane.b32.xlu0 %v7780, 32
  %v7872 = vpop.permute.xlu0 %7871
  %7873 = vrot.lane.b32.xlu0 %v7781, 32
  %v7874 = vpop.permute.xlu0 %7873
  %7875 = vrot.lane.b32.xlu0 %v7782, 32
  %v7876 = vpop.permute.xlu0 %7875
  %7877 = vrot.lane.b32.xlu0 %v7783, 32
  %v7878 = vpop.permute.xlu0 %7877
  %7879 = vrot.lane.b32.xlu0 %v7784, 32
  %v7880 = vpop.permute.xlu0 %7879
  %7913 = vst.msk [vmem:[#allocation3 + $0x8] sm:$0xff] %vm2088, %v7818
  %7914 = vst.msk [vmem:[#allocation3 + $0x20] sm:$0xff] %vm2088, %v7820
  %7915 = vst.msk [vmem:[#allocation3 + $0x38] sm:$0xff] %vm2088, %v7822
  %7916 = vst.msk [vmem:[#allocation3 + $0x50] sm:$0xff] %vm2088, %v7824
  %7917 = vst.msk [vmem:[#allocation3 + $0x68] sm:$0xff] %vm2088, %v7826
  %7918 = vst.msk [vmem:[#allocation3 + $0x80] sm:$0xff] %vm2088, %v7828
  %7919 = vst.msk [vmem:[#allocation3 + $0x98] sm:$0xff] %vm2088, %v7830
  %7920 = vst.msk [vmem:[#allocation3 + $0xb0] sm:$0xff] %vm2088, %v7832
  %7921 = vst.msk [vmem:[#allocation3 + $0xc8] sm:$0xff] %vm2088, %v7834
  %7922 = vst.msk [vmem:[#allocation3 + $0xe0] sm:$0xff] %vm2088, %v7836
  %7923 = vst.msk [vmem:[#allocation3 + $0xf8] sm:$0xff] %vm2088, %v7838
  %7924 = vst.msk [vmem:[#allocation3 + $0x110] sm:$0xff] %vm2088, %v7840
  %7925 = vst.msk [vmem:[#allocation3 + $0x128] sm:$0xff] %vm2088, %v7842
  %7926 = vst.msk [vmem:[#allocation3 + $0x140] sm:$0xff] %vm2088, %v7844
  %7927 = vst.msk [vmem:[#allocation3 + $0x158] sm:$0xff] %vm2088, %v7846
  %7928 = vst.msk [vmem:[#allocation3 + $0x170] sm:$0xff] %vm2088, %v7848
  %7929 = vst.msk [vmem:[#allocation3 + $0x188] sm:$0xff] %vm2088, %v7850
  %7930 = vst.msk [vmem:[#allocation3 + $0x1a0] sm:$0xff] %vm2088, %v7852
  %7931 = vst.msk [vmem:[#allocation3 + $0x1b8] sm:$0xff] %vm2088, %v7854
  %7932 = vst.msk [vmem:[#allocation3 + $0x1d0] sm:$0xff] %vm2088, %v7856
  %7933 = vst.msk [vmem:[#allocation3 + $0x1e8] sm:$0xff] %vm2088, %v7858
  %7934 = vst.msk [vmem:[#allocation3 + $0x200] sm:$0xff] %vm2088, %v7860
  %7935 = vst.msk [vmem:[#allocation3 + $0x218] sm:$0xff] %vm2088, %v7862
  %7936 = vst.msk [vmem:[#allocation3 + $0x230] sm:$0xff] %vm2088, %v7864
  %7937 = vst.msk [vmem:[#allocation3 + $0x248] sm:$0xff] %vm2088, %v7866
  %7938 = vst.msk [vmem:[#allocation3 + $0x260] sm:$0xff] %vm2088, %v7868
  %7939 = vst.msk [vmem:[#allocation3 + $0x278] sm:$0xff] %vm2088, %v7870
  %7940 = vst.msk [vmem:[#allocation3 + $0x290] sm:$0xff] %vm2088, %v7872
  %7941 = vst.msk [vmem:[#allocation3 + $0x2a8] sm:$0xff] %vm2088, %v7874
  %7942 = vst.msk [vmem:[#allocation3 + $0x2c0] sm:$0xff] %vm2088, %v7876
  %7943 = vst.msk [vmem:[#allocation3 + $0x2d8] sm:$0xff] %vm2088, %v7878
  %7944 = vst.msk [vmem:[#allocation3 + $0x2f0] sm:$0xff] %vm2088, %v7880
  %v7945 = vld [vmem:[#allocation2 + $0x27] sm:$0xff]
  %v7946 = vld [vmem:[#allocation2 + $0x2f] sm:$0xff]
  %v7947 = vld [vmem:[#allocation2 + $0x37] sm:$0xff]
  %v7948 = vld [vmem:[#allocation2 + $0x3f] sm:$0xff]
  %v7949 = vld [vmem:[#allocation2 + $0x47] sm:$0xff]
  %v7950 = vld [vmem:[#allocation2 + $0x4f] sm:$0xff]
  %v7951 = vld [vmem:[#allocation2 + $0x57] sm:$0xff]
  %v7952 = vld [vmem:[#allocation2 + $0x5f] sm:$0xff]
  %v7953 = vld [vmem:[#allocation2 + $0x67] sm:$0xff]
  %v7954 = vld [vmem:[#allocation2 + $0x6f] sm:$0xff]
  %v7955 = vld [vmem:[#allocation2 + $0x77] sm:$0xff]
  %v7956 = vld [vmem:[#allocation2 + $0x7f] sm:$0xff]
  %v7957 = vld [vmem:[#allocation2 + $0x87] sm:$0xff]
  %v7958 = vld [vmem:[#allocation2 + $0x8f] sm:$0xff]
  %v7959 = vld [vmem:[#allocation2 + $0x97] sm:$0xff]
  %v7960 = vld [vmem:[#allocation2 + $0x9f] sm:$0xff]
  %v7961 = vld [vmem:[#allocation2 + $0xa7] sm:$0xff]
  %v7962 = vld [vmem:[#allocation2 + $0xaf] sm:$0xff]
  %v7963 = vld [vmem:[#allocation2 + $0xb7] sm:$0xff]
  %v7964 = vld [vmem:[#allocation2 + $0xbf] sm:$0xff]
  %v7965 = vld [vmem:[#allocation2 + $0xc7] sm:$0xff]
  %v7966 = vld [vmem:[#allocation2 + $0xcf] sm:$0xff]
  %v7967 = vld [vmem:[#allocation2 + $0xd7] sm:$0xff]
  %v7968 = vld [vmem:[#allocation2 + $0xdf] sm:$0xff]
  %v7969 = vld [vmem:[#allocation2 + $0xe7] sm:$0xff]
  %v7970 = vld [vmem:[#allocation2 + $0xef] sm:$0xff]
  %v7971 = vld [vmem:[#allocation2 + $0xf7] sm:$0xff]
  %v7972 = vld [vmem:[#allocation2 + $0xff] sm:$0xff]
  %v7973 = vld [vmem:[#allocation2 + $0x107] sm:$0xff]
  %v7974 = vld [vmem:[#allocation2 + $0x10f] sm:$0xff]
  %v7975 = vld [vmem:[#allocation2 + $0x117] sm:$0xff]
  %v7976 = vld [vmem:[#allocation2 + $0x11f] sm:$0xff]
  %v7977 = vld [vmem:[#allocation2 + $0x127] sm:$0xff]
  %v7978 = vld [vmem:[#allocation2 + $0x12f] sm:$0xff]
  %v7979 = vld [vmem:[#allocation2 + $0x137] sm:$0xff]
  %v7980 = vld [vmem:[#allocation2 + $0x13f] sm:$0xff]
  %v7981 = vld [vmem:[#allocation2 + $0x147] sm:$0xff]
  %v7982 = vld [vmem:[#allocation2 + $0x14f] sm:$0xff]
  %v7983 = vld [vmem:[#allocation2 + $0x157] sm:$0xff]
  %v7984 = vld [vmem:[#allocation2 + $0x15f] sm:$0xff]
  %v7985 = vld [vmem:[#allocation2 + $0x167] sm:$0xff]
  %v7986 = vld [vmem:[#allocation2 + $0x16f] sm:$0xff]
  %v7987 = vld [vmem:[#allocation2 + $0x177] sm:$0xff]
  %v7988 = vld [vmem:[#allocation2 + $0x17f] sm:$0xff]
  %v7989 = vld [vmem:[#allocation2 + $0x187] sm:$0xff]
  %v7990 = vld [vmem:[#allocation2 + $0x18f] sm:$0xff]
  %v7991 = vld [vmem:[#allocation2 + $0x197] sm:$0xff]
  %v7992 = vld [vmem:[#allocation2 + $0x19f] sm:$0xff]
  %v7993 = vld [vmem:[#allocation2 + $0x1a7] sm:$0xff]
  %v7994 = vld [vmem:[#allocation2 + $0x1af] sm:$0xff]
  %v7995 = vld [vmem:[#allocation2 + $0x1b7] sm:$0xff]
  %v7996 = vld [vmem:[#allocation2 + $0x1bf] sm:$0xff]
  %v7997 = vld [vmem:[#allocation2 + $0x1c7] sm:$0xff]
  %v7998 = vld [vmem:[#allocation2 + $0x1cf] sm:$0xff]
  %v7999 = vld [vmem:[#allocation2 + $0x1d7] sm:$0xff]
  %v8000 = vld [vmem:[#allocation2 + $0x1df] sm:$0xff]
  %v8001 = vld [vmem:[#allocation2 + $0x1e7] sm:$0xff]
  %v8002 = vld [vmem:[#allocation2 + $0x1ef] sm:$0xff]
  %v8003 = vld [vmem:[#allocation2 + $0x1f7] sm:$0xff]
  %v8004 = vld [vmem:[#allocation2 + $0x1ff] sm:$0xff]
  %v8005 = vld [vmem:[#allocation2 + $0x207] sm:$0xff]
  %v8006 = vld [vmem:[#allocation2 + $0x20f] sm:$0xff]
  %v8007 = vld [vmem:[#allocation2 + $0x217] sm:$0xff]
  %v8008 = vld [vmem:[#allocation2 + $0x21f] sm:$0xff]
  %v8009 = vsel %vm3723, %v7945, 0.0
  %v8010 = vsel %vm3724, %v7946, 0.0
  %v8011 = vsel %vm3725, %v7947, 0.0
  %v8012 = vsel %vm3726, %v7948, 0.0
  %v8013 = vsel %vm3727, %v7949, 0.0
  %v8014 = vsel %vm3728, %v7950, 0.0
  %v8015 = vsel %vm3729, %v7951, 0.0
  %v8016 = vsel %vm3730, %v7952, 0.0
  %v8017 = vsel %vm3731, %v7953, 0.0
  %v8018 = vsel %vm3732, %v7954, 0.0
  %v8019 = vsel %vm3733, %v7955, 0.0
  %v8020 = vsel %vm3734, %v7956, 0.0
  %v8021 = vsel %vm3735, %v7957, 0.0
  %v8022 = vsel %vm3736, %v7958, 0.0
  %v8023 = vsel %vm3737, %v7959, 0.0
  %v8024 = vsel %vm3738, %v7960, 0.0
  %v8025 = vsel %vm3739, %v7961, 0.0
  %v8026 = vsel %vm3740, %v7962, 0.0
  %v8027 = vsel %vm3741, %v7963, 0.0
  %v8028 = vsel %vm3742, %v7964, 0.0
  %v8029 = vsel %vm3743, %v7965, 0.0
  %v8030 = vsel %vm3744, %v7966, 0.0
  %v8031 = vsel %vm3745, %v7967, 0.0
  %v8032 = vsel %vm3746, %v7968, 0.0
  %v8033 = vsel %vm3747, %v7969, 0.0
  %v8034 = vsel %vm3748, %v7970, 0.0
  %v8035 = vsel %vm3749, %v7971, 0.0
  %v8036 = vsel %vm3750, %v7972, 0.0
  %v8037 = vsel %vm3751, %v7973, 0.0
  %v8038 = vsel %vm3752, %v7974, 0.0
  %v8039 = vsel %vm3753, %v7975, 0.0
  %v8040 = vsel %vm3754, %v7976, 0.0
  %v8041 = vsel %vm3755, %v7977, 0.0
  %v8042 = vsel %vm3756, %v7978, 0.0
  %v8043 = vsel %vm3757, %v7979, 0.0
  %v8044 = vsel %vm3758, %v7980, 0.0
  %v8045 = vsel %vm3759, %v7981, 0.0
  %v8046 = vsel %vm3760, %v7982, 0.0
  %v8047 = vsel %vm3761, %v7983, 0.0
  %v8048 = vsel %vm3762, %v7984, 0.0
  %v8049 = vsel %vm3763, %v7985, 0.0
  %v8050 = vsel %vm3764, %v7986, 0.0
  %v8051 = vsel %vm3765, %v7987, 0.0
  %v8052 = vsel %vm3766, %v7988, 0.0
  %v8053 = vsel %vm3767, %v7989, 0.0
  %v8054 = vsel %vm3768, %v7990, 0.0
  %v8055 = vsel %vm3769, %v7991, 0.0
  %v8056 = vsel %vm3770, %v7992, 0.0
  %v8057 = vsel %vm3771, %v7993, 0.0
  %v8058 = vsel %vm3772, %v7994, 0.0
  %v8059 = vsel %vm3773, %v7995, 0.0
  %v8060 = vsel %vm3774, %v7996, 0.0
  %v8061 = vsel %vm3775, %v7997, 0.0
  %v8062 = vsel %vm3776, %v7998, 0.0
  %v8063 = vsel %vm3777, %v7999, 0.0
  %v8064 = vsel %vm3778, %v8000, 0.0
  %v8065 = vsel %vm3779, %v8001, 0.0
  %v8066 = vsel %vm3780, %v8002, 0.0
  %v8067 = vsel %vm3781, %v8003, 0.0
  %v8068 = vsel %vm3782, %v8004, 0.0
  %v8069 = vsel %vm3783, %v8005, 0.0
  %v8070 = vsel %vm3784, %v8006, 0.0
  %v8071 = vsel %vm3785, %v8007, 0.0
  %v8072 = vsel %vm3786, %v8008, 0.0
  %v8073 = vpack.c.bf16 %v8010, %v8009
  %v8074 = vpack.c.bf16 %v8012, %v8011
  %v8075 = vpack.c.bf16 %v8014, %v8013
  %v8076 = vpack.c.bf16 %v8016, %v8015
  %v8077 = vpack.c.bf16 %v8018, %v8017
  %v8078 = vpack.c.bf16 %v8020, %v8019
  %v8079 = vpack.c.bf16 %v8022, %v8021
  %v8080 = vpack.c.bf16 %v8024, %v8023
  %v8081 = vpack.c.bf16 %v8026, %v8025
  %v8082 = vpack.c.bf16 %v8028, %v8027
  %v8083 = vpack.c.bf16 %v8030, %v8029
  %v8084 = vpack.c.bf16 %v8032, %v8031
  %v8085 = vpack.c.bf16 %v8034, %v8033
  %v8086 = vpack.c.bf16 %v8036, %v8035
  %v8087 = vpack.c.bf16 %v8038, %v8037
  %v8088 = vpack.c.bf16 %v8040, %v8039
  %v8089 = vpack.c.bf16 %v8042, %v8041
  %v8090 = vpack.c.bf16 %v8044, %v8043
  %v8091 = vpack.c.bf16 %v8046, %v8045
  %v8092 = vpack.c.bf16 %v8048, %v8047
  %v8093 = vpack.c.bf16 %v8050, %v8049
  %v8094 = vpack.c.bf16 %v8052, %v8051
  %v8095 = vpack.c.bf16 %v8054, %v8053
  %v8096 = vpack.c.bf16 %v8056, %v8055
  %v8097 = vpack.c.bf16 %v8058, %v8057
  %v8098 = vpack.c.bf16 %v8060, %v8059
  %v8099 = vpack.c.bf16 %v8062, %v8061
  %v8100 = vpack.c.bf16 %v8064, %v8063
  %v8101 = vpack.c.bf16 %v8066, %v8065
  %v8102 = vpack.c.bf16 %v8068, %v8067
  %v8103 = vpack.c.bf16 %v8070, %v8069
  %v8104 = vpack.c.bf16 %v8072, %v8071
  %8137 = vrot.lane.b32.xlu0 %v8073, 64
  %v8138 = vpop.permute.xlu0 %8137
  %8139 = vrot.lane.b32.xlu0 %v8074, 64
  %v8140 = vpop.permute.xlu0 %8139
  %8141 = vrot.lane.b32.xlu0 %v8075, 64
  %v8142 = vpop.permute.xlu0 %8141
  %8143 = vrot.lane.b32.xlu0 %v8076, 64
  %v8144 = vpop.permute.xlu0 %8143
  %8145 = vrot.lane.b32.xlu0 %v8077, 64
  %v8146 = vpop.permute.xlu0 %8145
  %8147 = vrot.lane.b32.xlu0 %v8078, 64
  %v8148 = vpop.permute.xlu0 %8147
  %8149 = vrot.lane.b32.xlu0 %v8079, 64
  %v8150 = vpop.permute.xlu0 %8149
  %8151 = vrot.lane.b32.xlu0 %v8080, 64
  %v8152 = vpop.permute.xlu0 %8151
  %8153 = vrot.lane.b32.xlu0 %v8081, 64
  %v8154 = vpop.permute.xlu0 %8153
  %8155 = vrot.lane.b32.xlu0 %v8082, 64
  %v8156 = vpop.permute.xlu0 %8155
  %8157 = vrot.lane.b32.xlu0 %v8083, 64
  %v8158 = vpop.permute.xlu0 %8157
  %8159 = vrot.lane.b32.xlu0 %v8084, 64
  %v8160 = vpop.permute.xlu0 %8159
  %8161 = vrot.lane.b32.xlu0 %v8085, 64
  %v8162 = vpop.permute.xlu0 %8161
  %8163 = vrot.lane.b32.xlu0 %v8086, 64
  %v8164 = vpop.permute.xlu0 %8163
  %8165 = vrot.lane.b32.xlu0 %v8087, 64
  %v8166 = vpop.permute.xlu0 %8165
  %8167 = vrot.lane.b32.xlu0 %v8088, 64
  %v8168 = vpop.permute.xlu0 %8167
  %8169 = vrot.lane.b32.xlu0 %v8089, 64
  %v8170 = vpop.permute.xlu0 %8169
  %8171 = vrot.lane.b32.xlu0 %v8090, 64
  %v8172 = vpop.permute.xlu0 %8171
  %8173 = vrot.lane.b32.xlu0 %v8091, 64
  %v8174 = vpop.permute.xlu0 %8173
  %8175 = vrot.lane.b32.xlu0 %v8092, 64
  %v8176 = vpop.permute.xlu0 %8175
  %8177 = vrot.lane.b32.xlu0 %v8093, 64
  %v8178 = vpop.permute.xlu0 %8177
  %8179 = vrot.lane.b32.xlu0 %v8094, 64
  %v8180 = vpop.permute.xlu0 %8179
  %8181 = vrot.lane.b32.xlu0 %v8095, 64
  %v8182 = vpop.permute.xlu0 %8181
  %8183 = vrot.lane.b32.xlu0 %v8096, 64
  %v8184 = vpop.permute.xlu0 %8183
  %8185 = vrot.lane.b32.xlu0 %v8097, 64
  %v8186 = vpop.permute.xlu0 %8185
  %8187 = vrot.lane.b32.xlu0 %v8098, 64
  %v8188 = vpop.permute.xlu0 %8187
  %8189 = vrot.lane.b32.xlu0 %v8099, 64
  %v8190 = vpop.permute.xlu0 %8189
  %8191 = vrot.lane.b32.xlu0 %v8100, 64
  %v8192 = vpop.permute.xlu0 %8191
  %8193 = vrot.lane.b32.xlu0 %v8101, 64
  %v8194 = vpop.permute.xlu0 %8193
  %8195 = vrot.lane.b32.xlu0 %v8102, 64
  %v8196 = vpop.permute.xlu0 %8195
  %8197 = vrot.lane.b32.xlu0 %v8103, 64
  %v8198 = vpop.permute.xlu0 %8197
  %8199 = vrot.lane.b32.xlu0 %v8104, 64
  %v8200 = vpop.permute.xlu0 %8199
  %8233 = vst.msk [vmem:[#allocation3 + $0x8] sm:$0xff] %vm2537, %v8138
  %8234 = vst.msk [vmem:[#allocation3 + $0x20] sm:$0xff] %vm2537, %v8140
  %8235 = vst.msk [vmem:[#allocation3 + $0x38] sm:$0xff] %vm2537, %v8142
  %8236 = vst.msk [vmem:[#allocation3 + $0x50] sm:$0xff] %vm2537, %v8144
  %8237 = vst.msk [vmem:[#allocation3 + $0x68] sm:$0xff] %vm2537, %v8146
  %8238 = vst.msk [vmem:[#allocation3 + $0x80] sm:$0xff] %vm2537, %v8148
  %8239 = vst.msk [vmem:[#allocation3 + $0x98] sm:$0xff] %vm2537, %v8150
  %8240 = vst.msk [vmem:[#allocation3 + $0xb0] sm:$0xff] %vm2537, %v8152
  %8241 = vst.msk [vmem:[#allocation3 + $0xc8] sm:$0xff] %vm2537, %v8154
  %8242 = vst.msk [vmem:[#allocation3 + $0xe0] sm:$0xff] %vm2537, %v8156
  %8243 = vst.msk [vmem:[#allocation3 + $0xf8] sm:$0xff] %vm2537, %v8158
  %8244 = vst.msk [vmem:[#allocation3 + $0x110] sm:$0xff] %vm2537, %v8160
  %8245 = vst.msk [vmem:[#allocation3 + $0x128] sm:$0xff] %vm2537, %v8162
  %8246 = vst.msk [vmem:[#allocation3 + $0x140] sm:$0xff] %vm2537, %v8164
  %8247 = vst.msk [vmem:[#allocation3 + $0x158] sm:$0xff] %vm2537, %v8166
  %8248 = vst.msk [vmem:[#allocation3 + $0x170] sm:$0xff] %vm2537, %v8168
  %8249 = vst.msk [vmem:[#allocation3 + $0x188] sm:$0xff] %vm2537, %v8170
  %8250 = vst.msk [vmem:[#allocation3 + $0x1a0] sm:$0xff] %vm2537, %v8172
  %8251 = vst.msk [vmem:[#allocation3 + $0x1b8] sm:$0xff] %vm2537, %v8174
  %8252 = vst.msk [vmem:[#allocation3 + $0x1d0] sm:$0xff] %vm2537, %v8176
  %8253 = vst.msk [vmem:[#allocation3 + $0x1e8] sm:$0xff] %vm2537, %v8178
  %8254 = vst.msk [vmem:[#allocation3 + $0x200] sm:$0xff] %vm2537, %v8180
  %8255 = vst.msk [vmem:[#allocation3 + $0x218] sm:$0xff] %vm2537, %v8182
  %8256 = vst.msk [vmem:[#allocation3 + $0x230] sm:$0xff] %vm2537, %v8184
  %8257 = vst.msk [vmem:[#allocation3 + $0x248] sm:$0xff] %vm2537, %v8186
  %8258 = vst.msk [vmem:[#allocation3 + $0x260] sm:$0xff] %vm2537, %v8188
  %8259 = vst.msk [vmem:[#allocation3 + $0x278] sm:$0xff] %vm2537, %v8190
  %8260 = vst.msk [vmem:[#allocation3 + $0x290] sm:$0xff] %vm2537, %v8192
  %8261 = vst.msk [vmem:[#allocation3 + $0x2a8] sm:$0xff] %vm2537, %v8194
  %8262 = vst.msk [vmem:[#allocation3 + $0x2c0] sm:$0xff] %vm2537, %v8196
  %8263 = vst.msk [vmem:[#allocation3 + $0x2d8] sm:$0xff] %vm2537, %v8198
  %8264 = vst.msk [vmem:[#allocation3 + $0x2f0] sm:$0xff] %vm2537, %v8200
  %v8265 = vld [vmem:[#allocation2 + $0x28] sm:$0xff]
  %v8266 = vld [vmem:[#allocation2 + $0x30] sm:$0xff]
  %v8267 = vld [vmem:[#allocation2 + $0x38] sm:$0xff]
  %v8268 = vld [vmem:[#allocation2 + $0x40] sm:$0xff]
  %v8269 = vld [vmem:[#allocation2 + $0x48] sm:$0xff]
  %v8270 = vld [vmem:[#allocation2 + $0x50] sm:$0xff]
  %v8271 = vld [vmem:[#allocation2 + $0x58] sm:$0xff]
  %v8272 = vld [vmem:[#allocation2 + $0x60] sm:$0xff]
  %v8273 = vld [vmem:[#allocation2 + $0x68] sm:$0xff]
  %v8274 = vld [vmem:[#allocation2 + $0x70] sm:$0xff]
  %v8275 = vld [vmem:[#allocation2 + $0x78] sm:$0xff]
  %v8276 = vld [vmem:[#allocation2 + $0x80] sm:$0xff]
  %v8277 = vld [vmem:[#allocation2 + $0x88] sm:$0xff]
  %v8278 = vld [vmem:[#allocation2 + $0x90] sm:$0xff]
  %v8279 = vld [vmem:[#allocation2 + $0x98] sm:$0xff]
  %v8280 = vld [vmem:[#allocation2 + $0xa0] sm:$0xff]
  %v8281 = vld [vmem:[#allocation2 + $0xa8] sm:$0xff]
  %v8282 = vld [vmem:[#allocation2 + $0xb0] sm:$0xff]
  %v8283 = vld [vmem:[#allocation2 + $0xb8] sm:$0xff]
  %v8284 = vld [vmem:[#allocation2 + $0xc0] sm:$0xff]
  %v8285 = vld [vmem:[#allocation2 + $0xc8] sm:$0xff]
  %v8286 = vld [vmem:[#allocation2 + $0xd0] sm:$0xff]
  %v8287 = vld [vmem:[#allocation2 + $0xd8] sm:$0xff]
  %v8288 = vld [vmem:[#allocation2 + $0xe0] sm:$0xff]
  %v8289 = vld [vmem:[#allocation2 + $0xe8] sm:$0xff]
  %v8290 = vld [vmem:[#allocation2 + $0xf0] sm:$0xff]
  %v8291 = vld [vmem:[#allocation2 + $0xf8] sm:$0xff]
  %v8292 = vld [vmem:[#allocation2 + $0x100] sm:$0xff]
  %v8293 = vld [vmem:[#allocation2 + $0x108] sm:$0xff]
  %v8294 = vld [vmem:[#allocation2 + $0x110] sm:$0xff]
  %v8295 = vld [vmem:[#allocation2 + $0x118] sm:$0xff]
  %v8296 = vld [vmem:[#allocation2 + $0x120] sm:$0xff]
  %v8297 = vld [vmem:[#allocation2 + $0x128] sm:$0xff]
  %v8298 = vld [vmem:[#allocation2 + $0x130] sm:$0xff]
  %v8299 = vld [vmem:[#allocation2 + $0x138] sm:$0xff]
  %v8300 = vld [vmem:[#allocation2 + $0x140] sm:$0xff]
  %v8301 = vld [vmem:[#allocation2 + $0x148] sm:$0xff]
  %v8302 = vld [vmem:[#allocation2 + $0x150] sm:$0xff]
  %v8303 = vld [vmem:[#allocation2 + $0x158] sm:$0xff]
  %v8304 = vld [vmem:[#allocation2 + $0x160] sm:$0xff]
  %v8305 = vld [vmem:[#allocation2 + $0x168] sm:$0xff]
  %v8306 = vld [vmem:[#allocation2 + $0x170] sm:$0xff]
  %v8307 = vld [vmem:[#allocation2 + $0x178] sm:$0xff]
  %v8308 = vld [vmem:[#allocation2 + $0x180] sm:$0xff]
  %v8309 = vld [vmem:[#allocation2 + $0x188] sm:$0xff]
  %v8310 = vld [vmem:[#allocation2 + $0x190] sm:$0xff]
  %v8311 = vld [vmem:[#allocation2 + $0x198] sm:$0xff]
  %v8312 = vld [vmem:[#allocation2 + $0x1a0] sm:$0xff]
  %v8313 = vld [vmem:[#allocation2 + $0x1a8] sm:$0xff]
  %v8314 = vld [vmem:[#allocation2 + $0x1b0] sm:$0xff]
  %v8315 = vld [vmem:[#allocation2 + $0x1b8] sm:$0xff]
  %v8316 = vld [vmem:[#allocation2 + $0x1c0] sm:$0xff]
  %v8317 = vld [vmem:[#allocation2 + $0x1c8] sm:$0xff]
  %v8318 = vld [vmem:[#allocation2 + $0x1d0] sm:$0xff]
  %v8319 = vld [vmem:[#allocation2 + $0x1d8] sm:$0xff]
  %v8320 = vld [vmem:[#allocation2 + $0x1e0] sm:$0xff]
  %v8321 = vld [vmem:[#allocation2 + $0x1e8] sm:$0xff]
  %v8322 = vld [vmem:[#allocation2 + $0x1f0] sm:$0xff]
  %v8323 = vld [vmem:[#allocation2 + $0x1f8] sm:$0xff]
  %v8324 = vld [vmem:[#allocation2 + $0x200] sm:$0xff]
  %v8325 = vld [vmem:[#allocation2 + $0x208] sm:$0xff]
  %v8326 = vld [vmem:[#allocation2 + $0x210] sm:$0xff]
  %v8327 = vld [vmem:[#allocation2 + $0x218] sm:$0xff]
  %v8328 = vld [vmem:[#allocation2 + $0x220] sm:$0xff]
  %v8329 = vsel %vm4171, %v8265, 0.0
  %v8330 = vsel %vm4172, %v8266, 0.0
  %v8331 = vsel %vm4173, %v8267, 0.0
  %v8332 = vsel %vm4174, %v8268, 0.0
  %v8333 = vsel %vm4175, %v8269, 0.0
  %v8334 = vsel %vm4176, %v8270, 0.0
  %v8335 = vsel %vm4177, %v8271, 0.0
  %v8336 = vsel %vm4178, %v8272, 0.0
  %v8337 = vsel %vm4179, %v8273, 0.0
  %v8338 = vsel %vm4180, %v8274, 0.0
  %v8339 = vsel %vm4181, %v8275, 0.0
  %v8340 = vsel %vm4182, %v8276, 0.0
  %v8341 = vsel %vm4183, %v8277, 0.0
  %v8342 = vsel %vm4184, %v8278, 0.0
  %v8343 = vsel %vm4185, %v8279, 0.0
  %v8344 = vsel %vm4186, %v8280, 0.0
  %v8345 = vsel %vm4187, %v8281, 0.0
  %v8346 = vsel %vm4188, %v8282, 0.0
  %v8347 = vsel %vm4189, %v8283, 0.0
  %v8348 = vsel %vm4190, %v8284, 0.0
  %v8349 = vsel %vm4191, %v8285, 0.0
  %v8350 = vsel %vm4192, %v8286, 0.0
  %v8351 = vsel %vm4193, %v8287, 0.0
  %v8352 = vsel %vm4194, %v8288, 0.0
  %v8353 = vsel %vm4195, %v8289, 0.0
  %v8354 = vsel %vm4196, %v8290, 0.0
  %v8355 = vsel %vm4197, %v8291, 0.0
  %v8356 = vsel %vm4198, %v8292, 0.0
  %v8357 = vsel %vm4199, %v8293, 0.0
  %v8358 = vsel %vm4200, %v8294, 0.0
  %v8359 = vsel %vm4201, %v8295, 0.0
  %v8360 = vsel %vm4202, %v8296, 0.0
  %v8361 = vsel %vm4203, %v8297, 0.0
  %v8362 = vsel %vm4204, %v8298, 0.0
  %v8363 = vsel %vm4205, %v8299, 0.0
  %v8364 = vsel %vm4206, %v8300, 0.0
  %v8365 = vsel %vm4207, %v8301, 0.0
  %v8366 = vsel %vm4208, %v8302, 0.0
  %v8367 = vsel %vm4209, %v8303, 0.0
  %v8368 = vsel %vm4210, %v8304, 0.0
  %v8369 = vsel %vm4211, %v8305, 0.0
  %v8370 = vsel %vm4212, %v8306, 0.0
  %v8371 = vsel %vm4213, %v8307, 0.0
  %v8372 = vsel %vm4214, %v8308, 0.0
  %v8373 = vsel %vm4215, %v8309, 0.0
  %v8374 = vsel %vm4216, %v8310, 0.0
  %v8375 = vsel %vm4217, %v8311, 0.0
  %v8376 = vsel %vm4218, %v8312, 0.0
  %v8377 = vsel %vm4219, %v8313, 0.0
  %v8378 = vsel %vm4220, %v8314, 0.0
  %v8379 = vsel %vm4221, %v8315, 0.0
  %v8380 = vsel %vm4222, %v8316, 0.0
  %v8381 = vsel %vm4223, %v8317, 0.0
  %v8382 = vsel %vm4224, %v8318, 0.0
  %v8383 = vsel %vm4225, %v8319, 0.0
  %v8384 = vsel %vm4226, %v8320, 0.0
  %v8385 = vsel %vm4227, %v8321, 0.0
  %v8386 = vsel %vm4228, %v8322, 0.0
  %v8387 = vsel %vm4229, %v8323, 0.0
  %v8388 = vsel %vm4230, %v8324, 0.0
  %v8389 = vsel %vm4231, %v8325, 0.0
  %v8390 = vsel %vm4232, %v8326, 0.0
  %v8391 = vsel %vm4233, %v8327, 0.0
  %v8392 = vsel %vm4234, %v8328, 0.0
  %v8393 = vpack.c.bf16 %v8330, %v8329
  %v8394 = vpack.c.bf16 %v8332, %v8331
  %v8395 = vpack.c.bf16 %v8334, %v8333
  %v8396 = vpack.c.bf16 %v8336, %v8335
  %v8397 = vpack.c.bf16 %v8338, %v8337
  %v8398 = vpack.c.bf16 %v8340, %v8339
  %v8399 = vpack.c.bf16 %v8342, %v8341
  %v8400 = vpack.c.bf16 %v8344, %v8343
  %v8401 = vpack.c.bf16 %v8346, %v8345
  %v8402 = vpack.c.bf16 %v8348, %v8347
  %v8403 = vpack.c.bf16 %v8350, %v8349
  %v8404 = vpack.c.bf16 %v8352, %v8351
  %v8405 = vpack.c.bf16 %v8354, %v8353
  %v8406 = vpack.c.bf16 %v8356, %v8355
  %v8407 = vpack.c.bf16 %v8358, %v8357
  %v8408 = vpack.c.bf16 %v8360, %v8359
  %v8409 = vpack.c.bf16 %v8362, %v8361
  %v8410 = vpack.c.bf16 %v8364, %v8363
  %v8411 = vpack.c.bf16 %v8366, %v8365
  %v8412 = vpack.c.bf16 %v8368, %v8367
  %v8413 = vpack.c.bf16 %v8370, %v8369
  %v8414 = vpack.c.bf16 %v8372, %v8371
  %v8415 = vpack.c.bf16 %v8374, %v8373
  %v8416 = vpack.c.bf16 %v8376, %v8375
  %v8417 = vpack.c.bf16 %v8378, %v8377
  %v8418 = vpack.c.bf16 %v8380, %v8379
  %v8419 = vpack.c.bf16 %v8382, %v8381
  %v8420 = vpack.c.bf16 %v8384, %v8383
  %v8421 = vpack.c.bf16 %v8386, %v8385
  %v8422 = vpack.c.bf16 %v8388, %v8387
  %v8423 = vpack.c.bf16 %v8390, %v8389
  %v8424 = vpack.c.bf16 %v8392, %v8391
  %8457 = vrot.lane.b32.xlu0 %v8393, 96
  %v8458 = vpop.permute.xlu0 %8457
  %8459 = vrot.lane.b32.xlu0 %v8394, 96
  %v8460 = vpop.permute.xlu0 %8459
  %8461 = vrot.lane.b32.xlu0 %v8395, 96
  %v8462 = vpop.permute.xlu0 %8461
  %8463 = vrot.lane.b32.xlu0 %v8396, 96
  %v8464 = vpop.permute.xlu0 %8463
  %8465 = vrot.lane.b32.xlu0 %v8397, 96
  %v8466 = vpop.permute.xlu0 %8465
  %8467 = vrot.lane.b32.xlu0 %v8398, 96
  %v8468 = vpop.permute.xlu0 %8467
  %8469 = vrot.lane.b32.xlu0 %v8399, 96
  %v8470 = vpop.permute.xlu0 %8469
  %8471 = vrot.lane.b32.xlu0 %v8400, 96
  %v8472 = vpop.permute.xlu0 %8471
  %8473 = vrot.lane.b32.xlu0 %v8401, 96
  %v8474 = vpop.permute.xlu0 %8473
  %8475 = vrot.lane.b32.xlu0 %v8402, 96
  %v8476 = vpop.permute.xlu0 %8475
  %8477 = vrot.lane.b32.xlu0 %v8403, 96
  %v8478 = vpop.permute.xlu0 %8477
  %8479 = vrot.lane.b32.xlu0 %v8404, 96
  %v8480 = vpop.permute.xlu0 %8479
  %8481 = vrot.lane.b32.xlu0 %v8405, 96
  %v8482 = vpop.permute.xlu0 %8481
  %8483 = vrot.lane.b32.xlu0 %v8406, 96
  %v8484 = vpop.permute.xlu0 %8483
  %8485 = vrot.lane.b32.xlu0 %v8407, 96
  %v8486 = vpop.permute.xlu0 %8485
  %8487 = vrot.lane.b32.xlu0 %v8408, 96
  %v8488 = vpop.permute.xlu0 %8487
  %8489 = vrot.lane.b32.xlu0 %v8409, 96
  %v8490 = vpop.permute.xlu0 %8489
  %8491 = vrot.lane.b32.xlu0 %v8410, 96
  %v8492 = vpop.permute.xlu0 %8491
  %8493 = vrot.lane.b32.xlu0 %v8411, 96
  %v8494 = vpop.permute.xlu0 %8493
  %8495 = vrot.lane.b32.xlu0 %v8412, 96
  %v8496 = vpop.permute.xlu0 %8495
  %8497 = vrot.lane.b32.xlu0 %v8413, 96
  %v8498 = vpop.permute.xlu0 %8497
  %8499 = vrot.lane.b32.xlu0 %v8414, 96
  %v8500 = vpop.permute.xlu0 %8499
  %8501 = vrot.lane.b32.xlu0 %v8415, 96
  %v8502 = vpop.permute.xlu0 %8501
  %8503 = vrot.lane.b32.xlu0 %v8416, 96
  %v8504 = vpop.permute.xlu0 %8503
  %8505 = vrot.lane.b32.xlu0 %v8417, 96
  %v8506 = vpop.permute.xlu0 %8505
  %8507 = vrot.lane.b32.xlu0 %v8418, 96
  %v8508 = vpop.permute.xlu0 %8507
  %8509 = vrot.lane.b32.xlu0 %v8419, 96
  %v8510 = vpop.permute.xlu0 %8509
  %8511 = vrot.lane.b32.xlu0 %v8420, 96
  %v8512 = vpop.permute.xlu0 %8511
  %8513 = vrot.lane.b32.xlu0 %v8421, 96
  %v8514 = vpop.permute.xlu0 %8513
  %8515 = vrot.lane.b32.xlu0 %v8422, 96
  %v8516 = vpop.permute.xlu0 %8515
  %8517 = vrot.lane.b32.xlu0 %v8423, 96
  %v8518 = vpop.permute.xlu0 %8517
  %8519 = vrot.lane.b32.xlu0 %v8424, 96
  %v8520 = vpop.permute.xlu0 %8519
  %8553 = vst.msk [vmem:[#allocation3 + $0x8] sm:$0xff] %vm2986, %v8458
  %8554 = vst.msk [vmem:[#allocation3 + $0x20] sm:$0xff] %vm2986, %v8460
  %8555 = vst.msk [vmem:[#allocation3 + $0x38] sm:$0xff] %vm2986, %v8462
  %8556 = vst.msk [vmem:[#allocation3 + $0x50] sm:$0xff] %vm2986, %v8464
  %8557 = vst.msk [vmem:[#allocation3 + $0x68] sm:$0xff] %vm2986, %v8466
  %8558 = vst.msk [vmem:[#allocation3 + $0x80] sm:$0xff] %vm2986, %v8468
  %8559 = vst.msk [vmem:[#allocation3 + $0x98] sm:$0xff] %vm2986, %v8470
  %8560 = vst.msk [vmem:[#allocation3 + $0xb0] sm:$0xff] %vm2986, %v8472
  %8561 = vst.msk [vmem:[#allocation3 + $0xc8] sm:$0xff] %vm2986, %v8474
  %8562 = vst.msk [vmem:[#allocation3 + $0xe0] sm:$0xff] %vm2986, %v8476
  %8563 = vst.msk [vmem:[#allocation3 + $0xf8] sm:$0xff] %vm2986, %v8478
  %8564 = vst.msk [vmem:[#allocation3 + $0x110] sm:$0xff] %vm2986, %v8480
  %8565 = vst.msk [vmem:[#allocation3 + $0x128] sm:$0xff] %vm2986, %v8482
  %8566 = vst.msk [vmem:[#allocation3 + $0x140] sm:$0xff] %vm2986, %v8484
  %8567 = vst.msk [vmem:[#allocation3 + $0x158] sm:$0xff] %vm2986, %v8486
  %8568 = vst.msk [vmem:[#allocation3 + $0x170] sm:$0xff] %vm2986, %v8488
  %8569 = vst.msk [vmem:[#allocation3 + $0x188] sm:$0xff] %vm2986, %v8490
  %8570 = vst.msk [vmem:[#allocation3 + $0x1a0] sm:$0xff] %vm2986, %v8492
  %8571 = vst.msk [vmem:[#allocation3 + $0x1b8] sm:$0xff] %vm2986, %v8494
  %8572 = vst.msk [vmem:[#allocation3 + $0x1d0] sm:$0xff] %vm2986, %v8496
  %8573 = vst.msk [vmem:[#allocation3 + $0x1e8] sm:$0xff] %vm2986, %v8498
  %8574 = vst.msk [vmem:[#allocation3 + $0x200] sm:$0xff] %vm2986, %v8500
  %8575 = vst.msk [vmem:[#allocation3 + $0x218] sm:$0xff] %vm2986, %v8502
  %8576 = vst.msk [vmem:[#allocation3 + $0x230] sm:$0xff] %vm2986, %v8504
  %8577 = vst.msk [vmem:[#allocation3 + $0x248] sm:$0xff] %vm2986, %v8506
  %8578 = vst.msk [vmem:[#allocation3 + $0x260] sm:$0xff] %vm2986, %v8508
  %8579 = vst.msk [vmem:[#allocation3 + $0x278] sm:$0xff] %vm2986, %v8510
  %8580 = vst.msk [vmem:[#allocation3 + $0x290] sm:$0xff] %vm2986, %v8512
  %8581 = vst.msk [vmem:[#allocation3 + $0x2a8] sm:$0xff] %vm2986, %v8514
  %8582 = vst.msk [vmem:[#allocation3 + $0x2c0] sm:$0xff] %vm2986, %v8516
  %8583 = vst.msk [vmem:[#allocation3 + $0x2d8] sm:$0xff] %vm2986, %v8518
  %8584 = vst.msk [vmem:[#allocation3 + $0x2f0] sm:$0xff] %vm2986, %v8520
  %v8585 = vld [vmem:[#allocation2 + $0x29] sm:$0xff]
  %v8586 = vld [vmem:[#allocation2 + $0x31] sm:$0xff]
  %v8587 = vld [vmem:[#allocation2 + $0x39] sm:$0xff]
  %v8588 = vld [vmem:[#allocation2 + $0x41] sm:$0xff]
  %v8589 = vld [vmem:[#allocation2 + $0x49] sm:$0xff]
  %v8590 = vld [vmem:[#allocation2 + $0x51] sm:$0xff]
  %v8591 = vld [vmem:[#allocation2 + $0x59] sm:$0xff]
  %v8592 = vld [vmem:[#allocation2 + $0x61] sm:$0xff]
  %v8593 = vld [vmem:[#allocation2 + $0x69] sm:$0xff]
  %v8594 = vld [vmem:[#allocation2 + $0x71] sm:$0xff]
  %v8595 = vld [vmem:[#allocation2 + $0x79] sm:$0xff]
  %v8596 = vld [vmem:[#allocation2 + $0x81] sm:$0xff]
  %v8597 = vld [vmem:[#allocation2 + $0x89] sm:$0xff]
  %v8598 = vld [vmem:[#allocation2 + $0x91] sm:$0xff]
  %v8599 = vld [vmem:[#allocation2 + $0x99] sm:$0xff]
  %v8600 = vld [vmem:[#allocation2 + $0xa1] sm:$0xff]
  %v8601 = vld [vmem:[#allocation2 + $0xa9] sm:$0xff]
  %v8602 = vld [vmem:[#allocation2 + $0xb1] sm:$0xff]
  %v8603 = vld [vmem:[#allocation2 + $0xb9] sm:$0xff]
  %v8604 = vld [vmem:[#allocation2 + $0xc1] sm:$0xff]
  %v8605 = vld [vmem:[#allocation2 + $0xc9] sm:$0xff]
  %v8606 = vld [vmem:[#allocation2 + $0xd1] sm:$0xff]
  %v8607 = vld [vmem:[#allocation2 + $0xd9] sm:$0xff]
  %v8608 = vld [vmem:[#allocation2 + $0xe1] sm:$0xff]
  %v8609 = vld [vmem:[#allocation2 + $0xe9] sm:$0xff]
  %v8610 = vld [vmem:[#allocation2 + $0xf1] sm:$0xff]
  %v8611 = vld [vmem:[#allocation2 + $0xf9] sm:$0xff]
  %v8612 = vld [vmem:[#allocation2 + $0x101] sm:$0xff]
  %v8613 = vld [vmem:[#allocation2 + $0x109] sm:$0xff]
  %v8614 = vld [vmem:[#allocation2 + $0x111] sm:$0xff]
  %v8615 = vld [vmem:[#allocation2 + $0x119] sm:$0xff]
  %v8616 = vld [vmem:[#allocation2 + $0x121] sm:$0xff]
  %v8617 = vld [vmem:[#allocation2 + $0x129] sm:$0xff]
  %v8618 = vld [vmem:[#allocation2 + $0x131] sm:$0xff]
  %v8619 = vld [vmem:[#allocation2 + $0x139] sm:$0xff]
  %v8620 = vld [vmem:[#allocation2 + $0x141] sm:$0xff]
  %v8621 = vld [vmem:[#allocation2 + $0x149] sm:$0xff]
  %v8622 = vld [vmem:[#allocation2 + $0x151] sm:$0xff]
  %v8623 = vld [vmem:[#allocation2 + $0x159] sm:$0xff]
  %v8624 = vld [vmem:[#allocation2 + $0x161] sm:$0xff]
  %v8625 = vld [vmem:[#allocation2 + $0x169] sm:$0xff]
  %v8626 = vld [vmem:[#allocation2 + $0x171] sm:$0xff]
  %v8627 = vld [vmem:[#allocation2 + $0x179] sm:$0xff]
  %v8628 = vld [vmem:[#allocation2 + $0x181] sm:$0xff]
  %v8629 = vld [vmem:[#allocation2 + $0x189] sm:$0xff]
  %v8630 = vld [vmem:[#allocation2 + $0x191] sm:$0xff]
  %v8631 = vld [vmem:[#allocation2 + $0x199] sm:$0xff]
  %v8632 = vld [vmem:[#allocation2 + $0x1a1] sm:$0xff]
  %v8633 = vld [vmem:[#allocation2 + $0x1a9] sm:$0xff]
  %v8634 = vld [vmem:[#allocation2 + $0x1b1] sm:$0xff]
  %v8635 = vld [vmem:[#allocation2 + $0x1b9] sm:$0xff]
  %v8636 = vld [vmem:[#allocation2 + $0x1c1] sm:$0xff]
  %v8637 = vld [vmem:[#allocation2 + $0x1c9] sm:$0xff]
  %v8638 = vld [vmem:[#allocation2 + $0x1d1] sm:$0xff]
  %v8639 = vld [vmem:[#allocation2 + $0x1d9] sm:$0xff]
  %v8640 = vld [vmem:[#allocation2 + $0x1e1] sm:$0xff]
  %v8641 = vld [vmem:[#allocation2 + $0x1e9] sm:$0xff]
  %v8642 = vld [vmem:[#allocation2 + $0x1f1] sm:$0xff]
  %v8643 = vld [vmem:[#allocation2 + $0x1f9] sm:$0xff]
  %v8644 = vld [vmem:[#allocation2 + $0x201] sm:$0xff]
  %v8645 = vld [vmem:[#allocation2 + $0x209] sm:$0xff]
  %v8646 = vld [vmem:[#allocation2 + $0x211] sm:$0xff]
  %v8647 = vld [vmem:[#allocation2 + $0x219] sm:$0xff]
  %v8648 = vld [vmem:[#allocation2 + $0x221] sm:$0xff]
  %v8649 = vsel %vm4619, %v8585, 0.0
  %v8650 = vsel %vm4620, %v8586, 0.0
  %v8651 = vsel %vm4621, %v8587, 0.0
  %v8652 = vsel %vm4622, %v8588, 0.0
  %v8653 = vsel %vm4623, %v8589, 0.0
  %v8654 = vsel %vm4624, %v8590, 0.0
  %v8655 = vsel %vm4625, %v8591, 0.0
  %v8656 = vsel %vm4626, %v8592, 0.0
  %v8657 = vsel %vm4627, %v8593, 0.0
  %v8658 = vsel %vm4628, %v8594, 0.0
  %v8659 = vsel %vm4629, %v8595, 0.0
  %v8660 = vsel %vm4630, %v8596, 0.0
  %v8661 = vsel %vm4631, %v8597, 0.0
  %v8662 = vsel %vm4632, %v8598, 0.0
  %v8663 = vsel %vm4633, %v8599, 0.0
  %v8664 = vsel %vm4634, %v8600, 0.0
  %v8665 = vsel %vm4635, %v8601, 0.0
  %v8666 = vsel %vm4636, %v8602, 0.0
  %v8667 = vsel %vm4637, %v8603, 0.0
  %v8668 = vsel %vm4638, %v8604, 0.0
  %v8669 = vsel %vm4639, %v8605, 0.0
  %v8670 = vsel %vm4640, %v8606, 0.0
  %v8671 = vsel %vm4641, %v8607, 0.0
  %v8672 = vsel %vm4642, %v8608, 0.0
  %v8673 = vsel %vm4643, %v8609, 0.0
  %v8674 = vsel %vm4644, %v8610, 0.0
  %v8675 = vsel %vm4645, %v8611, 0.0
  %v8676 = vsel %vm4646, %v8612, 0.0
  %v8677 = vsel %vm4647, %v8613, 0.0
  %v8678 = vsel %vm4648, %v8614, 0.0
  %v8679 = vsel %vm4649, %v8615, 0.0
  %v8680 = vsel %vm4650, %v8616, 0.0
  %v8681 = vsel %vm4651, %v8617, 0.0
  %v8682 = vsel %vm4652, %v8618, 0.0
  %v8683 = vsel %vm4653, %v8619, 0.0
  %v8684 = vsel %vm4654, %v8620, 0.0
  %v8685 = vsel %vm4655, %v8621, 0.0
  %v8686 = vsel %vm4656, %v8622, 0.0
  %v8687 = vsel %vm4657, %v8623, 0.0
  %v8688 = vsel %vm4658, %v8624, 0.0
  %v8689 = vsel %vm4659, %v8625, 0.0
  %v8690 = vsel %vm4660, %v8626, 0.0
  %v8691 = vsel %vm4661, %v8627, 0.0
  %v8692 = vsel %vm4662, %v8628, 0.0
  %v8693 = vsel %vm4663, %v8629, 0.0
  %v8694 = vsel %vm4664, %v8630, 0.0
  %v8695 = vsel %vm4665, %v8631, 0.0
  %v8696 = vsel %vm4666, %v8632, 0.0
  %v8697 = vsel %vm4667, %v8633, 0.0
  %v8698 = vsel %vm4668, %v8634, 0.0
  %v8699 = vsel %vm4669, %v8635, 0.0
  %v8700 = vsel %vm4670, %v8636, 0.0
  %v8701 = vsel %vm4671, %v8637, 0.0
  %v8702 = vsel %vm4672, %v8638, 0.0
  %v8703 = vsel %vm4673, %v8639, 0.0
  %v8704 = vsel %vm4674, %v8640, 0.0
  %v8705 = vsel %vm4675, %v8641, 0.0
  %v8706 = vsel %vm4676, %v8642, 0.0
  %v8707 = vsel %vm4677, %v8643, 0.0
  %v8708 = vsel %vm4678, %v8644, 0.0
  %v8709 = vsel %vm4679, %v8645, 0.0
  %v8710 = vsel %vm4680, %v8646, 0.0
  %v8711 = vsel %vm4681, %v8647, 0.0
  %v8712 = vsel %vm4682, %v8648, 0.0
  %v8713 = vpack.c.bf16 %v8650, %v8649
  %v8714 = vpack.c.bf16 %v8652, %v8651
  %v8715 = vpack.c.bf16 %v8654, %v8653
  %v8716 = vpack.c.bf16 %v8656, %v8655
  %v8717 = vpack.c.bf16 %v8658, %v8657
  %v8718 = vpack.c.bf16 %v8660, %v8659
  %v8719 = vpack.c.bf16 %v8662, %v8661
  %v8720 = vpack.c.bf16 %v8664, %v8663
  %v8721 = vpack.c.bf16 %v8666, %v8665
  %v8722 = vpack.c.bf16 %v8668, %v8667
  %v8723 = vpack.c.bf16 %v8670, %v8669
  %v8724 = vpack.c.bf16 %v8672, %v8671
  %v8725 = vpack.c.bf16 %v8674, %v8673
  %v8726 = vpack.c.bf16 %v8676, %v8675
  %v8727 = vpack.c.bf16 %v8678, %v8677
  %v8728 = vpack.c.bf16 %v8680, %v8679
  %v8729 = vpack.c.bf16 %v8682, %v8681
  %v8730 = vpack.c.bf16 %v8684, %v8683
  %v8731 = vpack.c.bf16 %v8686, %v8685
  %v8732 = vpack.c.bf16 %v8688, %v8687
  %v8733 = vpack.c.bf16 %v8690, %v8689
  %v8734 = vpack.c.bf16 %v8692, %v8691
  %v8735 = vpack.c.bf16 %v8694, %v8693
  %v8736 = vpack.c.bf16 %v8696, %v8695
  %v8737 = vpack.c.bf16 %v8698, %v8697
  %v8738 = vpack.c.bf16 %v8700, %v8699
  %v8739 = vpack.c.bf16 %v8702, %v8701
  %v8740 = vpack.c.bf16 %v8704, %v8703
  %v8741 = vpack.c.bf16 %v8706, %v8705
  %v8742 = vpack.c.bf16 %v8708, %v8707
  %v8743 = vpack.c.bf16 %v8710, %v8709
  %v8744 = vpack.c.bf16 %v8712, %v8711
  %8745 = vst.msk [vmem:[#allocation3 + $0x10] sm:$0xff] %vm30, %v8713
  %8746 = vst.msk [vmem:[#allocation3 + $0x28] sm:$0xff] %vm30, %v8714
  %8747 = vst.msk [vmem:[#allocation3 + $0x40] sm:$0xff] %vm30, %v8715
  %8748 = vst.msk [vmem:[#allocation3 + $0x58] sm:$0xff] %vm30, %v8716
  %8749 = vst.msk [vmem:[#allocation3 + $0x70] sm:$0xff] %vm30, %v8717
  %8750 = vst.msk [vmem:[#allocation3 + $0x88] sm:$0xff] %vm30, %v8718
  %8751 = vst.msk [vmem:[#allocation3 + $0xa0] sm:$0xff] %vm30, %v8719
  %8752 = vst.msk [vmem:[#allocation3 + $0xb8] sm:$0xff] %vm30, %v8720
  %8753 = vst.msk [vmem:[#allocation3 + $0xd0] sm:$0xff] %vm30, %v8721
  %8754 = vst.msk [vmem:[#allocation3 + $0xe8] sm:$0xff] %vm30, %v8722
  %8755 = vst.msk [vmem:[#allocation3 + $0x100] sm:$0xff] %vm30, %v8723
  %8756 = vst.msk [vmem:[#allocation3 + $0x118] sm:$0xff] %vm30, %v8724
  %8757 = vst.msk [vmem:[#allocation3 + $0x130] sm:$0xff] %vm30, %v8725
  %8758 = vst.msk [vmem:[#allocation3 + $0x148] sm:$0xff] %vm30, %v8726
  %8759 = vst.msk [vmem:[#allocation3 + $0x160] sm:$0xff] %vm30, %v8727
  %8760 = vst.msk [vmem:[#allocation3 + $0x178] sm:$0xff] %vm30, %v8728
  %8761 = vst.msk [vmem:[#allocation3 + $0x190] sm:$0xff] %vm30, %v8729
  %8762 = vst.msk [vmem:[#allocation3 + $0x1a8] sm:$0xff] %vm30, %v8730
  %8763 = vst.msk [vmem:[#allocation3 + $0x1c0] sm:$0xff] %vm30, %v8731
  %8764 = vst.msk [vmem:[#allocation3 + $0x1d8] sm:$0xff] %vm30, %v8732
  %8765 = vst.msk [vmem:[#allocation3 + $0x1f0] sm:$0xff] %vm30, %v8733
  %8766 = vst.msk [vmem:[#allocation3 + $0x208] sm:$0xff] %vm30, %v8734
  %8767 = vst.msk [vmem:[#allocation3 + $0x220] sm:$0xff] %vm30, %v8735
  %8768 = vst.msk [vmem:[#allocation3 + $0x238] sm:$0xff] %vm30, %v8736
  %8769 = vst.msk [vmem:[#allocation3 + $0x250] sm:$0xff] %vm30, %v8737
  %8770 = vst.msk [vmem:[#allocation3 + $0x268] sm:$0xff] %vm30, %v8738
  %8771 = vst.msk [vmem:[#allocation3 + $0x280] sm:$0xff] %vm30, %v8739
  %8772 = vst.msk [vmem:[#allocation3 + $0x298] sm:$0xff] %vm30, %v8740
  %8773 = vst.msk [vmem:[#allocation3 + $0x2b0] sm:$0xff] %vm30, %v8741
  %8774 = vst.msk [vmem:[#allocation3 + $0x2c8] sm:$0xff] %vm30, %v8742
  %8775 = vst.msk [vmem:[#allocation3 + $0x2e0] sm:$0xff] %vm30, %v8743
  %8776 = vst.msk [vmem:[#allocation3 + $0x2f8] sm:$0xff] %vm30, %v8744
  %v8777 = vld [vmem:[#allocation3] sm:$0xff]
  %v8778 = vld [vmem:[#allocation3 + $0x8] sm:$0xff]
  %v8779 = vld [vmem:[#allocation3 + $0x10] sm:$0xff]
  %v8780 = vld [vmem:[#allocation3 + $0x18] sm:$0xff]
  %v8781 = vld [vmem:[#allocation3 + $0x20] sm:$0xff]
  %v8782 = vld [vmem:[#allocation3 + $0x28] sm:$0xff]
  %v8783 = vld [vmem:[#allocation3 + $0x30] sm:$0xff]
  %v8784 = vld [vmem:[#allocation3 + $0x38] sm:$0xff]
  %v8785 = vld [vmem:[#allocation3 + $0x40] sm:$0xff]
  %v8786 = vld [vmem:[#allocation3 + $0x48] sm:$0xff]
  %v8787 = vld [vmem:[#allocation3 + $0x50] sm:$0xff]
  %v8788 = vld [vmem:[#allocation3 + $0x58] sm:$0xff]
  %v8789 = vld [vmem:[#allocation3 + $0x60] sm:$0xff]
  %v8790 = vld [vmem:[#allocation3 + $0x68] sm:$0xff]
  %v8791 = vld [vmem:[#allocation3 + $0x70] sm:$0xff]
  %v8792 = vld [vmem:[#allocation3 + $0x78] sm:$0xff]
  %v8793 = vld [vmem:[#allocation3 + $0x80] sm:$0xff]
  %v8794 = vld [vmem:[#allocation3 + $0x88] sm:$0xff]
  %v8795 = vld [vmem:[#allocation3 + $0x90] sm:$0xff]
  %v8796 = vld [vmem:[#allocation3 + $0x98] sm:$0xff]
  %v8797 = vld [vmem:[#allocation3 + $0xa0] sm:$0xff]
  %v8798 = vld [vmem:[#allocation3 + $0xa8] sm:$0xff]
  %v8799 = vld [vmem:[#allocation3 + $0xb0] sm:$0xff]
  %v8800 = vld [vmem:[#allocation3 + $0xb8] sm:$0xff]
  %v8801 = vld [vmem:[#allocation3 + $0xc0] sm:$0xff]
  %v8802 = vld [vmem:[#allocation3 + $0xc8] sm:$0xff]
  %v8803 = vld [vmem:[#allocation3 + $0xd0] sm:$0xff]
  %v8804 = vld [vmem:[#allocation3 + $0xd8] sm:$0xff]
  %v8805 = vld [vmem:[#allocation3 + $0xe0] sm:$0xff]
  %v8806 = vld [vmem:[#allocation3 + $0xe8] sm:$0xff]
  %v8807 = vld [vmem:[#allocation3 + $0xf0] sm:$0xff]
  %v8808 = vld [vmem:[#allocation3 + $0xf8] sm:$0xff]
  %v8809 = vld [vmem:[#allocation3 + $0x100] sm:$0xff]
  %v8810 = vld [vmem:[#allocation3 + $0x108] sm:$0xff]
  %v8811 = vld [vmem:[#allocation3 + $0x110] sm:$0xff]
  %v8812 = vld [vmem:[#allocation3 + $0x118] sm:$0xff]
  %v8813 = vld [vmem:[#allocation3 + $0x120] sm:$0xff]
  %v8814 = vld [vmem:[#allocation3 + $0x128] sm:$0xff]
  %v8815 = vld [vmem:[#allocation3 + $0x130] sm:$0xff]
  %v8816 = vld [vmem:[#allocation3 + $0x138] sm:$0xff]
  %v8817 = vld [vmem:[#allocation3 + $0x140] sm:$0xff]
  %v8818 = vld [vmem:[#allocation3 + $0x148] sm:$0xff]
  %v8819 = vld [vmem:[#allocation3 + $0x150] sm:$0xff]
  %v8820 = vld [vmem:[#allocation3 + $0x158] sm:$0xff]
  %v8821 = vld [vmem:[#allocation3 + $0x160] sm:$0xff]
  %v8822 = vld [vmem:[#allocation3 + $0x168] sm:$0xff]
  %v8823 = vld [vmem:[#allocation3 + $0x170] sm:$0xff]
  %v8824 = vld [vmem:[#allocation3 + $0x178] sm:$0xff]
  %v8825 = vld [vmem:[#allocation3 + $0x180] sm:$0xff]
  %v8826 = vld [vmem:[#allocation3 + $0x188] sm:$0xff]
  %v8827 = vld [vmem:[#allocation3 + $0x190] sm:$0xff]
  %v8828 = vld [vmem:[#allocation3 + $0x198] sm:$0xff]
  %v8829 = vld [vmem:[#allocation3 + $0x1a0] sm:$0xff]
  %v8830 = vld [vmem:[#allocation3 + $0x1a8] sm:$0xff]
  %v8831 = vld [vmem:[#allocation3 + $0x1b0] sm:$0xff]
  %v8832 = vld [vmem:[#allocation3 + $0x1b8] sm:$0xff]
  %v8833 = vld [vmem:[#allocation3 + $0x1c0] sm:$0xff]
  %v8834 = vld [vmem:[#allocation3 + $0x1c8] sm:$0xff]
  %v8835 = vld [vmem:[#allocation3 + $0x1d0] sm:$0xff]
  %v8836 = vld [vmem:[#allocation3 + $0x1d8] sm:$0xff]
  %v8837 = vld [vmem:[#allocation3 + $0x1e0] sm:$0xff]
  %v8838 = vld [vmem:[#allocation3 + $0x1e8] sm:$0xff]
  %v8839 = vld [vmem:[#allocation3 + $0x1f0] sm:$0xff]
  %v8840 = vld [vmem:[#allocation3 + $0x1f8] sm:$0xff]
  %v8841 = vld [vmem:[#allocation3 + $0x200] sm:$0xff]
  %v8842 = vld [vmem:[#allocation3 + $0x208] sm:$0xff]
  %v8843 = vld [vmem:[#allocation3 + $0x210] sm:$0xff]
  %v8844 = vld [vmem:[#allocation3 + $0x218] sm:$0xff]
  %v8845 = vld [vmem:[#allocation3 + $0x220] sm:$0xff]
  %v8846 = vld [vmem:[#allocation3 + $0x228] sm:$0xff]
  %v8847 = vld [vmem:[#allocation3 + $0x230] sm:$0xff]
  %v8848 = vld [vmem:[#allocation3 + $0x238] sm:$0xff]
  %v8849 = vld [vmem:[#allocation3 + $0x240] sm:$0xff]
  %v8850 = vld [vmem:[#allocation3 + $0x248] sm:$0xff]
  %v8851 = vld [vmem:[#allocation3 + $0x250] sm:$0xff]
  %v8852 = vld [vmem:[#allocation3 + $0x258] sm:$0xff]
  %v8853 = vld [vmem:[#allocation3 + $0x260] sm:$0xff]
  %v8854 = vld [vmem:[#allocation3 + $0x268] sm:$0xff]
  %v8855 = vld [vmem:[#allocation3 + $0x270] sm:$0xff]
  %v8856 = vld [vmem:[#allocation3 + $0x278] sm:$0xff]
  %v8857 = vld [vmem:[#allocation3 + $0x280] sm:$0xff]
  %v8858 = vld [vmem:[#allocation3 + $0x288] sm:$0xff]
  %v8859 = vld [vmem:[#allocation3 + $0x290] sm:$0xff]
  %v8860 = vld [vmem:[#allocation3 + $0x298] sm:$0xff]
  %v8861 = vld [vmem:[#allocation3 + $0x2a0] sm:$0xff]
  %v8862 = vld [vmem:[#allocation3 + $0x2a8] sm:$0xff]
  %v8863 = vld [vmem:[#allocation3 + $0x2b0] sm:$0xff]
  %v8864 = vld [vmem:[#allocation3 + $0x2b8] sm:$0xff]
  %v8865 = vld [vmem:[#allocation3 + $0x2c0] sm:$0xff]
  %v8866 = vld [vmem:[#allocation3 + $0x2c8] sm:$0xff]
  %v8867 = vld [vmem:[#allocation3 + $0x2d0] sm:$0xff]
  %v8868 = vld [vmem:[#allocation3 + $0x2d8] sm:$0xff]
  %v8869 = vld [vmem:[#allocation3 + $0x2e0] sm:$0xff]
  %v8870 = vld [vmem:[#allocation3 + $0x2e8] sm:$0xff]
  %v8871 = vld [vmem:[#allocation3 + $0x2f0] sm:$0xff]
  %v8872 = vld [vmem:[#allocation3 + $0x2f8] sm:$0xff]
  %s8873 = scalar_lea.vmem %s3, 144
  %v8874 = vld [vmem:[%s8873] sm:$0xf]
  %v8875 = vld [vmem:[%s8873 + $0x4] sm:$0xf]
  %v8876 = vld [vmem:[%s8873 + $0x8] sm:$0xf]
  %v8877 = vld [vmem:[%s8873 + $0xc] sm:$0xf]
  %v8878 = vld [vmem:[%s8873 + $0x10] sm:$0xf]
  %v8879 = vld [vmem:[%s8873 + $0x14] sm:$0xf]
  %v8880 = vld [vmem:[%s8873 + $0x18] sm:$0xf]
  %v8881 = vld [vmem:[%s8873 + $0x1c] sm:$0xf]
  %v8882 = vld [vmem:[%s8873 + $0x20] sm:$0xf]
  %v8883 = vld [vmem:[%s8873 + $0x24] sm:$0xf]
  %v8884 = vld [vmem:[%s8873 + $0x28] sm:$0xf]
  %v8885 = vld [vmem:[%s8873 + $0x2c] sm:$0xf]
  %v8886 = vld [vmem:[%s8873 + $0x30] sm:$0xf]
  %v8887 = vld [vmem:[%s8873 + $0x34] sm:$0xf]
  %v8888 = vld [vmem:[%s8873 + $0x38] sm:$0xf]
  %v8889 = vld [vmem:[%s8873 + $0x3c] sm:$0xf]
  %v8890 = vld [vmem:[%s8873 + $0x40] sm:$0xf]
  %v8891 = vld [vmem:[%s8873 + $0x44] sm:$0xf]
  %v8892 = vld [vmem:[%s8873 + $0x48] sm:$0xf]
  %v8893 = vld [vmem:[%s8873 + $0x4c] sm:$0xf]
  %v8894 = vld [vmem:[%s8873 + $0x50] sm:$0xf]
  %v8895 = vld [vmem:[%s8873 + $0x54] sm:$0xf]
  %v8896 = vld [vmem:[%s8873 + $0x58] sm:$0xf]
  %v8897 = vld [vmem:[%s8873 + $0x5c] sm:$0xf]
  %v8898 = vld [vmem:[%s8873 + $0x60] sm:$0xf]
  %v8899 = vld [vmem:[%s8873 + $0x64] sm:$0xf]
  %v8900 = vld [vmem:[%s8873 + $0x68] sm:$0xf]
  %v8901 = vld [vmem:[%s8873 + $0x6c] sm:$0xf]
  %v8902 = vld [vmem:[%s8873 + $0x70] sm:$0xf]
  %v8903 = vld [vmem:[%s8873 + $0x74] sm:$0xf]
  %v8904 = vld [vmem:[%s8873 + $0x78] sm:$0xf]
  %v8905 = vld [vmem:[%s8873 + $0x7c] sm:$0xf]
  %v8906 = vld [vmem:[%s8873 + $0x80] sm:$0xf]
  %v8907 = vld [vmem:[%s8873 + $0x84] sm:$0xf]
  %v8908 = vld [vmem:[%s8873 + $0x88] sm:$0xf]
  %v8909 = vld [vmem:[%s8873 + $0x8c] sm:$0xf]
  %s8910 = scalar_lea.vmem %s5, 2
  %v8911 = vld [vmem:[%s8910] sm:$0x1]
  %v8913 = vlaneseq
  %v8914 = vshrl.u32 %v8913, 7
  %v8915 = vsub.s32 0, %v8914
  %v8916 = vrot.slane %v8911, %v8915
  %v8954 = vunpack.c.l.b16 %v8874
  %v8955 = vunpack.c.l.b16 %v8875
  %v8956 = vunpack.c.l.b16 %v8876
  %v8957 = vunpack.c.l.b16 %v8877
  %v8958 = vunpack.c.l.b16 %v8878
  %v8959 = vunpack.c.l.b16 %v8879
  %v8960 = vunpack.c.l.b16 %v8880
  %v8961 = vunpack.c.l.b16 %v8881
  %v8962 = vunpack.c.l.b16 %v8882
  %v8963 = vunpack.c.l.b16 %v8883
  %v8964 = vunpack.c.l.b16 %v8884
  %v8965 = vunpack.c.l.b16 %v8885
  %v8966 = vunpack.c.l.b16 %v8886
  %v8967 = vunpack.c.l.b16 %v8887
  %v8968 = vunpack.c.l.b16 %v8888
  %v8969 = vunpack.c.l.b16 %v8889
  %v8970 = vunpack.c.l.b16 %v8890
  %v8971 = vunpack.c.l.b16 %v8891
  %v8972 = vunpack.c.l.b16 %v8892
  %v8973 = vunpack.c.l.b16 %v8893
  %v8974 = vunpack.c.l.b16 %v8894
  %v8975 = vunpack.c.l.b16 %v8895
  %v8976 = vunpack.c.l.b16 %v8896
  %v8977 = vunpack.c.l.b16 %v8897
  %v8978 = vunpack.c.l.b16 %v8898
  %v8979 = vunpack.c.l.b16 %v8899
  %v8980 = vunpack.c.l.b16 %v8900
  %v8981 = vunpack.c.l.b16 %v8901
  %v8982 = vunpack.c.l.b16 %v8902
  %v8983 = vunpack.c.l.b16 %v8903
  %v8984 = vunpack.c.l.b16 %v8904
  %v8985 = vunpack.c.l.b16 %v8905
  %v8986 = vunpack.c.l.b16 %v8906
  %v8987 = vunpack.c.l.b16 %v8907
  %v8988 = vunpack.c.l.b16 %v8908
  %v8989 = vunpack.c.l.b16 %v8909
  %v8990 = vpack.c.b16 %v8955, %v8954
  %v8991 = vpack.c.b16 %v8957, %v8956
  %v8992 = vpack.c.b16 %v8959, %v8958
  %v8993 = vpack.c.b16 %v8961, %v8960
  %v8994 = vpack.c.b16 %v8963, %v8962
  %v8995 = vpack.c.b16 %v8965, %v8964
  %v8996 = vpack.c.b16 %v8967, %v8966
  %v8997 = vpack.c.b16 %v8969, %v8968
  %v8998 = vpack.c.b16 %v8971, %v8970
  %v8999 = vpack.c.b16 %v8973, %v8972
  %v9000 = vpack.c.b16 %v8975, %v8974
  %v9001 = vpack.c.b16 %v8977, %v8976
  %v9002 = vpack.c.b16 %v8979, %v8978
  %v9003 = vpack.c.b16 %v8981, %v8980
  %v9004 = vpack.c.b16 %v8983, %v8982
  %v9005 = vpack.c.b16 %v8985, %v8984
  %v9006 = vpack.c.b16 %v8987, %v8986
  %v9007 = vpack.c.b16 %v8989, %v8988
  %v9027 = vsel %vm30, %v8779, 0
  %v9030 = vsel %vm30, %v8782, 0
  %v9033 = vsel %vm30, %v8785, 0
  %v9036 = vsel %vm30, %v8788, 0
  %v9039 = vsel %vm30, %v8791, 0
  %v9042 = vsel %vm30, %v8794, 0
  %v9045 = vsel %vm30, %v8797, 0
  %v9048 = vsel %vm30, %v8800, 0
  %v9051 = vsel %vm30, %v8803, 0
  %v9054 = vsel %vm30, %v8806, 0
  %v9057 = vsel %vm30, %v8809, 0
  %v9060 = vsel %vm30, %v8812, 0
  %v9063 = vsel %vm30, %v8815, 0
  %v9066 = vsel %vm30, %v8818, 0
  %v9069 = vsel %vm30, %v8821, 0
  %v9072 = vsel %vm30, %v8824, 0
  %v9075 = vsel %vm30, %v8827, 0
  %v9078 = vsel %vm30, %v8830, 0
  %v9081 = vsel %vm30, %v8833, 0
  %v9084 = vsel %vm30, %v8836, 0
  %v9087 = vsel %vm30, %v8839, 0
  %v9090 = vsel %vm30, %v8842, 0
  %v9093 = vsel %vm30, %v8845, 0
  %v9096 = vsel %vm30, %v8848, 0
  %v9099 = vsel %vm30, %v8851, 0
  %v9102 = vsel %vm30, %v8854, 0
  %v9105 = vsel %vm30, %v8857, 0
  %v9108 = vsel %vm30, %v8860, 0
  %v9111 = vsel %vm30, %v8863, 0
  %v9114 = vsel %vm30, %v8866, 0
  %v9117 = vsel %vm30, %v8869, 0
  %v9120 = vsel %vm30, %v8872, 0
  %9122 = vmatprep.subr.bf16.mxu0 0
  %9123 = vmatpush1.bf16.msra.mxu0 %v8990
  %9124 = vmatprep.subr.bf16.mxu0 0
  %9125 = vmatpush1.bf16.msra.mxu0 %v8991
  %9126 = vmatprep.subr.bf16.mxu0 0
  %9127 = vmatpush1.bf16.msra.mxu0 %v8992
  %9128 = vmatprep.subr.bf16.mxu0 0
  %9129 = vmatpush1.bf16.msra.mxu0 %v8993
  %9130 = vmatprep.subr.bf16.mxu0 0
  %9131 = vmatpush1.bf16.msra.mxu0 %v8994
  %9132 = vmatprep.subr.bf16.mxu0 0
  %9133 = vmatpush1.bf16.msra.mxu0 %v8995
  %9134 = vmatprep.subr.bf16.mxu0 0
  %9135 = vmatpush1.bf16.msra.mxu0 %v8996
  %9136 = vmatprep.subr.bf16.mxu0 0
  %9137 = vmatpush1.bf16.msra.mxu0 %v8997
  %9138 = vmatprep.subr.bf16.mxu0 0
  %9139 = vmatpush1.bf16.msra.mxu0 %v8998
  %9140 = vmatprep.subr.bf16.mxu0 0
  %9141 = vmatpush1.bf16.msra.mxu0 %v8999
  %9142 = vmatprep.subr.bf16.mxu0 0
  %9143 = vmatpush1.bf16.msra.mxu0 %v9000
  %9144 = vmatprep.subr.bf16.mxu0 0
  %9145 = vmatpush1.bf16.msra.mxu0 %v9001
  %9146 = vmatprep.subr.bf16.mxu0 0
  %9147 = vmatpush1.bf16.msra.mxu0 %v9002
  %9148 = vmatprep.subr.bf16.mxu0 0
  %9149 = vmatpush1.bf16.msra.mxu0 %v9003
  %9150 = vmatprep.subr.bf16.mxu0 0
  %9151 = vmatpush1.bf16.msra.mxu0 %v9004
  %9152 = vmatprep.subr.bf16.mxu0 0
  %9153 = vmatpush1.bf16.msra.mxu0 %v9005
  %9154 = vmatprep.mubr.bf16.mxu0 %v8778
  %9155 = vmatmul.mubr.bf16.gmra.mrb[0].mxu0 %v8777
  %v9156 = vpop.f32.mrb[0].mxu0
  %v9157 = vadd.f32 %v8916, %v9156
  %v9158 = vpop.f32.mrb[0].mxu0
  %v9159 = vpop.f32.mrb[0].mxu0
  %v9160 = vadd.f32 %v8916, %v9159
  %v9161 = vpop.f32.mrb[0].mxu0
  %9162 = vmatprep.mubr.bf16.mxu0 %v8781
  %9163 = vmatmul.mubr.bf16.gmra.mrb[0].mxu0 %v8780
  %v9164 = vpop.f32.mrb[0].mxu0
  %v9165 = vadd.f32 %v8916, %v9164
  %v9166 = vpop.f32.mrb[0].mxu0
  %v9167 = vpop.f32.mrb[0].mxu0
  %v9168 = vadd.f32 %v8916, %v9167
  %v9169 = vpop.f32.mrb[0].mxu0
  %9170 = vmatprep.mubr.bf16.mxu0 %v8784
  %9171 = vmatmul.mubr.bf16.gmra.mrb[0].mxu0 %v8783
  %v9172 = vpop.f32.mrb[0].mxu0
  %v9173 = vadd.f32 %v8916, %v9172
  %v9174 = vpop.f32.mrb[0].mxu0
  %v9175 = vpop.f32.mrb[0].mxu0
  %v9176 = vadd.f32 %v8916, %v9175
  %v9177 = vpop.f32.mrb[0].mxu0
  %9178 = vmatprep.mubr.bf16.mxu0 %v8787
  %9179 = vmatmul.mubr.bf16.gmra.mrb[0].mxu0 %v8786
  %v9180 = vpop.f32.mrb[0].mxu0
  %v9181 = vadd.f32 %v8916, %v9180
  %v9182 = vpop.f32.mrb[0].mxu0
  %v9183 = vpop.f32.mrb[0].mxu0
  %v9184 = vadd.f32 %v8916, %v9183
  %v9185 = vpop.f32.mrb[0].mxu0
  %9186 = vmatprep.mubr.bf16.mxu0 %v8790
  %9187 = vmatmul.mubr.bf16.gmra.mrb[0].mxu0 %v8789
  %v9188 = vpop.f32.mrb[0].mxu0
  %v9189 = vadd.f32 %v8916, %v9188
  %v9190 = vpop.f32.mrb[0].mxu0
  %v9191 = vpop.f32.mrb[0].mxu0
  %v9192 = vadd.f32 %v8916, %v9191
  %v9193 = vpop.f32.mrb[0].mxu0
  %9194 = vmatprep.mubr.bf16.mxu0 %v8793
  %9195 = vmatmul.mubr.bf16.gmra.mrb[0].mxu0 %v8792
  %v9196 = vpop.f32.mrb[0].mxu0
  %v9197 = vadd.f32 %v8916, %v9196
  %v9198 = vpop.f32.mrb[0].mxu0
  %v9199 = vpop.f32.mrb[0].mxu0
  %v9200 = vadd.f32 %v8916, %v9199
  %v9201 = vpop.f32.mrb[0].mxu0
  %9202 = vmatprep.mubr.bf16.mxu0 %v8796
  %9203 = vmatmul.mubr.bf16.gmra.mrb[0].mxu0 %v8795
  %v9204 = vpop.f32.mrb[0].mxu0
  %v9205 = vadd.f32 %v8916, %v9204
  %v9206 = vpop.f32.mrb[0].mxu0
  %v9207 = vpop.f32.mrb[0].mxu0
  %v9208 = vadd.f32 %v8916, %v9207
  %v9209 = vpop.f32.mrb[0].mxu0
  %9210 = vmatprep.mubr.bf16.mxu0 %v8799
  %9211 = vmatmul.mubr.bf16.gmra.mrb[0].mxu0 %v8798
  %v9212 = vpop.f32.mrb[0].mxu0
  %v9213 = vadd.f32 %v8916, %v9212
  %v9214 = vpop.f32.mrb[0].mxu0
  %v9215 = vpop.f32.mrb[0].mxu0
  %v9216 = vadd.f32 %v8916, %v9215
  %v9217 = vpop.f32.mrb[0].mxu0
  %9218 = vmatprep.mubr.bf16.mxu0 %v8802
  %9219 = vmatmul.mubr.bf16.gmra.mrb[0].mxu0 %v8801
  %v9220 = vpop.f32.mrb[0].mxu0
  %v9221 = vadd.f32 %v8916, %v9220
  %v9222 = vpop.f32.mrb[0].mxu0
  %v9223 = vpop.f32.mrb[0].mxu0
  %v9224 = vadd.f32 %v8916, %v9223
  %v9225 = vpop.f32.mrb[0].mxu0
  %9226 = vmatprep.mubr.bf16.mxu0 %v8805
  %9227 = vmatmul.mubr.bf16.gmra.mrb[0].mxu0 %v8804
  %v9228 = vpop.f32.mrb[0].mxu0
  %v9229 = vadd.f32 %v8916, %v9228
  %v9230 = vpop.f32.mrb[0].mxu0
  %v9231 = vpop.f32.mrb[0].mxu0
  %v9232 = vadd.f32 %v8916, %v9231
  %v9233 = vpop.f32.mrb[0].mxu0
  %9234 = vmatprep.mubr.bf16.mxu0 %v8808
  %9235 = vmatmul.mubr.bf16.gmra.mrb[0].mxu0 %v8807
  %v9236 = vpop.f32.mrb[0].mxu0
  %v9237 = vadd.f32 %v8916, %v9236
  %v9238 = vpop.f32.mrb[0].mxu0
  %v9239 = vpop.f32.mrb[0].mxu0
  %v9240 = vadd.f32 %v8916, %v9239
  %v9241 = vpop.f32.mrb[0].mxu0
  %9242 = vmatprep.mubr.bf16.mxu0 %v8811
  %9243 = vmatmul.mubr.bf16.gmra.mrb[0].mxu0 %v8810
  %v9244 = vpop.f32.mrb[0].mxu0
  %v9245 = vadd.f32 %v8916, %v9244
  %v9246 = vpop.f32.mrb[0].mxu0
  %v9247 = vpop.f32.mrb[0].mxu0
  %v9248 = vadd.f32 %v8916, %v9247
  %v9249 = vpop.f32.mrb[0].mxu0
  %9250 = vmatprep.mubr.bf16.mxu0 %v8814
  %9251 = vmatmul.mubr.bf16.gmra.mrb[0].mxu0 %v8813
  %v9252 = vpop.f32.mrb[0].mxu0
  %v9253 = vadd.f32 %v8916, %v9252
  %v9254 = vpop.f32.mrb[0].mxu0
  %v9255 = vpop.f32.mrb[0].mxu0
  %v9256 = vadd.f32 %v8916, %v9255
  %v9257 = vpop.f32.mrb[0].mxu0
  %9258 = vmatprep.mubr.bf16.mxu0 %v8817
  %9259 = vmatmul.mubr.bf16.gmra.mrb[0].mxu0 %v8816
  %v9260 = vpop.f32.mrb[0].mxu0
  %v9261 = vadd.f32 %v8916, %v9260
  %v9262 = vpop.f32.mrb[0].mxu0
  %v9263 = vpop.f32.mrb[0].mxu0
  %v9264 = vadd.f32 %v8916, %v9263
  %v9265 = vpop.f32.mrb[0].mxu0
  %9266 = vmatprep.mubr.bf16.mxu0 %v8820
  %9267 = vmatmul.mubr.bf16.gmra.mrb[0].mxu0 %v8819
  %v9268 = vpop.f32.mrb[0].mxu0
  %v9269 = vadd.f32 %v8916, %v9268
  %v9270 = vpop.f32.mrb[0].mxu0
  %v9271 = vpop.f32.mrb[0].mxu0
  %v9272 = vadd.f32 %v8916, %v9271
  %v9273 = vpop.f32.mrb[0].mxu0
  %9274 = vmatprep.mubr.bf16.mxu0 %v8823
  %9275 = vmatmul.mubr.bf16.gmra.mrb[0].mxu0 %v8822
  %v9276 = vpop.f32.mrb[0].mxu0
  %v9277 = vadd.f32 %v8916, %v9276
  %v9278 = vpop.f32.mrb[0].mxu0
  %v9279 = vpop.f32.mrb[0].mxu0
  %v9280 = vadd.f32 %v8916, %v9279
  %v9281 = vpop.f32.mrb[0].mxu0
  %9282 = vmatprep.mubr.bf16.mxu0 %v8826
  %9283 = vmatmul.mubr.bf16.gmra.mrb[0].mxu0 %v8825
  %v9284 = vpop.f32.mrb[0].mxu0
  %v9285 = vadd.f32 %v8916, %v9284
  %v9286 = vpop.f32.mrb[0].mxu0
  %v9287 = vpop.f32.mrb[0].mxu0
  %v9288 = vadd.f32 %v8916, %v9287
  %v9289 = vpop.f32.mrb[0].mxu0
  %9290 = vmatprep.mubr.bf16.mxu0 %v8829
  %9291 = vmatmul.mubr.bf16.gmra.mrb[0].mxu0 %v8828
  %v9292 = vpop.f32.mrb[0].mxu0
  %v9293 = vadd.f32 %v8916, %v9292
  %v9294 = vpop.f32.mrb[0].mxu0
  %v9295 = vpop.f32.mrb[0].mxu0
  %v9296 = vadd.f32 %v8916, %v9295
  %v9297 = vpop.f32.mrb[0].mxu0
  %9298 = vmatprep.mubr.bf16.mxu0 %v8832
  %9299 = vmatmul.mubr.bf16.gmra.mrb[0].mxu0 %v8831
  %v9300 = vpop.f32.mrb[0].mxu0
  %v9301 = vadd.f32 %v8916, %v9300
  %v9302 = vpop.f32.mrb[0].mxu0
  %v9303 = vpop.f32.mrb[0].mxu0
  %v9304 = vadd.f32 %v8916, %v9303
  %v9305 = vpop.f32.mrb[0].mxu0
  %9306 = vmatprep.mubr.bf16.mxu0 %v8835
  %9307 = vmatmul.mubr.bf16.gmra.mrb[0].mxu0 %v8834
  %v9308 = vpop.f32.mrb[0].mxu0
  %v9309 = vadd.f32 %v8916, %v9308
  %v9310 = vpop.f32.mrb[0].mxu0
  %v9311 = vpop.f32.mrb[0].mxu0
  %v9312 = vadd.f32 %v8916, %v9311
  %v9313 = vpop.f32.mrb[0].mxu0
  %9314 = vmatprep.mubr.bf16.mxu0 %v8838
  %9315 = vmatmul.mubr.bf16.gmra.mrb[0].mxu0 %v8837
  %v9316 = vpop.f32.mrb[0].mxu0
  %v9317 = vadd.f32 %v8916, %v9316
  %v9318 = vpop.f32.mrb[0].mxu0
  %v9319 = vpop.f32.mrb[0].mxu0
  %v9320 = vadd.f32 %v8916, %v9319
  %v9321 = vpop.f32.mrb[0].mxu0
  %9322 = vmatprep.mubr.bf16.mxu0 %v8841
  %9323 = vmatmul.mubr.bf16.gmra.mrb[0].mxu0 %v8840
  %v9324 = vpop.f32.mrb[0].mxu0
  %v9325 = vadd.f32 %v8916, %v9324
  %v9326 = vpop.f32.mrb[0].mxu0
  %v9327 = vpop.f32.mrb[0].mxu0
  %v9328 = vadd.f32 %v8916, %v9327
  %v9329 = vpop.f32.mrb[0].mxu0
  %9330 = vmatprep.mubr.bf16.mxu0 %v8844
  %9331 = vmatmul.mubr.bf16.gmra.mrb[0].mxu0 %v8843
  %v9332 = vpop.f32.mrb[0].mxu0
  %v9333 = vadd.f32 %v8916, %v9332
  %v9334 = vpop.f32.mrb[0].mxu0
  %v9335 = vpop.f32.mrb[0].mxu0
  %v9336 = vadd.f32 %v8916, %v9335
  %v9337 = vpop.f32.mrb[0].mxu0
  %9338 = vmatprep.mubr.bf16.mxu0 %v8847
  %9339 = vmatmul.mubr.bf16.gmra.mrb[0].mxu0 %v8846
  %v9340 = vpop.f32.mrb[0].mxu0
  %v9341 = vadd.f32 %v8916, %v9340
  %v9342 = vpop.f32.mrb[0].mxu0
  %v9343 = vpop.f32.mrb[0].mxu0
  %v9344 = vadd.f32 %v8916, %v9343
  %v9345 = vpop.f32.mrb[0].mxu0
  %9346 = vmatprep.mubr.bf16.mxu0 %v8850
  %9347 = vmatmul.mubr.bf16.gmra.mrb[0].mxu0 %v8849
  %v9348 = vpop.f32.mrb[0].mxu0
  %v9349 = vadd.f32 %v8916, %v9348
  %v9350 = vpop.f32.mrb[0].mxu0
  %v9351 = vpop.f32.mrb[0].mxu0
  %v9352 = vadd.f32 %v8916, %v9351
  %v9353 = vpop.f32.mrb[0].mxu0
  %9354 = vmatprep.mubr.bf16.mxu0 %v8853
  %9355 = vmatmul.mubr.bf16.gmra.mrb[0].mxu0 %v8852
  %v9356 = vpop.f32.mrb[0].mxu0
  %v9357 = vadd.f32 %v8916, %v9356
  %v9358 = vpop.f32.mrb[0].mxu0
  %v9359 = vpop.f32.mrb[0].mxu0
  %v9360 = vadd.f32 %v8916, %v9359
  %v9361 = vpop.f32.mrb[0].mxu0
  %9362 = vmatprep.mubr.bf16.mxu0 %v8856
  %9363 = vmatmul.mubr.bf16.gmra.mrb[0].mxu0 %v8855
  %v9364 = vpop.f32.mrb[0].mxu0
  %v9365 = vadd.f32 %v8916, %v9364
  %v9366 = vpop.f32.mrb[0].mxu0
  %v9367 = vpop.f32.mrb[0].mxu0
  %v9368 = vadd.f32 %v8916, %v9367
  %v9369 = vpop.f32.mrb[0].mxu0
  %9370 = vmatprep.mubr.bf16.mxu0 %v8859
  %9371 = vmatmul.mubr.bf16.gmra.mrb[0].mxu0 %v8858
  %v9372 = vpop.f32.mrb[0].mxu0
  %v9373 = vadd.f32 %v8916, %v9372
  %v9374 = vpop.f32.mrb[0].mxu0
  %v9375 = vpop.f32.mrb[0].mxu0
  %v9376 = vadd.f32 %v8916, %v9375
  %v9377 = vpop.f32.mrb[0].mxu0
  %9378 = vmatprep.mubr.bf16.mxu0 %v8862
  %9379 = vmatmul.mubr.bf16.gmra.mrb[0].mxu0 %v8861
  %v9380 = vpop.f32.mrb[0].mxu0
  %v9381 = vadd.f32 %v8916, %v9380
  %v9382 = vpop.f32.mrb[0].mxu0
  %v9383 = vpop.f32.mrb[0].mxu0
  %v9384 = vadd.f32 %v8916, %v9383
  %v9385 = vpop.f32.mrb[0].mxu0
  %9386 = vmatprep.mubr.bf16.mxu0 %v8865
  %9387 = vmatmul.mubr.bf16.gmra.mrb[0].mxu0 %v8864
  %v9388 = vpop.f32.mrb[0].mxu0
  %v9389 = vadd.f32 %v8916, %v9388
  %v9390 = vpop.f32.mrb[0].mxu0
  %v9391 = vpop.f32.mrb[0].mxu0
  %v9392 = vadd.f32 %v8916, %v9391
  %v9393 = vpop.f32.mrb[0].mxu0
  %9394 = vmatprep.mubr.bf16.mxu0 %v8868
  %9395 = vmatmul.mubr.bf16.gmra.mrb[0].mxu0 %v8867
  %v9396 = vpop.f32.mrb[0].mxu0
  %v9397 = vadd.f32 %v8916, %v9396
  %v9398 = vpop.f32.mrb[0].mxu0
  %v9399 = vpop.f32.mrb[0].mxu0
  %v9400 = vadd.f32 %v8916, %v9399
  %v9401 = vpop.f32.mrb[0].mxu0
  %9402 = vmatprep.mubr.bf16.mxu0 %v8871
  %9403 = vmatmul.mubr.bf16.gmra.mrb[0].mxu0 %v8870
  %v9404 = vpop.f32.mrb[0].mxu0
  %v9405 = vadd.f32 %v8916, %v9404
  %v9406 = vpop.f32.mrb[0].mxu0
  %v9407 = vpop.f32.mrb[0].mxu0
  %v9408 = vadd.f32 %v8916, %v9407
  %v9409 = vpop.f32.mrb[0].mxu0
  %9410 = vdwg.mxu0
  %9411 = vmatprep.subr.bf16.mxu0 0
  %9412 = vmatpush1.bf16.msra.mxu0 %v9006
  %9413 = vmatprep.subr.bf16.mxu0 0
  %9414 = vmatpush1.bf16.msra.mxu0 %v9007
  %9415 = vmatprep.subr.bf16.mxu0 0
  %9416 = vmatpush1.bf16.msra.mxu0 0
  %9417 = vmatprep.subr.bf16.mxu0 0
  %9418 = vmatpush1.bf16.msra.mxu0 0
  %9419 = vmatprep.subr.bf16.mxu0 0
  %9420 = vmatpush1.bf16.msra.mxu0 0
  %9421 = vmatprep.subr.bf16.mxu0 0
  %9422 = vmatpush1.bf16.msra.mxu0 0
  %9423 = vmatprep.subr.bf16.mxu0 0
  %9424 = vmatpush1.bf16.msra.mxu0 0
  %9425 = vmatprep.subr.bf16.mxu0 0
  %9426 = vmatpush1.bf16.msra.mxu0 0
  %9427 = vmatprep.subr.bf16.mxu0 0
  %9428 = vmatpush1.bf16.msra.mxu0 0
  %9429 = vmatprep.subr.bf16.mxu0 0
  %9430 = vmatpush1.bf16.msra.mxu0 0
  %9431 = vmatprep.subr.bf16.mxu0 0
  %9432 = vmatpush1.bf16.msra.mxu0 0
  %9433 = vmatprep.subr.bf16.mxu0 0
  %9434 = vmatpush1.bf16.msra.mxu0 0
  %9435 = vmatprep.subr.bf16.mxu0 0
  %9436 = vmatpush1.bf16.msra.mxu0 0
  %9437 = vmatprep.subr.bf16.mxu0 0
  %9438 = vmatpush1.bf16.msra.mxu0 0
  %9439 = vmatprep.subr.bf16.mxu0 0
  %9440 = vmatpush1.bf16.msra.mxu0 0
  %9441 = vmatprep.subr.bf16.mxu0 0
  %9442 = vmatpush1.bf16.msra.mxu0 0
  %9443 = vmatprep.mubr.bf16.mxu0 0
  %9444 = vmatmul.mubr.bf16.gmra.mrb[0].mxu0 %v9027
  %v9445 = vpop.f32.mrb[0].mxu0
  %v9446 = vadd.f32 %v9157, %v9445
  %v9447 = vpop.f32.mrb[0].mxu0
  %v9448 = vpop.f32.mrb[0].mxu0
  %v9449 = vadd.f32 %v9160, %v9448
  %v9450 = vpop.f32.mrb[0].mxu0
  %9451 = vmatprep.mubr.bf16.mxu0 0
  %9452 = vmatmul.mubr.bf16.gmra.mrb[0].mxu0 %v9030
  %v9453 = vpop.f32.mrb[0].mxu0
  %v9454 = vadd.f32 %v9165, %v9453
  %v9455 = vpop.f32.mrb[0].mxu0
  %v9456 = vpop.f32.mrb[0].mxu0
  %v9457 = vadd.f32 %v9168, %v9456
  %v9458 = vpop.f32.mrb[0].mxu0
  %9459 = vmatprep.mubr.bf16.mxu0 0
  %9460 = vmatmul.mubr.bf16.gmra.mrb[0].mxu0 %v9033
  %v9461 = vpop.f32.mrb[0].mxu0
  %v9462 = vadd.f32 %v9173, %v9461
  %v9463 = vpop.f32.mrb[0].mxu0
  %v9464 = vpop.f32.mrb[0].mxu0
  %v9465 = vadd.f32 %v9176, %v9464
  %v9466 = vpop.f32.mrb[0].mxu0
  %9467 = vmatprep.mubr.bf16.mxu0 0
  %9468 = vmatmul.mubr.bf16.gmra.mrb[0].mxu0 %v9036
  %v9469 = vpop.f32.mrb[0].mxu0
  %v9470 = vadd.f32 %v9181, %v9469
  %v9471 = vpop.f32.mrb[0].mxu0
  %v9472 = vpop.f32.mrb[0].mxu0
  %v9473 = vadd.f32 %v9184, %v9472
  %v9474 = vpop.f32.mrb[0].mxu0
  %9475 = vmatprep.mubr.bf16.mxu0 0
  %9476 = vmatmul.mubr.bf16.gmra.mrb[0].mxu0 %v9039
  %v9477 = vpop.f32.mrb[0].mxu0
  %v9478 = vadd.f32 %v9189, %v9477
  %v9479 = vpop.f32.mrb[0].mxu0
  %v9480 = vpop.f32.mrb[0].mxu0
  %v9481 = vadd.f32 %v9192, %v9480
  %v9482 = vpop.f32.mrb[0].mxu0
  %9483 = vmatprep.mubr.bf16.mxu0 0
  %9484 = vmatmul.mubr.bf16.gmra.mrb[0].mxu0 %v9042
  %v9485 = vpop.f32.mrb[0].mxu0
  %v9486 = vadd.f32 %v9197, %v9485
  %v9487 = vpop.f32.mrb[0].mxu0
  %v9488 = vpop.f32.mrb[0].mxu0
  %v9489 = vadd.f32 %v9200, %v9488
  %v9490 = vpop.f32.mrb[0].mxu0
  %9491 = vmatprep.mubr.bf16.mxu0 0
  %9492 = vmatmul.mubr.bf16.gmra.mrb[0].mxu0 %v9045
  %v9493 = vpop.f32.mrb[0].mxu0
  %v9494 = vadd.f32 %v9205, %v9493
  %v9495 = vpop.f32.mrb[0].mxu0
  %v9496 = vpop.f32.mrb[0].mxu0
  %v9497 = vadd.f32 %v9208, %v9496
  %v9498 = vpop.f32.mrb[0].mxu0
  %9499 = vmatprep.mubr.bf16.mxu0 0
  %9500 = vmatmul.mubr.bf16.gmra.mrb[0].mxu0 %v9048
  %v9501 = vpop.f32.mrb[0].mxu0
  %v9502 = vadd.f32 %v9213, %v9501
  %v9503 = vpop.f32.mrb[0].mxu0
  %v9504 = vpop.f32.mrb[0].mxu0
  %v9505 = vadd.f32 %v9216, %v9504
  %v9506 = vpop.f32.mrb[0].mxu0
  %9507 = vmatprep.mubr.bf16.mxu0 0
  %9508 = vmatmul.mubr.bf16.gmra.mrb[0].mxu0 %v9051
  %v9509 = vpop.f32.mrb[0].mxu0
  %v9510 = vadd.f32 %v9221, %v9509
  %v9511 = vpop.f32.mrb[0].mxu0
  %v9512 = vpop.f32.mrb[0].mxu0
  %v9513 = vadd.f32 %v9224, %v9512
  %v9514 = vpop.f32.mrb[0].mxu0
  %9515 = vmatprep.mubr.bf16.mxu0 0
  %9516 = vmatmul.mubr.bf16.gmra.mrb[0].mxu0 %v9054
  %v9517 = vpop.f32.mrb[0].mxu0
  %v9518 = vadd.f32 %v9229, %v9517
  %v9519 = vpop.f32.mrb[0].mxu0
  %v9520 = vpop.f32.mrb[0].mxu0
  %v9521 = vadd.f32 %v9232, %v9520
  %v9522 = vpop.f32.mrb[0].mxu0
  %9523 = vmatprep.mubr.bf16.mxu0 0
  %9524 = vmatmul.mubr.bf16.gmra.mrb[0].mxu0 %v9057
  %v9525 = vpop.f32.mrb[0].mxu0
  %v9526 = vadd.f32 %v9237, %v9525
  %v9527 = vpop.f32.mrb[0].mxu0
  %v9528 = vpop.f32.mrb[0].mxu0
  %v9529 = vadd.f32 %v9240, %v9528
  %v9530 = vpop.f32.mrb[0].mxu0
  %9531 = vmatprep.mubr.bf16.mxu0 0
  %9532 = vmatmul.mubr.bf16.gmra.mrb[0].mxu0 %v9060
  %v9533 = vpop.f32.mrb[0].mxu0
  %v9534 = vadd.f32 %v9245, %v9533
  %v9535 = vpop.f32.mrb[0].mxu0
  %v9536 = vpop.f32.mrb[0].mxu0
  %v9537 = vadd.f32 %v9248, %v9536
  %v9538 = vpop.f32.mrb[0].mxu0
  %9539 = vmatprep.mubr.bf16.mxu0 0
  %9540 = vmatmul.mubr.bf16.gmra.mrb[0].mxu0 %v9063
  %v9541 = vpop.f32.mrb[0].mxu0
  %v9542 = vadd.f32 %v9253, %v9541
  %v9543 = vpop.f32.mrb[0].mxu0
  %v9544 = vpop.f32.mrb[0].mxu0
  %v9545 = vadd.f32 %v9256, %v9544
  %v9546 = vpop.f32.mrb[0].mxu0
  %9547 = vmatprep.mubr.bf16.mxu0 0
  %9548 = vmatmul.mubr.bf16.gmra.mrb[0].mxu0 %v9066
  %v9549 = vpop.f32.mrb[0].mxu0
  %v9550 = vadd.f32 %v9261, %v9549
  %v9551 = vpop.f32.mrb[0].mxu0
  %v9552 = vpop.f32.mrb[0].mxu0
  %v9553 = vadd.f32 %v9264, %v9552
  %v9554 = vpop.f32.mrb[0].mxu0
  %9555 = vmatprep.mubr.bf16.mxu0 0
  %9556 = vmatmul.mubr.bf16.gmra.mrb[0].mxu0 %v9069
  %v9557 = vpop.f32.mrb[0].mxu0
  %v9558 = vadd.f32 %v9269, %v9557
  %v9559 = vpop.f32.mrb[0].mxu0
  %v9560 = vpop.f32.mrb[0].mxu0
  %v9561 = vadd.f32 %v9272, %v9560
  %v9562 = vpop.f32.mrb[0].mxu0
  %9563 = vmatprep.mubr.bf16.mxu0 0
  %9564 = vmatmul.mubr.bf16.gmra.mrb[0].mxu0 %v9072
  %v9565 = vpop.f32.mrb[0].mxu0
  %v9566 = vadd.f32 %v9277, %v9565
  %v9567 = vpop.f32.mrb[0].mxu0
  %v9568 = vpop.f32.mrb[0].mxu0
  %v9569 = vadd.f32 %v9280, %v9568
  %v9570 = vpop.f32.mrb[0].mxu0
  %9571 = vmatprep.mubr.bf16.mxu0 0
  %9572 = vmatmul.mubr.bf16.gmra.mrb[0].mxu0 %v9075
  %v9573 = vpop.f32.mrb[0].mxu0
  %v9574 = vadd.f32 %v9285, %v9573
  %v9575 = vpop.f32.mrb[0].mxu0
  %v9576 = vpop.f32.mrb[0].mxu0
  %v9577 = vadd.f32 %v9288, %v9576
  %v9578 = vpop.f32.mrb[0].mxu0
  %9579 = vmatprep.mubr.bf16.mxu0 0
  %9580 = vmatmul.mubr.bf16.gmra.mrb[0].mxu0 %v9078
  %v9581 = vpop.f32.mrb[0].mxu0
  %v9582 = vadd.f32 %v9293, %v9581
  %v9583 = vpop.f32.mrb[0].mxu0
  %v9584 = vpop.f32.mrb[0].mxu0
  %v9585 = vadd.f32 %v9296, %v9584
  %v9586 = vpop.f32.mrb[0].mxu0
  %9587 = vmatprep.mubr.bf16.mxu0 0
  %9588 = vmatmul.mubr.bf16.gmra.mrb[0].mxu0 %v9081
  %v9589 = vpop.f32.mrb[0].mxu0
  %v9590 = vadd.f32 %v9301, %v9589
  %v9591 = vpop.f32.mrb[0].mxu0
  %v9592 = vpop.f32.mrb[0].mxu0
  %v9593 = vadd.f32 %v9304, %v9592
  %v9594 = vpop.f32.mrb[0].mxu0
  %9595 = vmatprep.mubr.bf16.mxu0 0
  %9596 = vmatmul.mubr.bf16.gmra.mrb[0].mxu0 %v9084
  %v9597 = vpop.f32.mrb[0].mxu0
  %v9598 = vadd.f32 %v9309, %v9597
  %v9599 = vpop.f32.mrb[0].mxu0
  %v9600 = vpop.f32.mrb[0].mxu0
  %v9601 = vadd.f32 %v9312, %v9600
  %v9602 = vpop.f32.mrb[0].mxu0
  %9603 = vmatprep.mubr.bf16.mxu0 0
  %9604 = vmatmul.mubr.bf16.gmra.mrb[0].mxu0 %v9087
  %v9605 = vpop.f32.mrb[0].mxu0
  %v9606 = vadd.f32 %v9317, %v9605
  %v9607 = vpop.f32.mrb[0].mxu0
  %v9608 = vpop.f32.mrb[0].mxu0
  %v9609 = vadd.f32 %v9320, %v9608
  %v9610 = vpop.f32.mrb[0].mxu0
  %9611 = vmatprep.mubr.bf16.mxu0 0
  %9612 = vmatmul.mubr.bf16.gmra.mrb[0].mxu0 %v9090
  %v9613 = vpop.f32.mrb[0].mxu0
  %v9614 = vadd.f32 %v9325, %v9613
  %v9615 = vpop.f32.mrb[0].mxu0
  %v9616 = vpop.f32.mrb[0].mxu0
  %v9617 = vadd.f32 %v9328, %v9616
  %v9618 = vpop.f32.mrb[0].mxu0
  %9619 = vmatprep.mubr.bf16.mxu0 0
  %9620 = vmatmul.mubr.bf16.gmra.mrb[0].mxu0 %v9093
  %v9621 = vpop.f32.mrb[0].mxu0
  %v9622 = vadd.f32 %v9333, %v9621
  %v9623 = vpop.f32.mrb[0].mxu0
  %v9624 = vpop.f32.mrb[0].mxu0
  %v9625 = vadd.f32 %v9336, %v9624
  %v9626 = vpop.f32.mrb[0].mxu0
  %9627 = vmatprep.mubr.bf16.mxu0 0
  %9628 = vmatmul.mubr.bf16.gmra.mrb[0].mxu0 %v9096
  %v9629 = vpop.f32.mrb[0].mxu0
  %v9630 = vadd.f32 %v9341, %v9629
  %v9631 = vpop.f32.mrb[0].mxu0
  %v9632 = vpop.f32.mrb[0].mxu0
  %v9633 = vadd.f32 %v9344, %v9632
  %v9634 = vpop.f32.mrb[0].mxu0
  %9635 = vmatprep.mubr.bf16.mxu0 0
  %9636 = vmatmul.mubr.bf16.gmra.mrb[0].mxu0 %v9099
  %v9637 = vpop.f32.mrb[0].mxu0
  %v9638 = vadd.f32 %v9349, %v9637
  %v9639 = vpop.f32.mrb[0].mxu0
  %v9640 = vpop.f32.mrb[0].mxu0
  %v9641 = vadd.f32 %v9352, %v9640
  %v9642 = vpop.f32.mrb[0].mxu0
  %9643 = vmatprep.mubr.bf16.mxu0 0
  %9644 = vmatmul.mubr.bf16.gmra.mrb[0].mxu0 %v9102
  %v9645 = vpop.f32.mrb[0].mxu0
  %v9646 = vadd.f32 %v9357, %v9645
  %v9647 = vpop.f32.mrb[0].mxu0
  %v9648 = vpop.f32.mrb[0].mxu0
  %v9649 = vadd.f32 %v9360, %v9648
  %v9650 = vpop.f32.mrb[0].mxu0
  %9651 = vmatprep.mubr.bf16.mxu0 0
  %9652 = vmatmul.mubr.bf16.gmra.mrb[0].mxu0 %v9105
  %v9653 = vpop.f32.mrb[0].mxu0
  %v9654 = vadd.f32 %v9365, %v9653
  %v9655 = vpop.f32.mrb[0].mxu0
  %v9656 = vpop.f32.mrb[0].mxu0
  %v9657 = vadd.f32 %v9368, %v9656
  %v9658 = vpop.f32.mrb[0].mxu0
  %9659 = vmatprep.mubr.bf16.mxu0 0
  %9660 = vmatmul.mubr.bf16.gmra.mrb[0].mxu0 %v9108
  %v9661 = vpop.f32.mrb[0].mxu0
  %v9662 = vadd.f32 %v9373, %v9661
  %v9663 = vpop.f32.mrb[0].mxu0
  %v9664 = vpop.f32.mrb[0].mxu0
  %v9665 = vadd.f32 %v9376, %v9664
  %v9666 = vpop.f32.mrb[0].mxu0
  %9667 = vmatprep.mubr.bf16.mxu0 0
  %9668 = vmatmul.mubr.bf16.gmra.mrb[0].mxu0 %v9111
  %v9669 = vpop.f32.mrb[0].mxu0
  %v9670 = vadd.f32 %v9381, %v9669
  %v9671 = vpop.f32.mrb[0].mxu0
  %v9672 = vpop.f32.mrb[0].mxu0
  %v9673 = vadd.f32 %v9384, %v9672
  %v9674 = vpop.f32.mrb[0].mxu0
  %9675 = vmatprep.mubr.bf16.mxu0 0
  %9676 = vmatmul.mubr.bf16.gmra.mrb[0].mxu0 %v9114
  %v9677 = vpop.f32.mrb[0].mxu0
  %v9678 = vadd.f32 %v9389, %v9677
  %v9679 = vpop.f32.mrb[0].mxu0
  %v9680 = vpop.f32.mrb[0].mxu0
  %v9681 = vadd.f32 %v9392, %v9680
  %v9682 = vpop.f32.mrb[0].mxu0
  %9683 = vmatprep.mubr.bf16.mxu0 0
  %9684 = vmatmul.mubr.bf16.gmra.mrb[0].mxu0 %v9117
  %v9685 = vpop.f32.mrb[0].mxu0
  %v9686 = vadd.f32 %v9397, %v9685
  %v9687 = vpop.f32.mrb[0].mxu0
  %v9688 = vpop.f32.mrb[0].mxu0
  %v9689 = vadd.f32 %v9400, %v9688
  %v9690 = vpop.f32.mrb[0].mxu0
  %9691 = vmatprep.mubr.bf16.mxu0 0
  %9692 = vmatmul.mubr.bf16.gmra.mrb[0].mxu0 %v9120
  %v9693 = vpop.f32.mrb[0].mxu0
  %v9694 = vadd.f32 %v9405, %v9693
  %v9695 = vpop.f32.mrb[0].mxu0
  %v9696 = vpop.f32.mrb[0].mxu0
  %v9697 = vadd.f32 %v9408, %v9696
  %v9698 = vpop.f32.mrb[0].mxu0
  %9699 = vdwg.mxu0
  %v9700 = vmax.f32 %v9446, 0.0
  %v9701 = vmax.f32 %v9449, 0.0
  %v9702 = vmax.f32 %v9454, 0.0
  %v9703 = vmax.f32 %v9457, 0.0
  %v9704 = vmax.f32 %v9462, 0.0
  %v9705 = vmax.f32 %v9465, 0.0
  %v9706 = vmax.f32 %v9470, 0.0
  %v9707 = vmax.f32 %v9473, 0.0
  %v9708 = vmax.f32 %v9478, 0.0
  %v9709 = vmax.f32 %v9481, 0.0
  %v9710 = vmax.f32 %v9486, 0.0
  %v9711 = vmax.f32 %v9489, 0.0
  %v9712 = vmax.f32 %v9494, 0.0
  %v9713 = vmax.f32 %v9497, 0.0
  %v9714 = vmax.f32 %v9502, 0.0
  %v9715 = vmax.f32 %v9505, 0.0
  %v9716 = vmax.f32 %v9510, 0.0
  %v9717 = vmax.f32 %v9513, 0.0
  %v9718 = vmax.f32 %v9518, 0.0
  %v9719 = vmax.f32 %v9521, 0.0
  %v9720 = vmax.f32 %v9526, 0.0
  %v9721 = vmax.f32 %v9529, 0.0
  %v9722 = vmax.f32 %v9534, 0.0
  %v9723 = vmax.f32 %v9537, 0.0
  %v9724 = vmax.f32 %v9542, 0.0
  %v9725 = vmax.f32 %v9545, 0.0
  %v9726 = vmax.f32 %v9550, 0.0
  %v9727 = vmax.f32 %v9553, 0.0
  %v9728 = vmax.f32 %v9558, 0.0
  %v9729 = vmax.f32 %v9561, 0.0
  %v9730 = vmax.f32 %v9566, 0.0
  %v9731 = vmax.f32 %v9569, 0.0
  %v9732 = vmax.f32 %v9574, 0.0
  %v9733 = vmax.f32 %v9577, 0.0
  %v9734 = vmax.f32 %v9582, 0.0
  %v9735 = vmax.f32 %v9585, 0.0
  %v9736 = vmax.f32 %v9590, 0.0
  %v9737 = vmax.f32 %v9593, 0.0
  %v9738 = vmax.f32 %v9598, 0.0
  %v9739 = vmax.f32 %v9601, 0.0
  %v9740 = vmax.f32 %v9606, 0.0
  %v9741 = vmax.f32 %v9609, 0.0
  %v9742 = vmax.f32 %v9614, 0.0
  %v9743 = vmax.f32 %v9617, 0.0
  %v9744 = vmax.f32 %v9622, 0.0
  %v9745 = vmax.f32 %v9625, 0.0
  %v9746 = vmax.f32 %v9630, 0.0
  %v9747 = vmax.f32 %v9633, 0.0
  %v9748 = vmax.f32 %v9638, 0.0
  %v9749 = vmax.f32 %v9641, 0.0
  %v9750 = vmax.f32 %v9646, 0.0
  %v9751 = vmax.f32 %v9649, 0.0
  %v9752 = vmax.f32 %v9654, 0.0
  %v9753 = vmax.f32 %v9657, 0.0
  %v9754 = vmax.f32 %v9662, 0.0
  %v9755 = vmax.f32 %v9665, 0.0
  %v9756 = vmax.f32 %v9670, 0.0
  %v9757 = vmax.f32 %v9673, 0.0
  %v9758 = vmax.f32 %v9678, 0.0
  %v9759 = vmax.f32 %v9681, 0.0
  %v9760 = vmax.f32 %v9686, 0.0
  %v9761 = vmax.f32 %v9689, 0.0
  %v9762 = vmax.f32 %v9694, 0.0
  %v9763 = vmax.f32 %v9697, 0.0
  %v9764 = vsel %vm30, %v9700, 0.0
  %v9765 = vsel %vm30, %v9701, 0.0
  %v9766 = vadd.f32 %v9764, %v9765
  %v9767 = vsel %vm30, %v9702, 0.0
  %v9768 = vadd.f32 %v9766, %v9767
  %v9769 = vsel %vm30, %v9703, 0.0
  %v9770 = vadd.f32 %v9768, %v9769
  %v9771 = vsel %vm30, %v9704, 0.0
  %v9772 = vadd.f32 %v9770, %v9771
  %v9773 = vsel %vm30, %v9705, 0.0
  %v9774 = vadd.f32 %v9772, %v9773
  %v9775 = vsel %vm30, %v9706, 0.0
  %v9776 = vadd.f32 %v9774, %v9775
  %v9777 = vsel %vm30, %v9707, 0.0
  %v9778 = vadd.f32 %v9776, %v9777
  %v9779 = vsel %vm30, %v9708, 0.0
  %v9780 = vadd.f32 %v9778, %v9779
  %v9781 = vsel %vm30, %v9709, 0.0
  %v9782 = vadd.f32 %v9780, %v9781
  %v9783 = vsel %vm30, %v9710, 0.0
  %v9784 = vadd.f32 %v9782, %v9783
  %v9785 = vsel %vm30, %v9711, 0.0
  %v9786 = vadd.f32 %v9784, %v9785
  %v9787 = vsel %vm30, %v9712, 0.0
  %v9788 = vadd.f32 %v9786, %v9787
  %v9789 = vsel %vm30, %v9713, 0.0
  %v9790 = vadd.f32 %v9788, %v9789
  %v9791 = vsel %vm30, %v9714, 0.0
  %v9792 = vadd.f32 %v9790, %v9791
  %v9793 = vsel %vm30, %v9715, 0.0
  %v9794 = vadd.f32 %v9792, %v9793
  %v9795 = vsel %vm30, %v9716, 0.0
  %v9796 = vadd.f32 %v9794, %v9795
  %v9797 = vsel %vm30, %v9717, 0.0
  %v9798 = vadd.f32 %v9796, %v9797
  %v9799 = vsel %vm30, %v9718, 0.0
  %v9800 = vadd.f32 %v9798, %v9799
  %v9801 = vsel %vm30, %v9719, 0.0
  %v9802 = vadd.f32 %v9800, %v9801
  %v9803 = vsel %vm30, %v9720, 0.0
  %v9804 = vadd.f32 %v9802, %v9803
  %v9805 = vsel %vm30, %v9721, 0.0
  %v9806 = vadd.f32 %v9804, %v9805
  %v9807 = vsel %vm30, %v9722, 0.0
  %v9808 = vadd.f32 %v9806, %v9807
  %v9809 = vsel %vm30, %v9723, 0.0
  %v9810 = vadd.f32 %v9808, %v9809
  %v9811 = vsel %vm30, %v9724, 0.0
  %v9812 = vadd.f32 %v9810, %v9811
  %v9813 = vsel %vm30, %v9725, 0.0
  %v9814 = vadd.f32 %v9812, %v9813
  %v9815 = vsel %vm30, %v9726, 0.0
  %v9816 = vadd.f32 %v9814, %v9815
  %v9817 = vsel %vm30, %v9727, 0.0
  %v9818 = vadd.f32 %v9816, %v9817
  %v9819 = vsel %vm30, %v9728, 0.0
  %v9820 = vadd.f32 %v9818, %v9819
  %v9821 = vsel %vm30, %v9729, 0.0
  %v9822 = vadd.f32 %v9820, %v9821
  %v9823 = vsel %vm30, %v9730, 0.0
  %v9824 = vadd.f32 %v9822, %v9823
  %v9825 = vsel %vm30, %v9731, 0.0
  %v9826 = vadd.f32 %v9824, %v9825
  %v9827 = vsel %vm30, %v9732, 0.0
  %v9828 = vadd.f32 %v9826, %v9827
  %v9829 = vsel %vm30, %v9733, 0.0
  %v9830 = vadd.f32 %v9828, %v9829
  %v9831 = vsel %vm30, %v9734, 0.0
  %v9832 = vadd.f32 %v9830, %v9831
  %v9833 = vsel %vm30, %v9735, 0.0
  %v9834 = vadd.f32 %v9832, %v9833
  %v9835 = vsel %vm30, %v9736, 0.0
  %v9836 = vadd.f32 %v9834, %v9835
  %v9837 = vsel %vm30, %v9737, 0.0
  %v9838 = vadd.f32 %v9836, %v9837
  %v9839 = vsel %vm30, %v9738, 0.0
  %v9840 = vadd.f32 %v9838, %v9839
  %v9841 = vsel %vm30, %v9739, 0.0
  %v9842 = vadd.f32 %v9840, %v9841
  %v9843 = vsel %vm30, %v9740, 0.0
  %v9844 = vadd.f32 %v9842, %v9843
  %v9845 = vsel %vm30, %v9741, 0.0
  %v9846 = vadd.f32 %v9844, %v9845
  %v9847 = vsel %vm30, %v9742, 0.0
  %v9848 = vadd.f32 %v9846, %v9847
  %v9849 = vsel %vm30, %v9743, 0.0
  %v9850 = vadd.f32 %v9848, %v9849
  %v9851 = vsel %vm30, %v9744, 0.0
  %v9852 = vadd.f32 %v9850, %v9851
  %v9853 = vsel %vm30, %v9745, 0.0
  %v9854 = vadd.f32 %v9852, %v9853
  %v9855 = vsel %vm30, %v9746, 0.0
  %v9856 = vadd.f32 %v9854, %v9855
  %v9857 = vsel %vm30, %v9747, 0.0
  %v9858 = vadd.f32 %v9856, %v9857
  %v9859 = vsel %vm30, %v9748, 0.0
  %v9860 = vadd.f32 %v9858, %v9859
  %v9861 = vsel %vm30, %v9749, 0.0
  %v9862 = vadd.f32 %v9860, %v9861
  %v9863 = vsel %vm30, %v9750, 0.0
  %v9864 = vadd.f32 %v9862, %v9863
  %v9865 = vsel %vm30, %v9751, 0.0
  %v9866 = vadd.f32 %v9864, %v9865
  %v9867 = vsel %vm30, %v9752, 0.0
  %v9868 = vadd.f32 %v9866, %v9867
  %v9869 = vsel %vm30, %v9753, 0.0
  %v9870 = vadd.f32 %v9868, %v9869
  %v9871 = vsel %vm30, %v9754, 0.0
  %v9872 = vadd.f32 %v9870, %v9871
  %v9873 = vsel %vm30, %v9755, 0.0
  %v9874 = vadd.f32 %v9872, %v9873
  %v9875 = vsel %vm30, %v9756, 0.0
  %v9876 = vadd.f32 %v9874, %v9875
  %v9877 = vsel %vm30, %v9757, 0.0
  %v9878 = vadd.f32 %v9876, %v9877
  %v9879 = vsel %vm30, %v9758, 0.0
  %v9880 = vadd.f32 %v9878, %v9879
  %v9881 = vsel %vm30, %v9759, 0.0
  %v9882 = vadd.f32 %v9880, %v9881
  %v9883 = vsel %vm30, %v9760, 0.0
  %v9884 = vadd.f32 %v9882, %v9883
  %v9885 = vsel %vm30, %v9761, 0.0
  %v9886 = vadd.f32 %v9884, %v9885
  %v9887 = vsel %vm30, %v9762, 0.0
  %v9888 = vadd.f32 %v9886, %v9887
  %v9889 = vsel %vm30, %v9763, 0.0
  %v9890 = vadd.f32 %v9888, %v9889
  %v9891 = vrot.slane %v9890, 4
  %v9892 = vadd.f32 %v9890, %v9891
  %v9893 = vrot.slane %v9892, 2
  %v9894 = vadd.f32 %v9892, %v9893
  %v9895 = vrot.slane %v9894, 1
  %v9896 = vadd.f32 %v9894, %v9895
  %v9897 = vmul.f32 %v9700, %v9700
  %v9898 = vmul.f32 %v9701, %v9701
  %v9899 = vmul.f32 %v9702, %v9702
  %v9900 = vmul.f32 %v9703, %v9703
  %v9901 = vmul.f32 %v9704, %v9704
  %v9902 = vmul.f32 %v9705, %v9705
  %v9903 = vmul.f32 %v9706, %v9706
  %v9904 = vmul.f32 %v9707, %v9707
  %v9905 = vmul.f32 %v9708, %v9708
  %v9906 = vmul.f32 %v9709, %v9709
  %v9907 = vmul.f32 %v9710, %v9710
  %v9908 = vmul.f32 %v9711, %v9711
  %v9909 = vmul.f32 %v9712, %v9712
  %v9910 = vmul.f32 %v9713, %v9713
  %v9911 = vmul.f32 %v9714, %v9714
  %v9912 = vmul.f32 %v9715, %v9715
  %v9913 = vmul.f32 %v9716, %v9716
  %v9914 = vmul.f32 %v9717, %v9717
  %v9915 = vmul.f32 %v9718, %v9718
  %v9916 = vmul.f32 %v9719, %v9719
  %v9917 = vmul.f32 %v9720, %v9720
  %v9918 = vmul.f32 %v9721, %v9721
  %v9919 = vmul.f32 %v9722, %v9722
  %v9920 = vmul.f32 %v9723, %v9723
  %v9921 = vmul.f32 %v9724, %v9724
  %v9922 = vmul.f32 %v9725, %v9725
  %v9923 = vmul.f32 %v9726, %v9726
  %v9924 = vmul.f32 %v9727, %v9727
  %v9925 = vmul.f32 %v9728, %v9728
  %v9926 = vmul.f32 %v9729, %v9729
  %v9927 = vmul.f32 %v9730, %v9730
  %v9928 = vmul.f32 %v9731, %v9731
  %v9929 = vmul.f32 %v9732, %v9732
  %v9930 = vmul.f32 %v9733, %v9733
  %v9931 = vmul.f32 %v9734, %v9734
  %v9932 = vmul.f32 %v9735, %v9735
  %v9933 = vmul.f32 %v9736, %v9736
  %v9934 = vmul.f32 %v9737, %v9737
  %v9935 = vmul.f32 %v9738, %v9738
  %v9936 = vmul.f32 %v9739, %v9739
  %v9937 = vmul.f32 %v9740, %v9740
  %v9938 = vmul.f32 %v9741, %v9741
  %v9939 = vmul.f32 %v9742, %v9742
  %v9940 = vmul.f32 %v9743, %v9743
  %v9941 = vmul.f32 %v9744, %v9744
  %v9942 = vmul.f32 %v9745, %v9745
  %v9943 = vmul.f32 %v9746, %v9746
  %v9944 = vmul.f32 %v9747, %v9747
  %v9945 = vmul.f32 %v9748, %v9748
  %v9946 = vmul.f32 %v9749, %v9749
  %v9947 = vmul.f32 %v9750, %v9750
  %v9948 = vmul.f32 %v9751, %v9751
  %v9949 = vmul.f32 %v9752, %v9752
  %v9950 = vmul.f32 %v9753, %v9753
  %v9951 = vmul.f32 %v9754, %v9754
  %v9952 = vmul.f32 %v9755, %v9755
  %v9953 = vmul.f32 %v9756, %v9756
  %v9954 = vmul.f32 %v9757, %v9757
  %v9955 = vmul.f32 %v9758, %v9758
  %v9956 = vmul.f32 %v9759, %v9759
  %v9957 = vmul.f32 %v9760, %v9760
  %v9958 = vmul.f32 %v9761, %v9761
  %v9959 = vmul.f32 %v9762, %v9762
  %v9960 = vmul.f32 %v9763, %v9763
  %v9961 = vsel %vm30, %v9897, 0.0
  %v9962 = vsel %vm30, %v9898, 0.0
  %v9963 = vadd.f32 %v9961, %v9962
  %v9964 = vsel %vm30, %v9899, 0.0
  %v9965 = vadd.f32 %v9963, %v9964
  %v9966 = vsel %vm30, %v9900, 0.0
  %v9967 = vadd.f32 %v9965, %v9966
  %v9968 = vsel %vm30, %v9901, 0.0
  %v9969 = vadd.f32 %v9967, %v9968
  %v9970 = vsel %vm30, %v9902, 0.0
  %v9971 = vadd.f32 %v9969, %v9970
  %v9972 = vsel %vm30, %v9903, 0.0
  %v9973 = vadd.f32 %v9971, %v9972
  %v9974 = vsel %vm30, %v9904, 0.0
  %v9975 = vadd.f32 %v9973, %v9974
  %v9976 = vsel %vm30, %v9905, 0.0
  %v9977 = vadd.f32 %v9975, %v9976
  %v9978 = vsel %vm30, %v9906, 0.0
  %v9979 = vadd.f32 %v9977, %v9978
  %v9980 = vsel %vm30, %v9907, 0.0
  %v9981 = vadd.f32 %v9979, %v9980
  %v9982 = vsel %vm30, %v9908, 0.0
  %v9983 = vadd.f32 %v9981, %v9982
  %v9984 = vsel %vm30, %v9909, 0.0
  %v9985 = vadd.f32 %v9983, %v9984
  %v9986 = vsel %vm30, %v9910, 0.0
  %v9987 = vadd.f32 %v9985, %v9986
  %v9988 = vsel %vm30, %v9911, 0.0
  %v9989 = vadd.f32 %v9987, %v9988
  %v9990 = vsel %vm30, %v9912, 0.0
  %v9991 = vadd.f32 %v9989, %v9990
  %v9992 = vsel %vm30, %v9913, 0.0
  %v9993 = vadd.f32 %v9991, %v9992
  %v9994 = vsel %vm30, %v9914, 0.0
  %v9995 = vadd.f32 %v9993, %v9994
  %v9996 = vsel %vm30, %v9915, 0.0
  %v9997 = vadd.f32 %v9995, %v9996
  %v9998 = vsel %vm30, %v9916, 0.0
  %v9999 = vadd.f32 %v9997, %v9998
  %v10000 = vsel %vm30, %v9917, 0.0
  %v10001 = vadd.f32 %v9999, %v10000
  %v10002 = vsel %vm30, %v9918, 0.0
  %v10003 = vadd.f32 %v10001, %v10002
  %v10004 = vsel %vm30, %v9919, 0.0
  %v10005 = vadd.f32 %v10003, %v10004
  %v10006 = vsel %vm30, %v9920, 0.0
  %v10007 = vadd.f32 %v10005, %v10006
  %v10008 = vsel %vm30, %v9921, 0.0
  %v10009 = vadd.f32 %v10007, %v10008
  %v10010 = vsel %vm30, %v9922, 0.0
  %v10011 = vadd.f32 %v10009, %v10010
  %v10012 = vsel %vm30, %v9923, 0.0
  %v10013 = vadd.f32 %v10011, %v10012
  %v10014 = vsel %vm30, %v9924, 0.0
  %v10015 = vadd.f32 %v10013, %v10014
  %v10016 = vsel %vm30, %v9925, 0.0
  %v10017 = vadd.f32 %v10015, %v10016
  %v10018 = vsel %vm30, %v9926, 0.0
  %v10019 = vadd.f32 %v10017, %v10018
  %v10020 = vsel %vm30, %v9927, 0.0
  %v10021 = vadd.f32 %v10019, %v10020
  %v10022 = vsel %vm30, %v9928, 0.0
  %v10023 = vadd.f32 %v10021, %v10022
  %v10024 = vsel %vm30, %v9929, 0.0
  %v10025 = vadd.f32 %v10023, %v10024
  %v10026 = vsel %vm30, %v9930, 0.0
  %v10027 = vadd.f32 %v10025, %v10026
  %v10028 = vsel %vm30, %v9931, 0.0
  %v10029 = vadd.f32 %v10027, %v10028
  %v10030 = vsel %vm30, %v9932, 0.0
  %v10031 = vadd.f32 %v10029, %v10030
  %v10032 = vsel %vm30, %v9933, 0.0
  %v10033 = vadd.f32 %v10031, %v10032
  %v10034 = vsel %vm30, %v9934, 0.0
  %v10035 = vadd.f32 %v10033, %v10034
  %v10036 = vsel %vm30, %v9935, 0.0
  %v10037 = vadd.f32 %v10035, %v10036
  %v10038 = vsel %vm30, %v9936, 0.0
  %v10039 = vadd.f32 %v10037, %v10038
  %v10040 = vsel %vm30, %v9937, 0.0
  %v10041 = vadd.f32 %v10039, %v10040
  %v10042 = vsel %vm30, %v9938, 0.0
  %v10043 = vadd.f32 %v10041, %v10042
  %v10044 = vsel %vm30, %v9939, 0.0
  %v10045 = vadd.f32 %v10043, %v10044
  %v10046 = vsel %vm30, %v9940, 0.0
  %v10047 = vadd.f32 %v10045, %v10046
  %v10048 = vsel %vm30, %v9941, 0.0
  %v10049 = vadd.f32 %v10047, %v10048
  %v10050 = vsel %vm30, %v9942, 0.0
  %v10051 = vadd.f32 %v10049, %v10050
  %v10052 = vsel %vm30, %v9943, 0.0
  %v10053 = vadd.f32 %v10051, %v10052
  %v10054 = vsel %vm30, %v9944, 0.0
  %v10055 = vadd.f32 %v10053, %v10054
  %v10056 = vsel %vm30, %v9945, 0.0
  %v10057 = vadd.f32 %v10055, %v10056
  %v10058 = vsel %vm30, %v9946, 0.0
  %v10059 = vadd.f32 %v10057, %v10058
  %v10060 = vsel %vm30, %v9947, 0.0
  %v10061 = vadd.f32 %v10059, %v10060
  %v10062 = vsel %vm30, %v9948, 0.0
  %v10063 = vadd.f32 %v10061, %v10062
  %v10064 = vsel %vm30, %v9949, 0.0
  %v10065 = vadd.f32 %v10063, %v10064
  %v10066 = vsel %vm30, %v9950, 0.0
  %v10067 = vadd.f32 %v10065, %v10066
  %v10068 = vsel %vm30, %v9951, 0.0
  %v10069 = vadd.f32 %v10067, %v10068
  %v10070 = vsel %vm30, %v9952, 0.0
  %v10071 = vadd.f32 %v10069, %v10070
  %v10072 = vsel %vm30, %v9953, 0.0
  %v10073 = vadd.f32 %v10071, %v10072
  %v10074 = vsel %vm30, %v9954, 0.0
  %v10075 = vadd.f32 %v10073, %v10074
  %v10076 = vsel %vm30, %v9955, 0.0
  %v10077 = vadd.f32 %v10075, %v10076
  %v10078 = vsel %vm30, %v9956, 0.0
  %v10079 = vadd.f32 %v10077, %v10078
  %v10080 = vsel %vm30, %v9957, 0.0
  %v10081 = vadd.f32 %v10079, %v10080
  %v10082 = vsel %vm30, %v9958, 0.0
  %v10083 = vadd.f32 %v10081, %v10082
  %v10084 = vsel %vm30, %v9959, 0.0
  %v10085 = vadd.f32 %v10083, %v10084
  %v10086 = vsel %vm30, %v9960, 0.0
  %v10087 = vadd.f32 %v10085, %v10086
  %v10088 = vrot.slane %v10087, 4
  %v10089 = vadd.f32 %v10087, %v10088
  %v10090 = vrot.slane %v10089, 2
  %v10091 = vadd.f32 %v10089, %v10090
  %v10092 = vrot.slane %v10091, 1
  %v10093 = vadd.f32 %v10091, %v10092
  %v10094 = vmul.f32 %v9896, 0.001953125
  %v10095 = vmul.f32 %v10093, 0.001953125
  %v10096 = vmul.f32 %v10094, %v10094
  %v10097 = vsub.f32 %v10095, %v10096
  %v10098 = vmax.f32 %v10097, 0.0
  %s10099 = scalar_lea.vmem %s6, 2
  %v10100 = vld [vmem:[%s10099] sm:$0x1]
  %v10101 = vadd.f32 %v10098, 1e-05
  %v10102 = vrsqrt.pop %v10101
  %v10103 = vmul.f32 %v10100, %v10102
  %s10104 = scalar_lea.vmem %s7, 2
  %v10105 = vld [vmem:[%s10104] sm:$0x1]
  %v10106 = vmul.f32 %v10094, %v10103
  %v10107 = vsub.f32 %v10105, %v10106
  %v10109 = vlaneseq
  %v10110 = vshrl.u32 %v10109, 7
  %v10111 = vsub.s32 0, %v10110
  %v10112 = vrot.slane %v10103, %v10111
  %v10114 = vmul.f32 %v9700, %v10112
  %v10115 = vmul.f32 %v9701, %v10112
  %v10116 = vmul.f32 %v9702, %v10112
  %v10117 = vmul.f32 %v9703, %v10112
  %v10118 = vmul.f32 %v9704, %v10112
  %v10119 = vmul.f32 %v9705, %v10112
  %v10120 = vmul.f32 %v9706, %v10112
  %v10121 = vmul.f32 %v9707, %v10112
  %v10122 = vmul.f32 %v9708, %v10112
  %v10123 = vmul.f32 %v9709, %v10112
  %v10124 = vmul.f32 %v9710, %v10112
  %v10125 = vmul.f32 %v9711, %v10112
  %v10126 = vmul.f32 %v9712, %v10112
  %v10127 = vmul.f32 %v9713, %v10112
  %v10128 = vmul.f32 %v9714, %v10112
  %v10129 = vmul.f32 %v9715, %v10112
  %v10130 = vmul.f32 %v9716, %v10112
  %v10131 = vmul.f32 %v9717, %v10112
  %v10132 = vmul.f32 %v9718, %v10112
  %v10133 = vmul.f32 %v9719, %v10112
  %v10134 = vmul.f32 %v9720, %v10112
  %v10135 = vmul.f32 %v9721, %v10112
  %v10136 = vmul.f32 %v9722, %v10112
  %v10137 = vmul.f32 %v9723, %v10112
  %v10138 = vmul.f32 %v9724, %v10112
  %v10139 = vmul.f32 %v9725, %v10112
  %v10140 = vmul.f32 %v9726, %v10112
  %v10141 = vmul.f32 %v9727, %v10112
  %v10142 = vmul.f32 %v9728, %v10112
  %v10143 = vmul.f32 %v9729, %v10112
  %v10144 = vmul.f32 %v9730, %v10112
  %v10145 = vmul.f32 %v9731, %v10112
  %v10146 = vmul.f32 %v9732, %v10112
  %v10147 = vmul.f32 %v9733, %v10112
  %v10148 = vmul.f32 %v9734, %v10112
  %v10149 = vmul.f32 %v9735, %v10112
  %v10150 = vmul.f32 %v9736, %v10112
  %v10151 = vmul.f32 %v9737, %v10112
  %v10152 = vmul.f32 %v9738, %v10112
  %v10153 = vmul.f32 %v9739, %v10112
  %v10154 = vmul.f32 %v9740, %v10112
  %v10155 = vmul.f32 %v9741, %v10112
  %v10156 = vmul.f32 %v9742, %v10112
  %v10157 = vmul.f32 %v9743, %v10112
  %v10158 = vmul.f32 %v9744, %v10112
  %v10159 = vmul.f32 %v9745, %v10112
  %v10160 = vmul.f32 %v9746, %v10112
  %v10161 = vmul.f32 %v9747, %v10112
  %v10162 = vmul.f32 %v9748, %v10112
  %v10163 = vmul.f32 %v9749, %v10112
  %v10164 = vmul.f32 %v9750, %v10112
  %v10165 = vmul.f32 %v9751, %v10112
  %v10166 = vmul.f32 %v9752, %v10112
  %v10167 = vmul.f32 %v9753, %v10112
  %v10168 = vmul.f32 %v9754, %v10112
  %v10169 = vmul.f32 %v9755, %v10112
  %v10170 = vmul.f32 %v9756, %v10112
  %v10171 = vmul.f32 %v9757, %v10112
  %v10172 = vmul.f32 %v9758, %v10112
  %v10173 = vmul.f32 %v9759, %v10112
  %v10174 = vmul.f32 %v9760, %v10112
  %v10175 = vmul.f32 %v9761, %v10112
  %v10176 = vmul.f32 %v9762, %v10112
  %v10177 = vmul.f32 %v9763, %v10112
  %v10179 = vlaneseq
  %v10180 = vshrl.u32 %v10179, 7
  %v10181 = vsub.s32 0, %v10180
  %v10182 = vrot.slane %v10107, %v10181
  %v10184 = vadd.f32 %v10114, %v10182
  %v10185 = vadd.f32 %v10115, %v10182
  %v10186 = vadd.f32 %v10116, %v10182
  %v10187 = vadd.f32 %v10117, %v10182
  %v10188 = vadd.f32 %v10118, %v10182
  %v10189 = vadd.f32 %v10119, %v10182
  %v10190 = vadd.f32 %v10120, %v10182
  %v10191 = vadd.f32 %v10121, %v10182
  %v10192 = vadd.f32 %v10122, %v10182
  %v10193 = vadd.f32 %v10123, %v10182
  %v10194 = vadd.f32 %v10124, %v10182
  %v10195 = vadd.f32 %v10125, %v10182
  %v10196 = vadd.f32 %v10126, %v10182
  %v10197 = vadd.f32 %v10127, %v10182
  %v10198 = vadd.f32 %v10128, %v10182
  %v10199 = vadd.f32 %v10129, %v10182
  %v10200 = vadd.f32 %v10130, %v10182
  %v10201 = vadd.f32 %v10131, %v10182
  %v10202 = vadd.f32 %v10132, %v10182
  %v10203 = vadd.f32 %v10133, %v10182
  %v10204 = vadd.f32 %v10134, %v10182
  %v10205 = vadd.f32 %v10135, %v10182
  %v10206 = vadd.f32 %v10136, %v10182
  %v10207 = vadd.f32 %v10137, %v10182
  %v10208 = vadd.f32 %v10138, %v10182
  %v10209 = vadd.f32 %v10139, %v10182
  %v10210 = vadd.f32 %v10140, %v10182
  %v10211 = vadd.f32 %v10141, %v10182
  %v10212 = vadd.f32 %v10142, %v10182
  %v10213 = vadd.f32 %v10143, %v10182
  %v10214 = vadd.f32 %v10144, %v10182
  %v10215 = vadd.f32 %v10145, %v10182
  %v10216 = vadd.f32 %v10146, %v10182
  %v10217 = vadd.f32 %v10147, %v10182
  %v10218 = vadd.f32 %v10148, %v10182
  %v10219 = vadd.f32 %v10149, %v10182
  %v10220 = vadd.f32 %v10150, %v10182
  %v10221 = vadd.f32 %v10151, %v10182
  %v10222 = vadd.f32 %v10152, %v10182
  %v10223 = vadd.f32 %v10153, %v10182
  %v10224 = vadd.f32 %v10154, %v10182
  %v10225 = vadd.f32 %v10155, %v10182
  %v10226 = vadd.f32 %v10156, %v10182
  %v10227 = vadd.f32 %v10157, %v10182
  %v10228 = vadd.f32 %v10158, %v10182
  %v10229 = vadd.f32 %v10159, %v10182
  %v10230 = vadd.f32 %v10160, %v10182
  %v10231 = vadd.f32 %v10161, %v10182
  %v10232 = vadd.f32 %v10162, %v10182
  %v10233 = vadd.f32 %v10163, %v10182
  %v10234 = vadd.f32 %v10164, %v10182
  %v10235 = vadd.f32 %v10165, %v10182
  %v10236 = vadd.f32 %v10166, %v10182
  %v10237 = vadd.f32 %v10167, %v10182
  %v10238 = vadd.f32 %v10168, %v10182
  %v10239 = vadd.f32 %v10169, %v10182
  %v10240 = vadd.f32 %v10170, %v10182
  %v10241 = vadd.f32 %v10171, %v10182
  %v10242 = vadd.f32 %v10172, %v10182
  %v10243 = vadd.f32 %v10173, %v10182
  %v10244 = vadd.f32 %v10174, %v10182
  %v10245 = vadd.f32 %v10175, %v10182
  %v10246 = vadd.f32 %v10176, %v10182
  %v10247 = vadd.f32 %v10177, %v10182
  %10248 = vst.msk [vmem:[#allocation2 + $0x18] sm:$0xff] %vm30, %v10184
  %10249 = vst.msk [vmem:[#allocation2 + $0x20] sm:$0xff] %vm30, %v10185
  %10250 = vst.msk [vmem:[#allocation2 + $0x28] sm:$0xff] %vm30, %v10186
  %10251 = vst.msk [vmem:[#allocation2 + $0x30] sm:$0xff] %vm30, %v10187
  %10252 = vst.msk [vmem:[#allocation2 + $0x38] sm:$0xff] %vm30, %v10188
  %10253 = vst.msk [vmem:[#allocation2 + $0x40] sm:$0xff] %vm30, %v10189
  %10254 = vst.msk [vmem:[#allocation2 + $0x48] sm:$0xff] %vm30, %v10190
  %10255 = vst.msk [vmem:[#allocation2 + $0x50] sm:$0xff] %vm30, %v10191
  %10256 = vst.msk [vmem:[#allocation2 + $0x58] sm:$0xff] %vm30, %v10192
  %10257 = vst.msk [vmem:[#allocation2 + $0x60] sm:$0xff] %vm30, %v10193
  %10258 = vst.msk [vmem:[#allocation2 + $0x68] sm:$0xff] %vm30, %v10194
  %10259 = vst.msk [vmem:[#allocation2 + $0x70] sm:$0xff] %vm30, %v10195
  %10260 = vst.msk [vmem:[#allocation2 + $0x78] sm:$0xff] %vm30, %v10196
  %10261 = vst.msk [vmem:[#allocation2 + $0x80] sm:$0xff] %vm30, %v10197
  %10262 = vst.msk [vmem:[#allocation2 + $0x88] sm:$0xff] %vm30, %v10198
  %10263 = vst.msk [vmem:[#allocation2 + $0x90] sm:$0xff] %vm30, %v10199
  %10264 = vst.msk [vmem:[#allocation2 + $0x98] sm:$0xff] %vm30, %v10200
  %10265 = vst.msk [vmem:[#allocation2 + $0xa0] sm:$0xff] %vm30, %v10201
  %10266 = vst.msk [vmem:[#allocation2 + $0xa8] sm:$0xff] %vm30, %v10202
  %10267 = vst.msk [vmem:[#allocation2 + $0xb0] sm:$0xff] %vm30, %v10203
  %10268 = vst.msk [vmem:[#allocation2 + $0xb8] sm:$0xff] %vm30, %v10204
  %10269 = vst.msk [vmem:[#allocation2 + $0xc0] sm:$0xff] %vm30, %v10205
  %10270 = vst.msk [vmem:[#allocation2 + $0xc8] sm:$0xff] %vm30, %v10206
  %10271 = vst.msk [vmem:[#allocation2 + $0xd0] sm:$0xff] %vm30, %v10207
  %10272 = vst.msk [vmem:[#allocation2 + $0xd8] sm:$0xff] %vm30, %v10208
  %10273 = vst.msk [vmem:[#allocation2 + $0xe0] sm:$0xff] %vm30, %v10209
  %10274 = vst.msk [vmem:[#allocation2 + $0xe8] sm:$0xff] %vm30, %v10210
  %10275 = vst.msk [vmem:[#allocation2 + $0xf0] sm:$0xff] %vm30, %v10211
  %10276 = vst.msk [vmem:[#allocation2 + $0xf8] sm:$0xff] %vm30, %v10212
  %10277 = vst.msk [vmem:[#allocation2 + $0x100] sm:$0xff] %vm30, %v10213
  %10278 = vst.msk [vmem:[#allocation2 + $0x108] sm:$0xff] %vm30, %v10214
  %10279 = vst.msk [vmem:[#allocation2 + $0x110] sm:$0xff] %vm30, %v10215
  %10280 = vst.msk [vmem:[#allocation2 + $0x118] sm:$0xff] %vm30, %v10216
  %10281 = vst.msk [vmem:[#allocation2 + $0x120] sm:$0xff] %vm30, %v10217
  %10282 = vst.msk [vmem:[#allocation2 + $0x128] sm:$0xff] %vm30, %v10218
  %10283 = vst.msk [vmem:[#allocation2 + $0x130] sm:$0xff] %vm30, %v10219
  %10284 = vst.msk [vmem:[#allocation2 + $0x138] sm:$0xff] %vm30, %v10220
  %10285 = vst.msk [vmem:[#allocation2 + $0x140] sm:$0xff] %vm30, %v10221
  %10286 = vst.msk [vmem:[#allocation2 + $0x148] sm:$0xff] %vm30, %v10222
  %10287 = vst.msk [vmem:[#allocation2 + $0x150] sm:$0xff] %vm30, %v10223
  %10288 = vst.msk [vmem:[#allocation2 + $0x158] sm:$0xff] %vm30, %v10224
  %10289 = vst.msk [vmem:[#allocation2 + $0x160] sm:$0xff] %vm30, %v10225
  %10290 = vst.msk [vmem:[#allocation2 + $0x168] sm:$0xff] %vm30, %v10226
  %10291 = vst.msk [vmem:[#allocation2 + $0x170] sm:$0xff] %vm30, %v10227
  %10292 = vst.msk [vmem:[#allocation2 + $0x178] sm:$0xff] %vm30, %v10228
  %10293 = vst.msk [vmem:[#allocation2 + $0x180] sm:$0xff] %vm30, %v10229
  %10294 = vst.msk [vmem:[#allocation2 + $0x188] sm:$0xff] %vm30, %v10230
  %10295 = vst.msk [vmem:[#allocation2 + $0x190] sm:$0xff] %vm30, %v10231
  %10296 = vst.msk [vmem:[#allocation2 + $0x198] sm:$0xff] %vm30, %v10232
  %10297 = vst.msk [vmem:[#allocation2 + $0x1a0] sm:$0xff] %vm30, %v10233
  %10298 = vst.msk [vmem:[#allocation2 + $0x1a8] sm:$0xff] %vm30, %v10234
  %10299 = vst.msk [vmem:[#allocation2 + $0x1b0] sm:$0xff] %vm30, %v10235
  %10300 = vst.msk [vmem:[#allocation2 + $0x1b8] sm:$0xff] %vm30, %v10236
  %10301 = vst.msk [vmem:[#allocation2 + $0x1c0] sm:$0xff] %vm30, %v10237
  %10302 = vst.msk [vmem:[#allocation2 + $0x1c8] sm:$0xff] %vm30, %v10238
  %10303 = vst.msk [vmem:[#allocation2 + $0x1d0] sm:$0xff] %vm30, %v10239
  %10304 = vst.msk [vmem:[#allocation2 + $0x1d8] sm:$0xff] %vm30, %v10240
  %10305 = vst.msk [vmem:[#allocation2 + $0x1e0] sm:$0xff] %vm30, %v10241
  %10306 = vst.msk [vmem:[#allocation2 + $0x1e8] sm:$0xff] %vm30, %v10242
  %10307 = vst.msk [vmem:[#allocation2 + $0x1f0] sm:$0xff] %vm30, %v10243
  %10308 = vst.msk [vmem:[#allocation2 + $0x1f8] sm:$0xff] %vm30, %v10244
  %10309 = vst.msk [vmem:[#allocation2 + $0x200] sm:$0xff] %vm30, %v10245
  %10310 = vst.msk [vmem:[#allocation2 + $0x208] sm:$0xff] %vm30, %v10246
  %10311 = vst.msk [vmem:[#allocation2 + $0x210] sm:$0xff] %vm30, %v10247
  %v10312 = vld [vmem:[#allocation2 + $0x18] sm:$0xff]
  %v10313 = vld [vmem:[#allocation2 + $0x20] sm:$0xff]
  %v10314 = vld [vmem:[#allocation2 + $0x28] sm:$0xff]
  %v10315 = vld [vmem:[#allocation2 + $0x30] sm:$0xff]
  %v10316 = vld [vmem:[#allocation2 + $0x38] sm:$0xff]
  %v10317 = vld [vmem:[#allocation2 + $0x40] sm:$0xff]
  %v10318 = vld [vmem:[#allocation2 + $0x48] sm:$0xff]
  %v10319 = vld [vmem:[#allocation2 + $0x50] sm:$0xff]
  %v10320 = vld [vmem:[#allocation2 + $0x58] sm:$0xff]
  %v10321 = vld [vmem:[#allocation2 + $0x60] sm:$0xff]
  %v10322 = vld [vmem:[#allocation2 + $0x68] sm:$0xff]
  %v10323 = vld [vmem:[#allocation2 + $0x70] sm:$0xff]
  %v10324 = vld [vmem:[#allocation2 + $0x78] sm:$0xff]
  %v10325 = vld [vmem:[#allocation2 + $0x80] sm:$0xff]
  %v10326 = vld [vmem:[#allocation2 + $0x88] sm:$0xff]
  %v10327 = vld [vmem:[#allocation2 + $0x90] sm:$0xff]
  %v10328 = vld [vmem:[#allocation2 + $0x98] sm:$0xff]
  %v10329 = vld [vmem:[#allocation2 + $0xa0] sm:$0xff]
  %v10330 = vld [vmem:[#allocation2 + $0xa8] sm:$0xff]
  %v10331 = vld [vmem:[#allocation2 + $0xb0] sm:$0xff]
  %v10332 = vld [vmem:[#allocation2 + $0xb8] sm:$0xff]
  %v10333 = vld [vmem:[#allocation2 + $0xc0] sm:$0xff]
  %v10334 = vld [vmem:[#allocation2 + $0xc8] sm:$0xff]
  %v10335 = vld [vmem:[#allocation2 + $0xd0] sm:$0xff]
  %v10336 = vld [vmem:[#allocation2 + $0xd8] sm:$0xff]
  %v10337 = vld [vmem:[#allocation2 + $0xe0] sm:$0xff]
  %v10338 = vld [vmem:[#allocation2 + $0xe8] sm:$0xff]
  %v10339 = vld [vmem:[#allocation2 + $0xf0] sm:$0xff]
  %v10340 = vld [vmem:[#allocation2 + $0xf8] sm:$0xff]
  %v10341 = vld [vmem:[#allocation2 + $0x100] sm:$0xff]
  %v10342 = vld [vmem:[#allocation2 + $0x108] sm:$0xff]
  %v10343 = vld [vmem:[#allocation2 + $0x110] sm:$0xff]
  %v10344 = vld [vmem:[#allocation2 + $0x118] sm:$0xff]
  %v10345 = vld [vmem:[#allocation2 + $0x120] sm:$0xff]
  %v10346 = vld [vmem:[#allocation2 + $0x128] sm:$0xff]
  %v10347 = vld [vmem:[#allocation2 + $0x130] sm:$0xff]
  %v10348 = vld [vmem:[#allocation2 + $0x138] sm:$0xff]
  %v10349 = vld [vmem:[#allocation2 + $0x140] sm:$0xff]
  %v10350 = vld [vmem:[#allocation2 + $0x148] sm:$0xff]
  %v10351 = vld [vmem:[#allocation2 + $0x150] sm:$0xff]
  %v10352 = vld [vmem:[#allocation2 + $0x158] sm:$0xff]
  %v10353 = vld [vmem:[#allocation2 + $0x160] sm:$0xff]
  %v10354 = vld [vmem:[#allocation2 + $0x168] sm:$0xff]
  %v10355 = vld [vmem:[#allocation2 + $0x170] sm:$0xff]
  %v10356 = vld [vmem:[#allocation2 + $0x178] sm:$0xff]
  %v10357 = vld [vmem:[#allocation2 + $0x180] sm:$0xff]
  %v10358 = vld [vmem:[#allocation2 + $0x188] sm:$0xff]
  %v10359 = vld [vmem:[#allocation2 + $0x190] sm:$0xff]
  %v10360 = vld [vmem:[#allocation2 + $0x198] sm:$0xff]
  %v10361 = vld [vmem:[#allocation2 + $0x1a0] sm:$0xff]
  %v10362 = vld [vmem:[#allocation2 + $0x1a8] sm:$0xff]
  %v10363 = vld [vmem:[#allocation2 + $0x1b0] sm:$0xff]
  %v10364 = vld [vmem:[#allocation2 + $0x1b8] sm:$0xff]
  %v10365 = vld [vmem:[#allocation2 + $0x1c0] sm:$0xff]
  %v10366 = vld [vmem:[#allocation2 + $0x1c8] sm:$0xff]
  %v10367 = vld [vmem:[#allocation2 + $0x1d0] sm:$0xff]
  %v10368 = vld [vmem:[#allocation2 + $0x1d8] sm:$0xff]
  %v10369 = vld [vmem:[#allocation2 + $0x1e0] sm:$0xff]
  %v10370 = vld [vmem:[#allocation2 + $0x1e8] sm:$0xff]
  %v10371 = vld [vmem:[#allocation2 + $0x1f0] sm:$0xff]
  %v10372 = vld [vmem:[#allocation2 + $0x1f8] sm:$0xff]
  %v10373 = vld [vmem:[#allocation2 + $0x200] sm:$0xff]
  %v10374 = vld [vmem:[#allocation2 + $0x208] sm:$0xff]
  %v10375 = vld [vmem:[#allocation2 + $0x210] sm:$0xff]
  %v10376 = vpack.c.bf16 %v10313, %v10312
  %v10377 = vpack.c.bf16 %v10315, %v10314
  %v10378 = vpack.c.bf16 %v10317, %v10316
  %v10379 = vpack.c.bf16 %v10319, %v10318
  %v10380 = vpack.c.bf16 %v10321, %v10320
  %v10381 = vpack.c.bf16 %v10323, %v10322
  %v10382 = vpack.c.bf16 %v10325, %v10324
  %v10383 = vpack.c.bf16 %v10327, %v10326
  %v10384 = vpack.c.bf16 %v10329, %v10328
  %v10385 = vpack.c.bf16 %v10331, %v10330
  %v10386 = vpack.c.bf16 %v10333, %v10332
  %v10387 = vpack.c.bf16 %v10335, %v10334
  %v10388 = vpack.c.bf16 %v10337, %v10336
  %v10389 = vpack.c.bf16 %v10339, %v10338
  %v10390 = vpack.c.bf16 %v10341, %v10340
  %v10391 = vpack.c.bf16 %v10343, %v10342
  %v10392 = vpack.c.bf16 %v10345, %v10344
  %v10393 = vpack.c.bf16 %v10347, %v10346
  %v10394 = vpack.c.bf16 %v10349, %v10348
  %v10395 = vpack.c.bf16 %v10351, %v10350
  %v10396 = vpack.c.bf16 %v10353, %v10352
  %v10397 = vpack.c.bf16 %v10355, %v10354
  %v10398 = vpack.c.bf16 %v10357, %v10356
  %v10399 = vpack.c.bf16 %v10359, %v10358
  %v10400 = vpack.c.bf16 %v10361, %v10360
  %v10401 = vpack.c.bf16 %v10363, %v10362
  %v10402 = vpack.c.bf16 %v10365, %v10364
  %v10403 = vpack.c.bf16 %v10367, %v10366
  %v10404 = vpack.c.bf16 %v10369, %v10368
  %v10405 = vpack.c.bf16 %v10371, %v10370
  %v10406 = vpack.c.bf16 %v10373, %v10372
  %v10407 = vpack.c.bf16 %v10375, %v10374
  %v10408 = vld [vmem:[%s4] sm:$0xf]
  %v10409 = vld [vmem:[%s4 + $0x4] sm:$0xf]
  %v10410 = vld [vmem:[%s4 + $0x8] sm:$0xf]
  %v10411 = vld [vmem:[%s4 + $0xc] sm:$0xf]
  %s10412 = scalar_lea.vmem %s5, 3
  %v10413 = vld [vmem:[%s10412] sm:$0x1]
  %v10415 = vlaneseq
  %v10416 = vshrl.u32 %v10415, 7
  %v10417 = vsub.s32 0, %v10416
  %v10418 = vrot.slane %v10413, %v10417
  %v10424 = vunpack.c.l.b16 %v10408
  %v10425 = vunpack.c.l.b16 %v10409
  %v10426 = vunpack.c.l.b16 %v10410
  %v10427 = vunpack.c.l.b16 %v10411
  %v10428 = vpack.c.b16 %v10425, %v10424
  %v10429 = vpack.c.b16 %v10427, %v10426
  %v10433 = vsel %vm30, %v10376, 0
  %v10436 = vsel %vm30, %v10377, 0
  %v10439 = vsel %vm30, %v10378, 0
  %v10442 = vsel %vm30, %v10379, 0
  %v10445 = vsel %vm30, %v10380, 0
  %v10448 = vsel %vm30, %v10381, 0
  %v10451 = vsel %vm30, %v10382, 0
  %v10454 = vsel %vm30, %v10383, 0
  %v10457 = vsel %vm30, %v10384, 0
  %v10460 = vsel %vm30, %v10385, 0
  %v10463 = vsel %vm30, %v10386, 0
  %v10466 = vsel %vm30, %v10387, 0
  %v10469 = vsel %vm30, %v10388, 0
  %v10472 = vsel %vm30, %v10389, 0
  %v10475 = vsel %vm30, %v10390, 0
  %v10478 = vsel %vm30, %v10391, 0
  %v10481 = vsel %vm30, %v10392, 0
  %v10484 = vsel %vm30, %v10393, 0
  %v10487 = vsel %vm30, %v10394, 0
  %v10490 = vsel %vm30, %v10395, 0
  %v10493 = vsel %vm30, %v10396, 0
  %v10496 = vsel %vm30, %v10397, 0
  %v10499 = vsel %vm30, %v10398, 0
  %v10502 = vsel %vm30, %v10399, 0
  %v10505 = vsel %vm30, %v10400, 0
  %v10508 = vsel %vm30, %v10401, 0
  %v10511 = vsel %vm30, %v10402, 0
  %v10514 = vsel %vm30, %v10403, 0
  %v10517 = vsel %vm30, %v10404, 0
  %v10520 = vsel %vm30, %v10405, 0
  %v10523 = vsel %vm30, %v10406, 0
  %v10526 = vsel %vm30, %v10407, 0
  %10528 = vmatprep.subr.bf16.mxu0 0
  %10529 = vmatpush1.bf16.msra.mxu0 %v10428
  %10530 = vmatprep.subr.bf16.mxu0 0
  %10531 = vmatpush1.bf16.msra.mxu0 %v10429
  %10532 = vmatprep.subr.bf16.mxu0 0
  %10533 = vmatpush1.bf16.msra.mxu0 0
  %10534 = vmatprep.subr.bf16.mxu0 0
  %10535 = vmatpush1.bf16.msra.mxu0 0
  %10536 = vmatprep.subr.bf16.mxu0 0
  %10537 = vmatpush1.bf16.msra.mxu0 0
  %10538 = vmatprep.subr.bf16.mxu0 0
  %10539 = vmatpush1.bf16.msra.mxu0 0
  %10540 = vmatprep.subr.bf16.mxu0 0
  %10541 = vmatpush1.bf16.msra.mxu0 0
  %10542 = vmatprep.subr.bf16.mxu0 0
  %10543 = vmatpush1.bf16.msra.mxu0 0
  %10544 = vmatprep.subr.bf16.mxu0 0
  %10545 = vmatpush1.bf16.msra.mxu0 0
  %10546 = vmatprep.subr.bf16.mxu0 0
  %10547 = vmatpush1.bf16.msra.mxu0 0
  %10548 = vmatprep.subr.bf16.mxu0 0
  %10549 = vmatpush1.bf16.msra.mxu0 0
  %10550 = vmatprep.subr.bf16.mxu0 0
  %10551 = vmatpush1.bf16.msra.mxu0 0
  %10552 = vmatprep.subr.bf16.mxu0 0
  %10553 = vmatpush1.bf16.msra.mxu0 0
  %10554 = vmatprep.subr.bf16.mxu0 0
  %10555 = vmatpush1.bf16.msra.mxu0 0
  %10556 = vmatprep.subr.bf16.mxu0 0
  %10557 = vmatpush1.bf16.msra.mxu0 0
  %10558 = vmatprep.subr.bf16.mxu0 0
  %10559 = vmatpush1.bf16.msra.mxu0 0
  %10560 = vmatprep.mubr.bf16.mxu0 0
  %10561 = vmatmul.mubr.bf16.gmra.mrb[0].mxu0 %v10433
  %v10562 = vpop.f32.mrb[0].mxu0
  %v10563 = vadd.f32 %v10418, %v10562
  %v10564 = vpop.f32.mrb[0].mxu0
  %v10565 = vpop.f32.mrb[0].mxu0
  %v10566 = vadd.f32 %v10418, %v10565
  %v10567 = vpop.f32.mrb[0].mxu0
  %10568 = vmatprep.mubr.bf16.mxu0 0
  %10569 = vmatmul.mubr.bf16.gmra.mrb[0].mxu0 %v10436
  %v10570 = vpop.f32.mrb[0].mxu0
  %v10571 = vadd.f32 %v10418, %v10570
  %v10572 = vpop.f32.mrb[0].mxu0
  %v10573 = vpop.f32.mrb[0].mxu0
  %v10574 = vadd.f32 %v10418, %v10573
  %v10575 = vpop.f32.mrb[0].mxu0
  %10576 = vmatprep.mubr.bf16.mxu0 0
  %10577 = vmatmul.mubr.bf16.gmra.mrb[0].mxu0 %v10439
  %v10578 = vpop.f32.mrb[0].mxu0
  %v10579 = vadd.f32 %v10418, %v10578
  %v10580 = vpop.f32.mrb[0].mxu0
  %v10581 = vpop.f32.mrb[0].mxu0
  %v10582 = vadd.f32 %v10418, %v10581
  %v10583 = vpop.f32.mrb[0].mxu0
  %10584 = vmatprep.mubr.bf16.mxu0 0
  %10585 = vmatmul.mubr.bf16.gmra.mrb[0].mxu0 %v10442
  %v10586 = vpop.f32.mrb[0].mxu0
  %v10587 = vadd.f32 %v10418, %v10586
  %v10588 = vpop.f32.mrb[0].mxu0
  %v10589 = vpop.f32.mrb[0].mxu0
  %v10590 = vadd.f32 %v10418, %v10589
  %v10591 = vpop.f32.mrb[0].mxu0
  %10592 = vmatprep.mubr.bf16.mxu0 0
  %10593 = vmatmul.mubr.bf16.gmra.mrb[0].mxu0 %v10445
  %v10594 = vpop.f32.mrb[0].mxu0
  %v10595 = vadd.f32 %v10418, %v10594
  %v10596 = vpop.f32.mrb[0].mxu0
  %v10597 = vpop.f32.mrb[0].mxu0
  %v10598 = vadd.f32 %v10418, %v10597
  %v10599 = vpop.f32.mrb[0].mxu0
  %10600 = vmatprep.mubr.bf16.mxu0 0
  %10601 = vmatmul.mubr.bf16.gmra.mrb[0].mxu0 %v10448
  %v10602 = vpop.f32.mrb[0].mxu0
  %v10603 = vadd.f32 %v10418, %v10602
  %v10604 = vpop.f32.mrb[0].mxu0
  %v10605 = vpop.f32.mrb[0].mxu0
  %v10606 = vadd.f32 %v10418, %v10605
  %v10607 = vpop.f32.mrb[0].mxu0
  %10608 = vmatprep.mubr.bf16.mxu0 0
  %10609 = vmatmul.mubr.bf16.gmra.mrb[0].mxu0 %v10451
  %v10610 = vpop.f32.mrb[0].mxu0
  %v10611 = vadd.f32 %v10418, %v10610
  %v10612 = vpop.f32.mrb[0].mxu0
  %v10613 = vpop.f32.mrb[0].mxu0
  %v10614 = vadd.f32 %v10418, %v10613
  %v10615 = vpop.f32.mrb[0].mxu0
  %10616 = vmatprep.mubr.bf16.mxu0 0
  %10617 = vmatmul.mubr.bf16.gmra.mrb[0].mxu0 %v10454
  %v10618 = vpop.f32.mrb[0].mxu0
  %v10619 = vadd.f32 %v10418, %v10618
  %v10620 = vpop.f32.mrb[0].mxu0
  %v10621 = vpop.f32.mrb[0].mxu0
  %v10622 = vadd.f32 %v10418, %v10621
  %v10623 = vpop.f32.mrb[0].mxu0
  %10624 = vmatprep.mubr.bf16.mxu0 0
  %10625 = vmatmul.mubr.bf16.gmra.mrb[0].mxu0 %v10457
  %v10626 = vpop.f32.mrb[0].mxu0
  %v10627 = vadd.f32 %v10418, %v10626
  %v10628 = vpop.f32.mrb[0].mxu0
  %v10629 = vpop.f32.mrb[0].mxu0
  %v10630 = vadd.f32 %v10418, %v10629
  %v10631 = vpop.f32.mrb[0].mxu0
  %10632 = vmatprep.mubr.bf16.mxu0 0
  %10633 = vmatmul.mubr.bf16.gmra.mrb[0].mxu0 %v10460
  %v10634 = vpop.f32.mrb[0].mxu0
  %v10635 = vadd.f32 %v10418, %v10634
  %v10636 = vpop.f32.mrb[0].mxu0
  %v10637 = vpop.f32.mrb[0].mxu0
  %v10638 = vadd.f32 %v10418, %v10637
  %v10639 = vpop.f32.mrb[0].mxu0
  %10640 = vmatprep.mubr.bf16.mxu0 0
  %10641 = vmatmul.mubr.bf16.gmra.mrb[0].mxu0 %v10463
  %v10642 = vpop.f32.mrb[0].mxu0
  %v10643 = vadd.f32 %v10418, %v10642
  %v10644 = vpop.f32.mrb[0].mxu0
  %v10645 = vpop.f32.mrb[0].mxu0
  %v10646 = vadd.f32 %v10418, %v10645
  %v10647 = vpop.f32.mrb[0].mxu0
  %10648 = vmatprep.mubr.bf16.mxu0 0
  %10649 = vmatmul.mubr.bf16.gmra.mrb[0].mxu0 %v10466
  %v10650 = vpop.f32.mrb[0].mxu0
  %v10651 = vadd.f32 %v10418, %v10650
  %v10652 = vpop.f32.mrb[0].mxu0
  %v10653 = vpop.f32.mrb[0].mxu0
  %v10654 = vadd.f32 %v10418, %v10653
  %v10655 = vpop.f32.mrb[0].mxu0
  %10656 = vmatprep.mubr.bf16.mxu0 0
  %10657 = vmatmul.mubr.bf16.gmra.mrb[0].mxu0 %v10469
  %v10658 = vpop.f32.mrb[0].mxu0
  %v10659 = vadd.f32 %v10418, %v10658
  %v10660 = vpop.f32.mrb[0].mxu0
  %v10661 = vpop.f32.mrb[0].mxu0
  %v10662 = vadd.f32 %v10418, %v10661
  %v10663 = vpop.f32.mrb[0].mxu0
  %10664 = vmatprep.mubr.bf16.mxu0 0
  %10665 = vmatmul.mubr.bf16.gmra.mrb[0].mxu0 %v10472
  %v10666 = vpop.f32.mrb[0].mxu0
  %v10667 = vadd.f32 %v10418, %v10666
  %v10668 = vpop.f32.mrb[0].mxu0
  %v10669 = vpop.f32.mrb[0].mxu0
  %v10670 = vadd.f32 %v10418, %v10669
  %v10671 = vpop.f32.mrb[0].mxu0
  %10672 = vmatprep.mubr.bf16.mxu0 0
  %10673 = vmatmul.mubr.bf16.gmra.mrb[0].mxu0 %v10475
  %v10674 = vpop.f32.mrb[0].mxu0
  %v10675 = vadd.f32 %v10418, %v10674
  %v10676 = vpop.f32.mrb[0].mxu0
  %v10677 = vpop.f32.mrb[0].mxu0
  %v10678 = vadd.f32 %v10418, %v10677
  %v10679 = vpop.f32.mrb[0].mxu0
  %10680 = vmatprep.mubr.bf16.mxu0 0
  %10681 = vmatmul.mubr.bf16.gmra.mrb[0].mxu0 %v10478
  %v10682 = vpop.f32.mrb[0].mxu0
  %v10683 = vadd.f32 %v10418, %v10682
  %v10684 = vpop.f32.mrb[0].mxu0
  %v10685 = vpop.f32.mrb[0].mxu0
  %v10686 = vadd.f32 %v10418, %v10685
  %v10687 = vpop.f32.mrb[0].mxu0
  %10688 = vmatprep.mubr.bf16.mxu0 0
  %10689 = vmatmul.mubr.bf16.gmra.mrb[0].mxu0 %v10481
  %v10690 = vpop.f32.mrb[0].mxu0
  %v10691 = vadd.f32 %v10418, %v10690
  %v10692 = vpop.f32.mrb[0].mxu0
  %v10693 = vpop.f32.mrb[0].mxu0
  %v10694 = vadd.f32 %v10418, %v10693
  %v10695 = vpop.f32.mrb[0].mxu0
  %10696 = vmatprep.mubr.bf16.mxu0 0
  %10697 = vmatmul.mubr.bf16.gmra.mrb[0].mxu0 %v10484
  %v10698 = vpop.f32.mrb[0].mxu0
  %v10699 = vadd.f32 %v10418, %v10698
  %v10700 = vpop.f32.mrb[0].mxu0
  %v10701 = vpop.f32.mrb[0].mxu0
  %v10702 = vadd.f32 %v10418, %v10701
  %v10703 = vpop.f32.mrb[0].mxu0
  %10704 = vmatprep.mubr.bf16.mxu0 0
  %10705 = vmatmul.mubr.bf16.gmra.mrb[0].mxu0 %v10487
  %v10706 = vpop.f32.mrb[0].mxu0
  %v10707 = vadd.f32 %v10418, %v10706
  %v10708 = vpop.f32.mrb[0].mxu0
  %v10709 = vpop.f32.mrb[0].mxu0
  %v10710 = vadd.f32 %v10418, %v10709
  %v10711 = vpop.f32.mrb[0].mxu0
  %10712 = vmatprep.mubr.bf16.mxu0 0
  %10713 = vmatmul.mubr.bf16.gmra.mrb[0].mxu0 %v10490
  %v10714 = vpop.f32.mrb[0].mxu0
  %v10715 = vadd.f32 %v10418, %v10714
  %v10716 = vpop.f32.mrb[0].mxu0
  %v10717 = vpop.f32.mrb[0].mxu0
  %v10718 = vadd.f32 %v10418, %v10717
  %v10719 = vpop.f32.mrb[0].mxu0
  %10720 = vmatprep.mubr.bf16.mxu0 0
  %10721 = vmatmul.mubr.bf16.gmra.mrb[0].mxu0 %v10493
  %v10722 = vpop.f32.mrb[0].mxu0
  %v10723 = vadd.f32 %v10418, %v10722
  %v10724 = vpop.f32.mrb[0].mxu0
  %v10725 = vpop.f32.mrb[0].mxu0
  %v10726 = vadd.f32 %v10418, %v10725
  %v10727 = vpop.f32.mrb[0].mxu0
  %10728 = vmatprep.mubr.bf16.mxu0 0
  %10729 = vmatmul.mubr.bf16.gmra.mrb[0].mxu0 %v10496
  %v10730 = vpop.f32.mrb[0].mxu0
  %v10731 = vadd.f32 %v10418, %v10730
  %v10732 = vpop.f32.mrb[0].mxu0
  %v10733 = vpop.f32.mrb[0].mxu0
  %v10734 = vadd.f32 %v10418, %v10733
  %v10735 = vpop.f32.mrb[0].mxu0
  %10736 = vmatprep.mubr.bf16.mxu0 0
  %10737 = vmatmul.mubr.bf16.gmra.mrb[0].mxu0 %v10499
  %v10738 = vpop.f32.mrb[0].mxu0
  %v10739 = vadd.f32 %v10418, %v10738
  %v10740 = vpop.f32.mrb[0].mxu0
  %v10741 = vpop.f32.mrb[0].mxu0
  %v10742 = vadd.f32 %v10418, %v10741
  %v10743 = vpop.f32.mrb[0].mxu0
  %10744 = vmatprep.mubr.bf16.mxu0 0
  %10745 = vmatmul.mubr.bf16.gmra.mrb[0].mxu0 %v10502
  %v10746 = vpop.f32.mrb[0].mxu0
  %v10747 = vadd.f32 %v10418, %v10746
  %v10748 = vpop.f32.mrb[0].mxu0
  %v10749 = vpop.f32.mrb[0].mxu0
  %v10750 = vadd.f32 %v10418, %v10749
  %v10751 = vpop.f32.mrb[0].mxu0
  %10752 = vmatprep.mubr.bf16.mxu0 0
  %10753 = vmatmul.mubr.bf16.gmra.mrb[0].mxu0 %v10505
  %v10754 = vpop.f32.mrb[0].mxu0
  %v10755 = vadd.f32 %v10418, %v10754
  %v10756 = vpop.f32.mrb[0].mxu0
  %v10757 = vpop.f32.mrb[0].mxu0
  %v10758 = vadd.f32 %v10418, %v10757
  %v10759 = vpop.f32.mrb[0].mxu0
  %10760 = vmatprep.mubr.bf16.mxu0 0
  %10761 = vmatmul.mubr.bf16.gmra.mrb[0].mxu0 %v10508
  %v10762 = vpop.f32.mrb[0].mxu0
  %v10763 = vadd.f32 %v10418, %v10762
  %v10764 = vpop.f32.mrb[0].mxu0
  %v10765 = vpop.f32.mrb[0].mxu0
  %v10766 = vadd.f32 %v10418, %v10765
  %v10767 = vpop.f32.mrb[0].mxu0
  %10768 = vmatprep.mubr.bf16.mxu0 0
  %10769 = vmatmul.mubr.bf16.gmra.mrb[0].mxu0 %v10511
  %v10770 = vpop.f32.mrb[0].mxu0
  %v10771 = vadd.f32 %v10418, %v10770
  %v10772 = vpop.f32.mrb[0].mxu0
  %v10773 = vpop.f32.mrb[0].mxu0
  %v10774 = vadd.f32 %v10418, %v10773
  %v10775 = vpop.f32.mrb[0].mxu0
  %10776 = vmatprep.mubr.bf16.mxu0 0
  %10777 = vmatmul.mubr.bf16.gmra.mrb[0].mxu0 %v10514
  %v10778 = vpop.f32.mrb[0].mxu0
  %v10779 = vadd.f32 %v10418, %v10778
  %v10780 = vpop.f32.mrb[0].mxu0
  %v10781 = vpop.f32.mrb[0].mxu0
  %v10782 = vadd.f32 %v10418, %v10781
  %v10783 = vpop.f32.mrb[0].mxu0
  %10784 = vmatprep.mubr.bf16.mxu0 0
  %10785 = vmatmul.mubr.bf16.gmra.mrb[0].mxu0 %v10517
  %v10786 = vpop.f32.mrb[0].mxu0
  %v10787 = vadd.f32 %v10418, %v10786
  %v10788 = vpop.f32.mrb[0].mxu0
  %v10789 = vpop.f32.mrb[0].mxu0
  %v10790 = vadd.f32 %v10418, %v10789
  %v10791 = vpop.f32.mrb[0].mxu0
  %10792 = vmatprep.mubr.bf16.mxu0 0
  %10793 = vmatmul.mubr.bf16.gmra.mrb[0].mxu0 %v10520
  %v10794 = vpop.f32.mrb[0].mxu0
  %v10795 = vadd.f32 %v10418, %v10794
  %v10796 = vpop.f32.mrb[0].mxu0
  %v10797 = vpop.f32.mrb[0].mxu0
  %v10798 = vadd.f32 %v10418, %v10797
  %v10799 = vpop.f32.mrb[0].mxu0
  %10800 = vmatprep.mubr.bf16.mxu0 0
  %10801 = vmatmul.mubr.bf16.gmra.mrb[0].mxu0 %v10523
  %v10802 = vpop.f32.mrb[0].mxu0
  %v10803 = vadd.f32 %v10418, %v10802
  %v10804 = vpop.f32.mrb[0].mxu0
  %v10805 = vpop.f32.mrb[0].mxu0
  %v10806 = vadd.f32 %v10418, %v10805
  %v10807 = vpop.f32.mrb[0].mxu0
  %10808 = vmatprep.mubr.bf16.mxu0 0
  %10809 = vmatmul.mubr.bf16.gmra.mrb[0].mxu0 %v10526
  %v10810 = vpop.f32.mrb[0].mxu0
  %v10811 = vadd.f32 %v10418, %v10810
  %v10812 = vpop.f32.mrb[0].mxu0
  %v10813 = vpop.f32.mrb[0].mxu0
  %v10814 = vadd.f32 %v10418, %v10813
  %v10815 = vpop.f32.mrb[0].mxu0
  %10816 = vdwg.mxu0
  %v10817 = vsel %vm30, %v10563, 0.0
  %v10818 = vsel %vm30, %v10566, 0.0
  %v10819 = vadd.f32 %v10817, %v10818
  %v10820 = vsel %vm30, %v10571, 0.0
  %v10821 = vadd.f32 %v10819, %v10820
  %v10822 = vsel %vm30, %v10574, 0.0
  %v10823 = vadd.f32 %v10821, %v10822
  %v10824 = vsel %vm30, %v10579, 0.0
  %v10825 = vadd.f32 %v10823, %v10824
  %v10826 = vsel %vm30, %v10582, 0.0
  %v10827 = vadd.f32 %v10825, %v10826
  %v10828 = vsel %vm30, %v10587, 0.0
  %v10829 = vadd.f32 %v10827, %v10828
  %v10830 = vsel %vm30, %v10590, 0.0
  %v10831 = vadd.f32 %v10829, %v10830
  %v10832 = vsel %vm30, %v10595, 0.0
  %v10833 = vadd.f32 %v10831, %v10832
  %v10834 = vsel %vm30, %v10598, 0.0
  %v10835 = vadd.f32 %v10833, %v10834
  %v10836 = vsel %vm30, %v10603, 0.0
  %v10837 = vadd.f32 %v10835, %v10836
  %v10838 = vsel %vm30, %v10606, 0.0
  %v10839 = vadd.f32 %v10837, %v10838
  %v10840 = vsel %vm30, %v10611, 0.0
  %v10841 = vadd.f32 %v10839, %v10840
  %v10842 = vsel %vm30, %v10614, 0.0
  %v10843 = vadd.f32 %v10841, %v10842
  %v10844 = vsel %vm30, %v10619, 0.0
  %v10845 = vadd.f32 %v10843, %v10844
  %v10846 = vsel %vm30, %v10622, 0.0
  %v10847 = vadd.f32 %v10845, %v10846
  %v10848 = vsel %vm30, %v10627, 0.0
  %v10849 = vadd.f32 %v10847, %v10848
  %v10850 = vsel %vm30, %v10630, 0.0
  %v10851 = vadd.f32 %v10849, %v10850
  %v10852 = vsel %vm30, %v10635, 0.0
  %v10853 = vadd.f32 %v10851, %v10852
  %v10854 = vsel %vm30, %v10638, 0.0
  %v10855 = vadd.f32 %v10853, %v10854
  %v10856 = vsel %vm30, %v10643, 0.0
  %v10857 = vadd.f32 %v10855, %v10856
  %v10858 = vsel %vm30, %v10646, 0.0
  %v10859 = vadd.f32 %v10857, %v10858
  %v10860 = vsel %vm30, %v10651, 0.0
  %v10861 = vadd.f32 %v10859, %v10860
  %v10862 = vsel %vm30, %v10654, 0.0
  %v10863 = vadd.f32 %v10861, %v10862
  %v10864 = vsel %vm30, %v10659, 0.0
  %v10865 = vadd.f32 %v10863, %v10864
  %v10866 = vsel %vm30, %v10662, 0.0
  %v10867 = vadd.f32 %v10865, %v10866
  %v10868 = vsel %vm30, %v10667, 0.0
  %v10869 = vadd.f32 %v10867, %v10868
  %v10870 = vsel %vm30, %v10670, 0.0
  %v10871 = vadd.f32 %v10869, %v10870
  %v10872 = vsel %vm30, %v10675, 0.0
  %v10873 = vadd.f32 %v10871, %v10872
  %v10874 = vsel %vm30, %v10678, 0.0
  %v10875 = vadd.f32 %v10873, %v10874
  %v10876 = vsel %vm30, %v10683, 0.0
  %v10877 = vadd.f32 %v10875, %v10876
  %v10878 = vsel %vm30, %v10686, 0.0
  %v10879 = vadd.f32 %v10877, %v10878
  %v10880 = vsel %vm30, %v10691, 0.0
  %v10881 = vadd.f32 %v10879, %v10880
  %v10882 = vsel %vm30, %v10694, 0.0
  %v10883 = vadd.f32 %v10881, %v10882
  %v10884 = vsel %vm30, %v10699, 0.0
  %v10885 = vadd.f32 %v10883, %v10884
  %v10886 = vsel %vm30, %v10702, 0.0
  %v10887 = vadd.f32 %v10885, %v10886
  %v10888 = vsel %vm30, %v10707, 0.0
  %v10889 = vadd.f32 %v10887, %v10888
  %v10890 = vsel %vm30, %v10710, 0.0
  %v10891 = vadd.f32 %v10889, %v10890
  %v10892 = vsel %vm30, %v10715, 0.0
  %v10893 = vadd.f32 %v10891, %v10892
  %v10894 = vsel %vm30, %v10718, 0.0
  %v10895 = vadd.f32 %v10893, %v10894
  %v10896 = vsel %vm30, %v10723, 0.0
  %v10897 = vadd.f32 %v10895, %v10896
  %v10898 = vsel %vm30, %v10726, 0.0
  %v10899 = vadd.f32 %v10897, %v10898
  %v10900 = vsel %vm30, %v10731, 0.0
  %v10901 = vadd.f32 %v10899, %v10900
  %v10902 = vsel %vm30, %v10734, 0.0
  %v10903 = vadd.f32 %v10901, %v10902
  %v10904 = vsel %vm30, %v10739, 0.0
  %v10905 = vadd.f32 %v10903, %v10904
  %v10906 = vsel %vm30, %v10742, 0.0
  %v10907 = vadd.f32 %v10905, %v10906
  %v10908 = vsel %vm30, %v10747, 0.0
  %v10909 = vadd.f32 %v10907, %v10908
  %v10910 = vsel %vm30, %v10750, 0.0
  %v10911 = vadd.f32 %v10909, %v10910
  %v10912 = vsel %vm30, %v10755, 0.0
  %v10913 = vadd.f32 %v10911, %v10912
  %v10914 = vsel %vm30, %v10758, 0.0
  %v10915 = vadd.f32 %v10913, %v10914
  %v10916 = vsel %vm30, %v10763, 0.0
  %v10917 = vadd.f32 %v10915, %v10916
  %v10918 = vsel %vm30, %v10766, 0.0
  %v10919 = vadd.f32 %v10917, %v10918
  %v10920 = vsel %vm30, %v10771, 0.0
  %v10921 = vadd.f32 %v10919, %v10920
  %v10922 = vsel %vm30, %v10774, 0.0
  %v10923 = vadd.f32 %v10921, %v10922
  %v10924 = vsel %vm30, %v10779, 0.0
  %v10925 = vadd.f32 %v10923, %v10924
  %v10926 = vsel %vm30, %v10782, 0.0
  %v10927 = vadd.f32 %v10925, %v10926
  %v10928 = vsel %vm30, %v10787, 0.0
  %v10929 = vadd.f32 %v10927, %v10928
  %v10930 = vsel %vm30, %v10790, 0.0
  %v10931 = vadd.f32 %v10929, %v10930
  %v10932 = vsel %vm30, %v10795, 0.0
  %v10933 = vadd.f32 %v10931, %v10932
  %v10934 = vsel %vm30, %v10798, 0.0
  %v10935 = vadd.f32 %v10933, %v10934
  %v10936 = vsel %vm30, %v10803, 0.0
  %v10937 = vadd.f32 %v10935, %v10936
  %v10938 = vsel %vm30, %v10806, 0.0
  %v10939 = vadd.f32 %v10937, %v10938
  %v10940 = vsel %vm30, %v10811, 0.0
  %v10941 = vadd.f32 %v10939, %v10940
  %v10942 = vsel %vm30, %v10814, 0.0
  %v10943 = vadd.f32 %v10941, %v10942
  %v10944 = vrot.slane %v10943, 4
  %v10945 = vadd.f32 %v10943, %v10944
  %v10946 = vrot.slane %v10945, 2
  %v10947 = vadd.f32 %v10945, %v10946
  %v10948 = vrot.slane %v10947, 1
  %v10949 = vadd.f32 %v10947, %v10948
  %v10950 = vmul.f32 %v10563, %v10563
  %v10951 = vmul.f32 %v10566, %v10566
  %v10952 = vmul.f32 %v10571, %v10571
  %v10953 = vmul.f32 %v10574, %v10574
  %v10954 = vmul.f32 %v10579, %v10579
  %v10955 = vmul.f32 %v10582, %v10582
  %v10956 = vmul.f32 %v10587, %v10587
  %v10957 = vmul.f32 %v10590, %v10590
  %v10958 = vmul.f32 %v10595, %v10595
  %v10959 = vmul.f32 %v10598, %v10598
  %v10960 = vmul.f32 %v10603, %v10603
  %v10961 = vmul.f32 %v10606, %v10606
  %v10962 = vmul.f32 %v10611, %v10611
  %v10963 = vmul.f32 %v10614, %v10614
  %v10964 = vmul.f32 %v10619, %v10619
  %v10965 = vmul.f32 %v10622, %v10622
  %v10966 = vmul.f32 %v10627, %v10627
  %v10967 = vmul.f32 %v10630, %v10630
  %v10968 = vmul.f32 %v10635, %v10635
  %v10969 = vmul.f32 %v10638, %v10638
  %v10970 = vmul.f32 %v10643, %v10643
  %v10971 = vmul.f32 %v10646, %v10646
  %v10972 = vmul.f32 %v10651, %v10651
  %v10973 = vmul.f32 %v10654, %v10654
  %v10974 = vmul.f32 %v10659, %v10659
  %v10975 = vmul.f32 %v10662, %v10662
  %v10976 = vmul.f32 %v10667, %v10667
  %v10977 = vmul.f32 %v10670, %v10670
  %v10978 = vmul.f32 %v10675, %v10675
  %v10979 = vmul.f32 %v10678, %v10678
  %v10980 = vmul.f32 %v10683, %v10683
  %v10981 = vmul.f32 %v10686, %v10686
  %v10982 = vmul.f32 %v10691, %v10691
  %v10983 = vmul.f32 %v10694, %v10694
  %v10984 = vmul.f32 %v10699, %v10699
  %v10985 = vmul.f32 %v10702, %v10702
  %v10986 = vmul.f32 %v10707, %v10707
  %v10987 = vmul.f32 %v10710, %v10710
  %v10988 = vmul.f32 %v10715, %v10715
  %v10989 = vmul.f32 %v10718, %v10718
  %v10990 = vmul.f32 %v10723, %v10723
  %v10991 = vmul.f32 %v10726, %v10726
  %v10992 = vmul.f32 %v10731, %v10731
  %v10993 = vmul.f32 %v10734, %v10734
  %v10994 = vmul.f32 %v10739, %v10739
  %v10995 = vmul.f32 %v10742, %v10742
  %v10996 = vmul.f32 %v10747, %v10747
  %v10997 = vmul.f32 %v10750, %v10750
  %v10998 = vmul.f32 %v10755, %v10755
  %v10999 = vmul.f32 %v10758, %v10758
  %v11000 = vmul.f32 %v10763, %v10763
  %v11001 = vmul.f32 %v10766, %v10766
  %v11002 = vmul.f32 %v10771, %v10771
  %v11003 = vmul.f32 %v10774, %v10774
  %v11004 = vmul.f32 %v10779, %v10779
  %v11005 = vmul.f32 %v10782, %v10782
  %v11006 = vmul.f32 %v10787, %v10787
  %v11007 = vmul.f32 %v10790, %v10790
  %v11008 = vmul.f32 %v10795, %v10795
  %v11009 = vmul.f32 %v10798, %v10798
  %v11010 = vmul.f32 %v10803, %v10803
  %v11011 = vmul.f32 %v10806, %v10806
  %v11012 = vmul.f32 %v10811, %v10811
  %v11013 = vmul.f32 %v10814, %v10814
  %v11014 = vsel %vm30, %v10950, 0.0
  %v11015 = vsel %vm30, %v10951, 0.0
  %v11016 = vadd.f32 %v11014, %v11015
  %v11017 = vsel %vm30, %v10952, 0.0
  %v11018 = vadd.f32 %v11016, %v11017
  %v11019 = vsel %vm30, %v10953, 0.0
  %v11020 = vadd.f32 %v11018, %v11019
  %v11021 = vsel %vm30, %v10954, 0.0
  %v11022 = vadd.f32 %v11020, %v11021
  %v11023 = vsel %vm30, %v10955, 0.0
  %v11024 = vadd.f32 %v11022, %v11023
  %v11025 = vsel %vm30, %v10956, 0.0
  %v11026 = vadd.f32 %v11024, %v11025
  %v11027 = vsel %vm30, %v10957, 0.0
  %v11028 = vadd.f32 %v11026, %v11027
  %v11029 = vsel %vm30, %v10958, 0.0
  %v11030 = vadd.f32 %v11028, %v11029
  %v11031 = vsel %vm30, %v10959, 0.0
  %v11032 = vadd.f32 %v11030, %v11031
  %v11033 = vsel %vm30, %v10960, 0.0
  %v11034 = vadd.f32 %v11032, %v11033
  %v11035 = vsel %vm30, %v10961, 0.0
  %v11036 = vadd.f32 %v11034, %v11035
  %v11037 = vsel %vm30, %v10962, 0.0
  %v11038 = vadd.f32 %v11036, %v11037
  %v11039 = vsel %vm30, %v10963, 0.0
  %v11040 = vadd.f32 %v11038, %v11039
  %v11041 = vsel %vm30, %v10964, 0.0
  %v11042 = vadd.f32 %v11040, %v11041
  %v11043 = vsel %vm30, %v10965, 0.0
  %v11044 = vadd.f32 %v11042, %v11043
  %v11045 = vsel %vm30, %v10966, 0.0
  %v11046 = vadd.f32 %v11044, %v11045
  %v11047 = vsel %vm30, %v10967, 0.0
  %v11048 = vadd.f32 %v11046, %v11047
  %v11049 = vsel %vm30, %v10968, 0.0
  %v11050 = vadd.f32 %v11048, %v11049
  %v11051 = vsel %vm30, %v10969, 0.0
  %v11052 = vadd.f32 %v11050, %v11051
  %v11053 = vsel %vm30, %v10970, 0.0
  %v11054 = vadd.f32 %v11052, %v11053
  %v11055 = vsel %vm30, %v10971, 0.0
  %v11056 = vadd.f32 %v11054, %v11055
  %v11057 = vsel %vm30, %v10972, 0.0
  %v11058 = vadd.f32 %v11056, %v11057
  %v11059 = vsel %vm30, %v10973, 0.0
  %v11060 = vadd.f32 %v11058, %v11059
  %v11061 = vsel %vm30, %v10974, 0.0
  %v11062 = vadd.f32 %v11060, %v11061
  %v11063 = vsel %vm30, %v10975, 0.0
  %v11064 = vadd.f32 %v11062, %v11063
  %v11065 = vsel %vm30, %v10976, 0.0
  %v11066 = vadd.f32 %v11064, %v11065
  %v11067 = vsel %vm30, %v10977, 0.0
  %v11068 = vadd.f32 %v11066, %v11067
  %v11069 = vsel %vm30, %v10978, 0.0
  %v11070 = vadd.f32 %v11068, %v11069
  %v11071 = vsel %vm30, %v10979, 0.0
  %v11072 = vadd.f32 %v11070, %v11071
  %v11073 = vsel %vm30, %v10980, 0.0
  %v11074 = vadd.f32 %v11072, %v11073
  %v11075 = vsel %vm30, %v10981, 0.0
  %v11076 = vadd.f32 %v11074, %v11075
  %v11077 = vsel %vm30, %v10982, 0.0
  %v11078 = vadd.f32 %v11076, %v11077
  %v11079 = vsel %vm30, %v10983, 0.0
  %v11080 = vadd.f32 %v11078, %v11079
  %v11081 = vsel %vm30, %v10984, 0.0
  %v11082 = vadd.f32 %v11080, %v11081
  %v11083 = vsel %vm30, %v10985, 0.0
  %v11084 = vadd.f32 %v11082, %v11083
  %v11085 = vsel %vm30, %v10986, 0.0
  %v11086 = vadd.f32 %v11084, %v11085
  %v11087 = vsel %vm30, %v10987, 0.0
  %v11088 = vadd.f32 %v11086, %v11087
  %v11089 = vsel %vm30, %v10988, 0.0
  %v11090 = vadd.f32 %v11088, %v11089
  %v11091 = vsel %vm30, %v10989, 0.0
  %v11092 = vadd.f32 %v11090, %v11091
  %v11093 = vsel %vm30, %v10990, 0.0
  %v11094 = vadd.f32 %v11092, %v11093
  %v11095 = vsel %vm30, %v10991, 0.0
  %v11096 = vadd.f32 %v11094, %v11095
  %v11097 = vsel %vm30, %v10992, 0.0
  %v11098 = vadd.f32 %v11096, %v11097
  %v11099 = vsel %vm30, %v10993, 0.0
  %v11100 = vadd.f32 %v11098, %v11099
  %v11101 = vsel %vm30, %v10994, 0.0
  %v11102 = vadd.f32 %v11100, %v11101
  %v11103 = vsel %vm30, %v10995, 0.0
  %v11104 = vadd.f32 %v11102, %v11103
  %v11105 = vsel %vm30, %v10996, 0.0
  %v11106 = vadd.f32 %v11104, %v11105
  %v11107 = vsel %vm30, %v10997, 0.0
  %v11108 = vadd.f32 %v11106, %v11107
  %v11109 = vsel %vm30, %v10998, 0.0
  %v11110 = vadd.f32 %v11108, %v11109
  %v11111 = vsel %vm30, %v10999, 0.0
  %v11112 = vadd.f32 %v11110, %v11111
  %v11113 = vsel %vm30, %v11000, 0.0
  %v11114 = vadd.f32 %v11112, %v11113
  %v11115 = vsel %vm30, %v11001, 0.0
  %v11116 = vadd.f32 %v11114, %v11115
  %v11117 = vsel %vm30, %v11002, 0.0
  %v11118 = vadd.f32 %v11116, %v11117
  %v11119 = vsel %vm30, %v11003, 0.0
  %v11120 = vadd.f32 %v11118, %v11119
  %v11121 = vsel %vm30, %v11004, 0.0
  %v11122 = vadd.f32 %v11120, %v11121
  %v11123 = vsel %vm30, %v11005, 0.0
  %v11124 = vadd.f32 %v11122, %v11123
  %v11125 = vsel %vm30, %v11006, 0.0
  %v11126 = vadd.f32 %v11124, %v11125
  %v11127 = vsel %vm30, %v11007, 0.0
  %v11128 = vadd.f32 %v11126, %v11127
  %v11129 = vsel %vm30, %v11008, 0.0
  %v11130 = vadd.f32 %v11128, %v11129
  %v11131 = vsel %vm30, %v11009, 0.0
  %v11132 = vadd.f32 %v11130, %v11131
  %v11133 = vsel %vm30, %v11010, 0.0
  %v11134 = vadd.f32 %v11132, %v11133
  %v11135 = vsel %vm30, %v11011, 0.0
  %v11136 = vadd.f32 %v11134, %v11135
  %v11137 = vsel %vm30, %v11012, 0.0
  %v11138 = vadd.f32 %v11136, %v11137
  %v11139 = vsel %vm30, %v11013, 0.0
  %v11140 = vadd.f32 %v11138, %v11139
  %v11141 = vrot.slane %v11140, 4
  %v11142 = vadd.f32 %v11140, %v11141
  %v11143 = vrot.slane %v11142, 2
  %v11144 = vadd.f32 %v11142, %v11143
  %v11145 = vrot.slane %v11144, 1
  %v11146 = vadd.f32 %v11144, %v11145
  %v11147 = vmul.f32 %v10949, 0.001953125
  %v11148 = vmul.f32 %v11146, 0.001953125
  %v11149 = vmul.f32 %v11147, %v11147
  %v11150 = vsub.f32 %v11148, %v11149
  %v11151 = vmax.f32 %v11150, 0.0
  %s11152 = scalar_lea.vmem %s6, 3
  %v11153 = vld [vmem:[%s11152] sm:$0x1]
  %v11154 = vadd.f32 %v11151, 1e-05
  %v11155 = vrsqrt.pop %v11154
  %v11156 = vmul.f32 %v11153, %v11155
  %s11157 = scalar_lea.vmem %s7, 3
  %v11158 = vld [vmem:[%s11157] sm:$0x1]
  %v11159 = vmul.f32 %v11147, %v11156
  %v11160 = vsub.f32 %v11158, %v11159
  %v11162 = vlaneseq
  %v11163 = vshrl.u32 %v11162, 7
  %v11164 = vsub.s32 0, %v11163
  %v11165 = vrot.slane %v11156, %v11164
  %v11167 = vmul.f32 %v10563, %v11165
  %v11168 = vmul.f32 %v10566, %v11165
  %v11169 = vmul.f32 %v10571, %v11165
  %v11170 = vmul.f32 %v10574, %v11165
  %v11171 = vmul.f32 %v10579, %v11165
  %v11172 = vmul.f32 %v10582, %v11165
  %v11173 = vmul.f32 %v10587, %v11165
  %v11174 = vmul.f32 %v10590, %v11165
  %v11175 = vmul.f32 %v10595, %v11165
  %v11176 = vmul.f32 %v10598, %v11165
  %v11177 = vmul.f32 %v10603, %v11165
  %v11178 = vmul.f32 %v10606, %v11165
  %v11179 = vmul.f32 %v10611, %v11165
  %v11180 = vmul.f32 %v10614, %v11165
  %v11181 = vmul.f32 %v10619, %v11165
  %v11182 = vmul.f32 %v10622, %v11165
  %v11183 = vmul.f32 %v10627, %v11165
  %v11184 = vmul.f32 %v10630, %v11165
  %v11185 = vmul.f32 %v10635, %v11165
  %v11186 = vmul.f32 %v10638, %v11165
  %v11187 = vmul.f32 %v10643, %v11165
  %v11188 = vmul.f32 %v10646, %v11165
  %v11189 = vmul.f32 %v10651, %v11165
  %v11190 = vmul.f32 %v10654, %v11165
  %v11191 = vmul.f32 %v10659, %v11165
  %v11192 = vmul.f32 %v10662, %v11165
  %v11193 = vmul.f32 %v10667, %v11165
  %v11194 = vmul.f32 %v10670, %v11165
  %v11195 = vmul.f32 %v10675, %v11165
  %v11196 = vmul.f32 %v10678, %v11165
  %v11197 = vmul.f32 %v10683, %v11165
  %v11198 = vmul.f32 %v10686, %v11165
  %v11199 = vmul.f32 %v10691, %v11165
  %v11200 = vmul.f32 %v10694, %v11165
  %v11201 = vmul.f32 %v10699, %v11165
  %v11202 = vmul.f32 %v10702, %v11165
  %v11203 = vmul.f32 %v10707, %v11165
  %v11204 = vmul.f32 %v10710, %v11165
  %v11205 = vmul.f32 %v10715, %v11165
  %v11206 = vmul.f32 %v10718, %v11165
  %v11207 = vmul.f32 %v10723, %v11165
  %v11208 = vmul.f32 %v10726, %v11165
  %v11209 = vmul.f32 %v10731, %v11165
  %v11210 = vmul.f32 %v10734, %v11165
  %v11211 = vmul.f32 %v10739, %v11165
  %v11212 = vmul.f32 %v10742, %v11165
  %v11213 = vmul.f32 %v10747, %v11165
  %v11214 = vmul.f32 %v10750, %v11165
  %v11215 = vmul.f32 %v10755, %v11165
  %v11216 = vmul.f32 %v10758, %v11165
  %v11217 = vmul.f32 %v10763, %v11165
  %v11218 = vmul.f32 %v10766, %v11165
  %v11219 = vmul.f32 %v10771, %v11165
  %v11220 = vmul.f32 %v10774, %v11165
  %v11221 = vmul.f32 %v10779, %v11165
  %v11222 = vmul.f32 %v10782, %v11165
  %v11223 = vmul.f32 %v10787, %v11165
  %v11224 = vmul.f32 %v10790, %v11165
  %v11225 = vmul.f32 %v10795, %v11165
  %v11226 = vmul.f32 %v10798, %v11165
  %v11227 = vmul.f32 %v10803, %v11165
  %v11228 = vmul.f32 %v10806, %v11165
  %v11229 = vmul.f32 %v10811, %v11165
  %v11230 = vmul.f32 %v10814, %v11165
  %v11232 = vlaneseq
  %v11233 = vshrl.u32 %v11232, 7
  %v11234 = vsub.s32 0, %v11233
  %v11235 = vrot.slane %v11160, %v11234
  %v11237 = vadd.f32 %v11167, %v11235
  %v11238 = vadd.f32 %v11168, %v11235
  %v11239 = vadd.f32 %v11169, %v11235
  %v11240 = vadd.f32 %v11170, %v11235
  %v11241 = vadd.f32 %v11171, %v11235
  %v11242 = vadd.f32 %v11172, %v11235
  %v11243 = vadd.f32 %v11173, %v11235
  %v11244 = vadd.f32 %v11174, %v11235
  %v11245 = vadd.f32 %v11175, %v11235
  %v11246 = vadd.f32 %v11176, %v11235
  %v11247 = vadd.f32 %v11177, %v11235
  %v11248 = vadd.f32 %v11178, %v11235
  %v11249 = vadd.f32 %v11179, %v11235
  %v11250 = vadd.f32 %v11180, %v11235
  %v11251 = vadd.f32 %v11181, %v11235
  %v11252 = vadd.f32 %v11182, %v11235
  %v11253 = vadd.f32 %v11183, %v11235
  %v11254 = vadd.f32 %v11184, %v11235
  %v11255 = vadd.f32 %v11185, %v11235
  %v11256 = vadd.f32 %v11186, %v11235
  %v11257 = vadd.f32 %v11187, %v11235
  %v11258 = vadd.f32 %v11188, %v11235
  %v11259 = vadd.f32 %v11189, %v11235
  %v11260 = vadd.f32 %v11190, %v11235
  %v11261 = vadd.f32 %v11191, %v11235
  %v11262 = vadd.f32 %v11192, %v11235
  %v11263 = vadd.f32 %v11193, %v11235
  %v11264 = vadd.f32 %v11194, %v11235
  %v11265 = vadd.f32 %v11195, %v11235
  %v11266 = vadd.f32 %v11196, %v11235
  %v11267 = vadd.f32 %v11197, %v11235
  %v11268 = vadd.f32 %v11198, %v11235
  %v11269 = vadd.f32 %v11199, %v11235
  %v11270 = vadd.f32 %v11200, %v11235
  %v11271 = vadd.f32 %v11201, %v11235
  %v11272 = vadd.f32 %v11202, %v11235
  %v11273 = vadd.f32 %v11203, %v11235
  %v11274 = vadd.f32 %v11204, %v11235
  %v11275 = vadd.f32 %v11205, %v11235
  %v11276 = vadd.f32 %v11206, %v11235
  %v11277 = vadd.f32 %v11207, %v11235
  %v11278 = vadd.f32 %v11208, %v11235
  %v11279 = vadd.f32 %v11209, %v11235
  %v11280 = vadd.f32 %v11210, %v11235
  %v11281 = vadd.f32 %v11211, %v11235
  %v11282 = vadd.f32 %v11212, %v11235
  %v11283 = vadd.f32 %v11213, %v11235
  %v11284 = vadd.f32 %v11214, %v11235
  %v11285 = vadd.f32 %v11215, %v11235
  %v11286 = vadd.f32 %v11216, %v11235
  %v11287 = vadd.f32 %v11217, %v11235
  %v11288 = vadd.f32 %v11218, %v11235
  %v11289 = vadd.f32 %v11219, %v11235
  %v11290 = vadd.f32 %v11220, %v11235
  %v11291 = vadd.f32 %v11221, %v11235
  %v11292 = vadd.f32 %v11222, %v11235
  %v11293 = vadd.f32 %v11223, %v11235
  %v11294 = vadd.f32 %v11224, %v11235
  %v11295 = vadd.f32 %v11225, %v11235
  %v11296 = vadd.f32 %v11226, %v11235
  %v11297 = vadd.f32 %v11227, %v11235
  %v11298 = vadd.f32 %v11228, %v11235
  %v11299 = vadd.f32 %v11229, %v11235
  %v11300 = vadd.f32 %v11230, %v11235
  %11301 = vst.msk [vmem:[%s8] sm:$0xff] %vm30, %v11237
  %11302 = vst.msk [vmem:[%s8 + $0x8] sm:$0xff] %vm30, %v11238
  %11303 = vst.msk [vmem:[%s8 + $0x10] sm:$0xff] %vm30, %v11239
  %11304 = vst.msk [vmem:[%s8 + $0x18] sm:$0xff] %vm30, %v11240
  %11305 = vst.msk [vmem:[%s8 + $0x20] sm:$0xff] %vm30, %v11241
  %11306 = vst.msk [vmem:[%s8 + $0x28] sm:$0xff] %vm30, %v11242
  %11307 = vst.msk [vmem:[%s8 + $0x30] sm:$0xff] %vm30, %v11243
  %11308 = vst.msk [vmem:[%s8 + $0x38] sm:$0xff] %vm30, %v11244
  %11309 = vst.msk [vmem:[%s8 + $0x40] sm:$0xff] %vm30, %v11245
  %11310 = vst.msk [vmem:[%s8 + $0x48] sm:$0xff] %vm30, %v11246
  %11311 = vst.msk [vmem:[%s8 + $0x50] sm:$0xff] %vm30, %v11247
  %11312 = vst.msk [vmem:[%s8 + $0x58] sm:$0xff] %vm30, %v11248
  %11313 = vst.msk [vmem:[%s8 + $0x60] sm:$0xff] %vm30, %v11249
  %11314 = vst.msk [vmem:[%s8 + $0x68] sm:$0xff] %vm30, %v11250
  %11315 = vst.msk [vmem:[%s8 + $0x70] sm:$0xff] %vm30, %v11251
  %11316 = vst.msk [vmem:[%s8 + $0x78] sm:$0xff] %vm30, %v11252
  %11317 = vst.msk [vmem:[%s8 + $0x80] sm:$0xff] %vm30, %v11253
  %11318 = vst.msk [vmem:[%s8 + $0x88] sm:$0xff] %vm30, %v11254
  %11319 = vst.msk [vmem:[%s8 + $0x90] sm:$0xff] %vm30, %v11255
  %11320 = vst.msk [vmem:[%s8 + $0x98] sm:$0xff] %vm30, %v11256
  %11321 = vst.msk [vmem:[%s8 + $0xa0] sm:$0xff] %vm30, %v11257
  %11322 = vst.msk [vmem:[%s8 + $0xa8] sm:$0xff] %vm30, %v11258
  %11323 = vst.msk [vmem:[%s8 + $0xb0] sm:$0xff] %vm30, %v11259
  %11324 = vst.msk [vmem:[%s8 + $0xb8] sm:$0xff] %vm30, %v11260
  %11325 = vst.msk [vmem:[%s8 + $0xc0] sm:$0xff] %vm30, %v11261
  %11326 = vst.msk [vmem:[%s8 + $0xc8] sm:$0xff] %vm30, %v11262
  %11327 = vst.msk [vmem:[%s8 + $0xd0] sm:$0xff] %vm30, %v11263
  %11328 = vst.msk [vmem:[%s8 + $0xd8] sm:$0xff] %vm30, %v11264
  %11329 = vst.msk [vmem:[%s8 + $0xe0] sm:$0xff] %vm30, %v11265
  %11330 = vst.msk [vmem:[%s8 + $0xe8] sm:$0xff] %vm30, %v11266
  %11331 = vst.msk [vmem:[%s8 + $0xf0] sm:$0xff] %vm30, %v11267
  %11332 = vst.msk [vmem:[%s8 + $0xf8] sm:$0xff] %vm30, %v11268
  %11333 = vst.msk [vmem:[%s8 + $0x100] sm:$0xff] %vm30, %v11269
  %11334 = vst.msk [vmem:[%s8 + $0x108] sm:$0xff] %vm30, %v11270
  %11335 = vst.msk [vmem:[%s8 + $0x110] sm:$0xff] %vm30, %v11271
  %11336 = vst.msk [vmem:[%s8 + $0x118] sm:$0xff] %vm30, %v11272
  %11337 = vst.msk [vmem:[%s8 + $0x120] sm:$0xff] %vm30, %v11273
  %11338 = vst.msk [vmem:[%s8 + $0x128] sm:$0xff] %vm30, %v11274
  %11339 = vst.msk [vmem:[%s8 + $0x130] sm:$0xff] %vm30, %v11275
  %11340 = vst.msk [vmem:[%s8 + $0x138] sm:$0xff] %vm30, %v11276
  %11341 = vst.msk [vmem:[%s8 + $0x140] sm:$0xff] %vm30, %v11277
  %11342 = vst.msk [vmem:[%s8 + $0x148] sm:$0xff] %vm30, %v11278
  %11343 = vst.msk [vmem:[%s8 + $0x150] sm:$0xff] %vm30, %v11279
  %11344 = vst.msk [vmem:[%s8 + $0x158] sm:$0xff] %vm30, %v11280
  %11345 = vst.msk [vmem:[%s8 + $0x160] sm:$0xff] %vm30, %v11281
  %11346 = vst.msk [vmem:[%s8 + $0x168] sm:$0xff] %vm30, %v11282
  %11347 = vst.msk [vmem:[%s8 + $0x170] sm:$0xff] %vm30, %v11283
  %11348 = vst.msk [vmem:[%s8 + $0x178] sm:$0xff] %vm30, %v11284
  %11349 = vst.msk [vmem:[%s8 + $0x180] sm:$0xff] %vm30, %v11285
  %11350 = vst.msk [vmem:[%s8 + $0x188] sm:$0xff] %vm30, %v11286
  %11351 = vst.msk [vmem:[%s8 + $0x190] sm:$0xff] %vm30, %v11287
  %11352 = vst.msk [vmem:[%s8 + $0x198] sm:$0xff] %vm30, %v11288
  %11353 = vst.msk [vmem:[%s8 + $0x1a0] sm:$0xff] %vm30, %v11289
  %11354 = vst.msk [vmem:[%s8 + $0x1a8] sm:$0xff] %vm30, %v11290
  %11355 = vst.msk [vmem:[%s8 + $0x1b0] sm:$0xff] %vm30, %v11291
  %11356 = vst.msk [vmem:[%s8 + $0x1b8] sm:$0xff] %vm30, %v11292
  %11357 = vst.msk [vmem:[%s8 + $0x1c0] sm:$0xff] %vm30, %v11293
  %11358 = vst.msk [vmem:[%s8 + $0x1c8] sm:$0xff] %vm30, %v11294
  %11359 = vst.msk [vmem:[%s8 + $0x1d0] sm:$0xff] %vm30, %v11295
  %11360 = vst.msk [vmem:[%s8 + $0x1d8] sm:$0xff] %vm30, %v11296
  %11361 = vst.msk [vmem:[%s8 + $0x1e0] sm:$0xff] %vm30, %v11297
  %11362 = vst.msk [vmem:[%s8 + $0x1e8] sm:$0xff] %vm30, %v11298
  %11363 = vst.msk [vmem:[%s8 + $0x1f0] sm:$0xff] %vm30, %v11299
  %11364 = vst.msk [vmem:[%s8 + $0x1f8] sm:$0xff] %vm30, %v11300
  // Predicated region
  $region34: #{tpu_custom_call.1} parent=0 // pred_check
    _
  $region35: #{tpu_custom_call.1} parent=0 // pred_check_branch
    %11366 = sbr.rel (0) target = $region37
  $region36: #{tpu_custom_call.1} parent=0 // pred_region
    _
  $region37: #{tpu_custom_call.1} parent=0 // pred_fallthru
    _
  // Predicated region
  $region38: #{tpu_custom_call.1} parent=0 // pred_check
    _
  $region39: #{tpu_custom_call.1} parent=0 // pred_check_branch
    %11368 = sbr.rel (0) target = $region41
  $region40: #{tpu_custom_call.1} parent=0 // pred_region
    _
  $region41: #{tpu_custom_call.1} parent=0 // pred_fallthru
    _

</llo_original>
